<compile_context>
chip_gen: v7x
topology: tpu7x:2x2x1
jax: 0.10.0
libtpu: 0.0.40
codegen_flags: <defaults>
</compile_context>

<pallas_src>
import functools

import jax
import jax.numpy as jnp
import numpy as np
from jax.experimental import pallas as pl
from jax.experimental.pallas import tpu as pltpu

UNROLL = 4  # in-kernel time-step unroll within each chunk (perf review: 2-4)


def _round_up(x, m):
    return (x + m - 1) // m * m


# ----------------------------- Pallas kernel --------------------------------
def _bilstm_chunk_kernel(gf_ref, gb_ref, whhf_ref, whhb_ref,
                         of_ref, ob_ref,
                         hf_sc, cf_sc, hb_sc, cb_sc,
                         *, t_valid):
    """Fused bidirectional LSTM recurrence over one (batch block, time chunk).

    Grid: (batch blocks ['parallel'], time chunks ['arbitrary'/sequential]).

    gf_ref : (TC, Bb, 4Hp) bf16  precomputed fwd gates (x@Wih + b), chunk c
    gb_ref : (TC, Bb, 4Hp) bf16  precomputed bwd gates, chunk nc-1-c (rev map)
    whh*   : (Hp, 4Hp)     bf16  recurrent weights (per-gate lane padded)
    of_ref : (TC, Bb, Hp)  bf16  fwd outputs, chunk c
    ob_ref : (TC, Bb, Hp)  bf16  bwd outputs, chunk nc-1-c
    h*_sc  : (Bb, Hp) bf16 hidden carry;  c*_sc : (Bb, Hp) f32 cell carry
    t_valid: static real length T+1; padded steps (global t >= t_valid) get
             zero gates in the *backward* direction so its state is exactly 0
             when it reaches the last real timestep.
    """
    c = pl.program_id(1)
    nc = pl.num_programs(1)

    @pl.when(c == 0)
    def _():
        hf_sc[...] = jnp.zeros_like(hf_sc)
        cf_sc[...] = jnp.zeros_like(cf_sc)
        hb_sc[...] = jnp.zeros_like(hb_sc)
        cb_sc[...] = jnp.zeros_like(cb_sc)

    TC = gf_ref.shape[0]
    Hp = whhf_ref.shape[0]
    bwd_chunk_t0 = (nc - 1 - c) * TC      # global time of local step 0 (bwd chunk)

    def cell(pre_gates_f32, h_bf16, c_f32, whh_ref):
        # Only the small recurrent matmul stays in the time loop: bf16 MXU
        # inputs, f32 accumulation; gate math in f32.
        gates = pre_gates_f32 + jnp.dot(h_bf16, whh_ref[...],
                                        preferred_element_type=jnp.float32)
        # PyTorch LSTM gate ordering: i, f, g, o (each gate a 128-lane block).
        i = jax.nn.sigmoid(gates[:, 0 * Hp:1 * Hp])
        f = jax.nn.sigmoid(gates[:, 1 * Hp:2 * Hp])
        g = jnp.tanh(gates[:, 2 * Hp:3 * Hp])
        o = jax.nn.sigmoid(gates[:, 3 * Hp:4 * Hp])
        c_new = f * c_f32 + i * g
        h_new = o * jnp.tanh(c_new)
        return h_new, c_new

    def step(i):
        # Forward direction: local step i of chunk c.
        pre_f = gf_ref[i].astype(jnp.float32)
        h_f, c_f = cell(pre_f, hf_sc[...], cf_sc[...], whhf_ref)
        hf_sc[...] = h_f.astype(hf_sc.dtype)
        cf_sc[...] = c_f
        of_ref[i] = h_f.astype(of_ref.dtype)

        # Backward direction: local step TC-1-i of chunk nc-1-c (reverse time).
        j = TC - 1 - i
        # Zero the pre-gates at padded global timesteps (t >= t_valid): with
        # zero gates and zero carried state, h/c stay exactly 0 (bf16-exact).
        scale = ((bwd_chunk_t0 + j) < t_valid).astype(jnp.float32)
        pre_b = gb_ref[j].astype(jnp.float32) * scale
        h_b, c_b = cell(pre_b, hb_sc[...], cb_sc[...], whhb_ref)
        hb_sc[...] = h_b.astype(hb_sc.dtype)
        cb_sc[...] = c_b
        ob_ref[j] = h_b.astype(ob_ref.dtype)

    # Partially unrolled time loop: full unroll of long chunks causes vreg
    # spills; UNROLL-wide bodies keep LLO scheduling visibility. TC is always a
    # multiple of UNROLL (enforced by the wrapper).
    @pl.loop(0, TC // UNROLL)
    def _(m):
        base = m * UNROLL
        for u in range(UNROLL):
            step(base + u)


# ------------------------- VMEM budgeting helpers ----------------------------
def _vmem_capacity_bytes():
    try:
        return int(pltpu.get_tpu_info().vmem_capacity_bytes)
    except Exception:
        return 64 * 1024 * 1024            # conservative: v7x per-core VMEM


def _vmem_need_bytes(tc, bb, hp):
    g = 4 * hp
    gate_in = 2 * 2 * tc * bb * g * 2      # 2 dirs, double-buffered, bf16
    outs = 2 * 2 * tc * bb * hp * 2        # 2 dirs, double-buffered, bf16
    weights = 2 * 1 * hp * g * 2           # single-buffered (pl.Buffered(1))
    scratch = 2 * bb * hp * (2 + 4)        # h bf16 + c f32 per direction
    return gate_in + outs + weights + scratch


def _choose_b_block(bp):
    # Split big batches into blocks so the leading 'parallel' grid axis can be
    # sharded across TensorCores (v7x megacore); small batches stay monolithic.
    for cand in (256, 128):
        if bp > cand and bp % cand == 0:
            return cand
    return bp


def _choose_chunk_and_limit(t_chunk, t1, bb, hp):
    cap = _vmem_capacity_bytes()
    budget = int(cap * 0.85) - (6 << 20)   # headroom for compiler scratch
    if t_chunk is None:
        tc = 64
    else:
        tc = _round_up(max(int(t_chunk), 1), UNROLL)
    tc = min(tc, _round_up(t1, UNROLL))
    tc = max(tc, UNROLL)
    while tc > UNROLL and _vmem_need_bytes(tc, bb, hp) > budget:
        tc -= UNROLL
    need = _vmem_need_bytes(tc, bb, hp)
    limit = max(need + (8 << 20), 32 << 20)
    limit = min(limit, cap - (2 << 20))
    return tc, int(limit)


# ----------------------------- recurrence call --------------------------------
def _bilstm_recurrence(gates_f, gates_b, whh_f, whh_b, *,
                       t_chunk, b_block, t_valid, vmem_limit_bytes):
    """gates_*: (T1p, Bp, 4Hp) bf16 precomputed input gates -> fwd/bwd outputs."""
    T1p, Bp, G = gates_f.shape
    Hp = whh_f.shape[0]
    nc = T1p // t_chunk
    nb = Bp // b_block

    kernel = functools.partial(_bilstm_chunk_kernel, t_valid=t_valid)

    grid_spec = pltpu.PrefetchScalarGridSpec(
        num_scalar_prefetch=0,
        grid=(nb, nc),
        in_specs=[
            pl.BlockSpec((t_chunk, b_block, G), lambda b, c: (c, b, 0)),
            pl.BlockSpec((t_chunk, b_block, G), lambda b, c: (nc - 1 - c, b, 0)),
            # Constant-index weight blocks: single-buffered to free VMEM.
            pl.BlockSpec((Hp, G), lambda b, c: (0, 0),
                         pipeline_mode=pl.Buffered(1)),
            pl.BlockSpec((Hp, G), lambda b, c: (0, 0),
                         pipeline_mode=pl.Buffered(1)),
        ],
        out_specs=[
            pl.BlockSpec((t_chunk, b_block, Hp), lambda b, c: (c, b, 0)),
            pl.BlockSpec((t_chunk, b_block, Hp), lambda b, c: (nc - 1 - c, b, 0)),
        ],
        scratch_shapes=[
            pltpu.VMEM((b_block, Hp), jnp.bfloat16),   # h fwd
            pltpu.VMEM((b_block, Hp), jnp.float32),    # c fwd
            pltpu.VMEM((b_block, Hp), jnp.bfloat16),   # h bwd
            pltpu.VMEM((b_block, Hp), jnp.float32),    # c bwd
        ],
    )
    return pl.pallas_call(
        kernel,
        out_shape=(jax.ShapeDtypeStruct((T1p, Bp, Hp), jnp.bfloat16),
                   jax.ShapeDtypeStruct((T1p, Bp, Hp), jnp.bfloat16)),
        grid_spec=grid_spec,
        compiler_params=pltpu.CompilerParams(
            dimension_semantics=("parallel", "arbitrary"),
            vmem_limit_bytes=vmem_limit_bytes),
    )(gates_f, gates_b, whh_f, whh_b)


# ---------------------------- padding helpers --------------------------------
def _pad_gate_cols(w, H, Hp):
    """(..., 4H) -> (..., 4*Hp): per-gate zero padding so each gate is a
    128-lane aligned block. Gate k's real values land in [k*Hp, k*Hp+H)."""
    lead = w.shape[:-1]
    w4 = w.reshape(*lead, 4, H)
    w4 = jnp.pad(w4, [(0, 0)] * len(lead) + [(0, 0), (0, Hp - H)])
    return w4.reshape(*lead, 4 * Hp)


def _pad_rows(w, Hp):
    """(H, G) -> (Hp, G) with zero rows (padded h lanes contribute nothing)."""
    return jnp.pad(w, ((0, Hp - w.shape[0]), (0, 0)))


# --------------------------- module forward (glue) ---------------------------
def word_lstm_encoder_forward(params, batch, *, t_chunk=None):
    """batch: (B, T, D) float32 -> h: (B, T+1, 2H) float32 (eval mode)."""
    root = params["root"]
    B, T, D = batch.shape
    H = params["layers"][0]["fwd"]["whh_t"].shape[0]
    Hp = _round_up(H, 128)          # lane-align each gate block
    G = 4 * Hp
    Bp = _round_up(B, 16)           # bf16 sublane tile is 16 rows
    T1 = T + 1

    Bb = _choose_b_block(Bp)
    TC, vmem_limit = _choose_chunk_and_limit(t_chunk, T1, Bb, Hp)
    nc = pl.cdiv(T1, TC)
    T1p = nc * TC

    # Prepend learned root embedding, go time-major.  Pad time/batch *before*
    # the layer-0 GEMM (cheap: D-wide) so the gate slabs are produced already
    # padded — no full-slab jnp.pad / jnp.where passes in HBM.
    root_col = jnp.broadcast_to(root[None, None, :], (B, 1, D))
    x = jnp.concatenate([root_col, batch], axis=1)     # (B, T1, D)
    x = jnp.transpose(x, (1, 0, 2))                    # (T1, B, D)
    x = jnp.pad(x, ((0, T1p - T1), (0, Bp - B), (0, 0))).astype(jnp.bfloat16)

    out_f = out_b = None
    for li, layer in enumerate(params["layers"]):
        gates = {}
        for d in ("fwd", "bwd"):
            wih_t, b = layer[d]["wih_t"], layer[d]["b"]
            b_p = _pad_gate_cols(b, H, Hp)                           # (G,) f32
            if li == 0:
                # One big (T1p*Bp, D) x (D, G) bf16 MXU GEMM, f32 accumulation.
                wih_p = _pad_gate_cols(wih_t, H, Hp).astype(jnp.bfloat16)
                g = jnp.dot(x.reshape(T1p * Bp, D), wih_p,
                            preferred_element_type=jnp.float32) + b_p
            else:
                # Consume fwd/bwd halves with split weights -> no concat of the
                # previous layer's (T1p, Bp, 2H) activations in HBM.
                top = _pad_rows(_pad_gate_cols(wih_t[:H], H, Hp), Hp).astype(jnp.bfloat16)
                bot = _pad_rows(_pad_gate_cols(wih_t[H:], H, Hp), Hp).astype(jnp.bfloat16)
                g = (jnp.dot(out_f.reshape(T1p * Bp, Hp), top,
                             preferred_element_type=jnp.float32)
                     + jnp.dot(out_b.reshape(T1p * Bp, Hp), bot,
                               preferred_element_type=jnp.float32) + b_p)
            gates[d] = g.astype(jnp.bfloat16).reshape(T1p, Bp, G)

        whh_f = _pad_rows(_pad_gate_cols(layer["fwd"]["whh_t"], H, Hp),
                          Hp).astype(jnp.bfloat16)
        whh_b = _pad_rows(_pad_gate_cols(layer["bwd"]["whh_t"], H, Hp),
                          Hp).astype(jnp.bfloat16)

        out_f, out_b = _bilstm_recurrence(
            gates["fwd"], gates["bwd"], whh_f, whh_b,
            t_chunk=TC, b_block=Bb, t_valid=T1, vmem_limit_bytes=vmem_limit)
        # TODO(synk): inter-layer dropout (p=0.33) is train-only; omitted (eval).

    h = jnp.concatenate([out_f[:T1, :B, :H], out_b[:T1, :B, :H]], axis=-1)
    return jnp.transpose(h, (1, 0, 2)).astype(jnp.float32)   # (B, T1, 2H)


# ------------------------------ param init -----------------------------------
def init_params(key, input_dim, hidden_dim, num_layers):
    k_root, key = jax.random.split(key)
    params = {
        # nn.init.uniform_(self.root) -> U[0, 1)
        "root": jax.random.uniform(k_root, (input_dim,), jnp.float32),
        "layers": [],
    }
    bound = 1.0 / np.sqrt(hidden_dim)   # PyTorch LSTM default init range
    for l in range(num_layers):
        din = input_dim if l == 0 else 2 * hidden_dim
        layer = {}
        for d in ("fwd", "bwd"):
            key, k1, k2, k3, k4 = jax.random.split(key, 5)
            w_ih = jax.random.uniform(k1, (4 * hidden_dim, din), jnp.float32,
                                      -bound, bound)
            w_hh = jax.random.uniform(k2, (4 * hidden_dim, hidden_dim),
                                      jnp.float32, -bound, bound)
            b_ih = jax.random.uniform(k3, (4 * hidden_dim,), jnp.float32,
                                      -bound, bound)
            b_hh = jax.random.uniform(k4, (4 * hidden_dim,), jnp.float32,
                                      -bound, bound)
            layer[d] = {
                "wih_t": jnp.transpose(w_ih),        # (din, 4H)
                "whh_t": jnp.transpose(w_hh),        # (H, 4H)
                "b": b_ih + b_hh,                    # (4H,)
            }
        params["layers"].append(layer)
    return params


# ---------------------------- pure-JAX reference ------------------------------
def _ref_direction(x_tbd, wih_t, whh_t, b):
    T, B, _ = x_tbd.shape
    H = whh_t.shape[0]

    def step(carry, x_t):
        h, c = carry
        gates = x_t @ wih_t + h @ whh_t + b
        i = jax.nn.sigmoid(gates[:, 0 * H:1 * H])
        f = jax.nn.sigmoid(gates[:, 1 * H:2 * H])
        g = jnp.tanh(gates[:, 2 * H:3 * H])
        o = jax.nn.sigmoid(gates[:, 3 * H:4 * H])
        c = f * c + i * g
        h = o * jnp.tanh(c)
        return (h, c), h

    init = (jnp.zeros((B, H), jnp.float32), jnp.zeros((B, H), jnp.float32))
    _, hs = jax.lax.scan(step, init, x_tbd)
    return hs


def ref_forward(params, batch):
    root = params["root"]
    B, T, D = batch.shape
    x = jnp.concatenate(
        [jnp.broadcast_to(root[None, None, :], (B, 1, D)), batch], axis=1)
    x = jnp.transpose(x, (1, 0, 2))
    for layer in params["layers"]:
        fwd = _ref_direction(x, layer["fwd"]["wih_t"],
                             layer["fwd"]["whh_t"], layer["fwd"]["b"])
        bwd = _ref_direction(x[::-1], layer["bwd"]["wih_t"],
                             layer["bwd"]["whh_t"], layer["bwd"]["b"])[::-1]
        x = jnp.concatenate([fwd, bwd], axis=-1)
    return jnp.transpose(x, (1, 0, 2))


# ----------------------------------- main -------------------------------------
if __name__ == "__main__":
    INPUT_DIM = 16
    HIDDEN_DIM = 32      # per direction (module default is 400; small for demo)
    NUM_LAYERS = 3
    B, T = 2, 8

    key = jax.random.PRNGKey(0)
    k_params, k_data = jax.random.split(key)
    params = init_params(k_params, INPUT_DIM, HIDDEN_DIM, NUM_LAYERS)
    batch = jax.random.normal(k_data, (B, T, INPUT_DIM), jnp.float32)

    # t_chunk=4 deliberately exercises the multi-chunk + in-kernel time-mask
    # path at demo sizes (T+1 = 9 -> 3 chunks of 4); production sizes use the
    # per-chip auto chunk (t_chunk=None).
    forward = jax.jit(functools.partial(word_lstm_encoder_forward, t_chunk=4))
    h = jax.block_until_ready(forward(params, batch))
    assert h.shape == (B, T + 1, 2 * HIDDEN_DIM), h.shape

    h_ref = jax.block_until_ready(ref_forward(params, batch))
    # bf16 storage/MXU with f32 accumulation -> relaxed tolerance vs f32 ref.
    np.testing.assert_allclose(np.asarray(h), np.asarray(h_ref),
                               rtol=2e-2, atol=2e-2)

    print("KERNEL_OK")
</pallas_src>

<mosaic_0001>
module attributes {stable_mosaic.version = 11 : i64} {
  func.func @_bilstm_chunk_kernel(%arg0: i32, %arg1: i32, %arg2: memref<4x16x512xbf16, #tpu.memory_space<vmem>>, %arg3: memref<4x16x512xbf16, #tpu.memory_space<vmem>>, %arg4: memref<128x512xbf16, #tpu.memory_space<vmem>>, %arg5: memref<128x512xbf16, #tpu.memory_space<vmem>>, %arg6: memref<4x16x128xbf16, #tpu.memory_space<vmem>>, %arg7: memref<4x16x128xbf16, #tpu.memory_space<vmem>>, %arg8: memref<16x128xbf16, #tpu.memory_space<vmem>>, %arg9: memref<16x128xf32, #tpu.memory_space<vmem>>, %arg10: memref<16x128xbf16, #tpu.memory_space<vmem>>, %arg11: memref<16x128xf32, #tpu.memory_space<vmem>>) attributes {dimension_semantics = [#tpu.dimension_semantics<parallel>, #tpu.dimension_semantics<arbitrary>], iteration_bounds = array<i64: 1, 3>, scalar_prefetch = 0 : i64, scratch_operands = 4 : i64, tpu.core_type = #tpu.core_type<tc>, window_params = [{transform_indices = @transform_0, window_bounds = array<i64: 4, 16, 512>}, {transform_indices = @transform_1, window_bounds = array<i64: 4, 16, 512>}, {pipeline_mode = #tpu.pipeline_mode<synchronous>, transform_indices = @transform_2, window_bounds = array<i64: 128, 512>}, {pipeline_mode = #tpu.pipeline_mode<synchronous>, transform_indices = @transform_3, window_bounds = array<i64: 128, 512>}, {transform_indices = @transform_4, window_bounds = array<i64: 4, 16, 128>}, {transform_indices = @transform_5, window_bounds = array<i64: 4, 16, 128>}]} {
    %c0_i32 = arith.constant 0 : i32
    %0 = arith.cmpi eq, %arg1, %c0_i32 : i32
    %1 = arith.extui %0 : i1 to i32
    %c0_i32_0 = arith.constant 0 : i32
    %2 = arith.cmpi ne, %1, %c0_i32_0 : i32
    scf.if %2 {
      %cst_157 = arith.constant 0.000000e+00 : bf16
      %376 = vector.broadcast %cst_157 : bf16 to vector<16x128xbf16>
      %c0_158 = arith.constant 0 : index
      %c0_159 = arith.constant 0 : index
      %377 = vector.load %arg8[%c0_158, %c0_159] : memref<16x128xbf16, #tpu.memory_space<vmem>>, vector<16x128xbf16>
      tpu.vector_store %arg8[%c0_158, %c0_159], %376 {strides = array<i32>} : memref<16x128xbf16, #tpu.memory_space<vmem>>, vector<16x128xbf16>,
      %cst_160 = arith.constant 0.000000e+00 : f32
      %378 = vector.broadcast %cst_160 : f32 to vector<16x128xf32>
      %c0_161 = arith.constant 0 : index
      %c0_162 = arith.constant 0 : index
      %379 = vector.load %arg9[%c0_161, %c0_162] : memref<16x128xf32, #tpu.memory_space<vmem>>, vector<16x128xf32>
      tpu.vector_store %arg9[%c0_161, %c0_162], %378 {strides = array<i32>} : memref<16x128xf32, #tpu.memory_space<vmem>>, vector<16x128xf32>,
      %cst_163 = arith.constant 0.000000e+00 : bf16
      %380 = vector.broadcast %cst_163 : bf16 to vector<16x128xbf16>
      %c0_164 = arith.constant 0 : index
      %c0_165 = arith.constant 0 : index
      %381 = vector.load %arg10[%c0_164, %c0_165] : memref<16x128xbf16, #tpu.memory_space<vmem>>, vector<16x128xbf16>
      tpu.vector_store %arg10[%c0_164, %c0_165], %380 {strides = array<i32>} : memref<16x128xbf16, #tpu.memory_space<vmem>>, vector<16x128xbf16>,
      %cst_166 = arith.constant 0.000000e+00 : f32
      %382 = vector.broadcast %cst_166 : f32 to vector<16x128xf32>
      %c0_167 = arith.constant 0 : index
      %c0_168 = arith.constant 0 : index
      %383 = vector.load %arg11[%c0_167, %c0_168] : memref<16x128xf32, #tpu.memory_space<vmem>>, vector<16x128xf32>
      tpu.vector_store %arg11[%c0_167, %c0_168], %382 {strides = array<i32>} : memref<16x128xf32, #tpu.memory_space<vmem>>, vector<16x128xf32>,
    } else {
    }
    %c2_i32 = arith.constant 2 : i32
    %3 = arith.subi %c2_i32, %arg1 : i32
    %c4_i32 = arith.constant 4 : i32
    %4 = arith.muli %3, %c4_i32 : i32
    %c0_i32_1 = arith.constant 0 : i32
    %c1_i32 = arith.constant 1 : i32
    %5 = arith.muli %c0_i32_1, %c1_i32 : i32
    %c0_i32_2 = arith.constant 0 : i32
    %6 = arith.addi %c0_i32_2, %5 : i32
    %c4_i32_3 = arith.constant 4 : i32
    %7 = arith.muli %6, %c4_i32_3 : i32
    %c0_i32_4 = arith.constant 0 : i32
    %8 = arith.addi %7, %c0_i32_4 : i32
    %9 = arith.index_cast %8 : i32 to index
    %c0 = arith.constant 0 : index
    %c0_5 = arith.constant 0 : index
    %10 = vector.load %arg2[%9, %c0, %c0_5] : memref<4x16x512xbf16, #tpu.memory_space<vmem>>, vector<1x16x512xbf16>
    %11 = vector.shape_cast %10 : vector<1x16x512xbf16> to vector<16x512xbf16>
    %12 = arith.extf %11 : vector<16x512xbf16> to vector<16x512xf32>
    %c0_6 = arith.constant 0 : index
    %c0_7 = arith.constant 0 : index
    %13 = vector.load %arg8[%c0_6, %c0_7] : memref<16x128xbf16, #tpu.memory_space<vmem>>, vector<16x128xbf16>
    %c0_8 = arith.constant 0 : index
    %c0_9 = arith.constant 0 : index
    %14 = vector.load %arg9[%c0_8, %c0_9] : memref<16x128xf32, #tpu.memory_space<vmem>>, vector<16x128xf32>
    %c0_10 = arith.constant 0 : index
    %c0_11 = arith.constant 0 : index
    %15 = vector.load %arg4[%c0_10, %c0_11] : memref<128x512xbf16, #tpu.memory_space<vmem>>, vector<128x512xbf16>
    %cst = arith.constant dense<0.000000e+00> : vector<16x512xf32>
    %16 = tpu.matmul %13, %15, %cst {dimension_numbers = #tpu.dot_dimension_numbers<[1], [0], [0], [1], [0, 0, 1, 1], [], []>} : vector<16x128xbf16>, vector<128x512xbf16>, vector<16x512xf32> -> vector<16x512xf32>
    %17 = arith.addf %12, %16 : vector<16x512xf32>
    %18 = vector.extract_strided_slice %17 {offsets = [0, 0], sizes = [16, 128], strides = [1, 1]} : vector<16x512xf32> to vector<16x128xf32>
    %19 = arith.negf %18 : vector<16x128xf32>
    %20 = math.exp %19 : vector<16x128xf32>
    %cst_12 = arith.constant 1.000000e+00 : f32
    %21 = vector.broadcast %cst_12 : f32 to vector<16x128xf32>
    %22 = arith.addf %21, %20 : vector<16x128xf32>
    %23 = arith.divf %21, %22 : vector<16x128xf32>
    %24 = vector.extract_strided_slice %17 {offsets = [0, 128], sizes = [16, 128], strides = [1, 1]} : vector<16x512xf32> to vector<16x128xf32>
    %25 = arith.negf %24 : vector<16x128xf32>
    %26 = math.exp %25 : vector<16x128xf32>
    %cst_13 = arith.constant 1.000000e+00 : f32
    %27 = vector.broadcast %cst_13 : f32 to vector<16x128xf32>
    %28 = arith.addf %27, %26 : vector<16x128xf32>
    %29 = arith.divf %27, %28 : vector<16x128xf32>
    %30 = vector.extract_strided_slice %17 {offsets = [0, 256], sizes = [16, 128], strides = [1, 1]} : vector<16x512xf32> to vector<16x128xf32>
    %31 = math.tanh %30 : vector<16x128xf32>
    %32 = vector.extract_strided_slice %17 {offsets = [0, 384], sizes = [16, 128], strides = [1, 1]} : vector<16x512xf32> to vector<16x128xf32>
    %33 = arith.negf %32 : vector<16x128xf32>
    %34 = math.exp %33 : vector<16x128xf32>
    %cst_14 = arith.constant 1.000000e+00 : f32
    %35 = vector.broadcast %cst_14 : f32 to vector<16x128xf32>
    %36 = arith.addf %35, %34 : vector<16x128xf32>
    %37 = arith.divf %35, %36 : vector<16x128xf32>
    %38 = arith.mulf %29, %14 : vector<16x128xf32>
    %39 = arith.mulf %23, %31 : vector<16x128xf32>
    %40 = arith.addf %38, %39 : vector<16x128xf32>
    %41 = math.tanh %40 : vector<16x128xf32>
    %42 = arith.mulf %37, %41 : vector<16x128xf32>
    %43 = arith.truncf %42 : vector<16x128xf32> to vector<16x128xbf16>
    %c0_15 = arith.constant 0 : index
    %c0_16 = arith.constant 0 : index
    %44 = vector.load %arg8[%c0_15, %c0_16] : memref<16x128xbf16, #tpu.memory_space<vmem>>, vector<16x128xbf16>
    tpu.vector_store %arg8[%c0_15, %c0_16], %43 {strides = array<i32>} : memref<16x128xbf16, #tpu.memory_space<vmem>>, vector<16x128xbf16>,
    %c0_17 = arith.constant 0 : index
    %c0_18 = arith.constant 0 : index
    %45 = vector.load %arg9[%c0_17, %c0_18] : memref<16x128xf32, #tpu.memory_space<vmem>>, vector<16x128xf32>
    tpu.vector_store %arg9[%c0_17, %c0_18], %40 {strides = array<i32>} : memref<16x128xf32, #tpu.memory_space<vmem>>, vector<16x128xf32>,
    %46 = arith.truncf %42 : vector<16x128xf32> to vector<16x128xbf16>
    %47 = arith.index_cast %8 : i32 to index
    %c0_19 = arith.constant 0 : index
    %c0_20 = arith.constant 0 : index
    %48 = vector.load %arg6[%47, %c0_19, %c0_20] : memref<4x16x128xbf16, #tpu.memory_space<vmem>>, vector<1x16x128xbf16>
    %49 = vector.shape_cast %48 : vector<1x16x128xbf16> to vector<16x128xbf16>
    %50 = vector.shape_cast %46 : vector<16x128xbf16> to vector<1x16x128xbf16>
    tpu.vector_store %arg6[%47, %c0_19, %c0_20], %50 {strides = array<i32>} : memref<4x16x128xbf16, #tpu.memory_space<vmem>>, vector<1x16x128xbf16>,
    %c3_i32 = arith.constant 3 : i32
    %51 = arith.subi %c3_i32, %8 : i32
    %52 = arith.addi %4, %51 : i32
    %c9_i32 = arith.constant 9 : i32
    %53 = arith.cmpi slt, %52, %c9_i32 : i32
    %54 = arith.extui %53 : i1 to i32
    %55 = arith.sitofp %54 : i32 to f32
    %56 = arith.index_cast %51 : i32 to index
    %c0_21 = arith.constant 0 : index
    %c0_22 = arith.constant 0 : index
    %57 = vector.load %arg3[%56, %c0_21, %c0_22] : memref<4x16x512xbf16, #tpu.memory_space<vmem>>, vector<1x16x512xbf16>
    %58 = vector.shape_cast %57 : vector<1x16x512xbf16> to vector<16x512xbf16>
    %59 = arith.extf %58 : vector<16x512xbf16> to vector<16x512xf32>
    %60 = vector.broadcast %55 : f32 to vector<16x512xf32>
    %61 = arith.mulf %59, %60 : vector<16x512xf32>
    %c0_23 = arith.constant 0 : index
    %c0_24 = arith.constant 0 : index
    %62 = vector.load %arg10[%c0_23, %c0_24] : memref<16x128xbf16, #tpu.memory_space<vmem>>, vector<16x128xbf16>
    %c0_25 = arith.constant 0 : index
    %c0_26 = arith.constant 0 : index
    %63 = vector.load %arg11[%c0_25, %c0_26] : memref<16x128xf32, #tpu.memory_space<vmem>>, vector<16x128xf32>
    %c0_27 = arith.constant 0 : index
    %c0_28 = arith.constant 0 : index
    %64 = vector.load %arg5[%c0_27, %c0_28] : memref<128x512xbf16, #tpu.memory_space<vmem>>, vector<128x512xbf16>
    %cst_29 = arith.constant dense<0.000000e+00> : vector<16x512xf32>
    %65 = tpu.matmul %62, %64, %cst_29 {dimension_numbers = #tpu.dot_dimension_numbers<[1], [0], [0], [1], [0, 0, 1, 1], [], []>} : vector<16x128xbf16>, vector<128x512xbf16>, vector<16x512xf32> -> vector<16x512xf32>
    %66 = arith.addf %61, %65 : vector<16x512xf32>
    %67 = vector.extract_strided_slice %66 {offsets = [0, 0], sizes = [16, 128], strides = [1, 1]} : vector<16x512xf32> to vector<16x128xf32>
    %68 = arith.negf %67 : vector<16x128xf32>
    %69 = math.exp %68 : vector<16x128xf32>
    %cst_30 = arith.constant 1.000000e+00 : f32
    %70 = vector.broadcast %cst_30 : f32 to vector<16x128xf32>
    %71 = arith.addf %70, %69 : vector<16x128xf32>
    %72 = arith.divf %70, %71 : vector<16x128xf32>
    %73 = vector.extract_strided_slice %66 {offsets = [0, 128], sizes = [16, 128], strides = [1, 1]} : vector<16x512xf32> to vector<16x128xf32>
    %74 = arith.negf %73 : vector<16x128xf32>
    %75 = math.exp %74 : vector<16x128xf32>
    %cst_31 = arith.constant 1.000000e+00 : f32
    %76 = vector.broadcast %cst_31 : f32 to vector<16x128xf32>
    %77 = arith.addf %76, %75 : vector<16x128xf32>
    %78 = arith.divf %76, %77 : vector<16x128xf32>
    %79 = vector.extract_strided_slice %66 {offsets = [0, 256], sizes = [16, 128], strides = [1, 1]} : vector<16x512xf32> to vector<16x128xf32>
    %80 = math.tanh %79 : vector<16x128xf32>
    %81 = vector.extract_strided_slice %66 {offsets = [0, 384], sizes = [16, 128], strides = [1, 1]} : vector<16x512xf32> to vector<16x128xf32>
    %82 = arith.negf %81 : vector<16x128xf32>
    %83 = math.exp %82 : vector<16x128xf32>
    %cst_32 = arith.constant 1.000000e+00 : f32
    %84 = vector.broadcast %cst_32 : f32 to vector<16x128xf32>
    %85 = arith.addf %84, %83 : vector<16x128xf32>
    %86 = arith.divf %84, %85 : vector<16x128xf32>
    %87 = arith.mulf %78, %63 : vector<16x128xf32>
    %88 = arith.mulf %72, %80 : vector<16x128xf32>
    %89 = arith.addf %87, %88 : vector<16x128xf32>
    %90 = math.tanh %89 : vector<16x128xf32>
    %91 = arith.mulf %86, %90 : vector<16x128xf32>
    %92 = arith.truncf %91 : vector<16x128xf32> to vector<16x128xbf16>
    %c0_33 = arith.constant 0 : index
    %c0_34 = arith.constant 0 : index
    %93 = vector.load %arg10[%c0_33, %c0_34] : memref<16x128xbf16, #tpu.memory_space<vmem>>, vector<16x128xbf16>
    tpu.vector_store %arg10[%c0_33, %c0_34], %92 {strides = array<i32>} : memref<16x128xbf16, #tpu.memory_space<vmem>>, vector<16x128xbf16>,
    %c0_35 = arith.constant 0 : index
    %c0_36 = arith.constant 0 : index
    %94 = vector.load %arg11[%c0_35, %c0_36] : memref<16x128xf32, #tpu.memory_space<vmem>>, vector<16x128xf32>
    tpu.vector_store %arg11[%c0_35, %c0_36], %89 {strides = array<i32>} : memref<16x128xf32, #tpu.memory_space<vmem>>, vector<16x128xf32>,
    %95 = arith.truncf %91 : vector<16x128xf32> to vector<16x128xbf16>
    %96 = arith.index_cast %51 : i32 to index
    %c0_37 = arith.constant 0 : index
    %c0_38 = arith.constant 0 : index
    %97 = vector.load %arg7[%96, %c0_37, %c0_38] : memref<4x16x128xbf16, #tpu.memory_space<vmem>>, vector<1x16x128xbf16>
    %98 = vector.shape_cast %97 : vector<1x16x128xbf16> to vector<16x128xbf16>
    %99 = vector.shape_cast %95 : vector<16x128xbf16> to vector<1x16x128xbf16>
    tpu.vector_store %arg7[%96, %c0_37, %c0_38], %99 {strides = array<i32>} : memref<4x16x128xbf16, #tpu.memory_space<vmem>>, vector<1x16x128xbf16>,
    %c1_i32_39 = arith.constant 1 : i32
    %100 = arith.addi %7, %c1_i32_39 : i32
    %101 = arith.index_cast %100 : i32 to index
    %c0_40 = arith.constant 0 : index
    %c0_41 = arith.constant 0 : index
    %102 = vector.load %arg2[%101, %c0_40, %c0_41] : memref<4x16x512xbf16, #tpu.memory_space<vmem>>, vector<1x16x512xbf16>
    %103 = vector.shape_cast %102 : vector<1x16x512xbf16> to vector<16x512xbf16>
    %104 = arith.extf %103 : vector<16x512xbf16> to vector<16x512xf32>
    %c0_42 = arith.constant 0 : index
    %c0_43 = arith.constant 0 : index
    %105 = vector.load %arg8[%c0_42, %c0_43] : memref<16x128xbf16, #tpu.memory_space<vmem>>, vector<16x128xbf16>
    %c0_44 = arith.constant 0 : index
    %c0_45 = arith.constant 0 : index
    %106 = vector.load %arg9[%c0_44, %c0_45] : memref<16x128xf32, #tpu.memory_space<vmem>>, vector<16x128xf32>
    %c0_46 = arith.constant 0 : index
    %c0_47 = arith.constant 0 : index
    %107 = vector.load %arg4[%c0_46, %c0_47] : memref<128x512xbf16, #tpu.memory_space<vmem>>, vector<128x512xbf16>
    %cst_48 = arith.constant dense<0.000000e+00> : vector<16x512xf32>
    %108 = tpu.matmul %105, %107, %cst_48 {dimension_numbers = #tpu.dot_dimension_numbers<[1], [0], [0], [1], [0, 0, 1, 1], [], []>} : vector<16x128xbf16>, vector<128x512xbf16>, vector<16x512xf32> -> vector<16x512xf32>
    %109 = arith.addf %104, %108 : vector<16x512xf32>
    %110 = vector.extract_strided_slice %109 {offsets = [0, 0], sizes = [16, 128], strides = [1, 1]} : vector<16x512xf32> to vector<16x128xf32>
    %111 = arith.negf %110 : vector<16x128xf32>
    %112 = math.exp %111 : vector<16x128xf32>
    %cst_49 = arith.constant 1.000000e+00 : f32
    %113 = vector.broadcast %cst_49 : f32 to vector<16x128xf32>
    %114 = arith.addf %113, %112 : vector<16x128xf32>
    %115 = arith.divf %113, %114 : vector<16x128xf32>
    %116 = vector.extract_strided_slice %109 {offsets = [0, 128], sizes = [16, 128], strides = [1, 1]} : vector<16x512xf32> to vector<16x128xf32>
    %117 = arith.negf %116 : vector<16x128xf32>
    %118 = math.exp %117 : vector<16x128xf32>
    %cst_50 = arith.constant 1.000000e+00 : f32
    %119 = vector.broadcast %cst_50 : f32 to vector<16x128xf32>
    %120 = arith.addf %119, %118 : vector<16x128xf32>
    %121 = arith.divf %119, %120 : vector<16x128xf32>
    %122 = vector.extract_strided_slice %109 {offsets = [0, 256], sizes = [16, 128], strides = [1, 1]} : vector<16x512xf32> to vector<16x128xf32>
    %123 = math.tanh %122 : vector<16x128xf32>
    %124 = vector.extract_strided_slice %109 {offsets = [0, 384], sizes = [16, 128], strides = [1, 1]} : vector<16x512xf32> to vector<16x128xf32>
    %125 = arith.negf %124 : vector<16x128xf32>
    %126 = math.exp %125 : vector<16x128xf32>
    %cst_51 = arith.constant 1.000000e+00 : f32
    %127 = vector.broadcast %cst_51 : f32 to vector<16x128xf32>
    %128 = arith.addf %127, %126 : vector<16x128xf32>
    %129 = arith.divf %127, %128 : vector<16x128xf32>
    %130 = arith.mulf %121, %106 : vector<16x128xf32>
    %131 = arith.mulf %115, %123 : vector<16x128xf32>
    %132 = arith.addf %130, %131 : vector<16x128xf32>
    %133 = math.tanh %132 : vector<16x128xf32>
    %134 = arith.mulf %129, %133 : vector<16x128xf32>
    %135 = arith.truncf %134 : vector<16x128xf32> to vector<16x128xbf16>
    %c0_52 = arith.constant 0 : index
    %c0_53 = arith.constant 0 : index
    %136 = vector.load %arg8[%c0_52, %c0_53] : memref<16x128xbf16, #tpu.memory_space<vmem>>, vector<16x128xbf16>
    tpu.vector_store %arg8[%c0_52, %c0_53], %135 {strides = array<i32>} : memref<16x128xbf16, #tpu.memory_space<vmem>>, vector<16x128xbf16>,
    %c0_54 = arith.constant 0 : index
    %c0_55 = arith.constant 0 : index
    %137 = vector.load %arg9[%c0_54, %c0_55] : memref<16x128xf32, #tpu.memory_space<vmem>>, vector<16x128xf32>
    tpu.vector_store %arg9[%c0_54, %c0_55], %132 {strides = array<i32>} : memref<16x128xf32, #tpu.memory_space<vmem>>, vector<16x128xf32>,
    %138 = arith.truncf %134 : vector<16x128xf32> to vector<16x128xbf16>
    %139 = arith.index_cast %100 : i32 to index
    %c0_56 = arith.constant 0 : index
    %c0_57 = arith.constant 0 : index
    %140 = vector.load %arg6[%139, %c0_56, %c0_57] : memref<4x16x128xbf16, #tpu.memory_space<vmem>>, vector<1x16x128xbf16>
    %141 = vector.shape_cast %140 : vector<1x16x128xbf16> to vector<16x128xbf16>
    %142 = vector.shape_cast %138 : vector<16x128xbf16> to vector<1x16x128xbf16>
    tpu.vector_store %arg6[%139, %c0_56, %c0_57], %142 {strides = array<i32>} : memref<4x16x128xbf16, #tpu.memory_space<vmem>>, vector<1x16x128xbf16>,
    %c3_i32_58 = arith.constant 3 : i32
    %143 = arith.subi %c3_i32_58, %100 : i32
    %144 = arith.addi %4, %143 : i32
    %c9_i32_59 = arith.constant 9 : i32
    %145 = arith.cmpi slt, %144, %c9_i32_59 : i32
    %146 = arith.extui %145 : i1 to i32
    %147 = arith.sitofp %146 : i32 to f32
    %148 = arith.index_cast %143 : i32 to index
    %c0_60 = arith.constant 0 : index
    %c0_61 = arith.constant 0 : index
    %149 = vector.load %arg3[%148, %c0_60, %c0_61] : memref<4x16x512xbf16, #tpu.memory_space<vmem>>, vector<1x16x512xbf16>
    %150 = vector.shape_cast %149 : vector<1x16x512xbf16> to vector<16x512xbf16>
    %151 = arith.extf %150 : vector<16x512xbf16> to vector<16x512xf32>
    %152 = vector.broadcast %147 : f32 to vector<16x512xf32>
    %153 = arith.mulf %151, %152 : vector<16x512xf32>
    %c0_62 = arith.constant 0 : index
    %c0_63 = arith.constant 0 : index
    %154 = vector.load %arg10[%c0_62, %c0_63] : memref<16x128xbf16, #tpu.memory_space<vmem>>, vector<16x128xbf16>
    %c0_64 = arith.constant 0 : index
    %c0_65 = arith.constant 0 : index
    %155 = vector.load %arg11[%c0_64, %c0_65] : memref<16x128xf32, #tpu.memory_space<vmem>>, vector<16x128xf32>
    %c0_66 = arith.constant 0 : index
    %c0_67 = arith.constant 0 : index
    %156 = vector.load %arg5[%c0_66, %c0_67] : memref<128x512xbf16, #tpu.memory_space<vmem>>, vector<128x512xbf16>
    %cst_68 = arith.constant dense<0.000000e+00> : vector<16x512xf32>
    %157 = tpu.matmul %154, %156, %cst_68 {dimension_numbers = #tpu.dot_dimension_numbers<[1], [0], [0], [1], [0, 0, 1, 1], [], []>} : vector<16x128xbf16>, vector<128x512xbf16>, vector<16x512xf32> -> vector<16x512xf32>
    %158 = arith.addf %153, %157 : vector<16x512xf32>
    %159 = vector.extract_strided_slice %158 {offsets = [0, 0], sizes = [16, 128], strides = [1, 1]} : vector<16x512xf32> to vector<16x128xf32>
    %160 = arith.negf %159 : vector<16x128xf32>
    %161 = math.exp %160 : vector<16x128xf32>
    %cst_69 = arith.constant 1.000000e+00 : f32
    %162 = vector.broadcast %cst_69 : f32 to vector<16x128xf32>
    %163 = arith.addf %162, %161 : vector<16x128xf32>
    %164 = arith.divf %162, %163 : vector<16x128xf32>
    %165 = vector.extract_strided_slice %158 {offsets = [0, 128], sizes = [16, 128], strides = [1, 1]} : vector<16x512xf32> to vector<16x128xf32>
    %166 = arith.negf %165 : vector<16x128xf32>
    %167 = math.exp %166 : vector<16x128xf32>
    %cst_70 = arith.constant 1.000000e+00 : f32
    %168 = vector.broadcast %cst_70 : f32 to vector<16x128xf32>
    %169 = arith.addf %168, %167 : vector<16x128xf32>
    %170 = arith.divf %168, %169 : vector<16x128xf32>
    %171 = vector.extract_strided_slice %158 {offsets = [0, 256], sizes = [16, 128], strides = [1, 1]} : vector<16x512xf32> to vector<16x128xf32>
    %172 = math.tanh %171 : vector<16x128xf32>
    %173 = vector.extract_strided_slice %158 {offsets = [0, 384], sizes = [16, 128], strides = [1, 1]} : vector<16x512xf32> to vector<16x128xf32>
    %174 = arith.negf %173 : vector<16x128xf32>
    %175 = math.exp %174 : vector<16x128xf32>
    %cst_71 = arith.constant 1.000000e+00 : f32
    %176 = vector.broadcast %cst_71 : f32 to vector<16x128xf32>
    %177 = arith.addf %176, %175 : vector<16x128xf32>
    %178 = arith.divf %176, %177 : vector<16x128xf32>
    %179 = arith.mulf %170, %155 : vector<16x128xf32>
    %180 = arith.mulf %164, %172 : vector<16x128xf32>
    %181 = arith.addf %179, %180 : vector<16x128xf32>
    %182 = math.tanh %181 : vector<16x128xf32>
    %183 = arith.mulf %178, %182 : vector<16x128xf32>
    %184 = arith.truncf %183 : vector<16x128xf32> to vector<16x128xbf16>
    %c0_72 = arith.constant 0 : index
    %c0_73 = arith.constant 0 : index
    %185 = vector.load %arg10[%c0_72, %c0_73] : memref<16x128xbf16, #tpu.memory_space<vmem>>, vector<16x128xbf16>
    tpu.vector_store %arg10[%c0_72, %c0_73], %184 {strides = array<i32>} : memref<16x128xbf16, #tpu.memory_space<vmem>>, vector<16x128xbf16>,
    %c0_74 = arith.constant 0 : index
    %c0_75 = arith.constant 0 : index
    %186 = vector.load %arg11[%c0_74, %c0_75] : memref<16x128xf32, #tpu.memory_space<vmem>>, vector<16x128xf32>
    tpu.vector_store %arg11[%c0_74, %c0_75], %181 {strides = array<i32>} : memref<16x128xf32, #tpu.memory_space<vmem>>, vector<16x128xf32>,
    %187 = arith.truncf %183 : vector<16x128xf32> to vector<16x128xbf16>
    %188 = arith.index_cast %143 : i32 to index
    %c0_76 = arith.constant 0 : index
    %c0_77 = arith.constant 0 : index
    %189 = vector.load %arg7[%188, %c0_76, %c0_77] : memref<4x16x128xbf16, #tpu.memory_space<vmem>>, vector<1x16x128xbf16>
    %190 = vector.shape_cast %189 : vector<1x16x128xbf16> to vector<16x128xbf16>
    %191 = vector.shape_cast %187 : vector<16x128xbf16> to vector<1x16x128xbf16>
    tpu.vector_store %arg7[%188, %c0_76, %c0_77], %191 {strides = array<i32>} : memref<4x16x128xbf16, #tpu.memory_space<vmem>>, vector<1x16x128xbf16>,
    %c2_i32_78 = arith.constant 2 : i32
    %192 = arith.addi %7, %c2_i32_78 : i32
    %193 = arith.index_cast %192 : i32 to index
    %c0_79 = arith.constant 0 : index
    %c0_80 = arith.constant 0 : index
    %194 = vector.load %arg2[%193, %c0_79, %c0_80] : memref<4x16x512xbf16, #tpu.memory_space<vmem>>, vector<1x16x512xbf16>
    %195 = vector.shape_cast %194 : vector<1x16x512xbf16> to vector<16x512xbf16>
    %196 = arith.extf %195 : vector<16x512xbf16> to vector<16x512xf32>
    %c0_81 = arith.constant 0 : index
    %c0_82 = arith.constant 0 : index
    %197 = vector.load %arg8[%c0_81, %c0_82] : memref<16x128xbf16, #tpu.memory_space<vmem>>, vector<16x128xbf16>
    %c0_83 = arith.constant 0 : index
    %c0_84 = arith.constant 0 : index
    %198 = vector.load %arg9[%c0_83, %c0_84] : memref<16x128xf32, #tpu.memory_space<vmem>>, vector<16x128xf32>
    %c0_85 = arith.constant 0 : index
    %c0_86 = arith.constant 0 : index
    %199 = vector.load %arg4[%c0_85, %c0_86] : memref<128x512xbf16, #tpu.memory_space<vmem>>, vector<128x512xbf16>
    %cst_87 = arith.constant dense<0.000000e+00> : vector<16x512xf32>
    %200 = tpu.matmul %197, %199, %cst_87 {dimension_numbers = #tpu.dot_dimension_numbers<[1], [0], [0], [1], [0, 0, 1, 1], [], []>} : vector<16x128xbf16>, vector<128x512xbf16>, vector<16x512xf32> -> vector<16x512xf32>
    %201 = arith.addf %196, %200 : vector<16x512xf32>
    %202 = vector.extract_strided_slice %201 {offsets = [0, 0], sizes = [16, 128], strides = [1, 1]} : vector<16x512xf32> to vector<16x128xf32>
    %203 = arith.negf %202 : vector<16x128xf32>
    %204 = math.exp %203 : vector<16x128xf32>
    %cst_88 = arith.constant 1.000000e+00 : f32
    %205 = vector.broadcast %cst_88 : f32 to vector<16x128xf32>
    %206 = arith.addf %205, %204 : vector<16x128xf32>
    %207 = arith.divf %205, %206 : vector<16x128xf32>
    %208 = vector.extract_strided_slice %201 {offsets = [0, 128], sizes = [16, 128], strides = [1, 1]} : vector<16x512xf32> to vector<16x128xf32>
    %209 = arith.negf %208 : vector<16x128xf32>
    %210 = math.exp %209 : vector<16x128xf32>
    %cst_89 = arith.constant 1.000000e+00 : f32
    %211 = vector.broadcast %cst_89 : f32 to vector<16x128xf32>
    %212 = arith.addf %211, %210 : vector<16x128xf32>
    %213 = arith.divf %211, %212 : vector<16x128xf32>
    %214 = vector.extract_strided_slice %201 {offsets = [0, 256], sizes = [16, 128], strides = [1, 1]} : vector<16x512xf32> to vector<16x128xf32>
    %215 = math.tanh %214 : vector<16x128xf32>
    %216 = vector.extract_strided_slice %201 {offsets = [0, 384], sizes = [16, 128], strides = [1, 1]} : vector<16x512xf32> to vector<16x128xf32>
    %217 = arith.negf %216 : vector<16x128xf32>
    %218 = math.exp %217 : vector<16x128xf32>
    %cst_90 = arith.constant 1.000000e+00 : f32
    %219 = vector.broadcast %cst_90 : f32 to vector<16x128xf32>
    %220 = arith.addf %219, %218 : vector<16x128xf32>
    %221 = arith.divf %219, %220 : vector<16x128xf32>
    %222 = arith.mulf %213, %198 : vector<16x128xf32>
    %223 = arith.mulf %207, %215 : vector<16x128xf32>
    %224 = arith.addf %222, %223 : vector<16x128xf32>
    %225 = math.tanh %224 : vector<16x128xf32>
    %226 = arith.mulf %221, %225 : vector<16x128xf32>
    %227 = arith.truncf %226 : vector<16x128xf32> to vector<16x128xbf16>
    %c0_91 = arith.constant 0 : index
    %c0_92 = arith.constant 0 : index
    %228 = vector.load %arg8[%c0_91, %c0_92] : memref<16x128xbf16, #tpu.memory_space<vmem>>, vector<16x128xbf16>
    tpu.vector_store %arg8[%c0_91, %c0_92], %227 {strides = array<i32>} : memref<16x128xbf16, #tpu.memory_space<vmem>>, vector<16x128xbf16>,
    %c0_93 = arith.constant 0 : index
    %c0_94 = arith.constant 0 : index
    %229 = vector.load %arg9[%c0_93, %c0_94] : memref<16x128xf32, #tpu.memory_space<vmem>>, vector<16x128xf32>
    tpu.vector_store %arg9[%c0_93, %c0_94], %224 {strides = array<i32>} : memref<16x128xf32, #tpu.memory_space<vmem>>, vector<16x128xf32>,
    %230 = arith.truncf %226 : vector<16x128xf32> to vector<16x128xbf16>
    %231 = arith.index_cast %192 : i32 to index
    %c0_95 = arith.constant 0 : index
    %c0_96 = arith.constant 0 : index
    %232 = vector.load %arg6[%231, %c0_95, %c0_96] : memref<4x16x128xbf16, #tpu.memory_space<vmem>>, vector<1x16x128xbf16>
    %233 = vector.shape_cast %232 : vector<1x16x128xbf16> to vector<16x128xbf16>
    %234 = vector.shape_cast %230 : vector<16x128xbf16> to vector<1x16x128xbf16>
    tpu.vector_store %arg6[%231, %c0_95, %c0_96], %234 {strides = array<i32>} : memref<4x16x128xbf16, #tpu.memory_space<vmem>>, vector<1x16x128xbf16>,
    %c3_i32_97 = arith.constant 3 : i32
    %235 = arith.subi %c3_i32_97, %192 : i32
    %236 = arith.addi %4, %235 : i32
    %c9_i32_98 = arith.constant 9 : i32
    %237 = arith.cmpi slt, %236, %c9_i32_98 : i32
    %238 = arith.extui %237 : i1 to i32
    %239 = arith.sitofp %238 : i32 to f32
    %240 = arith.index_cast %235 : i32 to index
    %c0_99 = arith.constant 0 : index
    %c0_100 = arith.constant 0 : index
    %241 = vector.load %arg3[%240, %c0_99, %c0_100] : memref<4x16x512xbf16, #tpu.memory_space<vmem>>, vector<1x16x512xbf16>
    %242 = vector.shape_cast %241 : vector<1x16x512xbf16> to vector<16x512xbf16>
    %243 = arith.extf %242 : vector<16x512xbf16> to vector<16x512xf32>
    %244 = vector.broadcast %239 : f32 to vector<16x512xf32>
    %245 = arith.mulf %243, %244 : vector<16x512xf32>
    %c0_101 = arith.constant 0 : index
    %c0_102 = arith.constant 0 : index
    %246 = vector.load %arg10[%c0_101, %c0_102] : memref<16x128xbf16, #tpu.memory_space<vmem>>, vector<16x128xbf16>
    %c0_103 = arith.constant 0 : index
    %c0_104 = arith.constant 0 : index
    %247 = vector.load %arg11[%c0_103, %c0_104] : memref<16x128xf32, #tpu.memory_space<vmem>>, vector<16x128xf32>
    %c0_105 = arith.constant 0 : index
    %c0_106 = arith.constant 0 : index
    %248 = vector.load %arg5[%c0_105, %c0_106] : memref<128x512xbf16, #tpu.memory_space<vmem>>, vector<128x512xbf16>
    %cst_107 = arith.constant dense<0.000000e+00> : vector<16x512xf32>
    %249 = tpu.matmul %246, %248, %cst_107 {dimension_numbers = #tpu.dot_dimension_numbers<[1], [0], [0], [1], [0, 0, 1, 1], [], []>} : vector<16x128xbf16>, vector<128x512xbf16>, vector<16x512xf32> -> vector<16x512xf32>
    %250 = arith.addf %245, %249 : vector<16x512xf32>
    %251 = vector.extract_strided_slice %250 {offsets = [0, 0], sizes = [16, 128], strides = [1, 1]} : vector<16x512xf32> to vector<16x128xf32>
    %252 = arith.negf %251 : vector<16x128xf32>
    %253 = math.exp %252 : vector<16x128xf32>
    %cst_108 = arith.constant 1.000000e+00 : f32
    %254 = vector.broadcast %cst_108 : f32 to vector<16x128xf32>
    %255 = arith.addf %254, %253 : vector<16x128xf32>
    %256 = arith.divf %254, %255 : vector<16x128xf32>
    %257 = vector.extract_strided_slice %250 {offsets = [0, 128], sizes = [16, 128], strides = [1, 1]} : vector<16x512xf32> to vector<16x128xf32>
    %258 = arith.negf %257 : vector<16x128xf32>
    %259 = math.exp %258 : vector<16x128xf32>
    %cst_109 = arith.constant 1.000000e+00 : f32
    %260 = vector.broadcast %cst_109 : f32 to vector<16x128xf32>
    %261 = arith.addf %260, %259 : vector<16x128xf32>
    %262 = arith.divf %260, %261 : vector<16x128xf32>
    %263 = vector.extract_strided_slice %250 {offsets = [0, 256], sizes = [16, 128], strides = [1, 1]} : vector<16x512xf32> to vector<16x128xf32>
    %264 = math.tanh %263 : vector<16x128xf32>
    %265 = vector.extract_strided_slice %250 {offsets = [0, 384], sizes = [16, 128], strides = [1, 1]} : vector<16x512xf32> to vector<16x128xf32>
    %266 = arith.negf %265 : vector<16x128xf32>
    %267 = math.exp %266 : vector<16x128xf32>
    %cst_110 = arith.constant 1.000000e+00 : f32
    %268 = vector.broadcast %cst_110 : f32 to vector<16x128xf32>
    %269 = arith.addf %268, %267 : vector<16x128xf32>
    %270 = arith.divf %268, %269 : vector<16x128xf32>
    %271 = arith.mulf %262, %247 : vector<16x128xf32>
    %272 = arith.mulf %256, %264 : vector<16x128xf32>
    %273 = arith.addf %271, %272 : vector<16x128xf32>
    %274 = math.tanh %273 : vector<16x128xf32>
    %275 = arith.mulf %270, %274 : vector<16x128xf32>
    %276 = arith.truncf %275 : vector<16x128xf32> to vector<16x128xbf16>
    %c0_111 = arith.constant 0 : index
    %c0_112 = arith.constant 0 : index
    %277 = vector.load %arg10[%c0_111, %c0_112] : memref<16x128xbf16, #tpu.memory_space<vmem>>, vector<16x128xbf16>
    tpu.vector_store %arg10[%c0_111, %c0_112], %276 {strides = array<i32>} : memref<16x128xbf16, #tpu.memory_space<vmem>>, vector<16x128xbf16>,
    %c0_113 = arith.constant 0 : index
    %c0_114 = arith.constant 0 : index
    %278 = vector.load %arg11[%c0_113, %c0_114] : memref<16x128xf32, #tpu.memory_space<vmem>>, vector<16x128xf32>
    tpu.vector_store %arg11[%c0_113, %c0_114], %273 {strides = array<i32>} : memref<16x128xf32, #tpu.memory_space<vmem>>, vector<16x128xf32>,
    %279 = arith.truncf %275 : vector<16x128xf32> to vector<16x128xbf16>
    %280 = arith.index_cast %235 : i32 to index
    %c0_115 = arith.constant 0 : index
    %c0_116 = arith.constant 0 : index
    %281 = vector.load %arg7[%280, %c0_115, %c0_116] : memref<4x16x128xbf16, #tpu.memory_space<vmem>>, vector<1x16x128xbf16>
    %282 = vector.shape_cast %281 : vector<1x16x128xbf16> to vector<16x128xbf16>
    %283 = vector.shape_cast %279 : vector<16x128xbf16> to vector<1x16x128xbf16>
    tpu.vector_store %arg7[%280, %c0_115, %c0_116], %283 {strides = array<i32>} : memref<4x16x128xbf16, #tpu.memory_space<vmem>>, vector<1x16x128xbf16>,
    %c3_i32_117 = arith.constant 3 : i32
    %284 = arith.addi %7, %c3_i32_117 : i32
    %285 = arith.index_cast %284 : i32 to index
    %c0_118 = arith.constant 0 : index
    %c0_119 = arith.constant 0 : index
    %286 = vector.load %arg2[%285, %c0_118, %c0_119] : memref<4x16x512xbf16, #tpu.memory_space<vmem>>, vector<1x16x512xbf16>
    %287 = vector.shape_cast %286 : vector<1x16x512xbf16> to vector<16x512xbf16>
    %288 = arith.extf %287 : vector<16x512xbf16> to vector<16x512xf32>
    %c0_120 = arith.constant 0 : index
    %c0_121 = arith.constant 0 : index
    %289 = vector.load %arg8[%c0_120, %c0_121] : memref<16x128xbf16, #tpu.memory_space<vmem>>, vector<16x128xbf16>
    %c0_122 = arith.constant 0 : index
    %c0_123 = arith.constant 0 : index
    %290 = vector.load %arg9[%c0_122, %c0_123] : memref<16x128xf32, #tpu.memory_space<vmem>>, vector<16x128xf32>
    %c0_124 = arith.constant 0 : index
    %c0_125 = arith.constant 0 : index
    %291 = vector.load %arg4[%c0_124, %c0_125] : memref<128x512xbf16, #tpu.memory_space<vmem>>, vector<128x512xbf16>
    %cst_126 = arith.constant dense<0.000000e+00> : vector<16x512xf32>
    %292 = tpu.matmul %289, %291, %cst_126 {dimension_numbers = #tpu.dot_dimension_numbers<[1], [0], [0], [1], [0, 0, 1, 1], [], []>} : vector<16x128xbf16>, vector<128x512xbf16>, vector<16x512xf32> -> vector<16x512xf32>
    %293 = arith.addf %288, %292 : vector<16x512xf32>
    %294 = vector.extract_strided_slice %293 {offsets = [0, 0], sizes = [16, 128], strides = [1, 1]} : vector<16x512xf32> to vector<16x128xf32>
    %295 = arith.negf %294 : vector<16x128xf32>
    %296 = math.exp %295 : vector<16x128xf32>
    %cst_127 = arith.constant 1.000000e+00 : f32
    %297 = vector.broadcast %cst_127 : f32 to vector<16x128xf32>
    %298 = arith.addf %297, %296 : vector<16x128xf32>
    %299 = arith.divf %297, %298 : vector<16x128xf32>
    %300 = vector.extract_strided_slice %293 {offsets = [0, 128], sizes = [16, 128], strides = [1, 1]} : vector<16x512xf32> to vector<16x128xf32>
    %301 = arith.negf %300 : vector<16x128xf32>
    %302 = math.exp %301 : vector<16x128xf32>
    %cst_128 = arith.constant 1.000000e+00 : f32
    %303 = vector.broadcast %cst_128 : f32 to vector<16x128xf32>
    %304 = arith.addf %303, %302 : vector<16x128xf32>
    %305 = arith.divf %303, %304 : vector<16x128xf32>
    %306 = vector.extract_strided_slice %293 {offsets = [0, 256], sizes = [16, 128], strides = [1, 1]} : vector<16x512xf32> to vector<16x128xf32>
    %307 = math.tanh %306 : vector<16x128xf32>
    %308 = vector.extract_strided_slice %293 {offsets = [0, 384], sizes = [16, 128], strides = [1, 1]} : vector<16x512xf32> to vector<16x128xf32>
    %309 = arith.negf %308 : vector<16x128xf32>
    %310 = math.exp %309 : vector<16x128xf32>
    %cst_129 = arith.constant 1.000000e+00 : f32
    %311 = vector.broadcast %cst_129 : f32 to vector<16x128xf32>
    %312 = arith.addf %311, %310 : vector<16x128xf32>
    %313 = arith.divf %311, %312 : vector<16x128xf32>
    %314 = arith.mulf %305, %290 : vector<16x128xf32>
    %315 = arith.mulf %299, %307 : vector<16x128xf32>
    %316 = arith.addf %314, %315 : vector<16x128xf32>
    %317 = math.tanh %316 : vector<16x128xf32>
    %318 = arith.mulf %313, %317 : vector<16x128xf32>
    %319 = arith.truncf %318 : vector<16x128xf32> to vector<16x128xbf16>
    %c0_130 = arith.constant 0 : index
    %c0_131 = arith.constant 0 : index
    %320 = vector.load %arg8[%c0_130, %c0_131] : memref<16x128xbf16, #tpu.memory_space<vmem>>, vector<16x128xbf16>
    tpu.vector_store %arg8[%c0_130, %c0_131], %319 {strides = array<i32>} : memref<16x128xbf16, #tpu.memory_space<vmem>>, vector<16x128xbf16>,
    %c0_132 = arith.constant 0 : index
    %c0_133 = arith.constant 0 : index
    %321 = vector.load %arg9[%c0_132, %c0_133] : memref<16x128xf32, #tpu.memory_space<vmem>>, vector<16x128xf32>
    tpu.vector_store %arg9[%c0_132, %c0_133], %316 {strides = array<i32>} : memref<16x128xf32, #tpu.memory_space<vmem>>, vector<16x128xf32>,
    %322 = arith.truncf %318 : vector<16x128xf32> to vector<16x128xbf16>
    %323 = arith.index_cast %284 : i32 to index
    %c0_134 = arith.constant 0 : index
    %c0_135 = arith.constant 0 : index
    %324 = vector.load %arg6[%323, %c0_134, %c0_135] : memref<4x16x128xbf16, #tpu.memory_space<vmem>>, vector<1x16x128xbf16>
    %325 = vector.shape_cast %324 : vector<1x16x128xbf16> to vector<16x128xbf16>
    %326 = vector.shape_cast %322 : vector<16x128xbf16> to vector<1x16x128xbf16>
    tpu.vector_store %arg6[%323, %c0_134, %c0_135], %326 {strides = array<i32>} : memref<4x16x128xbf16, #tpu.memory_space<vmem>>, vector<1x16x128xbf16>,
    %c3_i32_136 = arith.constant 3 : i32
    %327 = arith.subi %c3_i32_136, %284 : i32
    %328 = arith.addi %4, %327 : i32
    %c9_i32_137 = arith.constant 9 : i32
    %329 = arith.cmpi slt, %328, %c9_i32_137 : i32
    %330 = arith.extui %329 : i1 to i32
    %331 = arith.sitofp %330 : i32 to f32
    %332 = arith.index_cast %327 : i32 to index
    %c0_138 = arith.constant 0 : index
    %c0_139 = arith.constant 0 : index
    %333 = vector.load %arg3[%332, %c0_138, %c0_139] : memref<4x16x512xbf16, #tpu.memory_space<vmem>>, vector<1x16x512xbf16>
    %334 = vector.shape_cast %333 : vector<1x16x512xbf16> to vector<16x512xbf16>
    %335 = arith.extf %334 : vector<16x512xbf16> to vector<16x512xf32>
    %336 = vector.broadcast %331 : f32 to vector<16x512xf32>
    %337 = arith.mulf %335, %336 : vector<16x512xf32>
    %c0_140 = arith.constant 0 : index
    %c0_141 = arith.constant 0 : index
    %338 = vector.load %arg10[%c0_140, %c0_141] : memref<16x128xbf16, #tpu.memory_space<vmem>>, vector<16x128xbf16>
    %c0_142 = arith.constant 0 : index
    %c0_143 = arith.constant 0 : index
    %339 = vector.load %arg11[%c0_142, %c0_143] : memref<16x128xf32, #tpu.memory_space<vmem>>, vector<16x128xf32>
    %c0_144 = arith.constant 0 : index
    %c0_145 = arith.constant 0 : index
    %340 = vector.load %arg5[%c0_144, %c0_145] : memref<128x512xbf16, #tpu.memory_space<vmem>>, vector<128x512xbf16>
    %cst_146 = arith.constant dense<0.000000e+00> : vector<16x512xf32>
    %341 = tpu.matmul %338, %340, %cst_146 {dimension_numbers = #tpu.dot_dimension_numbers<[1], [0], [0], [1], [0, 0, 1, 1], [], []>} : vector<16x128xbf16>, vector<128x512xbf16>, vector<16x512xf32> -> vector<16x512xf32>
    %342 = arith.addf %337, %341 : vector<16x512xf32>
    %343 = vector.extract_strided_slice %342 {offsets = [0, 0], sizes = [16, 128], strides = [1, 1]} : vector<16x512xf32> to vector<16x128xf32>
    %344 = arith.negf %343 : vector<16x128xf32>
    %345 = math.exp %344 : vector<16x128xf32>
    %cst_147 = arith.constant 1.000000e+00 : f32
    %346 = vector.broadcast %cst_147 : f32 to vector<16x128xf32>
    %347 = arith.addf %346, %345 : vector<16x128xf32>
    %348 = arith.divf %346, %347 : vector<16x128xf32>
    %349 = vector.extract_strided_slice %342 {offsets = [0, 128], sizes = [16, 128], strides = [1, 1]} : vector<16x512xf32> to vector<16x128xf32>
    %350 = arith.negf %349 : vector<16x128xf32>
    %351 = math.exp %350 : vector<16x128xf32>
    %cst_148 = arith.constant 1.000000e+00 : f32
    %352 = vector.broadcast %cst_148 : f32 to vector<16x128xf32>
    %353 = arith.addf %352, %351 : vector<16x128xf32>
    %354 = arith.divf %352, %353 : vector<16x128xf32>
    %355 = vector.extract_strided_slice %342 {offsets = [0, 256], sizes = [16, 128], strides = [1, 1]} : vector<16x512xf32> to vector<16x128xf32>
    %356 = math.tanh %355 : vector<16x128xf32>
    %357 = vector.extract_strided_slice %342 {offsets = [0, 384], sizes = [16, 128], strides = [1, 1]} : vector<16x512xf32> to vector<16x128xf32>
    %358 = arith.negf %357 : vector<16x128xf32>
    %359 = math.exp %358 : vector<16x128xf32>
    %cst_149 = arith.constant 1.000000e+00 : f32
    %360 = vector.broadcast %cst_149 : f32 to vector<16x128xf32>
    %361 = arith.addf %360, %359 : vector<16x128xf32>
    %362 = arith.divf %360, %361 : vector<16x128xf32>
    %363 = arith.mulf %354, %339 : vector<16x128xf32>
    %364 = arith.mulf %348, %356 : vector<16x128xf32>
    %365 = arith.addf %363, %364 : vector<16x128xf32>
    %366 = math.tanh %365 : vector<16x128xf32>
    %367 = arith.mulf %362, %366 : vector<16x128xf32>
    %368 = arith.truncf %367 : vector<16x128xf32> to vector<16x128xbf16>
    %c0_150 = arith.constant 0 : index
    %c0_151 = arith.constant 0 : index
    %369 = vector.load %arg10[%c0_150, %c0_151] : memref<16x128xbf16, #tpu.memory_space<vmem>>, vector<16x128xbf16>
    tpu.vector_store %arg10[%c0_150, %c0_151], %368 {strides = array<i32>} : memref<16x128xbf16, #tpu.memory_space<vmem>>, vector<16x128xbf16>,
    %c0_152 = arith.constant 0 : index
    %c0_153 = arith.constant 0 : index
    %370 = vector.load %arg11[%c0_152, %c0_153] : memref<16x128xf32, #tpu.memory_space<vmem>>, vector<16x128xf32>
    tpu.vector_store %arg11[%c0_152, %c0_153], %365 {strides = array<i32>} : memref<16x128xf32, #tpu.memory_space<vmem>>, vector<16x128xf32>,
    %371 = arith.truncf %367 : vector<16x128xf32> to vector<16x128xbf16>
    %372 = arith.index_cast %327 : i32 to index
    %c0_154 = arith.constant 0 : index
    %c0_155 = arith.constant 0 : index
    %373 = vector.load %arg7[%372, %c0_154, %c0_155] : memref<4x16x128xbf16, #tpu.memory_space<vmem>>, vector<1x16x128xbf16>
    %374 = vector.shape_cast %373 : vector<1x16x128xbf16> to vector<16x128xbf16>
    %375 = vector.shape_cast %371 : vector<16x128xbf16> to vector<1x16x128xbf16>
    tpu.vector_store %arg7[%372, %c0_154, %c0_155], %375 {strides = array<i32>} : memref<4x16x128xbf16, #tpu.memory_space<vmem>>, vector<1x16x128xbf16>,
    %c1_i32_156 = arith.constant 1 : i32
    return
  }
  func.func @transform_0(%arg0: i32, %arg1: i32) -> (i32, i32, i32) {
    %c0_i32 = arith.constant 0 : i32
    %c0_i32_0 = arith.constant 0 : i32
    return %arg1, %arg0, %c0_i32 : i32, i32, i32
  }
  func.func @transform_1(%arg0: i32, %arg1: i32) -> (i32, i32, i32) {
    %c2_i32 = arith.constant 2 : i32
    %0 = arith.subi %c2_i32, %arg1 : i32
    %c0_i32 = arith.constant 0 : i32
    %c0_i32_0 = arith.constant 0 : i32
    return %0, %arg0, %c0_i32 : i32, i32, i32
  }
  func.func @transform_2(%arg0: i32, %arg1: i32) -> (i32, i32) {
    %c0_i32 = arith.constant 0 : i32
    %c0_i32_0 = arith.constant 0 : i32
    %c0_i32_1 = arith.constant 0 : i32
    return %c0_i32, %c0_i32_0 : i32, i32
  }
  func.func @transform_3(%arg0: i32, %arg1: i32) -> (i32, i32) {
    %c0_i32 = arith.constant 0 : i32
    %c0_i32_0 = arith.constant 0 : i32
    %c0_i32_1 = arith.constant 0 : i32
    return %c0_i32, %c0_i32_0 : i32, i32
  }
  func.func @transform_4(%arg0: i32, %arg1: i32) -> (i32, i32, i32) {
    %c0_i32 = arith.constant 0 : i32
    %c0_i32_0 = arith.constant 0 : i32
    return %arg1, %arg0, %c0_i32 : i32, i32, i32
  }
  func.func @transform_5(%arg0: i32, %arg1: i32) -> (i32, i32, i32) {
    %c2_i32 = arith.constant 2 : i32
    %0 = arith.subi %c2_i32, %arg1 : i32
    %c0_i32 = arith.constant 0 : i32
    %c0_i32_0 = arith.constant 0 : i32
    return %0, %arg0, %c0_i32 : i32, i32, i32
  }
}

module attributes {stable_mosaic.version = 11 : i64} {
  func.func @_bilstm_chunk_kernel(%arg0: i32, %arg1: i32, %arg2: memref<4x16x512xbf16, #tpu.memory_space<vmem>>, %arg3: memref<4x16x512xbf16, #tpu.memory_space<vmem>>, %arg4: memref<128x512xbf16, #tpu.memory_space<vmem>>, %arg5: memref<128x512xbf16, #tpu.memory_space<vmem>>, %arg6: memref<4x16x128xbf16, #tpu.memory_space<vmem>>, %arg7: memref<4x16x128xbf16, #tpu.memory_space<vmem>>, %arg8: memref<16x128xbf16, #tpu.memory_space<vmem>>, %arg9: memref<16x128xf32, #tpu.memory_space<vmem>>, %arg10: memref<16x128xbf16, #tpu.memory_space<vmem>>, %arg11: memref<16x128xf32, #tpu.memory_space<vmem>>) attributes {dimension_semantics = [#tpu.dimension_semantics<parallel>, #tpu.dimension_semantics<arbitrary>], iteration_bounds = array<i64: 1, 3>, scalar_prefetch = 0 : i64, scratch_operands = 4 : i64, tpu.core_type = #tpu.core_type<tc>, window_params = [{transform_indices = @transform_0, window_bounds = array<i64: 4, 16, 512>}, {transform_indices = @transform_1, window_bounds = array<i64: 4, 16, 512>}, {pipeline_mode = #tpu.pipeline_mode<synchronous>, transform_indices = @transform_2, window_bounds = array<i64: 128, 512>}, {pipeline_mode = #tpu.pipeline_mode<synchronous>, transform_indices = @transform_3, window_bounds = array<i64: 128, 512>}, {transform_indices = @transform_4, window_bounds = array<i64: 4, 16, 128>}, {transform_indices = @transform_5, window_bounds = array<i64: 4, 16, 128>}]} {
    %c0_i32 = arith.constant 0 : i32
    %0 = arith.cmpi eq, %arg1, %c0_i32 : i32
    %1 = arith.extui %0 : i1 to i32
    %c0_i32_0 = arith.constant 0 : i32
    %2 = arith.cmpi ne, %1, %c0_i32_0 : i32
    scf.if %2 {
      %cst_157 = arith.constant 0.000000e+00 : bf16
      %376 = vector.broadcast %cst_157 : bf16 to vector<16x128xbf16>
      %c0_158 = arith.constant 0 : index
      %c0_159 = arith.constant 0 : index
      %377 = vector.load %arg8[%c0_158, %c0_159] : memref<16x128xbf16, #tpu.memory_space<vmem>>, vector<16x128xbf16>
      tpu.vector_store %arg8[%c0_158, %c0_159], %376 {strides = array<i32>} : memref<16x128xbf16, #tpu.memory_space<vmem>>, vector<16x128xbf16>,
      %cst_160 = arith.constant 0.000000e+00 : f32
      %378 = vector.broadcast %cst_160 : f32 to vector<16x128xf32>
      %c0_161 = arith.constant 0 : index
      %c0_162 = arith.constant 0 : index
      %379 = vector.load %arg9[%c0_161, %c0_162] : memref<16x128xf32, #tpu.memory_space<vmem>>, vector<16x128xf32>
      tpu.vector_store %arg9[%c0_161, %c0_162], %378 {strides = array<i32>} : memref<16x128xf32, #tpu.memory_space<vmem>>, vector<16x128xf32>,
      %cst_163 = arith.constant 0.000000e+00 : bf16
      %380 = vector.broadcast %cst_163 : bf16 to vector<16x128xbf16>
      %c0_164 = arith.constant 0 : index
      %c0_165 = arith.constant 0 : index
      %381 = vector.load %arg10[%c0_164, %c0_165] : memref<16x128xbf16, #tpu.memory_space<vmem>>, vector<16x128xbf16>
      tpu.vector_store %arg10[%c0_164, %c0_165], %380 {strides = array<i32>} : memref<16x128xbf16, #tpu.memory_space<vmem>>, vector<16x128xbf16>,
      %cst_166 = arith.constant 0.000000e+00 : f32
      %382 = vector.broadcast %cst_166 : f32 to vector<16x128xf32>
      %c0_167 = arith.constant 0 : index
      %c0_168 = arith.constant 0 : index
      %383 = vector.load %arg11[%c0_167, %c0_168] : memref<16x128xf32, #tpu.memory_space<vmem>>, vector<16x128xf32>
      tpu.vector_store %arg11[%c0_167, %c0_168], %382 {strides = array<i32>} : memref<16x128xf32, #tpu.memory_space<vmem>>, vector<16x128xf32>,
    } else {
    }
    %c2_i32 = arith.constant 2 : i32
    %3 = arith.subi %c2_i32, %arg1 : i32
    %c4_i32 = arith.constant 4 : i32
    %4 = arith.muli %3, %c4_i32 : i32
    %c0_i32_1 = arith.constant 0 : i32
    %c1_i32 = arith.constant 1 : i32
    %5 = arith.muli %c0_i32_1, %c1_i32 : i32
    %c0_i32_2 = arith.constant 0 : i32
    %6 = arith.addi %c0_i32_2, %5 : i32
    %c4_i32_3 = arith.constant 4 : i32
    %7 = arith.muli %6, %c4_i32_3 : i32
    %c0_i32_4 = arith.constant 0 : i32
    %8 = arith.addi %7, %c0_i32_4 : i32
    %9 = arith.index_cast %8 : i32 to index
    %c0 = arith.constant 0 : index
    %c0_5 = arith.constant 0 : index
    %10 = vector.load %arg2[%9, %c0, %c0_5] : memref<4x16x512xbf16, #tpu.memory_space<vmem>>, vector<1x16x512xbf16>
    %11 = vector.shape_cast %10 : vector<1x16x512xbf16> to vector<16x512xbf16>
    %12 = arith.extf %11 : vector<16x512xbf16> to vector<16x512xf32>
    %c0_6 = arith.constant 0 : index
    %c0_7 = arith.constant 0 : index
    %13 = vector.load %arg8[%c0_6, %c0_7] : memref<16x128xbf16, #tpu.memory_space<vmem>>, vector<16x128xbf16>
    %c0_8 = arith.constant 0 : index
    %c0_9 = arith.constant 0 : index
    %14 = vector.load %arg9[%c0_8, %c0_9] : memref<16x128xf32, #tpu.memory_space<vmem>>, vector<16x128xf32>
    %c0_10 = arith.constant 0 : index
    %c0_11 = arith.constant 0 : index
    %15 = vector.load %arg4[%c0_10, %c0_11] : memref<128x512xbf16, #tpu.memory_space<vmem>>, vector<128x512xbf16>
    %cst = arith.constant dense<0.000000e+00> : vector<16x512xf32>
    %16 = tpu.matmul %13, %15, %cst {dimension_numbers = #tpu.dot_dimension_numbers<[1], [0], [0], [1], [0, 0, 1, 1], [], []>} : vector<16x128xbf16>, vector<128x512xbf16>, vector<16x512xf32> -> vector<16x512xf32>
    %17 = arith.addf %12, %16 : vector<16x512xf32>
    %18 = vector.extract_strided_slice %17 {offsets = [0, 0], sizes = [16, 128], strides = [1, 1]} : vector<16x512xf32> to vector<16x128xf32>
    %19 = arith.negf %18 : vector<16x128xf32>
    %20 = math.exp %19 : vector<16x128xf32>
    %cst_12 = arith.constant 1.000000e+00 : f32
    %21 = vector.broadcast %cst_12 : f32 to vector<16x128xf32>
    %22 = arith.addf %21, %20 : vector<16x128xf32>
    %23 = arith.divf %21, %22 : vector<16x128xf32>
    %24 = vector.extract_strided_slice %17 {offsets = [0, 128], sizes = [16, 128], strides = [1, 1]} : vector<16x512xf32> to vector<16x128xf32>
    %25 = arith.negf %24 : vector<16x128xf32>
    %26 = math.exp %25 : vector<16x128xf32>
    %cst_13 = arith.constant 1.000000e+00 : f32
    %27 = vector.broadcast %cst_13 : f32 to vector<16x128xf32>
    %28 = arith.addf %27, %26 : vector<16x128xf32>
    %29 = arith.divf %27, %28 : vector<16x128xf32>
    %30 = vector.extract_strided_slice %17 {offsets = [0, 256], sizes = [16, 128], strides = [1, 1]} : vector<16x512xf32> to vector<16x128xf32>
    %31 = math.tanh %30 : vector<16x128xf32>
    %32 = vector.extract_strided_slice %17 {offsets = [0, 384], sizes = [16, 128], strides = [1, 1]} : vector<16x512xf32> to vector<16x128xf32>
    %33 = arith.negf %32 : vector<16x128xf32>
    %34 = math.exp %33 : vector<16x128xf32>
    %cst_14 = arith.constant 1.000000e+00 : f32
    %35 = vector.broadcast %cst_14 : f32 to vector<16x128xf32>
    %36 = arith.addf %35, %34 : vector<16x128xf32>
    %37 = arith.divf %35, %36 : vector<16x128xf32>
    %38 = arith.mulf %29, %14 : vector<16x128xf32>
    %39 = arith.mulf %23, %31 : vector<16x128xf32>
    %40 = arith.addf %38, %39 : vector<16x128xf32>
    %41 = math.tanh %40 : vector<16x128xf32>
    %42 = arith.mulf %37, %41 : vector<16x128xf32>
    %43 = arith.truncf %42 : vector<16x128xf32> to vector<16x128xbf16>
    %c0_15 = arith.constant 0 : index
    %c0_16 = arith.constant 0 : index
    %44 = vector.load %arg8[%c0_15, %c0_16] : memref<16x128xbf16, #tpu.memory_space<vmem>>, vector<16x128xbf16>
    tpu.vector_store %arg8[%c0_15, %c0_16], %43 {strides = array<i32>} : memref<16x128xbf16, #tpu.memory_space<vmem>>, vector<16x128xbf16>,
    %c0_17 = arith.constant 0 : index
    %c0_18 = arith.constant 0 : index
    %45 = vector.load %arg9[%c0_17, %c0_18] : memref<16x128xf32, #tpu.memory_space<vmem>>, vector<16x128xf32>
    tpu.vector_store %arg9[%c0_17, %c0_18], %40 {strides = array<i32>} : memref<16x128xf32, #tpu.memory_space<vmem>>, vector<16x128xf32>,
    %46 = arith.truncf %42 : vector<16x128xf32> to vector<16x128xbf16>
    %47 = arith.index_cast %8 : i32 to index
    %c0_19 = arith.constant 0 : index
    %c0_20 = arith.constant 0 : index
    %48 = vector.load %arg6[%47, %c0_19, %c0_20] : memref<4x16x128xbf16, #tpu.memory_space<vmem>>, vector<1x16x128xbf16>
    %49 = vector.shape_cast %48 : vector<1x16x128xbf16> to vector<16x128xbf16>
    %50 = vector.shape_cast %46 : vector<16x128xbf16> to vector<1x16x128xbf16>
    tpu.vector_store %arg6[%47, %c0_19, %c0_20], %50 {strides = array<i32>} : memref<4x16x128xbf16, #tpu.memory_space<vmem>>, vector<1x16x128xbf16>,
    %c3_i32 = arith.constant 3 : i32
    %51 = arith.subi %c3_i32, %8 : i32
    %52 = arith.addi %4, %51 : i32
    %c9_i32 = arith.constant 9 : i32
    %53 = arith.cmpi slt, %52, %c9_i32 : i32
    %54 = arith.extui %53 : i1 to i32
    %55 = arith.sitofp %54 : i32 to f32
    %56 = arith.index_cast %51 : i32 to index
    %c0_21 = arith.constant 0 : index
    %c0_22 = arith.constant 0 : index
    %57 = vector.load %arg3[%56, %c0_21, %c0_22] : memref<4x16x512xbf16, #tpu.memory_space<vmem>>, vector<1x16x512xbf16>
    %58 = vector.shape_cast %57 : vector<1x16x512xbf16> to vector<16x512xbf16>
    %59 = arith.extf %58 : vector<16x512xbf16> to vector<16x512xf32>
    %60 = vector.broadcast %55 : f32 to vector<16x512xf32>
    %61 = arith.mulf %59, %60 : vector<16x512xf32>
    %c0_23 = arith.constant 0 : index
    %c0_24 = arith.constant 0 : index
    %62 = vector.load %arg10[%c0_23, %c0_24] : memref<16x128xbf16, #tpu.memory_space<vmem>>, vector<16x128xbf16>
    %c0_25 = arith.constant 0 : index
    %c0_26 = arith.constant 0 : index
    %63 = vector.load %arg11[%c0_25, %c0_26] : memref<16x128xf32, #tpu.memory_space<vmem>>, vector<16x128xf32>
    %c0_27 = arith.constant 0 : index
    %c0_28 = arith.constant 0 : index
    %64 = vector.load %arg5[%c0_27, %c0_28] : memref<128x512xbf16, #tpu.memory_space<vmem>>, vector<128x512xbf16>
    %cst_29 = arith.constant dense<0.000000e+00> : vector<16x512xf32>
    %65 = tpu.matmul %62, %64, %cst_29 {dimension_numbers = #tpu.dot_dimension_numbers<[1], [0], [0], [1], [0, 0, 1, 1], [], []>} : vector<16x128xbf16>, vector<128x512xbf16>, vector<16x512xf32> -> vector<16x512xf32>
    %66 = arith.addf %61, %65 : vector<16x512xf32>
    %67 = vector.extract_strided_slice %66 {offsets = [0, 0], sizes = [16, 128], strides = [1, 1]} : vector<16x512xf32> to vector<16x128xf32>
    %68 = arith.negf %67 : vector<16x128xf32>
    %69 = math.exp %68 : vector<16x128xf32>
    %cst_30 = arith.constant 1.000000e+00 : f32
    %70 = vector.broadcast %cst_30 : f32 to vector<16x128xf32>
    %71 = arith.addf %70, %69 : vector<16x128xf32>
    %72 = arith.divf %70, %71 : vector<16x128xf32>
    %73 = vector.extract_strided_slice %66 {offsets = [0, 128], sizes = [16, 128], strides = [1, 1]} : vector<16x512xf32> to vector<16x128xf32>
    %74 = arith.negf %73 : vector<16x128xf32>
    %75 = math.exp %74 : vector<16x128xf32>
    %cst_31 = arith.constant 1.000000e+00 : f32
    %76 = vector.broadcast %cst_31 : f32 to vector<16x128xf32>
    %77 = arith.addf %76, %75 : vector<16x128xf32>
    %78 = arith.divf %76, %77 : vector<16x128xf32>
    %79 = vector.extract_strided_slice %66 {offsets = [0, 256], sizes = [16, 128], strides = [1, 1]} : vector<16x512xf32> to vector<16x128xf32>
    %80 = math.tanh %79 : vector<16x128xf32>
    %81 = vector.extract_strided_slice %66 {offsets = [0, 384], sizes = [16, 128], strides = [1, 1]} : vector<16x512xf32> to vector<16x128xf32>
    %82 = arith.negf %81 : vector<16x128xf32>
    %83 = math.exp %82 : vector<16x128xf32>
    %cst_32 = arith.constant 1.000000e+00 : f32
    %84 = vector.broadcast %cst_32 : f32 to vector<16x128xf32>
    %85 = arith.addf %84, %83 : vector<16x128xf32>
    %86 = arith.divf %84, %85 : vector<16x128xf32>
    %87 = arith.mulf %78, %63 : vector<16x128xf32>
    %88 = arith.mulf %72, %80 : vector<16x128xf32>
    %89 = arith.addf %87, %88 : vector<16x128xf32>
    %90 = math.tanh %89 : vector<16x128xf32>
    %91 = arith.mulf %86, %90 : vector<16x128xf32>
    %92 = arith.truncf %91 : vector<16x128xf32> to vector<16x128xbf16>
    %c0_33 = arith.constant 0 : index
    %c0_34 = arith.constant 0 : index
    %93 = vector.load %arg10[%c0_33, %c0_34] : memref<16x128xbf16, #tpu.memory_space<vmem>>, vector<16x128xbf16>
    tpu.vector_store %arg10[%c0_33, %c0_34], %92 {strides = array<i32>} : memref<16x128xbf16, #tpu.memory_space<vmem>>, vector<16x128xbf16>,
    %c0_35 = arith.constant 0 : index
    %c0_36 = arith.constant 0 : index
    %94 = vector.load %arg11[%c0_35, %c0_36] : memref<16x128xf32, #tpu.memory_space<vmem>>, vector<16x128xf32>
    tpu.vector_store %arg11[%c0_35, %c0_36], %89 {strides = array<i32>} : memref<16x128xf32, #tpu.memory_space<vmem>>, vector<16x128xf32>,
    %95 = arith.truncf %91 : vector<16x128xf32> to vector<16x128xbf16>
    %96 = arith.index_cast %51 : i32 to index
    %c0_37 = arith.constant 0 : index
    %c0_38 = arith.constant 0 : index
    %97 = vector.load %arg7[%96, %c0_37, %c0_38] : memref<4x16x128xbf16, #tpu.memory_space<vmem>>, vector<1x16x128xbf16>
    %98 = vector.shape_cast %97 : vector<1x16x128xbf16> to vector<16x128xbf16>
    %99 = vector.shape_cast %95 : vector<16x128xbf16> to vector<1x16x128xbf16>
    tpu.vector_store %arg7[%96, %c0_37, %c0_38], %99 {strides = array<i32>} : memref<4x16x128xbf16, #tpu.memory_space<vmem>>, vector<1x16x128xbf16>,
    %c1_i32_39 = arith.constant 1 : i32
    %100 = arith.addi %7, %c1_i32_39 : i32
    %101 = arith.index_cast %100 : i32 to index
    %c0_40 = arith.constant 0 : index
    %c0_41 = arith.constant 0 : index
    %102 = vector.load %arg2[%101, %c0_40, %c0_41] : memref<4x16x512xbf16, #tpu.memory_space<vmem>>, vector<1x16x512xbf16>
    %103 = vector.shape_cast %102 : vector<1x16x512xbf16> to vector<16x512xbf16>
    %104 = arith.extf %103 : vector<16x512xbf16> to vector<16x512xf32>
    %c0_42 = arith.constant 0 : index
    %c0_43 = arith.constant 0 : index
    %105 = vector.load %arg8[%c0_42, %c0_43] : memref<16x128xbf16, #tpu.memory_space<vmem>>, vector<16x128xbf16>
    %c0_44 = arith.constant 0 : index
    %c0_45 = arith.constant 0 : index
    %106 = vector.load %arg9[%c0_44, %c0_45] : memref<16x128xf32, #tpu.memory_space<vmem>>, vector<16x128xf32>
    %c0_46 = arith.constant 0 : index
    %c0_47 = arith.constant 0 : index
    %107 = vector.load %arg4[%c0_46, %c0_47] : memref<128x512xbf16, #tpu.memory_space<vmem>>, vector<128x512xbf16>
    %cst_48 = arith.constant dense<0.000000e+00> : vector<16x512xf32>
    %108 = tpu.matmul %105, %107, %cst_48 {dimension_numbers = #tpu.dot_dimension_numbers<[1], [0], [0], [1], [0, 0, 1, 1], [], []>} : vector<16x128xbf16>, vector<128x512xbf16>, vector<16x512xf32> -> vector<16x512xf32>
    %109 = arith.addf %104, %108 : vector<16x512xf32>
    %110 = vector.extract_strided_slice %109 {offsets = [0, 0], sizes = [16, 128], strides = [1, 1]} : vector<16x512xf32> to vector<16x128xf32>
    %111 = arith.negf %110 : vector<16x128xf32>
    %112 = math.exp %111 : vector<16x128xf32>
    %cst_49 = arith.constant 1.000000e+00 : f32
    %113 = vector.broadcast %cst_49 : f32 to vector<16x128xf32>
    %114 = arith.addf %113, %112 : vector<16x128xf32>
    %115 = arith.divf %113, %114 : vector<16x128xf32>
    %116 = vector.extract_strided_slice %109 {offsets = [0, 128], sizes = [16, 128], strides = [1, 1]} : vector<16x512xf32> to vector<16x128xf32>
    %117 = arith.negf %116 : vector<16x128xf32>
    %118 = math.exp %117 : vector<16x128xf32>
    %cst_50 = arith.constant 1.000000e+00 : f32
    %119 = vector.broadcast %cst_50 : f32 to vector<16x128xf32>
    %120 = arith.addf %119, %118 : vector<16x128xf32>
    %121 = arith.divf %119, %120 : vector<16x128xf32>
    %122 = vector.extract_strided_slice %109 {offsets = [0, 256], sizes = [16, 128], strides = [1, 1]} : vector<16x512xf32> to vector<16x128xf32>
    %123 = math.tanh %122 : vector<16x128xf32>
    %124 = vector.extract_strided_slice %109 {offsets = [0, 384], sizes = [16, 128], strides = [1, 1]} : vector<16x512xf32> to vector<16x128xf32>
    %125 = arith.negf %124 : vector<16x128xf32>
    %126 = math.exp %125 : vector<16x128xf32>
    %cst_51 = arith.constant 1.000000e+00 : f32
    %127 = vector.broadcast %cst_51 : f32 to vector<16x128xf32>
    %128 = arith.addf %127, %126 : vector<16x128xf32>
    %129 = arith.divf %127, %128 : vector<16x128xf32>
    %130 = arith.mulf %121, %106 : vector<16x128xf32>
    %131 = arith.mulf %115, %123 : vector<16x128xf32>
    %132 = arith.addf %130, %131 : vector<16x128xf32>
    %133 = math.tanh %132 : vector<16x128xf32>
    %134 = arith.mulf %129, %133 : vector<16x128xf32>
    %135 = arith.truncf %134 : vector<16x128xf32> to vector<16x128xbf16>
    %c0_52 = arith.constant 0 : index
    %c0_53 = arith.constant 0 : index
    %136 = vector.load %arg8[%c0_52, %c0_53] : memref<16x128xbf16, #tpu.memory_space<vmem>>, vector<16x128xbf16>
    tpu.vector_store %arg8[%c0_52, %c0_53], %135 {strides = array<i32>} : memref<16x128xbf16, #tpu.memory_space<vmem>>, vector<16x128xbf16>,
    %c0_54 = arith.constant 0 : index
    %c0_55 = arith.constant 0 : index
    %137 = vector.load %arg9[%c0_54, %c0_55] : memref<16x128xf32, #tpu.memory_space<vmem>>, vector<16x128xf32>
    tpu.vector_store %arg9[%c0_54, %c0_55], %132 {strides = array<i32>} : memref<16x128xf32, #tpu.memory_space<vmem>>, vector<16x128xf32>,
    %138 = arith.truncf %134 : vector<16x128xf32> to vector<16x128xbf16>
    %139 = arith.index_cast %100 : i32 to index
    %c0_56 = arith.constant 0 : index
    %c0_57 = arith.constant 0 : index
    %140 = vector.load %arg6[%139, %c0_56, %c0_57] : memref<4x16x128xbf16, #tpu.memory_space<vmem>>, vector<1x16x128xbf16>
    %141 = vector.shape_cast %140 : vector<1x16x128xbf16> to vector<16x128xbf16>
    %142 = vector.shape_cast %138 : vector<16x128xbf16> to vector<1x16x128xbf16>
    tpu.vector_store %arg6[%139, %c0_56, %c0_57], %142 {strides = array<i32>} : memref<4x16x128xbf16, #tpu.memory_space<vmem>>, vector<1x16x128xbf16>,
    %c3_i32_58 = arith.constant 3 : i32
    %143 = arith.subi %c3_i32_58, %100 : i32
    %144 = arith.addi %4, %143 : i32
    %c9_i32_59 = arith.constant 9 : i32
    %145 = arith.cmpi slt, %144, %c9_i32_59 : i32
    %146 = arith.extui %145 : i1 to i32
    %147 = arith.sitofp %146 : i32 to f32
    %148 = arith.index_cast %143 : i32 to index
    %c0_60 = arith.constant 0 : index
    %c0_61 = arith.constant 0 : index
    %149 = vector.load %arg3[%148, %c0_60, %c0_61] : memref<4x16x512xbf16, #tpu.memory_space<vmem>>, vector<1x16x512xbf16>
    %150 = vector.shape_cast %149 : vector<1x16x512xbf16> to vector<16x512xbf16>
    %151 = arith.extf %150 : vector<16x512xbf16> to vector<16x512xf32>
    %152 = vector.broadcast %147 : f32 to vector<16x512xf32>
    %153 = arith.mulf %151, %152 : vector<16x512xf32>
    %c0_62 = arith.constant 0 : index
    %c0_63 = arith.constant 0 : index
    %154 = vector.load %arg10[%c0_62, %c0_63] : memref<16x128xbf16, #tpu.memory_space<vmem>>, vector<16x128xbf16>
    %c0_64 = arith.constant 0 : index
    %c0_65 = arith.constant 0 : index
    %155 = vector.load %arg11[%c0_64, %c0_65] : memref<16x128xf32, #tpu.memory_space<vmem>>, vector<16x128xf32>
    %c0_66 = arith.constant 0 : index
    %c0_67 = arith.constant 0 : index
    %156 = vector.load %arg5[%c0_66, %c0_67] : memref<128x512xbf16, #tpu.memory_space<vmem>>, vector<128x512xbf16>
    %cst_68 = arith.constant dense<0.000000e+00> : vector<16x512xf32>
    %157 = tpu.matmul %154, %156, %cst_68 {dimension_numbers = #tpu.dot_dimension_numbers<[1], [0], [0], [1], [0, 0, 1, 1], [], []>} : vector<16x128xbf16>, vector<128x512xbf16>, vector<16x512xf32> -> vector<16x512xf32>
    %158 = arith.addf %153, %157 : vector<16x512xf32>
    %159 = vector.extract_strided_slice %158 {offsets = [0, 0], sizes = [16, 128], strides = [1, 1]} : vector<16x512xf32> to vector<16x128xf32>
    %160 = arith.negf %159 : vector<16x128xf32>
    %161 = math.exp %160 : vector<16x128xf32>
    %cst_69 = arith.constant 1.000000e+00 : f32
    %162 = vector.broadcast %cst_69 : f32 to vector<16x128xf32>
    %163 = arith.addf %162, %161 : vector<16x128xf32>
    %164 = arith.divf %162, %163 : vector<16x128xf32>
    %165 = vector.extract_strided_slice %158 {offsets = [0, 128], sizes = [16, 128], strides = [1, 1]} : vector<16x512xf32> to vector<16x128xf32>
    %166 = arith.negf %165 : vector<16x128xf32>
    %167 = math.exp %166 : vector<16x128xf32>
    %cst_70 = arith.constant 1.000000e+00 : f32
    %168 = vector.broadcast %cst_70 : f32 to vector<16x128xf32>
    %169 = arith.addf %168, %167 : vector<16x128xf32>
    %170 = arith.divf %168, %169 : vector<16x128xf32>
    %171 = vector.extract_strided_slice %158 {offsets = [0, 256], sizes = [16, 128], strides = [1, 1]} : vector<16x512xf32> to vector<16x128xf32>
    %172 = math.tanh %171 : vector<16x128xf32>
    %173 = vector.extract_strided_slice %158 {offsets = [0, 384], sizes = [16, 128], strides = [1, 1]} : vector<16x512xf32> to vector<16x128xf32>
    %174 = arith.negf %173 : vector<16x128xf32>
    %175 = math.exp %174 : vector<16x128xf32>
    %cst_71 = arith.constant 1.000000e+00 : f32
    %176 = vector.broadcast %cst_71 : f32 to vector<16x128xf32>
    %177 = arith.addf %176, %175 : vector<16x128xf32>
    %178 = arith.divf %176, %177 : vector<16x128xf32>
    %179 = arith.mulf %170, %155 : vector<16x128xf32>
    %180 = arith.mulf %164, %172 : vector<16x128xf32>
    %181 = arith.addf %179, %180 : vector<16x128xf32>
    %182 = math.tanh %181 : vector<16x128xf32>
    %183 = arith.mulf %178, %182 : vector<16x128xf32>
    %184 = arith.truncf %183 : vector<16x128xf32> to vector<16x128xbf16>
    %c0_72 = arith.constant 0 : index
    %c0_73 = arith.constant 0 : index
    %185 = vector.load %arg10[%c0_72, %c0_73] : memref<16x128xbf16, #tpu.memory_space<vmem>>, vector<16x128xbf16>
    tpu.vector_store %arg10[%c0_72, %c0_73], %184 {strides = array<i32>} : memref<16x128xbf16, #tpu.memory_space<vmem>>, vector<16x128xbf16>,
    %c0_74 = arith.constant 0 : index
    %c0_75 = arith.constant 0 : index
    %186 = vector.load %arg11[%c0_74, %c0_75] : memref<16x128xf32, #tpu.memory_space<vmem>>, vector<16x128xf32>
    tpu.vector_store %arg11[%c0_74, %c0_75], %181 {strides = array<i32>} : memref<16x128xf32, #tpu.memory_space<vmem>>, vector<16x128xf32>,
    %187 = arith.truncf %183 : vector<16x128xf32> to vector<16x128xbf16>
    %188 = arith.index_cast %143 : i32 to index
    %c0_76 = arith.constant 0 : index
    %c0_77 = arith.constant 0 : index
    %189 = vector.load %arg7[%188, %c0_76, %c0_77] : memref<4x16x128xbf16, #tpu.memory_space<vmem>>, vector<1x16x128xbf16>
    %190 = vector.shape_cast %189 : vector<1x16x128xbf16> to vector<16x128xbf16>
    %191 = vector.shape_cast %187 : vector<16x128xbf16> to vector<1x16x128xbf16>
    tpu.vector_store %arg7[%188, %c0_76, %c0_77], %191 {strides = array<i32>} : memref<4x16x128xbf16, #tpu.memory_space<vmem>>, vector<1x16x128xbf16>,
    %c2_i32_78 = arith.constant 2 : i32
    %192 = arith.addi %7, %c2_i32_78 : i32
    %193 = arith.index_cast %192 : i32 to index
    %c0_79 = arith.constant 0 : index
    %c0_80 = arith.constant 0 : index
    %194 = vector.load %arg2[%193, %c0_79, %c0_80] : memref<4x16x512xbf16, #tpu.memory_space<vmem>>, vector<1x16x512xbf16>
    %195 = vector.shape_cast %194 : vector<1x16x512xbf16> to vector<16x512xbf16>
    %196 = arith.extf %195 : vector<16x512xbf16> to vector<16x512xf32>
    %c0_81 = arith.constant 0 : index
    %c0_82 = arith.constant 0 : index
    %197 = vector.load %arg8[%c0_81, %c0_82] : memref<16x128xbf16, #tpu.memory_space<vmem>>, vector<16x128xbf16>
    %c0_83 = arith.constant 0 : index
    %c0_84 = arith.constant 0 : index
    %198 = vector.load %arg9[%c0_83, %c0_84] : memref<16x128xf32, #tpu.memory_space<vmem>>, vector<16x128xf32>
    %c0_85 = arith.constant 0 : index
    %c0_86 = arith.constant 0 : index
    %199 = vector.load %arg4[%c0_85, %c0_86] : memref<128x512xbf16, #tpu.memory_space<vmem>>, vector<128x512xbf16>
    %cst_87 = arith.constant dense<0.000000e+00> : vector<16x512xf32>
    %200 = tpu.matmul %197, %199, %cst_87 {dimension_numbers = #tpu.dot_dimension_numbers<[1], [0], [0], [1], [0, 0, 1, 1], [], []>} : vector<16x128xbf16>, vector<128x512xbf16>, vector<16x512xf32> -> vector<16x512xf32>
    %201 = arith.addf %196, %200 : vector<16x512xf32>
    %202 = vector.extract_strided_slice %201 {offsets = [0, 0], sizes = [16, 128], strides = [1, 1]} : vector<16x512xf32> to vector<16x128xf32>
    %203 = arith.negf %202 : vector<16x128xf32>
    %204 = math.exp %203 : vector<16x128xf32>
    %cst_88 = arith.constant 1.000000e+00 : f32
    %205 = vector.broadcast %cst_88 : f32 to vector<16x128xf32>
    %206 = arith.addf %205, %204 : vector<16x128xf32>
    %207 = arith.divf %205, %206 : vector<16x128xf32>
    %208 = vector.extract_strided_slice %201 {offsets = [0, 128], sizes = [16, 128], strides = [1, 1]} : vector<16x512xf32> to vector<16x128xf32>
    %209 = arith.negf %208 : vector<16x128xf32>
    %210 = math.exp %209 : vector<16x128xf32>
    %cst_89 = arith.constant 1.000000e+00 : f32
    %211 = vector.broadcast %cst_89 : f32 to vector<16x128xf32>
    %212 = arith.addf %211, %210 : vector<16x128xf32>
    %213 = arith.divf %211, %212 : vector<16x128xf32>
    %214 = vector.extract_strided_slice %201 {offsets = [0, 256], sizes = [16, 128], strides = [1, 1]} : vector<16x512xf32> to vector<16x128xf32>
    %215 = math.tanh %214 : vector<16x128xf32>
    %216 = vector.extract_strided_slice %201 {offsets = [0, 384], sizes = [16, 128], strides = [1, 1]} : vector<16x512xf32> to vector<16x128xf32>
    %217 = arith.negf %216 : vector<16x128xf32>
    %218 = math.exp %217 : vector<16x128xf32>
    %cst_90 = arith.constant 1.000000e+00 : f32
    %219 = vector.broadcast %cst_90 : f32 to vector<16x128xf32>
    %220 = arith.addf %219, %218 : vector<16x128xf32>
    %221 = arith.divf %219, %220 : vector<16x128xf32>
    %222 = arith.mulf %213, %198 : vector<16x128xf32>
    %223 = arith.mulf %207, %215 : vector<16x128xf32>
    %224 = arith.addf %222, %223 : vector<16x128xf32>
    %225 = math.tanh %224 : vector<16x128xf32>
    %226 = arith.mulf %221, %225 : vector<16x128xf32>
    %227 = arith.truncf %226 : vector<16x128xf32> to vector<16x128xbf16>
    %c0_91 = arith.constant 0 : index
    %c0_92 = arith.constant 0 : index
    %228 = vector.load %arg8[%c0_91, %c0_92] : memref<16x128xbf16, #tpu.memory_space<vmem>>, vector<16x128xbf16>
    tpu.vector_store %arg8[%c0_91, %c0_92], %227 {strides = array<i32>} : memref<16x128xbf16, #tpu.memory_space<vmem>>, vector<16x128xbf16>,
    %c0_93 = arith.constant 0 : index
    %c0_94 = arith.constant 0 : index
    %229 = vector.load %arg9[%c0_93, %c0_94] : memref<16x128xf32, #tpu.memory_space<vmem>>, vector<16x128xf32>
    tpu.vector_store %arg9[%c0_93, %c0_94], %224 {strides = array<i32>} : memref<16x128xf32, #tpu.memory_space<vmem>>, vector<16x128xf32>,
    %230 = arith.truncf %226 : vector<16x128xf32> to vector<16x128xbf16>
    %231 = arith.index_cast %192 : i32 to index
    %c0_95 = arith.constant 0 : index
    %c0_96 = arith.constant 0 : index
    %232 = vector.load %arg6[%231, %c0_95, %c0_96] : memref<4x16x128xbf16, #tpu.memory_space<vmem>>, vector<1x16x128xbf16>
    %233 = vector.shape_cast %232 : vector<1x16x128xbf16> to vector<16x128xbf16>
    %234 = vector.shape_cast %230 : vector<16x128xbf16> to vector<1x16x128xbf16>
    tpu.vector_store %arg6[%231, %c0_95, %c0_96], %234 {strides = array<i32>} : memref<4x16x128xbf16, #tpu.memory_space<vmem>>, vector<1x16x128xbf16>,
    %c3_i32_97 = arith.constant 3 : i32
    %235 = arith.subi %c3_i32_97, %192 : i32
    %236 = arith.addi %4, %235 : i32
    %c9_i32_98 = arith.constant 9 : i32
    %237 = arith.cmpi slt, %236, %c9_i32_98 : i32
    %238 = arith.extui %237 : i1 to i32
    %239 = arith.sitofp %238 : i32 to f32
    %240 = arith.index_cast %235 : i32 to index
    %c0_99 = arith.constant 0 : index
    %c0_100 = arith.constant 0 : index
    %241 = vector.load %arg3[%240, %c0_99, %c0_100] : memref<4x16x512xbf16, #tpu.memory_space<vmem>>, vector<1x16x512xbf16>
    %242 = vector.shape_cast %241 : vector<1x16x512xbf16> to vector<16x512xbf16>
    %243 = arith.extf %242 : vector<16x512xbf16> to vector<16x512xf32>
    %244 = vector.broadcast %239 : f32 to vector<16x512xf32>
    %245 = arith.mulf %243, %244 : vector<16x512xf32>
    %c0_101 = arith.constant 0 : index
    %c0_102 = arith.constant 0 : index
    %246 = vector.load %arg10[%c0_101, %c0_102] : memref<16x128xbf16, #tpu.memory_space<vmem>>, vector<16x128xbf16>
    %c0_103 = arith.constant 0 : index
    %c0_104 = arith.constant 0 : index
    %247 = vector.load %arg11[%c0_103, %c0_104] : memref<16x128xf32, #tpu.memory_space<vmem>>, vector<16x128xf32>
    %c0_105 = arith.constant 0 : index
    %c0_106 = arith.constant 0 : index
    %248 = vector.load %arg5[%c0_105, %c0_106] : memref<128x512xbf16, #tpu.memory_space<vmem>>, vector<128x512xbf16>
    %cst_107 = arith.constant dense<0.000000e+00> : vector<16x512xf32>
    %249 = tpu.matmul %246, %248, %cst_107 {dimension_numbers = #tpu.dot_dimension_numbers<[1], [0], [0], [1], [0, 0, 1, 1], [], []>} : vector<16x128xbf16>, vector<128x512xbf16>, vector<16x512xf32> -> vector<16x512xf32>
    %250 = arith.addf %245, %249 : vector<16x512xf32>
    %251 = vector.extract_strided_slice %250 {offsets = [0, 0], sizes = [16, 128], strides = [1, 1]} : vector<16x512xf32> to vector<16x128xf32>
    %252 = arith.negf %251 : vector<16x128xf32>
    %253 = math.exp %252 : vector<16x128xf32>
    %cst_108 = arith.constant 1.000000e+00 : f32
    %254 = vector.broadcast %cst_108 : f32 to vector<16x128xf32>
    %255 = arith.addf %254, %253 : vector<16x128xf32>
    %256 = arith.divf %254, %255 : vector<16x128xf32>
    %257 = vector.extract_strided_slice %250 {offsets = [0, 128], sizes = [16, 128], strides = [1, 1]} : vector<16x512xf32> to vector<16x128xf32>
    %258 = arith.negf %257 : vector<16x128xf32>
    %259 = math.exp %258 : vector<16x128xf32>
    %cst_109 = arith.constant 1.000000e+00 : f32
    %260 = vector.broadcast %cst_109 : f32 to vector<16x128xf32>
    %261 = arith.addf %260, %259 : vector<16x128xf32>
    %262 = arith.divf %260, %261 : vector<16x128xf32>
    %263 = vector.extract_strided_slice %250 {offsets = [0, 256], sizes = [16, 128], strides = [1, 1]} : vector<16x512xf32> to vector<16x128xf32>
    %264 = math.tanh %263 : vector<16x128xf32>
    %265 = vector.extract_strided_slice %250 {offsets = [0, 384], sizes = [16, 128], strides = [1, 1]} : vector<16x512xf32> to vector<16x128xf32>
    %266 = arith.negf %265 : vector<16x128xf32>
    %267 = math.exp %266 : vector<16x128xf32>
    %cst_110 = arith.constant 1.000000e+00 : f32
    %268 = vector.broadcast %cst_110 : f32 to vector<16x128xf32>
    %269 = arith.addf %268, %267 : vector<16x128xf32>
    %270 = arith.divf %268, %269 : vector<16x128xf32>
    %271 = arith.mulf %262, %247 : vector<16x128xf32>
    %272 = arith.mulf %256, %264 : vector<16x128xf32>
    %273 = arith.addf %271, %272 : vector<16x128xf32>
    %274 = math.tanh %273 : vector<16x128xf32>
    %275 = arith.mulf %270, %274 : vector<16x128xf32>
    %276 = arith.truncf %275 : vector<16x128xf32> to vector<16x128xbf16>
    %c0_111 = arith.constant 0 : index
    %c0_112 = arith.constant 0 : index
    %277 = vector.load %arg10[%c0_111, %c0_112] : memref<16x128xbf16, #tpu.memory_space<vmem>>, vector<16x128xbf16>
    tpu.vector_store %arg10[%c0_111, %c0_112], %276 {strides = array<i32>} : memref<16x128xbf16, #tpu.memory_space<vmem>>, vector<16x128xbf16>,
    %c0_113 = arith.constant 0 : index
    %c0_114 = arith.constant 0 : index
    %278 = vector.load %arg11[%c0_113, %c0_114] : memref<16x128xf32, #tpu.memory_space<vmem>>, vector<16x128xf32>
    tpu.vector_store %arg11[%c0_113, %c0_114], %273 {strides = array<i32>} : memref<16x128xf32, #tpu.memory_space<vmem>>, vector<16x128xf32>,
    %279 = arith.truncf %275 : vector<16x128xf32> to vector<16x128xbf16>
    %280 = arith.index_cast %235 : i32 to index
    %c0_115 = arith.constant 0 : index
    %c0_116 = arith.constant 0 : index
    %281 = vector.load %arg7[%280, %c0_115, %c0_116] : memref<4x16x128xbf16, #tpu.memory_space<vmem>>, vector<1x16x128xbf16>
    %282 = vector.shape_cast %281 : vector<1x16x128xbf16> to vector<16x128xbf16>
    %283 = vector.shape_cast %279 : vector<16x128xbf16> to vector<1x16x128xbf16>
    tpu.vector_store %arg7[%280, %c0_115, %c0_116], %283 {strides = array<i32>} : memref<4x16x128xbf16, #tpu.memory_space<vmem>>, vector<1x16x128xbf16>,
    %c3_i32_117 = arith.constant 3 : i32
    %284 = arith.addi %7, %c3_i32_117 : i32
    %285 = arith.index_cast %284 : i32 to index
    %c0_118 = arith.constant 0 : index
    %c0_119 = arith.constant 0 : index
    %286 = vector.load %arg2[%285, %c0_118, %c0_119] : memref<4x16x512xbf16, #tpu.memory_space<vmem>>, vector<1x16x512xbf16>
    %287 = vector.shape_cast %286 : vector<1x16x512xbf16> to vector<16x512xbf16>
    %288 = arith.extf %287 : vector<16x512xbf16> to vector<16x512xf32>
    %c0_120 = arith.constant 0 : index
    %c0_121 = arith.constant 0 : index
    %289 = vector.load %arg8[%c0_120, %c0_121] : memref<16x128xbf16, #tpu.memory_space<vmem>>, vector<16x128xbf16>
    %c0_122 = arith.constant 0 : index
    %c0_123 = arith.constant 0 : index
    %290 = vector.load %arg9[%c0_122, %c0_123] : memref<16x128xf32, #tpu.memory_space<vmem>>, vector<16x128xf32>
    %c0_124 = arith.constant 0 : index
    %c0_125 = arith.constant 0 : index
    %291 = vector.load %arg4[%c0_124, %c0_125] : memref<128x512xbf16, #tpu.memory_space<vmem>>, vector<128x512xbf16>
    %cst_126 = arith.constant dense<0.000000e+00> : vector<16x512xf32>
    %292 = tpu.matmul %289, %291, %cst_126 {dimension_numbers = #tpu.dot_dimension_numbers<[1], [0], [0], [1], [0, 0, 1, 1], [], []>} : vector<16x128xbf16>, vector<128x512xbf16>, vector<16x512xf32> -> vector<16x512xf32>
    %293 = arith.addf %288, %292 : vector<16x512xf32>
    %294 = vector.extract_strided_slice %293 {offsets = [0, 0], sizes = [16, 128], strides = [1, 1]} : vector<16x512xf32> to vector<16x128xf32>
    %295 = arith.negf %294 : vector<16x128xf32>
    %296 = math.exp %295 : vector<16x128xf32>
    %cst_127 = arith.constant 1.000000e+00 : f32
    %297 = vector.broadcast %cst_127 : f32 to vector<16x128xf32>
    %298 = arith.addf %297, %296 : vector<16x128xf32>
    %299 = arith.divf %297, %298 : vector<16x128xf32>
    %300 = vector.extract_strided_slice %293 {offsets = [0, 128], sizes = [16, 128], strides = [1, 1]} : vector<16x512xf32> to vector<16x128xf32>
    %301 = arith.negf %300 : vector<16x128xf32>
    %302 = math.exp %301 : vector<16x128xf32>
    %cst_128 = arith.constant 1.000000e+00 : f32
    %303 = vector.broadcast %cst_128 : f32 to vector<16x128xf32>
    %304 = arith.addf %303, %302 : vector<16x128xf32>
    %305 = arith.divf %303, %304 : vector<16x128xf32>
    %306 = vector.extract_strided_slice %293 {offsets = [0, 256], sizes = [16, 128], strides = [1, 1]} : vector<16x512xf32> to vector<16x128xf32>
    %307 = math.tanh %306 : vector<16x128xf32>
    %308 = vector.extract_strided_slice %293 {offsets = [0, 384], sizes = [16, 128], strides = [1, 1]} : vector<16x512xf32> to vector<16x128xf32>
    %309 = arith.negf %308 : vector<16x128xf32>
    %310 = math.exp %309 : vector<16x128xf32>
    %cst_129 = arith.constant 1.000000e+00 : f32
    %311 = vector.broadcast %cst_129 : f32 to vector<16x128xf32>
    %312 = arith.addf %311, %310 : vector<16x128xf32>
    %313 = arith.divf %311, %312 : vector<16x128xf32>
    %314 = arith.mulf %305, %290 : vector<16x128xf32>
    %315 = arith.mulf %299, %307 : vector<16x128xf32>
    %316 = arith.addf %314, %315 : vector<16x128xf32>
    %317 = math.tanh %316 : vector<16x128xf32>
    %318 = arith.mulf %313, %317 : vector<16x128xf32>
    %319 = arith.truncf %318 : vector<16x128xf32> to vector<16x128xbf16>
    %c0_130 = arith.constant 0 : index
    %c0_131 = arith.constant 0 : index
    %320 = vector.load %arg8[%c0_130, %c0_131] : memref<16x128xbf16, #tpu.memory_space<vmem>>, vector<16x128xbf16>
    tpu.vector_store %arg8[%c0_130, %c0_131], %319 {strides = array<i32>} : memref<16x128xbf16, #tpu.memory_space<vmem>>, vector<16x128xbf16>,
    %c0_132 = arith.constant 0 : index
    %c0_133 = arith.constant 0 : index
    %321 = vector.load %arg9[%c0_132, %c0_133] : memref<16x128xf32, #tpu.memory_space<vmem>>, vector<16x128xf32>
    tpu.vector_store %arg9[%c0_132, %c0_133], %316 {strides = array<i32>} : memref<16x128xf32, #tpu.memory_space<vmem>>, vector<16x128xf32>,
    %322 = arith.truncf %318 : vector<16x128xf32> to vector<16x128xbf16>
    %323 = arith.index_cast %284 : i32 to index
    %c0_134 = arith.constant 0 : index
    %c0_135 = arith.constant 0 : index
    %324 = vector.load %arg6[%323, %c0_134, %c0_135] : memref<4x16x128xbf16, #tpu.memory_space<vmem>>, vector<1x16x128xbf16>
    %325 = vector.shape_cast %324 : vector<1x16x128xbf16> to vector<16x128xbf16>
    %326 = vector.shape_cast %322 : vector<16x128xbf16> to vector<1x16x128xbf16>
    tpu.vector_store %arg6[%323, %c0_134, %c0_135], %326 {strides = array<i32>} : memref<4x16x128xbf16, #tpu.memory_space<vmem>>, vector<1x16x128xbf16>,
    %c3_i32_136 = arith.constant 3 : i32
    %327 = arith.subi %c3_i32_136, %284 : i32
    %328 = arith.addi %4, %327 : i32
    %c9_i32_137 = arith.constant 9 : i32
    %329 = arith.cmpi slt, %328, %c9_i32_137 : i32
    %330 = arith.extui %329 : i1 to i32
    %331 = arith.sitofp %330 : i32 to f32
    %332 = arith.index_cast %327 : i32 to index
    %c0_138 = arith.constant 0 : index
    %c0_139 = arith.constant 0 : index
    %333 = vector.load %arg3[%332, %c0_138, %c0_139] : memref<4x16x512xbf16, #tpu.memory_space<vmem>>, vector<1x16x512xbf16>
    %334 = vector.shape_cast %333 : vector<1x16x512xbf16> to vector<16x512xbf16>
    %335 = arith.extf %334 : vector<16x512xbf16> to vector<16x512xf32>
    %336 = vector.broadcast %331 : f32 to vector<16x512xf32>
    %337 = arith.mulf %335, %336 : vector<16x512xf32>
    %c0_140 = arith.constant 0 : index
    %c0_141 = arith.constant 0 : index
    %338 = vector.load %arg10[%c0_140, %c0_141] : memref<16x128xbf16, #tpu.memory_space<vmem>>, vector<16x128xbf16>
    %c0_142 = arith.constant 0 : index
    %c0_143 = arith.constant 0 : index
    %339 = vector.load %arg11[%c0_142, %c0_143] : memref<16x128xf32, #tpu.memory_space<vmem>>, vector<16x128xf32>
    %c0_144 = arith.constant 0 : index
    %c0_145 = arith.constant 0 : index
    %340 = vector.load %arg5[%c0_144, %c0_145] : memref<128x512xbf16, #tpu.memory_space<vmem>>, vector<128x512xbf16>
    %cst_146 = arith.constant dense<0.000000e+00> : vector<16x512xf32>
    %341 = tpu.matmul %338, %340, %cst_146 {dimension_numbers = #tpu.dot_dimension_numbers<[1], [0], [0], [1], [0, 0, 1, 1], [], []>} : vector<16x128xbf16>, vector<128x512xbf16>, vector<16x512xf32> -> vector<16x512xf32>
    %342 = arith.addf %337, %341 : vector<16x512xf32>
    %343 = vector.extract_strided_slice %342 {offsets = [0, 0], sizes = [16, 128], strides = [1, 1]} : vector<16x512xf32> to vector<16x128xf32>
    %344 = arith.negf %343 : vector<16x128xf32>
    %345 = math.exp %344 : vector<16x128xf32>
    %cst_147 = arith.constant 1.000000e+00 : f32
    %346 = vector.broadcast %cst_147 : f32 to vector<16x128xf32>
    %347 = arith.addf %346, %345 : vector<16x128xf32>
    %348 = arith.divf %346, %347 : vector<16x128xf32>
    %349 = vector.extract_strided_slice %342 {offsets = [0, 128], sizes = [16, 128], strides = [1, 1]} : vector<16x512xf32> to vector<16x128xf32>
    %350 = arith.negf %349 : vector<16x128xf32>
    %351 = math.exp %350 : vector<16x128xf32>
    %cst_148 = arith.constant 1.000000e+00 : f32
    %352 = vector.broadcast %cst_148 : f32 to vector<16x128xf32>
    %353 = arith.addf %352, %351 : vector<16x128xf32>
    %354 = arith.divf %352, %353 : vector<16x128xf32>
    %355 = vector.extract_strided_slice %342 {offsets = [0, 256], sizes = [16, 128], strides = [1, 1]} : vector<16x512xf32> to vector<16x128xf32>
    %356 = math.tanh %355 : vector<16x128xf32>
    %357 = vector.extract_strided_slice %342 {offsets = [0, 384], sizes = [16, 128], strides = [1, 1]} : vector<16x512xf32> to vector<16x128xf32>
    %358 = arith.negf %357 : vector<16x128xf32>
    %359 = math.exp %358 : vector<16x128xf32>
    %cst_149 = arith.constant 1.000000e+00 : f32
    %360 = vector.broadcast %cst_149 : f32 to vector<16x128xf32>
    %361 = arith.addf %360, %359 : vector<16x128xf32>
    %362 = arith.divf %360, %361 : vector<16x128xf32>
    %363 = arith.mulf %354, %339 : vector<16x128xf32>
    %364 = arith.mulf %348, %356 : vector<16x128xf32>
    %365 = arith.addf %363, %364 : vector<16x128xf32>
    %366 = math.tanh %365 : vector<16x128xf32>
    %367 = arith.mulf %362, %366 : vector<16x128xf32>
    %368 = arith.truncf %367 : vector<16x128xf32> to vector<16x128xbf16>
    %c0_150 = arith.constant 0 : index
    %c0_151 = arith.constant 0 : index
    %369 = vector.load %arg10[%c0_150, %c0_151] : memref<16x128xbf16, #tpu.memory_space<vmem>>, vector<16x128xbf16>
    tpu.vector_store %arg10[%c0_150, %c0_151], %368 {strides = array<i32>} : memref<16x128xbf16, #tpu.memory_space<vmem>>, vector<16x128xbf16>,
    %c0_152 = arith.constant 0 : index
    %c0_153 = arith.constant 0 : index
    %370 = vector.load %arg11[%c0_152, %c0_153] : memref<16x128xf32, #tpu.memory_space<vmem>>, vector<16x128xf32>
    tpu.vector_store %arg11[%c0_152, %c0_153], %365 {strides = array<i32>} : memref<16x128xf32, #tpu.memory_space<vmem>>, vector<16x128xf32>,
    %371 = arith.truncf %367 : vector<16x128xf32> to vector<16x128xbf16>
    %372 = arith.index_cast %327 : i32 to index
    %c0_154 = arith.constant 0 : index
    %c0_155 = arith.constant 0 : index
    %373 = vector.load %arg7[%372, %c0_154, %c0_155] : memref<4x16x128xbf16, #tpu.memory_space<vmem>>, vector<1x16x128xbf16>
    %374 = vector.shape_cast %373 : vector<1x16x128xbf16> to vector<16x128xbf16>
    %375 = vector.shape_cast %371 : vector<16x128xbf16> to vector<1x16x128xbf16>
    tpu.vector_store %arg7[%372, %c0_154, %c0_155], %375 {strides = array<i32>} : memref<4x16x128xbf16, #tpu.memory_space<vmem>>, vector<1x16x128xbf16>,
    %c1_i32_156 = arith.constant 1 : i32
    return
  }
  func.func @transform_0(%arg0: i32, %arg1: i32) -> (i32, i32, i32) {
    %c0_i32 = arith.constant 0 : i32
    %c0_i32_0 = arith.constant 0 : i32
    return %arg1, %arg0, %c0_i32 : i32, i32, i32
  }
  func.func @transform_1(%arg0: i32, %arg1: i32) -> (i32, i32, i32) {
    %c2_i32 = arith.constant 2 : i32
    %0 = arith.subi %c2_i32, %arg1 : i32
    %c0_i32 = arith.constant 0 : i32
    %c0_i32_0 = arith.constant 0 : i32
    return %0, %arg0, %c0_i32 : i32, i32, i32
  }
  func.func @transform_2(%arg0: i32, %arg1: i32) -> (i32, i32) {
    %c0_i32 = arith.constant 0 : i32
    %c0_i32_0 = arith.constant 0 : i32
    %c0_i32_1 = arith.constant 0 : i32
    return %c0_i32, %c0_i32_0 : i32, i32
  }
  func.func @transform_3(%arg0: i32, %arg1: i32) -> (i32, i32) {
    %c0_i32 = arith.constant 0 : i32
    %c0_i32_0 = arith.constant 0 : i32
    %c0_i32_1 = arith.constant 0 : i32
    return %c0_i32, %c0_i32_0 : i32, i32
  }
  func.func @transform_4(%arg0: i32, %arg1: i32) -> (i32, i32, i32) {
    %c0_i32 = arith.constant 0 : i32
    %c0_i32_0 = arith.constant 0 : i32
    return %arg1, %arg0, %c0_i32 : i32, i32, i32
  }
  func.func @transform_5(%arg0: i32, %arg1: i32) -> (i32, i32, i32) {
    %c2_i32 = arith.constant 2 : i32
    %0 = arith.subi %c2_i32, %arg1 : i32
    %c0_i32 = arith.constant 0 : i32
    %c0_i32_0 = arith.constant 0 : i32
    return %0, %arg0, %c0_i32 : i32, i32, i32
  }
}

</mosaic_0001>

<llo_original>
// kernel: word_lstm_encoder_forward.3
$region0: #{word_lstm_encoder_forward.3}
  #allocation0 [shape = 'u32[]', space=smem, size = 0x4, offset = 0x4, fixed_abs, tag = 'smem constant byte address 0x4 - core index']
  #allocation1 [shape = 'u32[144,128]{1,0:T(1,128)}', space=vmem, size = 0x12000, scoped, tag = 'internal scratch']
  #allocation2 [shape = 'bf16[16,128]{1,0:T(16,128)(2,1)}', space=vmem, size = 0x1000, scoped, tag = 'scratch operand']
  #allocation3 [shape = 'f32[16,128]{1,0:T(8,128)}', space=vmem, size = 0x2000, scoped, tag = 'scratch operand']
  #allocation4 [shape = 'bf16[16,128]{1,0:T(16,128)(2,1)}', space=vmem, size = 0x1000, scoped, tag = 'scratch operand']
  #allocation5 [shape = 'f32[16,128]{1,0:T(8,128)}', space=vmem, size = 0x2000, scoped, tag = 'scratch operand']
  %s0 = inlined_call_operand.vmem [shape: bf16[12,16,512], index: 0, kind: input, shape index: {}]
  %s1 = inlined_call_operand.vmem [shape: bf16[12,16,512], index: 1, kind: input, shape index: {}]
  %s2 = inlined_call_operand.vmem [shape: bf16[128,512], index: 2, kind: input, shape index: {}]
  %s3 = inlined_call_operand.vmem [shape: bf16[128,512], index: 3, kind: input, shape index: {}]
  %s4 = inlined_call_operand.vmem [shape: bf16[12,16,128], index: 4, kind: output, shape index: {0}]
  %s5 = inlined_call_operand.vmem [shape: bf16[12,16,128], index: 5, kind: output, shape index: {1}]
  %6 = xla_tuple %s4, %s5
  %s7 = sld [smem:[#allocation0]]
  $region61: #{word_lstm_encoder_forward.3} parent=0
    _
  %s9 = ssub.s32 1, %s7
  %s10 = scalar_select 0, %s9, %s7
  loop: start=0, step=1, limit=5
  $region2: #{word_lstm_encoder_forward.3} parent=0 // loop_pre_header
    _
  $region3: #{word_lstm_encoder_forward.3} parent=0 // loop_header
    %s12 = sphi 0, %s16
    %p13 = scmp.ge.s32.totalorder %s12, 5
    %s19 = sphi 0, %s31
    %s20 = sphi 0, %s27
    %s21 = sphi 0, %s19
    %s22 = sphi 0, %s20
    %s23 = sphi 0, %s21
    %s24 = sphi 0, %s22
    %s36 = sphi 0, %s38
    %s39 = sphi 0, %s36
    %s40 = sphi 0, %s39
    %s56 = sphi 0, %s40
    %s66 = sphi 0, %s68
    %s69 = sphi 0, %s66
    %s70 = sphi 0, %s69
    %s86 = sphi 0, %s70
    %s90 = sphi 0, %s90
    %s92 = sphi 0, %s90
    %s93 = sphi 0, %s92
    %s107 = sphi 0, %s93
    %s111 = sphi 0, %s111
    %s113 = sphi 0, %s111
    %s114 = sphi 0, %s113
    %s128 = sphi 0, %s114
    %s136 = sphi 0, %s138
    %s139 = sphi 0, %s136
    %s140 = sphi 0, %s139
    %s156 = sphi 0, %s140
    %s166 = sphi 0, %s168
    %s169 = sphi 0, %s166
    %s170 = sphi 0, %s169
    %s186 = sphi 0, %s170
  $region4: #{word_lstm_encoder_forward.3} parent=0 // loop_header_branch
    %15 = sbr.rel (%p13) target = $region8
  $region5: #{word_lstm_encoder_forward.3} parent=0 // loop_body
    %s17 = ssub.s32 %s12, 1
    %s18 = ssub.s32 %s12, 2
    %s25 = sadd.s32 1, %s20
    %p26 = scmp.ge.s32.totalorder %s25, 3
    %s27 = scalar_select %p26, 0, %s25
    %s28 = sadd.s32 1, %s19
    %s29 = scalar_select %p26, %s28, %s19
    %p30 = scmp.ge.s32.totalorder %s29, 1
    %s31 = scalar_select %p30, 0, %s29
    %s32 = ssub.s32 %s20, %s27
    %s33 = ssub.s32 %s19, %s31
    %s34 = sor.u32 %s32, %s33
    %p35 = scmp.eq.s32.totalorder %s34, 0
    %s37 = sadd.s32 %s36, 1
    %s38 = scalar_select %p35, %s36, %s37
    %p41 = pneg %p35
    %p42 = scmp.eq.s32.totalorder %s12, 2
    %p43 = por %p41, %p42
    %p44 = scmp.ne.s32.totalorder %s36, %s39
    %p45 = scmp.eq.s32.totalorder %s12, 0
    %p46 = por %p44, %p45
    %p47 = scmp.ne.s32.totalorder %s36, %s39
    %p48 = scmp.eq.s32.totalorder %s17, 2
    %p49 = por %p47, %p48
    %p50 = scmp.ne.s32.totalorder %s39, %s40
    %p51 = scmp.eq.s32.totalorder %s17, 0
    %p52 = por %p50, %p51
    %p53 = scmp.ne.s32.totalorder %s39, %s40
    %p54 = scmp.eq.s32.totalorder %s18, 2
    %p55 = por %p53, %p54
    %p57 = scmp.ne.s32.totalorder %s40, %s56
    %p58 = scmp.eq.s32.totalorder %s18, 0
    %p59 = por %p57, %p58
    %s60 = ssub.s32 2, %s20
    %s61 = ssub.s32 2, %s27
    %s62 = ssub.s32 %s60, %s61
    %s63 = ssub.s32 %s19, %s31
    %s64 = sor.u32 %s62, %s63
    %p65 = scmp.eq.s32.totalorder %s64, 0
    %s67 = sadd.s32 %s66, 1
    %s68 = scalar_select %p65, %s66, %s67
    %p71 = pneg %p65
    %p72 = scmp.eq.s32.totalorder %s12, 2
    %p73 = por %p71, %p72
    %p74 = scmp.ne.s32.totalorder %s66, %s69
    %p75 = scmp.eq.s32.totalorder %s12, 0
    %p76 = por %p74, %p75
    %p77 = scmp.ne.s32.totalorder %s66, %s69
    %p78 = scmp.eq.s32.totalorder %s17, 2
    %p79 = por %p77, %p78
    %p80 = scmp.ne.s32.totalorder %s69, %s70
    %p81 = scmp.eq.s32.totalorder %s17, 0
    %p82 = por %p80, %p81
    %p83 = scmp.ne.s32.totalorder %s69, %s70
    %p84 = scmp.eq.s32.totalorder %s18, 2
    %p85 = por %p83, %p84
    %p87 = scmp.ne.s32.totalorder %s70, %s86
    %p88 = scmp.eq.s32.totalorder %s18, 0
    %p89 = por %p87, %p88
    %s91 = sadd.s32 %s90, 1
    %p94 = scmp.eq.s32.totalorder %s12, 2
    %p95 = scmp.ne.s32.totalorder %s90, %s92
    %p96 = scmp.eq.s32.totalorder %s12, 0
    %p97 = por %p95, %p96
    %p98 = scmp.ne.s32.totalorder %s90, %s92
    %p99 = scmp.eq.s32.totalorder %s17, 2
    %p100 = por %p98, %p99
    %p101 = scmp.ne.s32.totalorder %s92, %s93
    %p102 = scmp.eq.s32.totalorder %s17, 0
    %p103 = por %p101, %p102
    %p104 = scmp.ne.s32.totalorder %s92, %s93
    %p105 = scmp.eq.s32.totalorder %s18, 2
    %p106 = por %p104, %p105
    %p108 = scmp.ne.s32.totalorder %s93, %s107
    %p109 = scmp.eq.s32.totalorder %s18, 0
    %p110 = por %p108, %p109
    %s112 = sadd.s32 %s111, 1
    %p115 = scmp.eq.s32.totalorder %s12, 2
    %p116 = scmp.ne.s32.totalorder %s111, %s113
    %p117 = scmp.eq.s32.totalorder %s12, 0
    %p118 = por %p116, %p117
    %p119 = scmp.ne.s32.totalorder %s111, %s113
    %p120 = scmp.eq.s32.totalorder %s17, 2
    %p121 = por %p119, %p120
    %p122 = scmp.ne.s32.totalorder %s113, %s114
    %p123 = scmp.eq.s32.totalorder %s17, 0
    %p124 = por %p122, %p123
    %p125 = scmp.ne.s32.totalorder %s113, %s114
    %p126 = scmp.eq.s32.totalorder %s18, 2
    %p127 = por %p125, %p126
    %p129 = scmp.ne.s32.totalorder %s114, %s128
    %p130 = scmp.eq.s32.totalorder %s18, 0
    %p131 = por %p129, %p130
    %s132 = ssub.s32 %s20, %s27
    %s133 = ssub.s32 %s19, %s31
    %s134 = sor.u32 %s132, %s133
    %p135 = scmp.eq.s32.totalorder %s134, 0
    %s137 = sadd.s32 %s136, 1
    %s138 = scalar_select %p135, %s136, %s137
    %p141 = pneg %p135
    %p142 = scmp.eq.s32.totalorder %s12, 2
    %p143 = por %p141, %p142
    %p144 = scmp.ne.s32.totalorder %s136, %s139
    %p145 = scmp.eq.s32.totalorder %s12, 0
    %p146 = por %p144, %p145
    %p147 = scmp.ne.s32.totalorder %s136, %s139
    %p148 = scmp.eq.s32.totalorder %s17, 2
    %p149 = por %p147, %p148
    %p150 = scmp.ne.s32.totalorder %s139, %s140
    %p151 = scmp.eq.s32.totalorder %s17, 0
    %p152 = por %p150, %p151
    %p153 = scmp.ne.s32.totalorder %s139, %s140
    %p154 = scmp.eq.s32.totalorder %s18, 2
    %p155 = por %p153, %p154
    %p157 = scmp.ne.s32.totalorder %s140, %s156
    %p158 = scmp.eq.s32.totalorder %s18, 0
    %p159 = por %p157, %p158
    %s160 = ssub.s32 2, %s20
    %s161 = ssub.s32 2, %s27
    %s162 = ssub.s32 %s160, %s161
    %s163 = ssub.s32 %s19, %s31
    %s164 = sor.u32 %s162, %s163
    %p165 = scmp.eq.s32.totalorder %s164, 0
    %s167 = sadd.s32 %s166, 1
    %s168 = scalar_select %p165, %s166, %s167
    %p171 = pneg %p165
    %p172 = scmp.eq.s32.totalorder %s12, 2
    %p173 = por %p171, %p172
    %p174 = scmp.ne.s32.totalorder %s166, %s169
    %p175 = scmp.eq.s32.totalorder %s12, 0
    %p176 = por %p174, %p175
    %p177 = scmp.ne.s32.totalorder %s166, %s169
    %p178 = scmp.eq.s32.totalorder %s17, 2
    %p179 = por %p177, %p178
    %p180 = scmp.ne.s32.totalorder %s169, %s170
    %p181 = scmp.eq.s32.totalorder %s17, 0
    %p182 = por %p180, %p181
    %p183 = scmp.ne.s32.totalorder %s169, %s170
    %p184 = scmp.eq.s32.totalorder %s18, 2
    %p185 = por %p183, %p184
    %p187 = scmp.ne.s32.totalorder %s170, %s186
    %p188 = scmp.eq.s32.totalorder %s18, 0
    %p189 = por %p187, %p188
    %p190 = scmp.le.s32.totalorder 1, %s12
    %p191 = scmp.lt.s32.totalorder %s12, 4
    %p192 = pnand %p190, %p191
    %p193 = pneg %p192
    // Predicated region
    $region9: #{word_lstm_encoder_forward.3} parent=5 // pred_check
      _
    $region10: #{word_lstm_encoder_forward.3} parent=5 // pred_check_branch
      %195 = sbr.rel (%p192) target = $region12
    $region11: #{word_lstm_encoder_forward.3} parent=5 // pred_region
      %s196 = ssub.s32 %s12, 1
      // Predicated region
      $region13: #{word_lstm_encoder_forward.3} parent=11 // pred_check
        %p197 = pneg %p103
      $region14: #{word_lstm_encoder_forward.3} parent=11 // pred_check_branch
        %199 = sbr.rel (%p197) target = $region16
      $region15: #{word_lstm_encoder_forward.3} parent=11 // pred_region
        _
      $region16: #{word_lstm_encoder_forward.3} parent=11 // pred_fallthru
        _
      // Predicated region
      $region17: #{word_lstm_encoder_forward.3} parent=11 // pred_check
        %p200 = pneg %p124
      $region18: #{word_lstm_encoder_forward.3} parent=11 // pred_check_branch
        %202 = sbr.rel (%p200) target = $region20
      $region19: #{word_lstm_encoder_forward.3} parent=11 // pred_region
        _
      $region20: #{word_lstm_encoder_forward.3} parent=11 // pred_fallthru
        _
    $region12: #{word_lstm_encoder_forward.3} parent=5 // pred_fallthru
      _
    %p203 = scmp.lt.s32.totalorder %s12, 3
    // Predicated region
    $region21: #{word_lstm_encoder_forward.3} parent=5 // pred_check
      %p204 = pneg %p203
    $region22: #{word_lstm_encoder_forward.3} parent=5 // pred_check_branch
      %206 = sbr.rel (%p204) target = $region24
    $region23: #{word_lstm_encoder_forward.3} parent=5 // pred_region
      // Predicated region
      $region25: #{word_lstm_encoder_forward.3} parent=23 // pred_check
        %p207 = pneg %p46
      $region26: #{word_lstm_encoder_forward.3} parent=23 // pred_check_branch
        %209 = sbr.rel (%p207) target = $region28
      $region27: #{word_lstm_encoder_forward.3} parent=23 // pred_region
        %s210 = smul.u32 4, %s20
        %s211 = smul.u32 2, %s19
        %p212 = scmp.lt.s32.totalorder %s210, 11
        %s213 = scalar_select %p212, %s210, 11
        %p214 = scmp.lt.s32.totalorder %s211, 1
        %s215 = scalar_select %p214, %s211, 1
        %s216 = smul.addr %s215, 4
        %s217 = smul.addr %s213, 8
        %s218 = sadd.s32 %s216, %s217
        %s219 = smul.addr %s218, 4
        %s220 = scalar_lea.vmem %s0, %s219
        %s221 = smul.u32 4, %s20
        %s222 = smul.u32 2, %s19
      $region28: #{word_lstm_encoder_forward.3} parent=23 // pred_fallthru
        _
      // Predicated region
      $region29: #{word_lstm_encoder_forward.3} parent=23 // pred_check
        %p223 = pneg %p76
      $region30: #{word_lstm_encoder_forward.3} parent=23 // pred_check_branch
        %225 = sbr.rel (%p223) target = $region32
      $region31: #{word_lstm_encoder_forward.3} parent=23 // pred_region
        %s226 = ssub.s32 2, %s20
        %s227 = smul.u32 4, %s226
        %s228 = smul.u32 2, %s19
        %p229 = scmp.lt.s32.totalorder %s227, 11
        %s230 = scalar_select %p229, %s227, 11
        %p231 = scmp.lt.s32.totalorder %s228, 1
        %s232 = scalar_select %p231, %s228, 1
        %s233 = smul.addr %s232, 4
        %s234 = smul.addr %s230, 8
        %s235 = sadd.s32 %s233, %s234
        %s236 = smul.addr %s235, 4
        %s237 = scalar_lea.vmem %s1, %s236
        %s238 = ssub.s32 2, %s20
        %s239 = smul.u32 4, %s238
        %s240 = smul.u32 2, %s19
      $region32: #{word_lstm_encoder_forward.3} parent=23 // pred_fallthru
        _
    $region24: #{word_lstm_encoder_forward.3} parent=5 // pred_fallthru
      _
    %p241 = scmp.le.s32.totalorder 1, %s12
    %p242 = scmp.lt.s32.totalorder %s12, 4
    %p243 = pnand %p241, %p242
    %p244 = pneg %p243
    // Predicated region
    $region33: #{word_lstm_encoder_forward.3} parent=5 // pred_check
      _
    $region34: #{word_lstm_encoder_forward.3} parent=5 // pred_check_branch
      %246 = sbr.rel (%p243) target = $region36
    $region35: #{word_lstm_encoder_forward.3} parent=5 // pred_region
      %s247 = ssub.s32 %s12, 1
      %s248 = smul.u32 4, %s22
      %s249 = smul.u32 2, %s21
      %p250 = scmp.lt.s32.totalorder %s248, 11
      %s251 = scalar_select %p250, %s248, 11
      %p252 = scmp.lt.s32.totalorder %s249, 1
      %s253 = scalar_select %p252, %s249, 1
      %s254 = smul.addr %s253, 4
      %s255 = smul.addr %s251, 8
      %s256 = sadd.s32 %s254, %s255
      %s257 = smul.addr %s256, 4
      %s258 = scalar_lea.vmem %s0, %s257
      %p259 = pneg %p52
      %p260 = pneg %p49
      %s261 = ssub.s32 2, %s22
      %s262 = smul.u32 4, %s261
      %s263 = smul.u32 2, %s21
      %p264 = scmp.lt.s32.totalorder %s262, 11
      %s265 = scalar_select %p264, %s262, 11
      %p266 = scmp.lt.s32.totalorder %s263, 1
      %s267 = scalar_select %p266, %s263, 1
      %s268 = smul.addr %s267, 4
      %s269 = smul.addr %s265, 8
      %s270 = sadd.s32 %s268, %s269
      %s271 = smul.addr %s270, 4
      %s272 = scalar_lea.vmem %s1, %s271
      %p273 = pneg %p82
      %p274 = pneg %p79
      %p275 = pneg %p103
      %p276 = pneg %p100
      %p277 = pneg %p124
      %p278 = pneg %p121
      %p279 = pneg %p152
      %p280 = pneg %p149
      %s281 = smul.u32 4, %s22
      %p282 = scmp.lt.s32.totalorder %s281, 11
      %s283 = scalar_select %p282, %s281, 11
      %p284 = scmp.lt.s32.totalorder %s21, 0
      %s285 = scalar_select %p284, %s21, 0
      %s286 = sadd.s32 %s285, %s283
      %s287 = smul.addr %s286, 8
      %s288 = scalar_lea.vmem %s4, %s287
      %p289 = pneg %p182
      %p290 = pneg %p179
      %s291 = ssub.s32 2, %s22
      %s292 = smul.u32 4, %s291
      %p293 = scmp.lt.s32.totalorder %s292, 11
      %s294 = scalar_select %p293, %s292, 11
      %p295 = scmp.lt.s32.totalorder %s21, 0
      %s296 = scalar_select %p295, %s21, 0
      %s297 = sadd.s32 %s296, %s294
      %s298 = smul.addr %s297, 8
      %s299 = scalar_lea.vmem %s5, %s298
      %s300 = smul.u32 4, %s22
      %s301 = smul.u32 2, %s21
      %p302 = scmp.lt.s32.totalorder %s300, 11
      %s303 = scalar_select %p302, %s300, 11
      %p304 = scmp.lt.s32.totalorder %s301, 1
      %s305 = scalar_select %p304, %s301, 1
      %s306 = smul.addr %s305, 4
      %s307 = smul.addr %s303, 8
      %s308 = sadd.s32 %s306, %s307
      %s309 = smul.addr %s308, 4
      %s310 = scalar_lea.vmem %s0, %s309
      %s311 = smul.u32 4, %s22
      %s312 = smul.u32 2, %s21
      %s313 = ssub.s32 2, %s22
      %s314 = smul.u32 4, %s313
      %s315 = smul.u32 2, %s21
      %p316 = scmp.lt.s32.totalorder %s314, 11
      %s317 = scalar_select %p316, %s314, 11
      %p318 = scmp.lt.s32.totalorder %s315, 1
      %s319 = scalar_select %p318, %s315, 1
      %s320 = smul.addr %s319, 4
      %s321 = smul.addr %s317, 8
      %s322 = sadd.s32 %s320, %s321
      %s323 = smul.addr %s322, 4
      %s324 = scalar_lea.vmem %s1, %s323
      %s325 = ssub.s32 2, %s22
      %s326 = smul.u32 4, %s325
      %s327 = smul.u32 2, %s21
      %s328 = smul.u32 4, %s22
      %p329 = scmp.lt.s32.totalorder %s328, 11
      %s330 = scalar_select %p329, %s328, 11
      %p331 = scmp.lt.s32.totalorder %s21, 0
      %s332 = scalar_select %p331, %s21, 0
      %s333 = sadd.s32 %s332, %s330
      %s334 = smul.addr %s333, 8
      %s335 = scalar_lea.vmem %s4, %s334
      %s336 = smul.u32 4, %s22
      %s337 = ssub.s32 2, %s22
      %s338 = smul.u32 4, %s337
      %p339 = scmp.lt.s32.totalorder %s338, 11
      %s340 = scalar_select %p339, %s338, 11
      %p341 = scmp.lt.s32.totalorder %s21, 0
      %s342 = scalar_select %p341, %s21, 0
      %s343 = sadd.s32 %s342, %s340
      %s344 = smul.addr %s343, 8
      %s345 = scalar_lea.vmem %s5, %s344
      %s346 = ssub.s32 2, %s22
      %s347 = smul.u32 4, %s346
      %p349 = scmp.eq.s32.totalorder %s22, 0
      // Predicated region
      $region37: #{word_lstm_encoder_forward.3} parent=35 // pred_check
        %p350 = pneg %p349
      $region38: #{word_lstm_encoder_forward.3} parent=35 // pred_check_branch
        %352 = sbr.rel (%p350) target = $region40
      $region39: #{word_lstm_encoder_forward.3} parent=35 // pred_region
        %353 = vst [vmem:[#allocation2] sm:$0xff] 0
        %354 = vst [vmem:[#allocation3] sm:$0xff] 0.0
        %355 = vst [vmem:[#allocation3 + $0x8] sm:$0xff] 0.0
        %356 = vst [vmem:[#allocation4] sm:$0xff] 0
        %357 = vst [vmem:[#allocation5] sm:$0xff] 0.0
        %358 = vst [vmem:[#allocation5 + $0x8] sm:$0xff] 0.0
      $region40: #{word_lstm_encoder_forward.3} parent=35 // pred_fallthru
        _
      %s359 = ssub.s32 2, %s22
      %s360 = smul.u32 %s359, 4
      %v361 = vld [vmem:[%s310] sm:$0xff]
      %v362 = vld [vmem:[%s310 + $0x8] sm:$0xff]
      %v363 = vld [vmem:[%s310 + $0x10] sm:$0xff]
      %v364 = vld [vmem:[%s310 + $0x18] sm:$0xff]
      %v365 = vunpack.c.l.bf16 %v361
      %v366 = vunpack.c.h.bf16 %v361
      %v367 = vunpack.c.l.bf16 %v362
      %v368 = vunpack.c.h.bf16 %v362
      %v369 = vunpack.c.l.bf16 %v363
      %v370 = vunpack.c.h.bf16 %v363
      %v371 = vunpack.c.l.bf16 %v364
      %v372 = vunpack.c.h.bf16 %v364
      %v373 = vld [vmem:[#allocation2] sm:$0xff]
      %v374 = vld [vmem:[#allocation3] sm:$0xff]
      %v375 = vld [vmem:[#allocation3 + $0x8] sm:$0xff]
      %v376 = vld [vmem:[%s2] sm:$0xff]
      %v377 = vld [vmem:[%s2 + $0x8] sm:$0xff]
      %v378 = vld [vmem:[%s2 + $0x10] sm:$0xff]
      %v379 = vld [vmem:[%s2 + $0x18] sm:$0xff]
      %v380 = vld [vmem:[%s2 + $0x20] sm:$0xff]
      %v381 = vld [vmem:[%s2 + $0x28] sm:$0xff]
      %v382 = vld [vmem:[%s2 + $0x30] sm:$0xff]
      %v383 = vld [vmem:[%s2 + $0x38] sm:$0xff]
      %v384 = vld [vmem:[%s2 + $0x40] sm:$0xff]
      %v385 = vld [vmem:[%s2 + $0x48] sm:$0xff]
      %v386 = vld [vmem:[%s2 + $0x50] sm:$0xff]
      %v387 = vld [vmem:[%s2 + $0x58] sm:$0xff]
      %v388 = vld [vmem:[%s2 + $0x60] sm:$0xff]
      %v389 = vld [vmem:[%s2 + $0x68] sm:$0xff]
      %v390 = vld [vmem:[%s2 + $0x70] sm:$0xff]
      %v391 = vld [vmem:[%s2 + $0x78] sm:$0xff]
      %v392 = vld [vmem:[%s2 + $0x80] sm:$0xff]
      %v393 = vld [vmem:[%s2 + $0x88] sm:$0xff]
      %v394 = vld [vmem:[%s2 + $0x90] sm:$0xff]
      %v395 = vld [vmem:[%s2 + $0x98] sm:$0xff]
      %v396 = vld [vmem:[%s2 + $0xa0] sm:$0xff]
      %v397 = vld [vmem:[%s2 + $0xa8] sm:$0xff]
      %v398 = vld [vmem:[%s2 + $0xb0] sm:$0xff]
      %v399 = vld [vmem:[%s2 + $0xb8] sm:$0xff]
      %v400 = vld [vmem:[%s2 + $0xc0] sm:$0xff]
      %v401 = vld [vmem:[%s2 + $0xc8] sm:$0xff]
      %v402 = vld [vmem:[%s2 + $0xd0] sm:$0xff]
      %v403 = vld [vmem:[%s2 + $0xd8] sm:$0xff]
      %v404 = vld [vmem:[%s2 + $0xe0] sm:$0xff]
      %v405 = vld [vmem:[%s2 + $0xe8] sm:$0xff]
      %v406 = vld [vmem:[%s2 + $0xf0] sm:$0xff]
      %v407 = vld [vmem:[%s2 + $0xf8] sm:$0xff]
      %v440 = vunpack.c.l.b16 %v376
      %v441 = vunpack.c.h.b16 %v376
      %v442 = vunpack.c.l.b16 %v377
      %v443 = vunpack.c.h.b16 %v377
      %v444 = vunpack.c.l.b16 %v378
      %v445 = vunpack.c.h.b16 %v378
      %v446 = vunpack.c.l.b16 %v379
      %v447 = vunpack.c.h.b16 %v379
      %v448 = vunpack.c.l.b16 %v380
      %v449 = vunpack.c.h.b16 %v380
      %v450 = vunpack.c.l.b16 %v381
      %v451 = vunpack.c.h.b16 %v381
      %v452 = vunpack.c.l.b16 %v382
      %v453 = vunpack.c.h.b16 %v382
      %v454 = vunpack.c.l.b16 %v383
      %v455 = vunpack.c.h.b16 %v383
      %v456 = vunpack.c.l.b16 %v384
      %v457 = vunpack.c.h.b16 %v384
      %v458 = vunpack.c.l.b16 %v385
      %v459 = vunpack.c.h.b16 %v385
      %v460 = vunpack.c.l.b16 %v386
      %v461 = vunpack.c.h.b16 %v386
      %v462 = vunpack.c.l.b16 %v387
      %v463 = vunpack.c.h.b16 %v387
      %v464 = vunpack.c.l.b16 %v388
      %v465 = vunpack.c.h.b16 %v388
      %v466 = vunpack.c.l.b16 %v389
      %v467 = vunpack.c.h.b16 %v389
      %v468 = vunpack.c.l.b16 %v390
      %v469 = vunpack.c.h.b16 %v390
      %v470 = vunpack.c.l.b16 %v391
      %v471 = vunpack.c.h.b16 %v391
      %v472 = vunpack.c.l.b16 %v392
      %v473 = vunpack.c.h.b16 %v392
      %v474 = vunpack.c.l.b16 %v393
      %v475 = vunpack.c.h.b16 %v393
      %v476 = vunpack.c.l.b16 %v394
      %v477 = vunpack.c.h.b16 %v394
      %v478 = vunpack.c.l.b16 %v395
      %v479 = vunpack.c.h.b16 %v395
      %v480 = vunpack.c.l.b16 %v396
      %v481 = vunpack.c.h.b16 %v396
      %v482 = vunpack.c.l.b16 %v397
      %v483 = vunpack.c.h.b16 %v397
      %v484 = vunpack.c.l.b16 %v398
      %v485 = vunpack.c.h.b16 %v398
      %v486 = vunpack.c.l.b16 %v399
      %v487 = vunpack.c.h.b16 %v399
      %v488 = vunpack.c.l.b16 %v400
      %v489 = vunpack.c.h.b16 %v400
      %v490 = vunpack.c.l.b16 %v401
      %v491 = vunpack.c.h.b16 %v401
      %v492 = vunpack.c.l.b16 %v402
      %v493 = vunpack.c.h.b16 %v402
      %v494 = vunpack.c.l.b16 %v403
      %v495 = vunpack.c.h.b16 %v403
      %v496 = vunpack.c.l.b16 %v404
      %v497 = vunpack.c.h.b16 %v404
      %v498 = vunpack.c.l.b16 %v405
      %v499 = vunpack.c.h.b16 %v405
      %v500 = vunpack.c.l.b16 %v406
      %v501 = vunpack.c.h.b16 %v406
      %v502 = vunpack.c.l.b16 %v407
      %v503 = vunpack.c.h.b16 %v407
      %v504 = vpack.c.b16 %v444, %v440
      %v505 = vpack.c.b16 %v445, %v441
      %v506 = vpack.c.b16 %v446, %v442
      %v507 = vpack.c.b16 %v447, %v443
      %v508 = vpack.c.b16 %v452, %v448
      %v509 = vpack.c.b16 %v453, %v449
      %v510 = vpack.c.b16 %v454, %v450
      %v511 = vpack.c.b16 %v455, %v451
      %v512 = vpack.c.b16 %v460, %v456
      %v513 = vpack.c.b16 %v461, %v457
      %v514 = vpack.c.b16 %v462, %v458
      %v515 = vpack.c.b16 %v463, %v459
      %v516 = vpack.c.b16 %v468, %v464
      %v517 = vpack.c.b16 %v469, %v465
      %v518 = vpack.c.b16 %v470, %v466
      %v519 = vpack.c.b16 %v471, %v467
      %v520 = vpack.c.b16 %v476, %v472
      %v521 = vpack.c.b16 %v477, %v473
      %v522 = vpack.c.b16 %v478, %v474
      %v523 = vpack.c.b16 %v479, %v475
      %v524 = vpack.c.b16 %v484, %v480
      %v525 = vpack.c.b16 %v485, %v481
      %v526 = vpack.c.b16 %v486, %v482
      %v527 = vpack.c.b16 %v487, %v483
      %v528 = vpack.c.b16 %v492, %v488
      %v529 = vpack.c.b16 %v493, %v489
      %v530 = vpack.c.b16 %v494, %v490
      %v531 = vpack.c.b16 %v495, %v491
      %v532 = vpack.c.b16 %v500, %v496
      %v533 = vpack.c.b16 %v501, %v497
      %v534 = vpack.c.b16 %v502, %v498
      %v535 = vpack.c.b16 %v503, %v499
      %568 = vmatprep.subr.bf16.mxu0 %v505
      %569 = vmatpush1.bf16.msra.mxu0 %v504
      %570 = vmatprep.subr.bf16.mxu0 %v509
      %571 = vmatpush1.bf16.msra.mxu0 %v508
      %572 = vmatprep.subr.bf16.mxu0 %v513
      %573 = vmatpush1.bf16.msra.mxu0 %v512
      %574 = vmatprep.subr.bf16.mxu0 %v517
      %575 = vmatpush1.bf16.msra.mxu0 %v516
      %576 = vmatprep.subr.bf16.mxu0 %v521
      %577 = vmatpush1.bf16.msra.mxu0 %v520
      %578 = vmatprep.subr.bf16.mxu0 %v525
      %579 = vmatpush1.bf16.msra.mxu0 %v524
      %580 = vmatprep.subr.bf16.mxu0 %v529
      %581 = vmatpush1.bf16.msra.mxu0 %v528
      %582 = vmatprep.subr.bf16.mxu0 %v533
      %583 = vmatpush1.bf16.msra.mxu0 %v532
      %584 = vmatprep.subr.bf16.mxu0 0
      %585 = vmatpush1.bf16.msra.mxu0 0
      %586 = vmatprep.subr.bf16.mxu0 0
      %587 = vmatpush1.bf16.msra.mxu0 0
      %588 = vmatprep.subr.bf16.mxu0 0
      %589 = vmatpush1.bf16.msra.mxu0 0
      %590 = vmatprep.subr.bf16.mxu0 0
      %591 = vmatpush1.bf16.msra.mxu0 0
      %592 = vmatprep.subr.bf16.mxu0 0
      %593 = vmatpush1.bf16.msra.mxu0 0
      %594 = vmatprep.subr.bf16.mxu0 0
      %595 = vmatpush1.bf16.msra.mxu0 0
      %596 = vmatprep.subr.bf16.mxu0 0
      %597 = vmatpush1.bf16.msra.mxu0 0
      %598 = vmatprep.subr.bf16.mxu0 0
      %599 = vmatpush1.bf16.msra.mxu0 0
      %600 = vmatprep.mubr.bf16.mxu0 0
      %601 = vmatmul.mubr.bf16.gmra.mrb[0].mxu0 %v373
      %v602 = vpop.f32.mrb[0].mxu0
      %v603 = vadd.f32 0.0, %v602
      %v604 = vpop.f32.mrb[0].mxu0
      %v605 = vadd.f32 0.0, %v604
      %v606 = vpop.f32.mrb[0].mxu0
      %v607 = vadd.f32 0.0, %v606
      %v608 = vpop.f32.mrb[0].mxu0
      %v609 = vadd.f32 0.0, %v608
      %610 = vdwg.mxu0
      %611 = vmatprep.subr.bf16.mxu0 %v507
      %612 = vmatpush1.bf16.msra.mxu0 %v506
      %613 = vmatprep.subr.bf16.mxu0 %v511
      %614 = vmatpush1.bf16.msra.mxu0 %v510
      %615 = vmatprep.subr.bf16.mxu0 %v515
      %616 = vmatpush1.bf16.msra.mxu0 %v514
      %617 = vmatprep.subr.bf16.mxu0 %v519
      %618 = vmatpush1.bf16.msra.mxu0 %v518
      %619 = vmatprep.subr.bf16.mxu0 %v523
      %620 = vmatpush1.bf16.msra.mxu0 %v522
      %621 = vmatprep.subr.bf16.mxu0 %v527
      %622 = vmatpush1.bf16.msra.mxu0 %v526
      %623 = vmatprep.subr.bf16.mxu0 %v531
      %624 = vmatpush1.bf16.msra.mxu0 %v530
      %625 = vmatprep.subr.bf16.mxu0 %v535
      %626 = vmatpush1.bf16.msra.mxu0 %v534
      %627 = vmatprep.subr.bf16.mxu0 0
      %628 = vmatpush1.bf16.msra.mxu0 0
      %629 = vmatprep.subr.bf16.mxu0 0
      %630 = vmatpush1.bf16.msra.mxu0 0
      %631 = vmatprep.subr.bf16.mxu0 0
      %632 = vmatpush1.bf16.msra.mxu0 0
      %633 = vmatprep.subr.bf16.mxu0 0
      %634 = vmatpush1.bf16.msra.mxu0 0
      %635 = vmatprep.subr.bf16.mxu0 0
      %636 = vmatpush1.bf16.msra.mxu0 0
      %637 = vmatprep.subr.bf16.mxu0 0
      %638 = vmatpush1.bf16.msra.mxu0 0
      %639 = vmatprep.subr.bf16.mxu0 0
      %640 = vmatpush1.bf16.msra.mxu0 0
      %641 = vmatprep.subr.bf16.mxu0 0
      %642 = vmatpush1.bf16.msra.mxu0 0
      %643 = vmatprep.mubr.bf16.mxu0 0
      %644 = vmatmul.mubr.bf16.gmra.mrb[0].mxu0 %v373
      %v645 = vpop.f32.mrb[0].mxu0
      %v646 = vadd.f32 0.0, %v645
      %v647 = vpop.f32.mrb[0].mxu0
      %v648 = vadd.f32 0.0, %v647
      %v649 = vpop.f32.mrb[0].mxu0
      %v650 = vadd.f32 0.0, %v649
      %v651 = vpop.f32.mrb[0].mxu0
      %v652 = vadd.f32 0.0, %v651
      %653 = vdwg.mxu0
      %v654 = vadd.f32 %v365, %v603
      %v655 = vadd.f32 %v366, %v605
      %v656 = vadd.f32 %v367, %v646
      %v657 = vadd.f32 %v368, %v648
      %v658 = vadd.f32 %v369, %v607
      %v659 = vadd.f32 %v370, %v609
      %v660 = vadd.f32 %v371, %v650
      %v661 = vadd.f32 %v372, %v652
      %v662 = vxor.u32 %v654, 2147483648
      %v663 = vxor.u32 %v658, 2147483648
      %v664 = vmul.f32 %v662, 1.442695
      %v665 = vpow.pop %v664
      %v666 = vmul.f32 %v663, 1.442695
      %v667 = vpow.pop %v666
      %v668 = vadd.f32 %v665, 1.0
      %v669 = vadd.f32 %v667, 1.0
      %v670 = vrcp.pop %v668
      %v671 = vmul.f32 1.0, %v670
      %v672 = vrcp.pop %v669
      %v673 = vmul.f32 1.0, %v672
      %v674 = vxor.u32 %v655, 2147483648
      %v675 = vxor.u32 %v659, 2147483648
      %v676 = vmul.f32 %v674, 1.442695
      %v677 = vpow.pop %v676
      %v678 = vmul.f32 %v675, 1.442695
      %v679 = vpow.pop %v678
      %v680 = vadd.f32 %v677, 1.0
      %v681 = vadd.f32 %v679, 1.0
      %v682 = vrcp.pop %v680
      %v683 = vmul.f32 1.0, %v682
      %v684 = vrcp.pop %v681
      %v685 = vmul.f32 1.0, %v684
      %v686 = vtanh.pop %v656
      %v687 = vtanh.pop %v660
      %v688 = vxor.u32 %v657, 2147483648
      %v689 = vxor.u32 %v661, 2147483648
      %v690 = vmul.f32 %v688, 1.442695
      %v691 = vpow.pop %v690
      %v692 = vmul.f32 %v689, 1.442695
      %v693 = vpow.pop %v692
      %v694 = vadd.f32 %v691, 1.0
      %v695 = vadd.f32 %v693, 1.0
      %v696 = vrcp.pop %v694
      %v697 = vmul.f32 1.0, %v696
      %v698 = vrcp.pop %v695
      %v699 = vmul.f32 1.0, %v698
      %v700 = vmul.f32 %v683, %v374
      %v701 = vmul.f32 %v685, %v375
      %v702 = vmul.f32 %v671, %v686
      %v703 = vmul.f32 %v673, %v687
      %v704 = vadd.f32 %v700, %v702
      %v705 = vadd.f32 %v701, %v703
      %v706 = vtanh.pop %v704
      %v707 = vtanh.pop %v705
      %v708 = vmul.f32 %v697, %v706
      %v709 = vmul.f32 %v699, %v707
      %v710 = vpack.c.bf16 %v709, %v708
      %711 = vst [vmem:[#allocation2] sm:$0xff] %v710
      %712 = vst [vmem:[#allocation3] sm:$0xff] %v704
      %713 = vst [vmem:[#allocation3 + $0x8] sm:$0xff] %v705
      %714 = vst [vmem:[%s335] sm:$0xff] %v710
      %s715 = sadd.s32 %s360, 3
      %p716 = scmp.lt.s32.totalorder %s715, 9
      %s717 = scalar_select %p716, 1, 0
      %s718 = scvt.s32.f32 %s717
      %s719 = scalar_lea.vmem %s324, 96
      %v720 = vld [vmem:[%s719] sm:$0xff]
      %v721 = vld [vmem:[%s719 + $0x8] sm:$0xff]
      %v722 = vld [vmem:[%s719 + $0x10] sm:$0xff]
      %v723 = vld [vmem:[%s719 + $0x18] sm:$0xff]
      %v724 = vunpack.c.l.bf16 %v720
      %v725 = vunpack.c.h.bf16 %v720
      %v726 = vunpack.c.l.bf16 %v721
      %v727 = vunpack.c.h.bf16 %v721
      %v728 = vunpack.c.l.bf16 %v722
      %v729 = vunpack.c.h.bf16 %v722
      %v730 = vunpack.c.l.bf16 %v723
      %v731 = vunpack.c.h.bf16 %v723
      %v732 = vstv %s718
      %v733 = vmul.f32 %v724, %v732
      %v734 = vmul.f32 %v725, %v732
      %v735 = vmul.f32 %v726, %v732
      %v736 = vmul.f32 %v727, %v732
      %v737 = vmul.f32 %v728, %v732
      %v738 = vmul.f32 %v729, %v732
      %v739 = vmul.f32 %v730, %v732
      %v740 = vmul.f32 %v731, %v732
      %v741 = vld [vmem:[#allocation4] sm:$0xff]
      %v742 = vld [vmem:[#allocation5] sm:$0xff]
      %v743 = vld [vmem:[#allocation5 + $0x8] sm:$0xff]
      %v744 = vld [vmem:[%s3] sm:$0xff]
      %v745 = vld [vmem:[%s3 + $0x8] sm:$0xff]
      %v746 = vld [vmem:[%s3 + $0x10] sm:$0xff]
      %v747 = vld [vmem:[%s3 + $0x18] sm:$0xff]
      %v748 = vld [vmem:[%s3 + $0x20] sm:$0xff]
      %v749 = vld [vmem:[%s3 + $0x28] sm:$0xff]
      %v750 = vld [vmem:[%s3 + $0x30] sm:$0xff]
      %v751 = vld [vmem:[%s3 + $0x38] sm:$0xff]
      %v752 = vld [vmem:[%s3 + $0x40] sm:$0xff]
      %v753 = vld [vmem:[%s3 + $0x48] sm:$0xff]
      %v754 = vld [vmem:[%s3 + $0x50] sm:$0xff]
      %v755 = vld [vmem:[%s3 + $0x58] sm:$0xff]
      %v756 = vld [vmem:[%s3 + $0x60] sm:$0xff]
      %v757 = vld [vmem:[%s3 + $0x68] sm:$0xff]
      %v758 = vld [vmem:[%s3 + $0x70] sm:$0xff]
      %v759 = vld [vmem:[%s3 + $0x78] sm:$0xff]
      %v760 = vld [vmem:[%s3 + $0x80] sm:$0xff]
      %v761 = vld [vmem:[%s3 + $0x88] sm:$0xff]
      %v762 = vld [vmem:[%s3 + $0x90] sm:$0xff]
      %v763 = vld [vmem:[%s3 + $0x98] sm:$0xff]
      %v764 = vld [vmem:[%s3 + $0xa0] sm:$0xff]
      %v765 = vld [vmem:[%s3 + $0xa8] sm:$0xff]
      %v766 = vld [vmem:[%s3 + $0xb0] sm:$0xff]
      %v767 = vld [vmem:[%s3 + $0xb8] sm:$0xff]
      %v768 = vld [vmem:[%s3 + $0xc0] sm:$0xff]
      %v769 = vld [vmem:[%s3 + $0xc8] sm:$0xff]
      %v770 = vld [vmem:[%s3 + $0xd0] sm:$0xff]
      %v771 = vld [vmem:[%s3 + $0xd8] sm:$0xff]
      %v772 = vld [vmem:[%s3 + $0xe0] sm:$0xff]
      %v773 = vld [vmem:[%s3 + $0xe8] sm:$0xff]
      %v774 = vld [vmem:[%s3 + $0xf0] sm:$0xff]
      %v775 = vld [vmem:[%s3 + $0xf8] sm:$0xff]
      %v808 = vunpack.c.l.b16 %v744
      %v809 = vunpack.c.h.b16 %v744
      %v810 = vunpack.c.l.b16 %v745
      %v811 = vunpack.c.h.b16 %v745
      %v812 = vunpack.c.l.b16 %v746
      %v813 = vunpack.c.h.b16 %v746
      %v814 = vunpack.c.l.b16 %v747
      %v815 = vunpack.c.h.b16 %v747
      %v816 = vunpack.c.l.b16 %v748
      %v817 = vunpack.c.h.b16 %v748
      %v818 = vunpack.c.l.b16 %v749
      %v819 = vunpack.c.h.b16 %v749
      %v820 = vunpack.c.l.b16 %v750
      %v821 = vunpack.c.h.b16 %v750
      %v822 = vunpack.c.l.b16 %v751
      %v823 = vunpack.c.h.b16 %v751
      %v824 = vunpack.c.l.b16 %v752
      %v825 = vunpack.c.h.b16 %v752
      %v826 = vunpack.c.l.b16 %v753
      %v827 = vunpack.c.h.b16 %v753
      %v828 = vunpack.c.l.b16 %v754
      %v829 = vunpack.c.h.b16 %v754
      %v830 = vunpack.c.l.b16 %v755
      %v831 = vunpack.c.h.b16 %v755
      %v832 = vunpack.c.l.b16 %v756
      %v833 = vunpack.c.h.b16 %v756
      %v834 = vunpack.c.l.b16 %v757
      %v835 = vunpack.c.h.b16 %v757
      %v836 = vunpack.c.l.b16 %v758
      %v837 = vunpack.c.h.b16 %v758
      %v838 = vunpack.c.l.b16 %v759
      %v839 = vunpack.c.h.b16 %v759
      %v840 = vunpack.c.l.b16 %v760
      %v841 = vunpack.c.h.b16 %v760
      %v842 = vunpack.c.l.b16 %v761
      %v843 = vunpack.c.h.b16 %v761
      %v844 = vunpack.c.l.b16 %v762
      %v845 = vunpack.c.h.b16 %v762
      %v846 = vunpack.c.l.b16 %v763
      %v847 = vunpack.c.h.b16 %v763
      %v848 = vunpack.c.l.b16 %v764
      %v849 = vunpack.c.h.b16 %v764
      %v850 = vunpack.c.l.b16 %v765
      %v851 = vunpack.c.h.b16 %v765
      %v852 = vunpack.c.l.b16 %v766
      %v853 = vunpack.c.h.b16 %v766
      %v854 = vunpack.c.l.b16 %v767
      %v855 = vunpack.c.h.b16 %v767
      %v856 = vunpack.c.l.b16 %v768
      %v857 = vunpack.c.h.b16 %v768
      %v858 = vunpack.c.l.b16 %v769
      %v859 = vunpack.c.h.b16 %v769
      %v860 = vunpack.c.l.b16 %v770
      %v861 = vunpack.c.h.b16 %v770
      %v862 = vunpack.c.l.b16 %v771
      %v863 = vunpack.c.h.b16 %v771
      %v864 = vunpack.c.l.b16 %v772
      %v865 = vunpack.c.h.b16 %v772
      %v866 = vunpack.c.l.b16 %v773
      %v867 = vunpack.c.h.b16 %v773
      %v868 = vunpack.c.l.b16 %v774
      %v869 = vunpack.c.h.b16 %v774
      %v870 = vunpack.c.l.b16 %v775
      %v871 = vunpack.c.h.b16 %v775
      %v872 = vpack.c.b16 %v812, %v808
      %v873 = vpack.c.b16 %v813, %v809
      %v874 = vpack.c.b16 %v814, %v810
      %v875 = vpack.c.b16 %v815, %v811
      %v876 = vpack.c.b16 %v820, %v816
      %v877 = vpack.c.b16 %v821, %v817
      %v878 = vpack.c.b16 %v822, %v818
      %v879 = vpack.c.b16 %v823, %v819
      %v880 = vpack.c.b16 %v828, %v824
      %v881 = vpack.c.b16 %v829, %v825
      %v882 = vpack.c.b16 %v830, %v826
      %v883 = vpack.c.b16 %v831, %v827
      %v884 = vpack.c.b16 %v836, %v832
      %v885 = vpack.c.b16 %v837, %v833
      %v886 = vpack.c.b16 %v838, %v834
      %v887 = vpack.c.b16 %v839, %v835
      %v888 = vpack.c.b16 %v844, %v840
      %v889 = vpack.c.b16 %v845, %v841
      %v890 = vpack.c.b16 %v846, %v842
      %v891 = vpack.c.b16 %v847, %v843
      %v892 = vpack.c.b16 %v852, %v848
      %v893 = vpack.c.b16 %v853, %v849
      %v894 = vpack.c.b16 %v854, %v850
      %v895 = vpack.c.b16 %v855, %v851
      %v896 = vpack.c.b16 %v860, %v856
      %v897 = vpack.c.b16 %v861, %v857
      %v898 = vpack.c.b16 %v862, %v858
      %v899 = vpack.c.b16 %v863, %v859
      %v900 = vpack.c.b16 %v868, %v864
      %v901 = vpack.c.b16 %v869, %v865
      %v902 = vpack.c.b16 %v870, %v866
      %v903 = vpack.c.b16 %v871, %v867
      %936 = vmatprep.subr.bf16.mxu0 %v873
      %937 = vmatpush1.bf16.msra.mxu0 %v872
      %938 = vmatprep.subr.bf16.mxu0 %v877
      %939 = vmatpush1.bf16.msra.mxu0 %v876
      %940 = vmatprep.subr.bf16.mxu0 %v881
      %941 = vmatpush1.bf16.msra.mxu0 %v880
      %942 = vmatprep.subr.bf16.mxu0 %v885
      %943 = vmatpush1.bf16.msra.mxu0 %v884
      %944 = vmatprep.subr.bf16.mxu0 %v889
      %945 = vmatpush1.bf16.msra.mxu0 %v888
      %946 = vmatprep.subr.bf16.mxu0 %v893
      %947 = vmatpush1.bf16.msra.mxu0 %v892
      %948 = vmatprep.subr.bf16.mxu0 %v897
      %949 = vmatpush1.bf16.msra.mxu0 %v896
      %950 = vmatprep.subr.bf16.mxu0 %v901
      %951 = vmatpush1.bf16.msra.mxu0 %v900
      %952 = vmatprep.subr.bf16.mxu0 0
      %953 = vmatpush1.bf16.msra.mxu0 0
      %954 = vmatprep.subr.bf16.mxu0 0
      %955 = vmatpush1.bf16.msra.mxu0 0
      %956 = vmatprep.subr.bf16.mxu0 0
      %957 = vmatpush1.bf16.msra.mxu0 0
      %958 = vmatprep.subr.bf16.mxu0 0
      %959 = vmatpush1.bf16.msra.mxu0 0
      %960 = vmatprep.subr.bf16.mxu0 0
      %961 = vmatpush1.bf16.msra.mxu0 0
      %962 = vmatprep.subr.bf16.mxu0 0
      %963 = vmatpush1.bf16.msra.mxu0 0
      %964 = vmatprep.subr.bf16.mxu0 0
      %965 = vmatpush1.bf16.msra.mxu0 0
      %966 = vmatprep.subr.bf16.mxu0 0
      %967 = vmatpush1.bf16.msra.mxu0 0
      %968 = vmatprep.mubr.bf16.mxu0 0
      %969 = vmatmul.mubr.bf16.gmra.mrb[0].mxu0 %v741
      %v970 = vpop.f32.mrb[0].mxu0
      %v971 = vadd.f32 0.0, %v970
      %v972 = vpop.f32.mrb[0].mxu0
      %v973 = vadd.f32 0.0, %v972
      %v974 = vpop.f32.mrb[0].mxu0
      %v975 = vadd.f32 0.0, %v974
      %v976 = vpop.f32.mrb[0].mxu0
      %v977 = vadd.f32 0.0, %v976
      %978 = vdwg.mxu0
      %979 = vmatprep.subr.bf16.mxu0 %v875
      %980 = vmatpush1.bf16.msra.mxu0 %v874
      %981 = vmatprep.subr.bf16.mxu0 %v879
      %982 = vmatpush1.bf16.msra.mxu0 %v878
      %983 = vmatprep.subr.bf16.mxu0 %v883
      %984 = vmatpush1.bf16.msra.mxu0 %v882
      %985 = vmatprep.subr.bf16.mxu0 %v887
      %986 = vmatpush1.bf16.msra.mxu0 %v886
      %987 = vmatprep.subr.bf16.mxu0 %v891
      %988 = vmatpush1.bf16.msra.mxu0 %v890
      %989 = vmatprep.subr.bf16.mxu0 %v895
      %990 = vmatpush1.bf16.msra.mxu0 %v894
      %991 = vmatprep.subr.bf16.mxu0 %v899
      %992 = vmatpush1.bf16.msra.mxu0 %v898
      %993 = vmatprep.subr.bf16.mxu0 %v903
      %994 = vmatpush1.bf16.msra.mxu0 %v902
      %995 = vmatprep.subr.bf16.mxu0 0
      %996 = vmatpush1.bf16.msra.mxu0 0
      %997 = vmatprep.subr.bf16.mxu0 0
      %998 = vmatpush1.bf16.msra.mxu0 0
      %999 = vmatprep.subr.bf16.mxu0 0
      %1000 = vmatpush1.bf16.msra.mxu0 0
      %1001 = vmatprep.subr.bf16.mxu0 0
      %1002 = vmatpush1.bf16.msra.mxu0 0
      %1003 = vmatprep.subr.bf16.mxu0 0
      %1004 = vmatpush1.bf16.msra.mxu0 0
      %1005 = vmatprep.subr.bf16.mxu0 0
      %1006 = vmatpush1.bf16.msra.mxu0 0
      %1007 = vmatprep.subr.bf16.mxu0 0
      %1008 = vmatpush1.bf16.msra.mxu0 0
      %1009 = vmatprep.subr.bf16.mxu0 0
      %1010 = vmatpush1.bf16.msra.mxu0 0
      %1011 = vmatprep.mubr.bf16.mxu0 0
      %1012 = vmatmul.mubr.bf16.gmra.mrb[0].mxu0 %v741
      %v1013 = vpop.f32.mrb[0].mxu0
      %v1014 = vadd.f32 0.0, %v1013
      %v1015 = vpop.f32.mrb[0].mxu0
      %v1016 = vadd.f32 0.0, %v1015
      %v1017 = vpop.f32.mrb[0].mxu0
      %v1018 = vadd.f32 0.0, %v1017
      %v1019 = vpop.f32.mrb[0].mxu0
      %v1020 = vadd.f32 0.0, %v1019
      %1021 = vdwg.mxu0
      %v1022 = vadd.f32 %v733, %v971
      %v1023 = vadd.f32 %v734, %v973
      %v1024 = vadd.f32 %v735, %v1014
      %v1025 = vadd.f32 %v736, %v1016
      %v1026 = vadd.f32 %v737, %v975
      %v1027 = vadd.f32 %v738, %v977
      %v1028 = vadd.f32 %v739, %v1018
      %v1029 = vadd.f32 %v740, %v1020
      %v1030 = vxor.u32 %v1022, 2147483648
      %v1031 = vxor.u32 %v1026, 2147483648
      %v1032 = vmul.f32 %v1030, 1.442695
      %v1033 = vpow.pop %v1032
      %v1034 = vmul.f32 %v1031, 1.442695
      %v1035 = vpow.pop %v1034
      %v1036 = vadd.f32 %v1033, 1.0
      %v1037 = vadd.f32 %v1035, 1.0
      %v1038 = vrcp.pop %v1036
      %v1039 = vmul.f32 1.0, %v1038
      %v1040 = vrcp.pop %v1037
      %v1041 = vmul.f32 1.0, %v1040
      %v1042 = vxor.u32 %v1023, 2147483648
      %v1043 = vxor.u32 %v1027, 2147483648
      %v1044 = vmul.f32 %v1042, 1.442695
      %v1045 = vpow.pop %v1044
      %v1046 = vmul.f32 %v1043, 1.442695
      %v1047 = vpow.pop %v1046
      %v1048 = vadd.f32 %v1045, 1.0
      %v1049 = vadd.f32 %v1047, 1.0
      %v1050 = vrcp.pop %v1048
      %v1051 = vmul.f32 1.0, %v1050
      %v1052 = vrcp.pop %v1049
      %v1053 = vmul.f32 1.0, %v1052
      %v1054 = vtanh.pop %v1024
      %v1055 = vtanh.pop %v1028
      %v1056 = vxor.u32 %v1025, 2147483648
      %v1057 = vxor.u32 %v1029, 2147483648
      %v1058 = vmul.f32 %v1056, 1.442695
      %v1059 = vpow.pop %v1058
      %v1060 = vmul.f32 %v1057, 1.442695
      %v1061 = vpow.pop %v1060
      %v1062 = vadd.f32 %v1059, 1.0
      %v1063 = vadd.f32 %v1061, 1.0
      %v1064 = vrcp.pop %v1062
      %v1065 = vmul.f32 1.0, %v1064
      %v1066 = vrcp.pop %v1063
      %v1067 = vmul.f32 1.0, %v1066
      %v1068 = vmul.f32 %v1051, %v742
      %v1069 = vmul.f32 %v1053, %v743
      %v1070 = vmul.f32 %v1039, %v1054
      %v1071 = vmul.f32 %v1041, %v1055
      %v1072 = vadd.f32 %v1068, %v1070
      %v1073 = vadd.f32 %v1069, %v1071
      %v1074 = vtanh.pop %v1072
      %v1075 = vtanh.pop %v1073
      %v1076 = vmul.f32 %v1065, %v1074
      %v1077 = vmul.f32 %v1067, %v1075
      %v1078 = vpack.c.bf16 %v1077, %v1076
      %1079 = vst [vmem:[#allocation4] sm:$0xff] %v1078
      %1080 = vst [vmem:[#allocation5] sm:$0xff] %v1072
      %1081 = vst [vmem:[#allocation5 + $0x8] sm:$0xff] %v1073
      %s1082 = scalar_lea.vmem %s345, 24
      %1083 = vst [vmem:[%s1082] sm:$0xff] %v1078
      %s1084 = scalar_lea.vmem %s310, 32
      %v1085 = vld [vmem:[%s1084] sm:$0xff]
      %v1086 = vld [vmem:[%s1084 + $0x8] sm:$0xff]
      %v1087 = vld [vmem:[%s1084 + $0x10] sm:$0xff]
      %v1088 = vld [vmem:[%s1084 + $0x18] sm:$0xff]
      %v1089 = vunpack.c.l.bf16 %v1085
      %v1090 = vunpack.c.h.bf16 %v1085
      %v1091 = vunpack.c.l.bf16 %v1086
      %v1092 = vunpack.c.h.bf16 %v1086
      %v1093 = vunpack.c.l.bf16 %v1087
      %v1094 = vunpack.c.h.bf16 %v1087
      %v1095 = vunpack.c.l.bf16 %v1088
      %v1096 = vunpack.c.h.bf16 %v1088
      %v1097 = vld [vmem:[#allocation2] sm:$0xff]
      %v1098 = vld [vmem:[#allocation3] sm:$0xff]
      %v1099 = vld [vmem:[#allocation3 + $0x8] sm:$0xff]
      %v1100 = vld [vmem:[%s2] sm:$0xff]
      %v1101 = vld [vmem:[%s2 + $0x8] sm:$0xff]
      %v1102 = vld [vmem:[%s2 + $0x10] sm:$0xff]
      %v1103 = vld [vmem:[%s2 + $0x18] sm:$0xff]
      %v1104 = vld [vmem:[%s2 + $0x20] sm:$0xff]
      %v1105 = vld [vmem:[%s2 + $0x28] sm:$0xff]
      %v1106 = vld [vmem:[%s2 + $0x30] sm:$0xff]
      %v1107 = vld [vmem:[%s2 + $0x38] sm:$0xff]
      %v1108 = vld [vmem:[%s2 + $0x40] sm:$0xff]
      %v1109 = vld [vmem:[%s2 + $0x48] sm:$0xff]
      %v1110 = vld [vmem:[%s2 + $0x50] sm:$0xff]
      %v1111 = vld [vmem:[%s2 + $0x58] sm:$0xff]
      %v1112 = vld [vmem:[%s2 + $0x60] sm:$0xff]
      %v1113 = vld [vmem:[%s2 + $0x68] sm:$0xff]
      %v1114 = vld [vmem:[%s2 + $0x70] sm:$0xff]
      %v1115 = vld [vmem:[%s2 + $0x78] sm:$0xff]
      %v1116 = vld [vmem:[%s2 + $0x80] sm:$0xff]
      %v1117 = vld [vmem:[%s2 + $0x88] sm:$0xff]
      %v1118 = vld [vmem:[%s2 + $0x90] sm:$0xff]
      %v1119 = vld [vmem:[%s2 + $0x98] sm:$0xff]
      %v1120 = vld [vmem:[%s2 + $0xa0] sm:$0xff]
      %v1121 = vld [vmem:[%s2 + $0xa8] sm:$0xff]
      %v1122 = vld [vmem:[%s2 + $0xb0] sm:$0xff]
      %v1123 = vld [vmem:[%s2 + $0xb8] sm:$0xff]
      %v1124 = vld [vmem:[%s2 + $0xc0] sm:$0xff]
      %v1125 = vld [vmem:[%s2 + $0xc8] sm:$0xff]
      %v1126 = vld [vmem:[%s2 + $0xd0] sm:$0xff]
      %v1127 = vld [vmem:[%s2 + $0xd8] sm:$0xff]
      %v1128 = vld [vmem:[%s2 + $0xe0] sm:$0xff]
      %v1129 = vld [vmem:[%s2 + $0xe8] sm:$0xff]
      %v1130 = vld [vmem:[%s2 + $0xf0] sm:$0xff]
      %v1131 = vld [vmem:[%s2 + $0xf8] sm:$0xff]
      %v1164 = vunpack.c.l.b16 %v1100
      %v1165 = vunpack.c.h.b16 %v1100
      %v1166 = vunpack.c.l.b16 %v1101
      %v1167 = vunpack.c.h.b16 %v1101
      %v1168 = vunpack.c.l.b16 %v1102
      %v1169 = vunpack.c.h.b16 %v1102
      %v1170 = vunpack.c.l.b16 %v1103
      %v1171 = vunpack.c.h.b16 %v1103
      %v1172 = vunpack.c.l.b16 %v1104
      %v1173 = vunpack.c.h.b16 %v1104
      %v1174 = vunpack.c.l.b16 %v1105
      %v1175 = vunpack.c.h.b16 %v1105
      %v1176 = vunpack.c.l.b16 %v1106
      %v1177 = vunpack.c.h.b16 %v1106
      %v1178 = vunpack.c.l.b16 %v1107
      %v1179 = vunpack.c.h.b16 %v1107
      %v1180 = vunpack.c.l.b16 %v1108
      %v1181 = vunpack.c.h.b16 %v1108
      %v1182 = vunpack.c.l.b16 %v1109
      %v1183 = vunpack.c.h.b16 %v1109
      %v1184 = vunpack.c.l.b16 %v1110
      %v1185 = vunpack.c.h.b16 %v1110
      %v1186 = vunpack.c.l.b16 %v1111
      %v1187 = vunpack.c.h.b16 %v1111
      %v1188 = vunpack.c.l.b16 %v1112
      %v1189 = vunpack.c.h.b16 %v1112
      %v1190 = vunpack.c.l.b16 %v1113
      %v1191 = vunpack.c.h.b16 %v1113
      %v1192 = vunpack.c.l.b16 %v1114
      %v1193 = vunpack.c.h.b16 %v1114
      %v1194 = vunpack.c.l.b16 %v1115
      %v1195 = vunpack.c.h.b16 %v1115
      %v1196 = vunpack.c.l.b16 %v1116
      %v1197 = vunpack.c.h.b16 %v1116
      %v1198 = vunpack.c.l.b16 %v1117
      %v1199 = vunpack.c.h.b16 %v1117
      %v1200 = vunpack.c.l.b16 %v1118
      %v1201 = vunpack.c.h.b16 %v1118
      %v1202 = vunpack.c.l.b16 %v1119
      %v1203 = vunpack.c.h.b16 %v1119
      %v1204 = vunpack.c.l.b16 %v1120
      %v1205 = vunpack.c.h.b16 %v1120
      %v1206 = vunpack.c.l.b16 %v1121
      %v1207 = vunpack.c.h.b16 %v1121
      %v1208 = vunpack.c.l.b16 %v1122
      %v1209 = vunpack.c.h.b16 %v1122
      %v1210 = vunpack.c.l.b16 %v1123
      %v1211 = vunpack.c.h.b16 %v1123
      %v1212 = vunpack.c.l.b16 %v1124
      %v1213 = vunpack.c.h.b16 %v1124
      %v1214 = vunpack.c.l.b16 %v1125
      %v1215 = vunpack.c.h.b16 %v1125
      %v1216 = vunpack.c.l.b16 %v1126
      %v1217 = vunpack.c.h.b16 %v1126
      %v1218 = vunpack.c.l.b16 %v1127
      %v1219 = vunpack.c.h.b16 %v1127
      %v1220 = vunpack.c.l.b16 %v1128
      %v1221 = vunpack.c.h.b16 %v1128
      %v1222 = vunpack.c.l.b16 %v1129
      %v1223 = vunpack.c.h.b16 %v1129
      %v1224 = vunpack.c.l.b16 %v1130
      %v1225 = vunpack.c.h.b16 %v1130
      %v1226 = vunpack.c.l.b16 %v1131
      %v1227 = vunpack.c.h.b16 %v1131
      %v1228 = vpack.c.b16 %v1168, %v1164
      %v1229 = vpack.c.b16 %v1169, %v1165
      %v1230 = vpack.c.b16 %v1170, %v1166
      %v1231 = vpack.c.b16 %v1171, %v1167
      %v1232 = vpack.c.b16 %v1176, %v1172
      %v1233 = vpack.c.b16 %v1177, %v1173
      %v1234 = vpack.c.b16 %v1178, %v1174
      %v1235 = vpack.c.b16 %v1179, %v1175
      %v1236 = vpack.c.b16 %v1184, %v1180
      %v1237 = vpack.c.b16 %v1185, %v1181
      %v1238 = vpack.c.b16 %v1186, %v1182
      %v1239 = vpack.c.b16 %v1187, %v1183
      %v1240 = vpack.c.b16 %v1192, %v1188
      %v1241 = vpack.c.b16 %v1193, %v1189
      %v1242 = vpack.c.b16 %v1194, %v1190
      %v1243 = vpack.c.b16 %v1195, %v1191
      %v1244 = vpack.c.b16 %v1200, %v1196
      %v1245 = vpack.c.b16 %v1201, %v1197
      %v1246 = vpack.c.b16 %v1202, %v1198
      %v1247 = vpack.c.b16 %v1203, %v1199
      %v1248 = vpack.c.b16 %v1208, %v1204
      %v1249 = vpack.c.b16 %v1209, %v1205
      %v1250 = vpack.c.b16 %v1210, %v1206
      %v1251 = vpack.c.b16 %v1211, %v1207
      %v1252 = vpack.c.b16 %v1216, %v1212
      %v1253 = vpack.c.b16 %v1217, %v1213
      %v1254 = vpack.c.b16 %v1218, %v1214
      %v1255 = vpack.c.b16 %v1219, %v1215
      %v1256 = vpack.c.b16 %v1224, %v1220
      %v1257 = vpack.c.b16 %v1225, %v1221
      %v1258 = vpack.c.b16 %v1226, %v1222
      %v1259 = vpack.c.b16 %v1227, %v1223
      %1292 = vmatprep.subr.bf16.mxu0 %v1229
      %1293 = vmatpush1.bf16.msra.mxu0 %v1228
      %1294 = vmatprep.subr.bf16.mxu0 %v1233
      %1295 = vmatpush1.bf16.msra.mxu0 %v1232
      %1296 = vmatprep.subr.bf16.mxu0 %v1237
      %1297 = vmatpush1.bf16.msra.mxu0 %v1236
      %1298 = vmatprep.subr.bf16.mxu0 %v1241
      %1299 = vmatpush1.bf16.msra.mxu0 %v1240
      %1300 = vmatprep.subr.bf16.mxu0 %v1245
      %1301 = vmatpush1.bf16.msra.mxu0 %v1244
      %1302 = vmatprep.subr.bf16.mxu0 %v1249
      %1303 = vmatpush1.bf16.msra.mxu0 %v1248
      %1304 = vmatprep.subr.bf16.mxu0 %v1253
      %1305 = vmatpush1.bf16.msra.mxu0 %v1252
      %1306 = vmatprep.subr.bf16.mxu0 %v1257
      %1307 = vmatpush1.bf16.msra.mxu0 %v1256
      %1308 = vmatprep.subr.bf16.mxu0 0
      %1309 = vmatpush1.bf16.msra.mxu0 0
      %1310 = vmatprep.subr.bf16.mxu0 0
      %1311 = vmatpush1.bf16.msra.mxu0 0
      %1312 = vmatprep.subr.bf16.mxu0 0
      %1313 = vmatpush1.bf16.msra.mxu0 0
      %1314 = vmatprep.subr.bf16.mxu0 0
      %1315 = vmatpush1.bf16.msra.mxu0 0
      %1316 = vmatprep.subr.bf16.mxu0 0
      %1317 = vmatpush1.bf16.msra.mxu0 0
      %1318 = vmatprep.subr.bf16.mxu0 0
      %1319 = vmatpush1.bf16.msra.mxu0 0
      %1320 = vmatprep.subr.bf16.mxu0 0
      %1321 = vmatpush1.bf16.msra.mxu0 0
      %1322 = vmatprep.subr.bf16.mxu0 0
      %1323 = vmatpush1.bf16.msra.mxu0 0
      %1324 = vmatprep.mubr.bf16.mxu0 0
      %1325 = vmatmul.mubr.bf16.gmra.mrb[0].mxu0 %v1097
      %v1326 = vpop.f32.mrb[0].mxu0
      %v1327 = vadd.f32 0.0, %v1326
      %v1328 = vpop.f32.mrb[0].mxu0
      %v1329 = vadd.f32 0.0, %v1328
      %v1330 = vpop.f32.mrb[0].mxu0
      %v1331 = vadd.f32 0.0, %v1330
      %v1332 = vpop.f32.mrb[0].mxu0
      %v1333 = vadd.f32 0.0, %v1332
      %1334 = vdwg.mxu0
      %1335 = vmatprep.subr.bf16.mxu0 %v1231
      %1336 = vmatpush1.bf16.msra.mxu0 %v1230
      %1337 = vmatprep.subr.bf16.mxu0 %v1235
      %1338 = vmatpush1.bf16.msra.mxu0 %v1234
      %1339 = vmatprep.subr.bf16.mxu0 %v1239
      %1340 = vmatpush1.bf16.msra.mxu0 %v1238
      %1341 = vmatprep.subr.bf16.mxu0 %v1243
      %1342 = vmatpush1.bf16.msra.mxu0 %v1242
      %1343 = vmatprep.subr.bf16.mxu0 %v1247
      %1344 = vmatpush1.bf16.msra.mxu0 %v1246
      %1345 = vmatprep.subr.bf16.mxu0 %v1251
      %1346 = vmatpush1.bf16.msra.mxu0 %v1250
      %1347 = vmatprep.subr.bf16.mxu0 %v1255
      %1348 = vmatpush1.bf16.msra.mxu0 %v1254
      %1349 = vmatprep.subr.bf16.mxu0 %v1259
      %1350 = vmatpush1.bf16.msra.mxu0 %v1258
      %1351 = vmatprep.subr.bf16.mxu0 0
      %1352 = vmatpush1.bf16.msra.mxu0 0
      %1353 = vmatprep.subr.bf16.mxu0 0
      %1354 = vmatpush1.bf16.msra.mxu0 0
      %1355 = vmatprep.subr.bf16.mxu0 0
      %1356 = vmatpush1.bf16.msra.mxu0 0
      %1357 = vmatprep.subr.bf16.mxu0 0
      %1358 = vmatpush1.bf16.msra.mxu0 0
      %1359 = vmatprep.subr.bf16.mxu0 0
      %1360 = vmatpush1.bf16.msra.mxu0 0
      %1361 = vmatprep.subr.bf16.mxu0 0
      %1362 = vmatpush1.bf16.msra.mxu0 0
      %1363 = vmatprep.subr.bf16.mxu0 0
      %1364 = vmatpush1.bf16.msra.mxu0 0
      %1365 = vmatprep.subr.bf16.mxu0 0
      %1366 = vmatpush1.bf16.msra.mxu0 0
      %1367 = vmatprep.mubr.bf16.mxu0 0
      %1368 = vmatmul.mubr.bf16.gmra.mrb[0].mxu0 %v1097
      %v1369 = vpop.f32.mrb[0].mxu0
      %v1370 = vadd.f32 0.0, %v1369
      %v1371 = vpop.f32.mrb[0].mxu0
      %v1372 = vadd.f32 0.0, %v1371
      %v1373 = vpop.f32.mrb[0].mxu0
      %v1374 = vadd.f32 0.0, %v1373
      %v1375 = vpop.f32.mrb[0].mxu0
      %v1376 = vadd.f32 0.0, %v1375
      %1377 = vdwg.mxu0
      %v1378 = vadd.f32 %v1089, %v1327
      %v1379 = vadd.f32 %v1090, %v1329
      %v1380 = vadd.f32 %v1091, %v1370
      %v1381 = vadd.f32 %v1092, %v1372
      %v1382 = vadd.f32 %v1093, %v1331
      %v1383 = vadd.f32 %v1094, %v1333
      %v1384 = vadd.f32 %v1095, %v1374
      %v1385 = vadd.f32 %v1096, %v1376
      %v1386 = vxor.u32 %v1378, 2147483648
      %v1387 = vxor.u32 %v1382, 2147483648
      %v1388 = vmul.f32 %v1386, 1.442695
      %v1389 = vpow.pop %v1388
      %v1390 = vmul.f32 %v1387, 1.442695
      %v1391 = vpow.pop %v1390
      %v1392 = vadd.f32 %v1389, 1.0
      %v1393 = vadd.f32 %v1391, 1.0
      %v1394 = vrcp.pop %v1392
      %v1395 = vmul.f32 1.0, %v1394
      %v1396 = vrcp.pop %v1393
      %v1397 = vmul.f32 1.0, %v1396
      %v1398 = vxor.u32 %v1379, 2147483648
      %v1399 = vxor.u32 %v1383, 2147483648
      %v1400 = vmul.f32 %v1398, 1.442695
      %v1401 = vpow.pop %v1400
      %v1402 = vmul.f32 %v1399, 1.442695
      %v1403 = vpow.pop %v1402
      %v1404 = vadd.f32 %v1401, 1.0
      %v1405 = vadd.f32 %v1403, 1.0
      %v1406 = vrcp.pop %v1404
      %v1407 = vmul.f32 1.0, %v1406
      %v1408 = vrcp.pop %v1405
      %v1409 = vmul.f32 1.0, %v1408
      %v1410 = vtanh.pop %v1380
      %v1411 = vtanh.pop %v1384
      %v1412 = vxor.u32 %v1381, 2147483648
      %v1413 = vxor.u32 %v1385, 2147483648
      %v1414 = vmul.f32 %v1412, 1.442695
      %v1415 = vpow.pop %v1414
      %v1416 = vmul.f32 %v1413, 1.442695
      %v1417 = vpow.pop %v1416
      %v1418 = vadd.f32 %v1415, 1.0
      %v1419 = vadd.f32 %v1417, 1.0
      %v1420 = vrcp.pop %v1418
      %v1421 = vmul.f32 1.0, %v1420
      %v1422 = vrcp.pop %v1419
      %v1423 = vmul.f32 1.0, %v1422
      %v1424 = vmul.f32 %v1407, %v1098
      %v1425 = vmul.f32 %v1409, %v1099
      %v1426 = vmul.f32 %v1395, %v1410
      %v1427 = vmul.f32 %v1397, %v1411
      %v1428 = vadd.f32 %v1424, %v1426
      %v1429 = vadd.f32 %v1425, %v1427
      %v1430 = vtanh.pop %v1428
      %v1431 = vtanh.pop %v1429
      %v1432 = vmul.f32 %v1421, %v1430
      %v1433 = vmul.f32 %v1423, %v1431
      %v1434 = vpack.c.bf16 %v1433, %v1432
      %1435 = vst [vmem:[#allocation2] sm:$0xff] %v1434
      %1436 = vst [vmem:[#allocation3] sm:$0xff] %v1428
      %1437 = vst [vmem:[#allocation3 + $0x8] sm:$0xff] %v1429
      %s1438 = scalar_lea.vmem %s335, 8
      %1439 = vst [vmem:[%s1438] sm:$0xff] %v1434
      %s1440 = sadd.s32 %s360, 2
      %p1441 = scmp.lt.s32.totalorder %s1440, 9
      %s1442 = scalar_select %p1441, 1, 0
      %s1443 = scvt.s32.f32 %s1442
      %s1444 = scalar_lea.vmem %s324, 64
      %v1445 = vld [vmem:[%s1444] sm:$0xff]
      %v1446 = vld [vmem:[%s1444 + $0x8] sm:$0xff]
      %v1447 = vld [vmem:[%s1444 + $0x10] sm:$0xff]
      %v1448 = vld [vmem:[%s1444 + $0x18] sm:$0xff]
      %v1449 = vunpack.c.l.bf16 %v1445
      %v1450 = vunpack.c.h.bf16 %v1445
      %v1451 = vunpack.c.l.bf16 %v1446
      %v1452 = vunpack.c.h.bf16 %v1446
      %v1453 = vunpack.c.l.bf16 %v1447
      %v1454 = vunpack.c.h.bf16 %v1447
      %v1455 = vunpack.c.l.bf16 %v1448
      %v1456 = vunpack.c.h.bf16 %v1448
      %v1457 = vstv %s1443
      %v1458 = vmul.f32 %v1449, %v1457
      %v1459 = vmul.f32 %v1450, %v1457
      %v1460 = vmul.f32 %v1451, %v1457
      %v1461 = vmul.f32 %v1452, %v1457
      %v1462 = vmul.f32 %v1453, %v1457
      %v1463 = vmul.f32 %v1454, %v1457
      %v1464 = vmul.f32 %v1455, %v1457
      %v1465 = vmul.f32 %v1456, %v1457
      %v1466 = vld [vmem:[#allocation4] sm:$0xff]
      %v1467 = vld [vmem:[#allocation5] sm:$0xff]
      %v1468 = vld [vmem:[#allocation5 + $0x8] sm:$0xff]
      %v1469 = vld [vmem:[%s3] sm:$0xff]
      %v1470 = vld [vmem:[%s3 + $0x8] sm:$0xff]
      %v1471 = vld [vmem:[%s3 + $0x10] sm:$0xff]
      %v1472 = vld [vmem:[%s3 + $0x18] sm:$0xff]
      %v1473 = vld [vmem:[%s3 + $0x20] sm:$0xff]
      %v1474 = vld [vmem:[%s3 + $0x28] sm:$0xff]
      %v1475 = vld [vmem:[%s3 + $0x30] sm:$0xff]
      %v1476 = vld [vmem:[%s3 + $0x38] sm:$0xff]
      %v1477 = vld [vmem:[%s3 + $0x40] sm:$0xff]
      %v1478 = vld [vmem:[%s3 + $0x48] sm:$0xff]
      %v1479 = vld [vmem:[%s3 + $0x50] sm:$0xff]
      %v1480 = vld [vmem:[%s3 + $0x58] sm:$0xff]
      %v1481 = vld [vmem:[%s3 + $0x60] sm:$0xff]
      %v1482 = vld [vmem:[%s3 + $0x68] sm:$0xff]
      %v1483 = vld [vmem:[%s3 + $0x70] sm:$0xff]
      %v1484 = vld [vmem:[%s3 + $0x78] sm:$0xff]
      %v1485 = vld [vmem:[%s3 + $0x80] sm:$0xff]
      %v1486 = vld [vmem:[%s3 + $0x88] sm:$0xff]
      %v1487 = vld [vmem:[%s3 + $0x90] sm:$0xff]
      %v1488 = vld [vmem:[%s3 + $0x98] sm:$0xff]
      %v1489 = vld [vmem:[%s3 + $0xa0] sm:$0xff]
      %v1490 = vld [vmem:[%s3 + $0xa8] sm:$0xff]
      %v1491 = vld [vmem:[%s3 + $0xb0] sm:$0xff]
      %v1492 = vld [vmem:[%s3 + $0xb8] sm:$0xff]
      %v1493 = vld [vmem:[%s3 + $0xc0] sm:$0xff]
      %v1494 = vld [vmem:[%s3 + $0xc8] sm:$0xff]
      %v1495 = vld [vmem:[%s3 + $0xd0] sm:$0xff]
      %v1496 = vld [vmem:[%s3 + $0xd8] sm:$0xff]
      %v1497 = vld [vmem:[%s3 + $0xe0] sm:$0xff]
      %v1498 = vld [vmem:[%s3 + $0xe8] sm:$0xff]
      %v1499 = vld [vmem:[%s3 + $0xf0] sm:$0xff]
      %v1500 = vld [vmem:[%s3 + $0xf8] sm:$0xff]
      %v1533 = vunpack.c.l.b16 %v1469
      %v1534 = vunpack.c.h.b16 %v1469
      %v1535 = vunpack.c.l.b16 %v1470
      %v1536 = vunpack.c.h.b16 %v1470
      %v1537 = vunpack.c.l.b16 %v1471
      %v1538 = vunpack.c.h.b16 %v1471
      %v1539 = vunpack.c.l.b16 %v1472
      %v1540 = vunpack.c.h.b16 %v1472
      %v1541 = vunpack.c.l.b16 %v1473
      %v1542 = vunpack.c.h.b16 %v1473
      %v1543 = vunpack.c.l.b16 %v1474
      %v1544 = vunpack.c.h.b16 %v1474
      %v1545 = vunpack.c.l.b16 %v1475
      %v1546 = vunpack.c.h.b16 %v1475
      %v1547 = vunpack.c.l.b16 %v1476
      %v1548 = vunpack.c.h.b16 %v1476
      %v1549 = vunpack.c.l.b16 %v1477
      %v1550 = vunpack.c.h.b16 %v1477
      %v1551 = vunpack.c.l.b16 %v1478
      %v1552 = vunpack.c.h.b16 %v1478
      %v1553 = vunpack.c.l.b16 %v1479
      %v1554 = vunpack.c.h.b16 %v1479
      %v1555 = vunpack.c.l.b16 %v1480
      %v1556 = vunpack.c.h.b16 %v1480
      %v1557 = vunpack.c.l.b16 %v1481
      %v1558 = vunpack.c.h.b16 %v1481
      %v1559 = vunpack.c.l.b16 %v1482
      %v1560 = vunpack.c.h.b16 %v1482
      %v1561 = vunpack.c.l.b16 %v1483
      %v1562 = vunpack.c.h.b16 %v1483
      %v1563 = vunpack.c.l.b16 %v1484
      %v1564 = vunpack.c.h.b16 %v1484
      %v1565 = vunpack.c.l.b16 %v1485
      %v1566 = vunpack.c.h.b16 %v1485
      %v1567 = vunpack.c.l.b16 %v1486
      %v1568 = vunpack.c.h.b16 %v1486
      %v1569 = vunpack.c.l.b16 %v1487
      %v1570 = vunpack.c.h.b16 %v1487
      %v1571 = vunpack.c.l.b16 %v1488
      %v1572 = vunpack.c.h.b16 %v1488
      %v1573 = vunpack.c.l.b16 %v1489
      %v1574 = vunpack.c.h.b16 %v1489
      %v1575 = vunpack.c.l.b16 %v1490
      %v1576 = vunpack.c.h.b16 %v1490
      %v1577 = vunpack.c.l.b16 %v1491
      %v1578 = vunpack.c.h.b16 %v1491
      %v1579 = vunpack.c.l.b16 %v1492
      %v1580 = vunpack.c.h.b16 %v1492
      %v1581 = vunpack.c.l.b16 %v1493
      %v1582 = vunpack.c.h.b16 %v1493
      %v1583 = vunpack.c.l.b16 %v1494
      %v1584 = vunpack.c.h.b16 %v1494
      %v1585 = vunpack.c.l.b16 %v1495
      %v1586 = vunpack.c.h.b16 %v1495
      %v1587 = vunpack.c.l.b16 %v1496
      %v1588 = vunpack.c.h.b16 %v1496
      %v1589 = vunpack.c.l.b16 %v1497
      %v1590 = vunpack.c.h.b16 %v1497
      %v1591 = vunpack.c.l.b16 %v1498
      %v1592 = vunpack.c.h.b16 %v1498
      %v1593 = vunpack.c.l.b16 %v1499
      %v1594 = vunpack.c.h.b16 %v1499
      %v1595 = vunpack.c.l.b16 %v1500
      %v1596 = vunpack.c.h.b16 %v1500
      %v1597 = vpack.c.b16 %v1537, %v1533
      %v1598 = vpack.c.b16 %v1538, %v1534
      %v1599 = vpack.c.b16 %v1539, %v1535
      %v1600 = vpack.c.b16 %v1540, %v1536
      %v1601 = vpack.c.b16 %v1545, %v1541
      %v1602 = vpack.c.b16 %v1546, %v1542
      %v1603 = vpack.c.b16 %v1547, %v1543
      %v1604 = vpack.c.b16 %v1548, %v1544
      %v1605 = vpack.c.b16 %v1553, %v1549
      %v1606 = vpack.c.b16 %v1554, %v1550
      %v1607 = vpack.c.b16 %v1555, %v1551
      %v1608 = vpack.c.b16 %v1556, %v1552
      %v1609 = vpack.c.b16 %v1561, %v1557
      %v1610 = vpack.c.b16 %v1562, %v1558
      %v1611 = vpack.c.b16 %v1563, %v1559
      %v1612 = vpack.c.b16 %v1564, %v1560
      %v1613 = vpack.c.b16 %v1569, %v1565
      %v1614 = vpack.c.b16 %v1570, %v1566
      %v1615 = vpack.c.b16 %v1571, %v1567
      %v1616 = vpack.c.b16 %v1572, %v1568
      %v1617 = vpack.c.b16 %v1577, %v1573
      %v1618 = vpack.c.b16 %v1578, %v1574
      %v1619 = vpack.c.b16 %v1579, %v1575
      %v1620 = vpack.c.b16 %v1580, %v1576
      %v1621 = vpack.c.b16 %v1585, %v1581
      %v1622 = vpack.c.b16 %v1586, %v1582
      %v1623 = vpack.c.b16 %v1587, %v1583
      %v1624 = vpack.c.b16 %v1588, %v1584
      %v1625 = vpack.c.b16 %v1593, %v1589
      %v1626 = vpack.c.b16 %v1594, %v1590
      %v1627 = vpack.c.b16 %v1595, %v1591
      %v1628 = vpack.c.b16 %v1596, %v1592
      %1661 = vmatprep.subr.bf16.mxu0 %v1598
      %1662 = vmatpush1.bf16.msra.mxu0 %v1597
      %1663 = vmatprep.subr.bf16.mxu0 %v1602
      %1664 = vmatpush1.bf16.msra.mxu0 %v1601
      %1665 = vmatprep.subr.bf16.mxu0 %v1606
      %1666 = vmatpush1.bf16.msra.mxu0 %v1605
      %1667 = vmatprep.subr.bf16.mxu0 %v1610
      %1668 = vmatpush1.bf16.msra.mxu0 %v1609
      %1669 = vmatprep.subr.bf16.mxu0 %v1614
      %1670 = vmatpush1.bf16.msra.mxu0 %v1613
      %1671 = vmatprep.subr.bf16.mxu0 %v1618
      %1672 = vmatpush1.bf16.msra.mxu0 %v1617
      %1673 = vmatprep.subr.bf16.mxu0 %v1622
      %1674 = vmatpush1.bf16.msra.mxu0 %v1621
      %1675 = vmatprep.subr.bf16.mxu0 %v1626
      %1676 = vmatpush1.bf16.msra.mxu0 %v1625
      %1677 = vmatprep.subr.bf16.mxu0 0
      %1678 = vmatpush1.bf16.msra.mxu0 0
      %1679 = vmatprep.subr.bf16.mxu0 0
      %1680 = vmatpush1.bf16.msra.mxu0 0
      %1681 = vmatprep.subr.bf16.mxu0 0
      %1682 = vmatpush1.bf16.msra.mxu0 0
      %1683 = vmatprep.subr.bf16.mxu0 0
      %1684 = vmatpush1.bf16.msra.mxu0 0
      %1685 = vmatprep.subr.bf16.mxu0 0
      %1686 = vmatpush1.bf16.msra.mxu0 0
      %1687 = vmatprep.subr.bf16.mxu0 0
      %1688 = vmatpush1.bf16.msra.mxu0 0
      %1689 = vmatprep.subr.bf16.mxu0 0
      %1690 = vmatpush1.bf16.msra.mxu0 0
      %1691 = vmatprep.subr.bf16.mxu0 0
      %1692 = vmatpush1.bf16.msra.mxu0 0
      %1693 = vmatprep.mubr.bf16.mxu0 0
      %1694 = vmatmul.mubr.bf16.gmra.mrb[0].mxu0 %v1466
      %v1695 = vpop.f32.mrb[0].mxu0
      %v1696 = vadd.f32 0.0, %v1695
      %v1697 = vpop.f32.mrb[0].mxu0
      %v1698 = vadd.f32 0.0, %v1697
      %v1699 = vpop.f32.mrb[0].mxu0
      %v1700 = vadd.f32 0.0, %v1699
      %v1701 = vpop.f32.mrb[0].mxu0
      %v1702 = vadd.f32 0.0, %v1701
      %1703 = vdwg.mxu0
      %1704 = vmatprep.subr.bf16.mxu0 %v1600
      %1705 = vmatpush1.bf16.msra.mxu0 %v1599
      %1706 = vmatprep.subr.bf16.mxu0 %v1604
      %1707 = vmatpush1.bf16.msra.mxu0 %v1603
      %1708 = vmatprep.subr.bf16.mxu0 %v1608
      %1709 = vmatpush1.bf16.msra.mxu0 %v1607
      %1710 = vmatprep.subr.bf16.mxu0 %v1612
      %1711 = vmatpush1.bf16.msra.mxu0 %v1611
      %1712 = vmatprep.subr.bf16.mxu0 %v1616
      %1713 = vmatpush1.bf16.msra.mxu0 %v1615
      %1714 = vmatprep.subr.bf16.mxu0 %v1620
      %1715 = vmatpush1.bf16.msra.mxu0 %v1619
      %1716 = vmatprep.subr.bf16.mxu0 %v1624
      %1717 = vmatpush1.bf16.msra.mxu0 %v1623
      %1718 = vmatprep.subr.bf16.mxu0 %v1628
      %1719 = vmatpush1.bf16.msra.mxu0 %v1627
      %1720 = vmatprep.subr.bf16.mxu0 0
      %1721 = vmatpush1.bf16.msra.mxu0 0
      %1722 = vmatprep.subr.bf16.mxu0 0
      %1723 = vmatpush1.bf16.msra.mxu0 0
      %1724 = vmatprep.subr.bf16.mxu0 0
      %1725 = vmatpush1.bf16.msra.mxu0 0
      %1726 = vmatprep.subr.bf16.mxu0 0
      %1727 = vmatpush1.bf16.msra.mxu0 0
      %1728 = vmatprep.subr.bf16.mxu0 0
      %1729 = vmatpush1.bf16.msra.mxu0 0
      %1730 = vmatprep.subr.bf16.mxu0 0
      %1731 = vmatpush1.bf16.msra.mxu0 0
      %1732 = vmatprep.subr.bf16.mxu0 0
      %1733 = vmatpush1.bf16.msra.mxu0 0
      %1734 = vmatprep.subr.bf16.mxu0 0
      %1735 = vmatpush1.bf16.msra.mxu0 0
      %1736 = vmatprep.mubr.bf16.mxu0 0
      %1737 = vmatmul.mubr.bf16.gmra.mrb[0].mxu0 %v1466
      %v1738 = vpop.f32.mrb[0].mxu0
      %v1739 = vadd.f32 0.0, %v1738
      %v1740 = vpop.f32.mrb[0].mxu0
      %v1741 = vadd.f32 0.0, %v1740
      %v1742 = vpop.f32.mrb[0].mxu0
      %v1743 = vadd.f32 0.0, %v1742
      %v1744 = vpop.f32.mrb[0].mxu0
      %v1745 = vadd.f32 0.0, %v1744
      %1746 = vdwg.mxu0
      %v1747 = vadd.f32 %v1458, %v1696
      %v1748 = vadd.f32 %v1459, %v1698
      %v1749 = vadd.f32 %v1460, %v1739
      %v1750 = vadd.f32 %v1461, %v1741
      %v1751 = vadd.f32 %v1462, %v1700
      %v1752 = vadd.f32 %v1463, %v1702
      %v1753 = vadd.f32 %v1464, %v1743
      %v1754 = vadd.f32 %v1465, %v1745
      %v1755 = vxor.u32 %v1747, 2147483648
      %v1756 = vxor.u32 %v1751, 2147483648
      %v1757 = vmul.f32 %v1755, 1.442695
      %v1758 = vpow.pop %v1757
      %v1759 = vmul.f32 %v1756, 1.442695
      %v1760 = vpow.pop %v1759
      %v1761 = vadd.f32 %v1758, 1.0
      %v1762 = vadd.f32 %v1760, 1.0
      %v1763 = vrcp.pop %v1761
      %v1764 = vmul.f32 1.0, %v1763
      %v1765 = vrcp.pop %v1762
      %v1766 = vmul.f32 1.0, %v1765
      %v1767 = vxor.u32 %v1748, 2147483648
      %v1768 = vxor.u32 %v1752, 2147483648
      %v1769 = vmul.f32 %v1767, 1.442695
      %v1770 = vpow.pop %v1769
      %v1771 = vmul.f32 %v1768, 1.442695
      %v1772 = vpow.pop %v1771
      %v1773 = vadd.f32 %v1770, 1.0
      %v1774 = vadd.f32 %v1772, 1.0
      %v1775 = vrcp.pop %v1773
      %v1776 = vmul.f32 1.0, %v1775
      %v1777 = vrcp.pop %v1774
      %v1778 = vmul.f32 1.0, %v1777
      %v1779 = vtanh.pop %v1749
      %v1780 = vtanh.pop %v1753
      %v1781 = vxor.u32 %v1750, 2147483648
      %v1782 = vxor.u32 %v1754, 2147483648
      %v1783 = vmul.f32 %v1781, 1.442695
      %v1784 = vpow.pop %v1783
      %v1785 = vmul.f32 %v1782, 1.442695
      %v1786 = vpow.pop %v1785
      %v1787 = vadd.f32 %v1784, 1.0
      %v1788 = vadd.f32 %v1786, 1.0
      %v1789 = vrcp.pop %v1787
      %v1790 = vmul.f32 1.0, %v1789
      %v1791 = vrcp.pop %v1788
      %v1792 = vmul.f32 1.0, %v1791
      %v1793 = vmul.f32 %v1776, %v1467
      %v1794 = vmul.f32 %v1778, %v1468
      %v1795 = vmul.f32 %v1764, %v1779
      %v1796 = vmul.f32 %v1766, %v1780
      %v1797 = vadd.f32 %v1793, %v1795
      %v1798 = vadd.f32 %v1794, %v1796
      %v1799 = vtanh.pop %v1797
      %v1800 = vtanh.pop %v1798
      %v1801 = vmul.f32 %v1790, %v1799
      %v1802 = vmul.f32 %v1792, %v1800
      %v1803 = vpack.c.bf16 %v1802, %v1801
      %1804 = vst [vmem:[#allocation4] sm:$0xff] %v1803
      %1805 = vst [vmem:[#allocation5] sm:$0xff] %v1797
      %1806 = vst [vmem:[#allocation5 + $0x8] sm:$0xff] %v1798
      %s1807 = scalar_lea.vmem %s345, 16
      %1808 = vst [vmem:[%s1807] sm:$0xff] %v1803
      %s1809 = scalar_lea.vmem %s310, 64
      %v1810 = vld [vmem:[%s1809] sm:$0xff]
      %v1811 = vld [vmem:[%s1809 + $0x8] sm:$0xff]
      %v1812 = vld [vmem:[%s1809 + $0x10] sm:$0xff]
      %v1813 = vld [vmem:[%s1809 + $0x18] sm:$0xff]
      %v1814 = vunpack.c.l.bf16 %v1810
      %v1815 = vunpack.c.h.bf16 %v1810
      %v1816 = vunpack.c.l.bf16 %v1811
      %v1817 = vunpack.c.h.bf16 %v1811
      %v1818 = vunpack.c.l.bf16 %v1812
      %v1819 = vunpack.c.h.bf16 %v1812
      %v1820 = vunpack.c.l.bf16 %v1813
      %v1821 = vunpack.c.h.bf16 %v1813
      %v1822 = vld [vmem:[#allocation2] sm:$0xff]
      %v1823 = vld [vmem:[#allocation3] sm:$0xff]
      %v1824 = vld [vmem:[#allocation3 + $0x8] sm:$0xff]
      %v1825 = vld [vmem:[%s2] sm:$0xff]
      %v1826 = vld [vmem:[%s2 + $0x8] sm:$0xff]
      %v1827 = vld [vmem:[%s2 + $0x10] sm:$0xff]
      %v1828 = vld [vmem:[%s2 + $0x18] sm:$0xff]
      %v1829 = vld [vmem:[%s2 + $0x20] sm:$0xff]
      %v1830 = vld [vmem:[%s2 + $0x28] sm:$0xff]
      %v1831 = vld [vmem:[%s2 + $0x30] sm:$0xff]
      %v1832 = vld [vmem:[%s2 + $0x38] sm:$0xff]
      %v1833 = vld [vmem:[%s2 + $0x40] sm:$0xff]
      %v1834 = vld [vmem:[%s2 + $0x48] sm:$0xff]
      %v1835 = vld [vmem:[%s2 + $0x50] sm:$0xff]
      %v1836 = vld [vmem:[%s2 + $0x58] sm:$0xff]
      %v1837 = vld [vmem:[%s2 + $0x60] sm:$0xff]
      %v1838 = vld [vmem:[%s2 + $0x68] sm:$0xff]
      %v1839 = vld [vmem:[%s2 + $0x70] sm:$0xff]
      %v1840 = vld [vmem:[%s2 + $0x78] sm:$0xff]
      %v1841 = vld [vmem:[%s2 + $0x80] sm:$0xff]
      %v1842 = vld [vmem:[%s2 + $0x88] sm:$0xff]
      %v1843 = vld [vmem:[%s2 + $0x90] sm:$0xff]
      %v1844 = vld [vmem:[%s2 + $0x98] sm:$0xff]
      %v1845 = vld [vmem:[%s2 + $0xa0] sm:$0xff]
      %v1846 = vld [vmem:[%s2 + $0xa8] sm:$0xff]
      %v1847 = vld [vmem:[%s2 + $0xb0] sm:$0xff]
      %v1848 = vld [vmem:[%s2 + $0xb8] sm:$0xff]
      %v1849 = vld [vmem:[%s2 + $0xc0] sm:$0xff]
      %v1850 = vld [vmem:[%s2 + $0xc8] sm:$0xff]
      %v1851 = vld [vmem:[%s2 + $0xd0] sm:$0xff]
      %v1852 = vld [vmem:[%s2 + $0xd8] sm:$0xff]
      %v1853 = vld [vmem:[%s2 + $0xe0] sm:$0xff]
      %v1854 = vld [vmem:[%s2 + $0xe8] sm:$0xff]
      %v1855 = vld [vmem:[%s2 + $0xf0] sm:$0xff]
      %v1856 = vld [vmem:[%s2 + $0xf8] sm:$0xff]
      %v1889 = vunpack.c.l.b16 %v1825
      %v1890 = vunpack.c.h.b16 %v1825
      %v1891 = vunpack.c.l.b16 %v1826
      %v1892 = vunpack.c.h.b16 %v1826
      %v1893 = vunpack.c.l.b16 %v1827
      %v1894 = vunpack.c.h.b16 %v1827
      %v1895 = vunpack.c.l.b16 %v1828
      %v1896 = vunpack.c.h.b16 %v1828
      %v1897 = vunpack.c.l.b16 %v1829
      %v1898 = vunpack.c.h.b16 %v1829
      %v1899 = vunpack.c.l.b16 %v1830
      %v1900 = vunpack.c.h.b16 %v1830
      %v1901 = vunpack.c.l.b16 %v1831
      %v1902 = vunpack.c.h.b16 %v1831
      %v1903 = vunpack.c.l.b16 %v1832
      %v1904 = vunpack.c.h.b16 %v1832
      %v1905 = vunpack.c.l.b16 %v1833
      %v1906 = vunpack.c.h.b16 %v1833
      %v1907 = vunpack.c.l.b16 %v1834
      %v1908 = vunpack.c.h.b16 %v1834
      %v1909 = vunpack.c.l.b16 %v1835
      %v1910 = vunpack.c.h.b16 %v1835
      %v1911 = vunpack.c.l.b16 %v1836
      %v1912 = vunpack.c.h.b16 %v1836
      %v1913 = vunpack.c.l.b16 %v1837
      %v1914 = vunpack.c.h.b16 %v1837
      %v1915 = vunpack.c.l.b16 %v1838
      %v1916 = vunpack.c.h.b16 %v1838
      %v1917 = vunpack.c.l.b16 %v1839
      %v1918 = vunpack.c.h.b16 %v1839
      %v1919 = vunpack.c.l.b16 %v1840
      %v1920 = vunpack.c.h.b16 %v1840
      %v1921 = vunpack.c.l.b16 %v1841
      %v1922 = vunpack.c.h.b16 %v1841
      %v1923 = vunpack.c.l.b16 %v1842
      %v1924 = vunpack.c.h.b16 %v1842
      %v1925 = vunpack.c.l.b16 %v1843
      %v1926 = vunpack.c.h.b16 %v1843
      %v1927 = vunpack.c.l.b16 %v1844
      %v1928 = vunpack.c.h.b16 %v1844
      %v1929 = vunpack.c.l.b16 %v1845
      %v1930 = vunpack.c.h.b16 %v1845
      %v1931 = vunpack.c.l.b16 %v1846
      %v1932 = vunpack.c.h.b16 %v1846
      %v1933 = vunpack.c.l.b16 %v1847
      %v1934 = vunpack.c.h.b16 %v1847
      %v1935 = vunpack.c.l.b16 %v1848
      %v1936 = vunpack.c.h.b16 %v1848
      %v1937 = vunpack.c.l.b16 %v1849
      %v1938 = vunpack.c.h.b16 %v1849
      %v1939 = vunpack.c.l.b16 %v1850
      %v1940 = vunpack.c.h.b16 %v1850
      %v1941 = vunpack.c.l.b16 %v1851
      %v1942 = vunpack.c.h.b16 %v1851
      %v1943 = vunpack.c.l.b16 %v1852
      %v1944 = vunpack.c.h.b16 %v1852
      %v1945 = vunpack.c.l.b16 %v1853
      %v1946 = vunpack.c.h.b16 %v1853
      %v1947 = vunpack.c.l.b16 %v1854
      %v1948 = vunpack.c.h.b16 %v1854
      %v1949 = vunpack.c.l.b16 %v1855
      %v1950 = vunpack.c.h.b16 %v1855
      %v1951 = vunpack.c.l.b16 %v1856
      %v1952 = vunpack.c.h.b16 %v1856
      %v1953 = vpack.c.b16 %v1893, %v1889
      %v1954 = vpack.c.b16 %v1894, %v1890
      %v1955 = vpack.c.b16 %v1895, %v1891
      %v1956 = vpack.c.b16 %v1896, %v1892
      %v1957 = vpack.c.b16 %v1901, %v1897
      %v1958 = vpack.c.b16 %v1902, %v1898
      %v1959 = vpack.c.b16 %v1903, %v1899
      %v1960 = vpack.c.b16 %v1904, %v1900
      %v1961 = vpack.c.b16 %v1909, %v1905
      %v1962 = vpack.c.b16 %v1910, %v1906
      %v1963 = vpack.c.b16 %v1911, %v1907
      %v1964 = vpack.c.b16 %v1912, %v1908
      %v1965 = vpack.c.b16 %v1917, %v1913
      %v1966 = vpack.c.b16 %v1918, %v1914
      %v1967 = vpack.c.b16 %v1919, %v1915
      %v1968 = vpack.c.b16 %v1920, %v1916
      %v1969 = vpack.c.b16 %v1925, %v1921
      %v1970 = vpack.c.b16 %v1926, %v1922
      %v1971 = vpack.c.b16 %v1927, %v1923
      %v1972 = vpack.c.b16 %v1928, %v1924
      %v1973 = vpack.c.b16 %v1933, %v1929
      %v1974 = vpack.c.b16 %v1934, %v1930
      %v1975 = vpack.c.b16 %v1935, %v1931
      %v1976 = vpack.c.b16 %v1936, %v1932
      %v1977 = vpack.c.b16 %v1941, %v1937
      %v1978 = vpack.c.b16 %v1942, %v1938
      %v1979 = vpack.c.b16 %v1943, %v1939
      %v1980 = vpack.c.b16 %v1944, %v1940
      %v1981 = vpack.c.b16 %v1949, %v1945
      %v1982 = vpack.c.b16 %v1950, %v1946
      %v1983 = vpack.c.b16 %v1951, %v1947
      %v1984 = vpack.c.b16 %v1952, %v1948
      %2017 = vmatprep.subr.bf16.mxu0 %v1954
      %2018 = vmatpush1.bf16.msra.mxu0 %v1953
      %2019 = vmatprep.subr.bf16.mxu0 %v1958
      %2020 = vmatpush1.bf16.msra.mxu0 %v1957
      %2021 = vmatprep.subr.bf16.mxu0 %v1962
      %2022 = vmatpush1.bf16.msra.mxu0 %v1961
      %2023 = vmatprep.subr.bf16.mxu0 %v1966
      %2024 = vmatpush1.bf16.msra.mxu0 %v1965
      %2025 = vmatprep.subr.bf16.mxu0 %v1970
      %2026 = vmatpush1.bf16.msra.mxu0 %v1969
      %2027 = vmatprep.subr.bf16.mxu0 %v1974
      %2028 = vmatpush1.bf16.msra.mxu0 %v1973
      %2029 = vmatprep.subr.bf16.mxu0 %v1978
      %2030 = vmatpush1.bf16.msra.mxu0 %v1977
      %2031 = vmatprep.subr.bf16.mxu0 %v1982
      %2032 = vmatpush1.bf16.msra.mxu0 %v1981
      %2033 = vmatprep.subr.bf16.mxu0 0
      %2034 = vmatpush1.bf16.msra.mxu0 0
      %2035 = vmatprep.subr.bf16.mxu0 0
      %2036 = vmatpush1.bf16.msra.mxu0 0
      %2037 = vmatprep.subr.bf16.mxu0 0
      %2038 = vmatpush1.bf16.msra.mxu0 0
      %2039 = vmatprep.subr.bf16.mxu0 0
      %2040 = vmatpush1.bf16.msra.mxu0 0
      %2041 = vmatprep.subr.bf16.mxu0 0
      %2042 = vmatpush1.bf16.msra.mxu0 0
      %2043 = vmatprep.subr.bf16.mxu0 0
      %2044 = vmatpush1.bf16.msra.mxu0 0
      %2045 = vmatprep.subr.bf16.mxu0 0
      %2046 = vmatpush1.bf16.msra.mxu0 0
      %2047 = vmatprep.subr.bf16.mxu0 0
      %2048 = vmatpush1.bf16.msra.mxu0 0
      %2049 = vmatprep.mubr.bf16.mxu0 0
      %2050 = vmatmul.mubr.bf16.gmra.mrb[0].mxu0 %v1822
      %v2051 = vpop.f32.mrb[0].mxu0
      %v2052 = vadd.f32 0.0, %v2051
      %v2053 = vpop.f32.mrb[0].mxu0
      %v2054 = vadd.f32 0.0, %v2053
      %v2055 = vpop.f32.mrb[0].mxu0
      %v2056 = vadd.f32 0.0, %v2055
      %v2057 = vpop.f32.mrb[0].mxu0
      %v2058 = vadd.f32 0.0, %v2057
      %2059 = vdwg.mxu0
      %2060 = vmatprep.subr.bf16.mxu0 %v1956
      %2061 = vmatpush1.bf16.msra.mxu0 %v1955
      %2062 = vmatprep.subr.bf16.mxu0 %v1960
      %2063 = vmatpush1.bf16.msra.mxu0 %v1959
      %2064 = vmatprep.subr.bf16.mxu0 %v1964
      %2065 = vmatpush1.bf16.msra.mxu0 %v1963
      %2066 = vmatprep.subr.bf16.mxu0 %v1968
      %2067 = vmatpush1.bf16.msra.mxu0 %v1967
      %2068 = vmatprep.subr.bf16.mxu0 %v1972
      %2069 = vmatpush1.bf16.msra.mxu0 %v1971
      %2070 = vmatprep.subr.bf16.mxu0 %v1976
      %2071 = vmatpush1.bf16.msra.mxu0 %v1975
      %2072 = vmatprep.subr.bf16.mxu0 %v1980
      %2073 = vmatpush1.bf16.msra.mxu0 %v1979
      %2074 = vmatprep.subr.bf16.mxu0 %v1984
      %2075 = vmatpush1.bf16.msra.mxu0 %v1983
      %2076 = vmatprep.subr.bf16.mxu0 0
      %2077 = vmatpush1.bf16.msra.mxu0 0
      %2078 = vmatprep.subr.bf16.mxu0 0
      %2079 = vmatpush1.bf16.msra.mxu0 0
      %2080 = vmatprep.subr.bf16.mxu0 0
      %2081 = vmatpush1.bf16.msra.mxu0 0
      %2082 = vmatprep.subr.bf16.mxu0 0
      %2083 = vmatpush1.bf16.msra.mxu0 0
      %2084 = vmatprep.subr.bf16.mxu0 0
      %2085 = vmatpush1.bf16.msra.mxu0 0
      %2086 = vmatprep.subr.bf16.mxu0 0
      %2087 = vmatpush1.bf16.msra.mxu0 0
      %2088 = vmatprep.subr.bf16.mxu0 0
      %2089 = vmatpush1.bf16.msra.mxu0 0
      %2090 = vmatprep.subr.bf16.mxu0 0
      %2091 = vmatpush1.bf16.msra.mxu0 0
      %2092 = vmatprep.mubr.bf16.mxu0 0
      %2093 = vmatmul.mubr.bf16.gmra.mrb[0].mxu0 %v1822
      %v2094 = vpop.f32.mrb[0].mxu0
      %v2095 = vadd.f32 0.0, %v2094
      %v2096 = vpop.f32.mrb[0].mxu0
      %v2097 = vadd.f32 0.0, %v2096
      %v2098 = vpop.f32.mrb[0].mxu0
      %v2099 = vadd.f32 0.0, %v2098
      %v2100 = vpop.f32.mrb[0].mxu0
      %v2101 = vadd.f32 0.0, %v2100
      %2102 = vdwg.mxu0
      %v2103 = vadd.f32 %v1814, %v2052
      %v2104 = vadd.f32 %v1815, %v2054
      %v2105 = vadd.f32 %v1816, %v2095
      %v2106 = vadd.f32 %v1817, %v2097
      %v2107 = vadd.f32 %v1818, %v2056
      %v2108 = vadd.f32 %v1819, %v2058
      %v2109 = vadd.f32 %v1820, %v2099
      %v2110 = vadd.f32 %v1821, %v2101
      %v2111 = vxor.u32 %v2103, 2147483648
      %v2112 = vxor.u32 %v2107, 2147483648
      %v2113 = vmul.f32 %v2111, 1.442695
      %v2114 = vpow.pop %v2113
      %v2115 = vmul.f32 %v2112, 1.442695
      %v2116 = vpow.pop %v2115
      %v2117 = vadd.f32 %v2114, 1.0
      %v2118 = vadd.f32 %v2116, 1.0
      %v2119 = vrcp.pop %v2117
      %v2120 = vmul.f32 1.0, %v2119
      %v2121 = vrcp.pop %v2118
      %v2122 = vmul.f32 1.0, %v2121
      %v2123 = vxor.u32 %v2104, 2147483648
      %v2124 = vxor.u32 %v2108, 2147483648
      %v2125 = vmul.f32 %v2123, 1.442695
      %v2126 = vpow.pop %v2125
      %v2127 = vmul.f32 %v2124, 1.442695
      %v2128 = vpow.pop %v2127
      %v2129 = vadd.f32 %v2126, 1.0
      %v2130 = vadd.f32 %v2128, 1.0
      %v2131 = vrcp.pop %v2129
      %v2132 = vmul.f32 1.0, %v2131
      %v2133 = vrcp.pop %v2130
      %v2134 = vmul.f32 1.0, %v2133
      %v2135 = vtanh.pop %v2105
      %v2136 = vtanh.pop %v2109
      %v2137 = vxor.u32 %v2106, 2147483648
      %v2138 = vxor.u32 %v2110, 2147483648
      %v2139 = vmul.f32 %v2137, 1.442695
      %v2140 = vpow.pop %v2139
      %v2141 = vmul.f32 %v2138, 1.442695
      %v2142 = vpow.pop %v2141
      %v2143 = vadd.f32 %v2140, 1.0
      %v2144 = vadd.f32 %v2142, 1.0
      %v2145 = vrcp.pop %v2143
      %v2146 = vmul.f32 1.0, %v2145
      %v2147 = vrcp.pop %v2144
      %v2148 = vmul.f32 1.0, %v2147
      %v2149 = vmul.f32 %v2132, %v1823
      %v2150 = vmul.f32 %v2134, %v1824
      %v2151 = vmul.f32 %v2120, %v2135
      %v2152 = vmul.f32 %v2122, %v2136
      %v2153 = vadd.f32 %v2149, %v2151
      %v2154 = vadd.f32 %v2150, %v2152
      %v2155 = vtanh.pop %v2153
      %v2156 = vtanh.pop %v2154
      %v2157 = vmul.f32 %v2146, %v2155
      %v2158 = vmul.f32 %v2148, %v2156
      %v2159 = vpack.c.bf16 %v2158, %v2157
      %2160 = vst [vmem:[#allocation2] sm:$0xff] %v2159
      %2161 = vst [vmem:[#allocation3] sm:$0xff] %v2153
      %2162 = vst [vmem:[#allocation3 + $0x8] sm:$0xff] %v2154
      %s2163 = scalar_lea.vmem %s335, 16
      %2164 = vst [vmem:[%s2163] sm:$0xff] %v2159
      %s2165 = sadd.s32 %s360, 1
      %p2166 = scmp.lt.s32.totalorder %s2165, 9
      %s2167 = scalar_select %p2166, 1, 0
      %s2168 = scvt.s32.f32 %s2167
      %s2169 = scalar_lea.vmem %s324, 32
      %v2170 = vld [vmem:[%s2169] sm:$0xff]
      %v2171 = vld [vmem:[%s2169 + $0x8] sm:$0xff]
      %v2172 = vld [vmem:[%s2169 + $0x10] sm:$0xff]
      %v2173 = vld [vmem:[%s2169 + $0x18] sm:$0xff]
      %v2174 = vunpack.c.l.bf16 %v2170
      %v2175 = vunpack.c.h.bf16 %v2170
      %v2176 = vunpack.c.l.bf16 %v2171
      %v2177 = vunpack.c.h.bf16 %v2171
      %v2178 = vunpack.c.l.bf16 %v2172
      %v2179 = vunpack.c.h.bf16 %v2172
      %v2180 = vunpack.c.l.bf16 %v2173
      %v2181 = vunpack.c.h.bf16 %v2173
      %v2182 = vstv %s2168
      %v2183 = vmul.f32 %v2174, %v2182
      %v2184 = vmul.f32 %v2175, %v2182
      %v2185 = vmul.f32 %v2176, %v2182
      %v2186 = vmul.f32 %v2177, %v2182
      %v2187 = vmul.f32 %v2178, %v2182
      %v2188 = vmul.f32 %v2179, %v2182
      %v2189 = vmul.f32 %v2180, %v2182
      %v2190 = vmul.f32 %v2181, %v2182
      %v2191 = vld [vmem:[#allocation4] sm:$0xff]
      %v2192 = vld [vmem:[#allocation5] sm:$0xff]
      %v2193 = vld [vmem:[#allocation5 + $0x8] sm:$0xff]
      %v2194 = vld [vmem:[%s3] sm:$0xff]
      %v2195 = vld [vmem:[%s3 + $0x8] sm:$0xff]
      %v2196 = vld [vmem:[%s3 + $0x10] sm:$0xff]
      %v2197 = vld [vmem:[%s3 + $0x18] sm:$0xff]
      %v2198 = vld [vmem:[%s3 + $0x20] sm:$0xff]
      %v2199 = vld [vmem:[%s3 + $0x28] sm:$0xff]
      %v2200 = vld [vmem:[%s3 + $0x30] sm:$0xff]
      %v2201 = vld [vmem:[%s3 + $0x38] sm:$0xff]
      %v2202 = vld [vmem:[%s3 + $0x40] sm:$0xff]
      %v2203 = vld [vmem:[%s3 + $0x48] sm:$0xff]
      %v2204 = vld [vmem:[%s3 + $0x50] sm:$0xff]
      %v2205 = vld [vmem:[%s3 + $0x58] sm:$0xff]
      %v2206 = vld [vmem:[%s3 + $0x60] sm:$0xff]
      %v2207 = vld [vmem:[%s3 + $0x68] sm:$0xff]
      %v2208 = vld [vmem:[%s3 + $0x70] sm:$0xff]
      %v2209 = vld [vmem:[%s3 + $0x78] sm:$0xff]
      %v2210 = vld [vmem:[%s3 + $0x80] sm:$0xff]
      %v2211 = vld [vmem:[%s3 + $0x88] sm:$0xff]
      %v2212 = vld [vmem:[%s3 + $0x90] sm:$0xff]
      %v2213 = vld [vmem:[%s3 + $0x98] sm:$0xff]
      %v2214 = vld [vmem:[%s3 + $0xa0] sm:$0xff]
      %v2215 = vld [vmem:[%s3 + $0xa8] sm:$0xff]
      %v2216 = vld [vmem:[%s3 + $0xb0] sm:$0xff]
      %v2217 = vld [vmem:[%s3 + $0xb8] sm:$0xff]
      %v2218 = vld [vmem:[%s3 + $0xc0] sm:$0xff]
      %v2219 = vld [vmem:[%s3 + $0xc8] sm:$0xff]
      %v2220 = vld [vmem:[%s3 + $0xd0] sm:$0xff]
      %v2221 = vld [vmem:[%s3 + $0xd8] sm:$0xff]
      %v2222 = vld [vmem:[%s3 + $0xe0] sm:$0xff]
      %v2223 = vld [vmem:[%s3 + $0xe8] sm:$0xff]
      %v2224 = vld [vmem:[%s3 + $0xf0] sm:$0xff]
      %v2225 = vld [vmem:[%s3 + $0xf8] sm:$0xff]
      %v2258 = vunpack.c.l.b16 %v2194
      %v2259 = vunpack.c.h.b16 %v2194
      %v2260 = vunpack.c.l.b16 %v2195
      %v2261 = vunpack.c.h.b16 %v2195
      %v2262 = vunpack.c.l.b16 %v2196
      %v2263 = vunpack.c.h.b16 %v2196
      %v2264 = vunpack.c.l.b16 %v2197
      %v2265 = vunpack.c.h.b16 %v2197
      %v2266 = vunpack.c.l.b16 %v2198
      %v2267 = vunpack.c.h.b16 %v2198
      %v2268 = vunpack.c.l.b16 %v2199
      %v2269 = vunpack.c.h.b16 %v2199
      %v2270 = vunpack.c.l.b16 %v2200
      %v2271 = vunpack.c.h.b16 %v2200
      %v2272 = vunpack.c.l.b16 %v2201
      %v2273 = vunpack.c.h.b16 %v2201
      %v2274 = vunpack.c.l.b16 %v2202
      %v2275 = vunpack.c.h.b16 %v2202
      %v2276 = vunpack.c.l.b16 %v2203
      %v2277 = vunpack.c.h.b16 %v2203
      %v2278 = vunpack.c.l.b16 %v2204
      %v2279 = vunpack.c.h.b16 %v2204
      %v2280 = vunpack.c.l.b16 %v2205
      %v2281 = vunpack.c.h.b16 %v2205
      %v2282 = vunpack.c.l.b16 %v2206
      %v2283 = vunpack.c.h.b16 %v2206
      %v2284 = vunpack.c.l.b16 %v2207
      %v2285 = vunpack.c.h.b16 %v2207
      %v2286 = vunpack.c.l.b16 %v2208
      %v2287 = vunpack.c.h.b16 %v2208
      %v2288 = vunpack.c.l.b16 %v2209
      %v2289 = vunpack.c.h.b16 %v2209
      %v2290 = vunpack.c.l.b16 %v2210
      %v2291 = vunpack.c.h.b16 %v2210
      %v2292 = vunpack.c.l.b16 %v2211
      %v2293 = vunpack.c.h.b16 %v2211
      %v2294 = vunpack.c.l.b16 %v2212
      %v2295 = vunpack.c.h.b16 %v2212
      %v2296 = vunpack.c.l.b16 %v2213
      %v2297 = vunpack.c.h.b16 %v2213
      %v2298 = vunpack.c.l.b16 %v2214
      %v2299 = vunpack.c.h.b16 %v2214
      %v2300 = vunpack.c.l.b16 %v2215
      %v2301 = vunpack.c.h.b16 %v2215
      %v2302 = vunpack.c.l.b16 %v2216
      %v2303 = vunpack.c.h.b16 %v2216
      %v2304 = vunpack.c.l.b16 %v2217
      %v2305 = vunpack.c.h.b16 %v2217
      %v2306 = vunpack.c.l.b16 %v2218
      %v2307 = vunpack.c.h.b16 %v2218
      %v2308 = vunpack.c.l.b16 %v2219
      %v2309 = vunpack.c.h.b16 %v2219
      %v2310 = vunpack.c.l.b16 %v2220
      %v2311 = vunpack.c.h.b16 %v2220
      %v2312 = vunpack.c.l.b16 %v2221
      %v2313 = vunpack.c.h.b16 %v2221
      %v2314 = vunpack.c.l.b16 %v2222
      %v2315 = vunpack.c.h.b16 %v2222
      %v2316 = vunpack.c.l.b16 %v2223
      %v2317 = vunpack.c.h.b16 %v2223
      %v2318 = vunpack.c.l.b16 %v2224
      %v2319 = vunpack.c.h.b16 %v2224
      %v2320 = vunpack.c.l.b16 %v2225
      %v2321 = vunpack.c.h.b16 %v2225
      %v2322 = vpack.c.b16 %v2262, %v2258
      %v2323 = vpack.c.b16 %v2263, %v2259
      %v2324 = vpack.c.b16 %v2264, %v2260
      %v2325 = vpack.c.b16 %v2265, %v2261
      %v2326 = vpack.c.b16 %v2270, %v2266
      %v2327 = vpack.c.b16 %v2271, %v2267
      %v2328 = vpack.c.b16 %v2272, %v2268
      %v2329 = vpack.c.b16 %v2273, %v2269
      %v2330 = vpack.c.b16 %v2278, %v2274
      %v2331 = vpack.c.b16 %v2279, %v2275
      %v2332 = vpack.c.b16 %v2280, %v2276
      %v2333 = vpack.c.b16 %v2281, %v2277
      %v2334 = vpack.c.b16 %v2286, %v2282
      %v2335 = vpack.c.b16 %v2287, %v2283
      %v2336 = vpack.c.b16 %v2288, %v2284
      %v2337 = vpack.c.b16 %v2289, %v2285
      %v2338 = vpack.c.b16 %v2294, %v2290
      %v2339 = vpack.c.b16 %v2295, %v2291
      %v2340 = vpack.c.b16 %v2296, %v2292
      %v2341 = vpack.c.b16 %v2297, %v2293
      %v2342 = vpack.c.b16 %v2302, %v2298
      %v2343 = vpack.c.b16 %v2303, %v2299
      %v2344 = vpack.c.b16 %v2304, %v2300
      %v2345 = vpack.c.b16 %v2305, %v2301
      %v2346 = vpack.c.b16 %v2310, %v2306
      %v2347 = vpack.c.b16 %v2311, %v2307
      %v2348 = vpack.c.b16 %v2312, %v2308
      %v2349 = vpack.c.b16 %v2313, %v2309
      %v2350 = vpack.c.b16 %v2318, %v2314
      %v2351 = vpack.c.b16 %v2319, %v2315
      %v2352 = vpack.c.b16 %v2320, %v2316
      %v2353 = vpack.c.b16 %v2321, %v2317
      %2386 = vmatprep.subr.bf16.mxu0 %v2323
      %2387 = vmatpush1.bf16.msra.mxu0 %v2322
      %2388 = vmatprep.subr.bf16.mxu0 %v2327
      %2389 = vmatpush1.bf16.msra.mxu0 %v2326
      %2390 = vmatprep.subr.bf16.mxu0 %v2331
      %2391 = vmatpush1.bf16.msra.mxu0 %v2330
      %2392 = vmatprep.subr.bf16.mxu0 %v2335
      %2393 = vmatpush1.bf16.msra.mxu0 %v2334
      %2394 = vmatprep.subr.bf16.mxu0 %v2339
      %2395 = vmatpush1.bf16.msra.mxu0 %v2338
      %2396 = vmatprep.subr.bf16.mxu0 %v2343
      %2397 = vmatpush1.bf16.msra.mxu0 %v2342
      %2398 = vmatprep.subr.bf16.mxu0 %v2347
      %2399 = vmatpush1.bf16.msra.mxu0 %v2346
      %2400 = vmatprep.subr.bf16.mxu0 %v2351
      %2401 = vmatpush1.bf16.msra.mxu0 %v2350
      %2402 = vmatprep.subr.bf16.mxu0 0
      %2403 = vmatpush1.bf16.msra.mxu0 0
      %2404 = vmatprep.subr.bf16.mxu0 0
      %2405 = vmatpush1.bf16.msra.mxu0 0
      %2406 = vmatprep.subr.bf16.mxu0 0
      %2407 = vmatpush1.bf16.msra.mxu0 0
      %2408 = vmatprep.subr.bf16.mxu0 0
      %2409 = vmatpush1.bf16.msra.mxu0 0
      %2410 = vmatprep.subr.bf16.mxu0 0
      %2411 = vmatpush1.bf16.msra.mxu0 0
      %2412 = vmatprep.subr.bf16.mxu0 0
      %2413 = vmatpush1.bf16.msra.mxu0 0
      %2414 = vmatprep.subr.bf16.mxu0 0
      %2415 = vmatpush1.bf16.msra.mxu0 0
      %2416 = vmatprep.subr.bf16.mxu0 0
      %2417 = vmatpush1.bf16.msra.mxu0 0
      %2418 = vmatprep.mubr.bf16.mxu0 0
      %2419 = vmatmul.mubr.bf16.gmra.mrb[0].mxu0 %v2191
      %v2420 = vpop.f32.mrb[0].mxu0
      %v2421 = vadd.f32 0.0, %v2420
      %v2422 = vpop.f32.mrb[0].mxu0
      %v2423 = vadd.f32 0.0, %v2422
      %v2424 = vpop.f32.mrb[0].mxu0
      %v2425 = vadd.f32 0.0, %v2424
      %v2426 = vpop.f32.mrb[0].mxu0
      %v2427 = vadd.f32 0.0, %v2426
      %2428 = vdwg.mxu0
      %2429 = vmatprep.subr.bf16.mxu0 %v2325
      %2430 = vmatpush1.bf16.msra.mxu0 %v2324
      %2431 = vmatprep.subr.bf16.mxu0 %v2329
      %2432 = vmatpush1.bf16.msra.mxu0 %v2328
      %2433 = vmatprep.subr.bf16.mxu0 %v2333
      %2434 = vmatpush1.bf16.msra.mxu0 %v2332
      %2435 = vmatprep.subr.bf16.mxu0 %v2337
      %2436 = vmatpush1.bf16.msra.mxu0 %v2336
      %2437 = vmatprep.subr.bf16.mxu0 %v2341
      %2438 = vmatpush1.bf16.msra.mxu0 %v2340
      %2439 = vmatprep.subr.bf16.mxu0 %v2345
      %2440 = vmatpush1.bf16.msra.mxu0 %v2344
      %2441 = vmatprep.subr.bf16.mxu0 %v2349
      %2442 = vmatpush1.bf16.msra.mxu0 %v2348
      %2443 = vmatprep.subr.bf16.mxu0 %v2353
      %2444 = vmatpush1.bf16.msra.mxu0 %v2352
      %2445 = vmatprep.subr.bf16.mxu0 0
      %2446 = vmatpush1.bf16.msra.mxu0 0
      %2447 = vmatprep.subr.bf16.mxu0 0
      %2448 = vmatpush1.bf16.msra.mxu0 0
      %2449 = vmatprep.subr.bf16.mxu0 0
      %2450 = vmatpush1.bf16.msra.mxu0 0
      %2451 = vmatprep.subr.bf16.mxu0 0
      %2452 = vmatpush1.bf16.msra.mxu0 0
      %2453 = vmatprep.subr.bf16.mxu0 0
      %2454 = vmatpush1.bf16.msra.mxu0 0
      %2455 = vmatprep.subr.bf16.mxu0 0
      %2456 = vmatpush1.bf16.msra.mxu0 0
      %2457 = vmatprep.subr.bf16.mxu0 0
      %2458 = vmatpush1.bf16.msra.mxu0 0
      %2459 = vmatprep.subr.bf16.mxu0 0
      %2460 = vmatpush1.bf16.msra.mxu0 0
      %2461 = vmatprep.mubr.bf16.mxu0 0
      %2462 = vmatmul.mubr.bf16.gmra.mrb[0].mxu0 %v2191
      %v2463 = vpop.f32.mrb[0].mxu0
      %v2464 = vadd.f32 0.0, %v2463
      %v2465 = vpop.f32.mrb[0].mxu0
      %v2466 = vadd.f32 0.0, %v2465
      %v2467 = vpop.f32.mrb[0].mxu0
      %v2468 = vadd.f32 0.0, %v2467
      %v2469 = vpop.f32.mrb[0].mxu0
      %v2470 = vadd.f32 0.0, %v2469
      %2471 = vdwg.mxu0
      %v2472 = vadd.f32 %v2183, %v2421
      %v2473 = vadd.f32 %v2184, %v2423
      %v2474 = vadd.f32 %v2185, %v2464
      %v2475 = vadd.f32 %v2186, %v2466
      %v2476 = vadd.f32 %v2187, %v2425
      %v2477 = vadd.f32 %v2188, %v2427
      %v2478 = vadd.f32 %v2189, %v2468
      %v2479 = vadd.f32 %v2190, %v2470
      %v2480 = vxor.u32 %v2472, 2147483648
      %v2481 = vxor.u32 %v2476, 2147483648
      %v2482 = vmul.f32 %v2480, 1.442695
      %v2483 = vpow.pop %v2482
      %v2484 = vmul.f32 %v2481, 1.442695
      %v2485 = vpow.pop %v2484
      %v2486 = vadd.f32 %v2483, 1.0
      %v2487 = vadd.f32 %v2485, 1.0
      %v2488 = vrcp.pop %v2486
      %v2489 = vmul.f32 1.0, %v2488
      %v2490 = vrcp.pop %v2487
      %v2491 = vmul.f32 1.0, %v2490
      %v2492 = vxor.u32 %v2473, 2147483648
      %v2493 = vxor.u32 %v2477, 2147483648
      %v2494 = vmul.f32 %v2492, 1.442695
      %v2495 = vpow.pop %v2494
      %v2496 = vmul.f32 %v2493, 1.442695
      %v2497 = vpow.pop %v2496
      %v2498 = vadd.f32 %v2495, 1.0
      %v2499 = vadd.f32 %v2497, 1.0
      %v2500 = vrcp.pop %v2498
      %v2501 = vmul.f32 1.0, %v2500
      %v2502 = vrcp.pop %v2499
      %v2503 = vmul.f32 1.0, %v2502
      %v2504 = vtanh.pop %v2474
      %v2505 = vtanh.pop %v2478
      %v2506 = vxor.u32 %v2475, 2147483648
      %v2507 = vxor.u32 %v2479, 2147483648
      %v2508 = vmul.f32 %v2506, 1.442695
      %v2509 = vpow.pop %v2508
      %v2510 = vmul.f32 %v2507, 1.442695
      %v2511 = vpow.pop %v2510
      %v2512 = vadd.f32 %v2509, 1.0
      %v2513 = vadd.f32 %v2511, 1.0
      %v2514 = vrcp.pop %v2512
      %v2515 = vmul.f32 1.0, %v2514
      %v2516 = vrcp.pop %v2513
      %v2517 = vmul.f32 1.0, %v2516
      %v2518 = vmul.f32 %v2501, %v2192
      %v2519 = vmul.f32 %v2503, %v2193
      %v2520 = vmul.f32 %v2489, %v2504
      %v2521 = vmul.f32 %v2491, %v2505
      %v2522 = vadd.f32 %v2518, %v2520
      %v2523 = vadd.f32 %v2519, %v2521
      %v2524 = vtanh.pop %v2522
      %v2525 = vtanh.pop %v2523
      %v2526 = vmul.f32 %v2515, %v2524
      %v2527 = vmul.f32 %v2517, %v2525
      %v2528 = vpack.c.bf16 %v2527, %v2526
      %2529 = vst [vmem:[#allocation4] sm:$0xff] %v2528
      %2530 = vst [vmem:[#allocation5] sm:$0xff] %v2522
      %2531 = vst [vmem:[#allocation5 + $0x8] sm:$0xff] %v2523
      %s2532 = scalar_lea.vmem %s345, 8
      %2533 = vst [vmem:[%s2532] sm:$0xff] %v2528
      %s2534 = scalar_lea.vmem %s310, 96
      %v2535 = vld [vmem:[%s2534] sm:$0xff]
      %v2536 = vld [vmem:[%s2534 + $0x8] sm:$0xff]
      %v2537 = vld [vmem:[%s2534 + $0x10] sm:$0xff]
      %v2538 = vld [vmem:[%s2534 + $0x18] sm:$0xff]
      %v2539 = vunpack.c.l.bf16 %v2535
      %v2540 = vunpack.c.h.bf16 %v2535
      %v2541 = vunpack.c.l.bf16 %v2536
      %v2542 = vunpack.c.h.bf16 %v2536
      %v2543 = vunpack.c.l.bf16 %v2537
      %v2544 = vunpack.c.h.bf16 %v2537
      %v2545 = vunpack.c.l.bf16 %v2538
      %v2546 = vunpack.c.h.bf16 %v2538
      %v2547 = vld [vmem:[#allocation2] sm:$0xff]
      %v2548 = vld [vmem:[#allocation3] sm:$0xff]
      %v2549 = vld [vmem:[#allocation3 + $0x8] sm:$0xff]
      %v2550 = vld [vmem:[%s2] sm:$0xff]
      %v2551 = vld [vmem:[%s2 + $0x8] sm:$0xff]
      %v2552 = vld [vmem:[%s2 + $0x10] sm:$0xff]
      %v2553 = vld [vmem:[%s2 + $0x18] sm:$0xff]
      %v2554 = vld [vmem:[%s2 + $0x20] sm:$0xff]
      %v2555 = vld [vmem:[%s2 + $0x28] sm:$0xff]
      %v2556 = vld [vmem:[%s2 + $0x30] sm:$0xff]
      %v2557 = vld [vmem:[%s2 + $0x38] sm:$0xff]
      %v2558 = vld [vmem:[%s2 + $0x40] sm:$0xff]
      %v2559 = vld [vmem:[%s2 + $0x48] sm:$0xff]
      %v2560 = vld [vmem:[%s2 + $0x50] sm:$0xff]
      %v2561 = vld [vmem:[%s2 + $0x58] sm:$0xff]
      %v2562 = vld [vmem:[%s2 + $0x60] sm:$0xff]
      %v2563 = vld [vmem:[%s2 + $0x68] sm:$0xff]
      %v2564 = vld [vmem:[%s2 + $0x70] sm:$0xff]
      %v2565 = vld [vmem:[%s2 + $0x78] sm:$0xff]
      %v2566 = vld [vmem:[%s2 + $0x80] sm:$0xff]
      %v2567 = vld [vmem:[%s2 + $0x88] sm:$0xff]
      %v2568 = vld [vmem:[%s2 + $0x90] sm:$0xff]
      %v2569 = vld [vmem:[%s2 + $0x98] sm:$0xff]
      %v2570 = vld [vmem:[%s2 + $0xa0] sm:$0xff]
      %v2571 = vld [vmem:[%s2 + $0xa8] sm:$0xff]
      %v2572 = vld [vmem:[%s2 + $0xb0] sm:$0xff]
      %v2573 = vld [vmem:[%s2 + $0xb8] sm:$0xff]
      %v2574 = vld [vmem:[%s2 + $0xc0] sm:$0xff]
      %v2575 = vld [vmem:[%s2 + $0xc8] sm:$0xff]
      %v2576 = vld [vmem:[%s2 + $0xd0] sm:$0xff]
      %v2577 = vld [vmem:[%s2 + $0xd8] sm:$0xff]
      %v2578 = vld [vmem:[%s2 + $0xe0] sm:$0xff]
      %v2579 = vld [vmem:[%s2 + $0xe8] sm:$0xff]
      %v2580 = vld [vmem:[%s2 + $0xf0] sm:$0xff]
      %v2581 = vld [vmem:[%s2 + $0xf8] sm:$0xff]
      %v2614 = vunpack.c.l.b16 %v2550
      %v2615 = vunpack.c.h.b16 %v2550
      %v2616 = vunpack.c.l.b16 %v2551
      %v2617 = vunpack.c.h.b16 %v2551
      %v2618 = vunpack.c.l.b16 %v2552
      %v2619 = vunpack.c.h.b16 %v2552
      %v2620 = vunpack.c.l.b16 %v2553
      %v2621 = vunpack.c.h.b16 %v2553
      %v2622 = vunpack.c.l.b16 %v2554
      %v2623 = vunpack.c.h.b16 %v2554
      %v2624 = vunpack.c.l.b16 %v2555
      %v2625 = vunpack.c.h.b16 %v2555
      %v2626 = vunpack.c.l.b16 %v2556
      %v2627 = vunpack.c.h.b16 %v2556
      %v2628 = vunpack.c.l.b16 %v2557
      %v2629 = vunpack.c.h.b16 %v2557
      %v2630 = vunpack.c.l.b16 %v2558
      %v2631 = vunpack.c.h.b16 %v2558
      %v2632 = vunpack.c.l.b16 %v2559
      %v2633 = vunpack.c.h.b16 %v2559
      %v2634 = vunpack.c.l.b16 %v2560
      %v2635 = vunpack.c.h.b16 %v2560
      %v2636 = vunpack.c.l.b16 %v2561
      %v2637 = vunpack.c.h.b16 %v2561
      %v2638 = vunpack.c.l.b16 %v2562
      %v2639 = vunpack.c.h.b16 %v2562
      %v2640 = vunpack.c.l.b16 %v2563
      %v2641 = vunpack.c.h.b16 %v2563
      %v2642 = vunpack.c.l.b16 %v2564
      %v2643 = vunpack.c.h.b16 %v2564
      %v2644 = vunpack.c.l.b16 %v2565
      %v2645 = vunpack.c.h.b16 %v2565
      %v2646 = vunpack.c.l.b16 %v2566
      %v2647 = vunpack.c.h.b16 %v2566
      %v2648 = vunpack.c.l.b16 %v2567
      %v2649 = vunpack.c.h.b16 %v2567
      %v2650 = vunpack.c.l.b16 %v2568
      %v2651 = vunpack.c.h.b16 %v2568
      %v2652 = vunpack.c.l.b16 %v2569
      %v2653 = vunpack.c.h.b16 %v2569
      %v2654 = vunpack.c.l.b16 %v2570
      %v2655 = vunpack.c.h.b16 %v2570
      %v2656 = vunpack.c.l.b16 %v2571
      %v2657 = vunpack.c.h.b16 %v2571
      %v2658 = vunpack.c.l.b16 %v2572
      %v2659 = vunpack.c.h.b16 %v2572
      %v2660 = vunpack.c.l.b16 %v2573
      %v2661 = vunpack.c.h.b16 %v2573
      %v2662 = vunpack.c.l.b16 %v2574
      %v2663 = vunpack.c.h.b16 %v2574
      %v2664 = vunpack.c.l.b16 %v2575
      %v2665 = vunpack.c.h.b16 %v2575
      %v2666 = vunpack.c.l.b16 %v2576
      %v2667 = vunpack.c.h.b16 %v2576
      %v2668 = vunpack.c.l.b16 %v2577
      %v2669 = vunpack.c.h.b16 %v2577
      %v2670 = vunpack.c.l.b16 %v2578
      %v2671 = vunpack.c.h.b16 %v2578
      %v2672 = vunpack.c.l.b16 %v2579
      %v2673 = vunpack.c.h.b16 %v2579
      %v2674 = vunpack.c.l.b16 %v2580
      %v2675 = vunpack.c.h.b16 %v2580
      %v2676 = vunpack.c.l.b16 %v2581
      %v2677 = vunpack.c.h.b16 %v2581
      %v2678 = vpack.c.b16 %v2618, %v2614
      %v2679 = vpack.c.b16 %v2619, %v2615
      %v2680 = vpack.c.b16 %v2620, %v2616
      %v2681 = vpack.c.b16 %v2621, %v2617
      %v2682 = vpack.c.b16 %v2626, %v2622
      %v2683 = vpack.c.b16 %v2627, %v2623
      %v2684 = vpack.c.b16 %v2628, %v2624
      %v2685 = vpack.c.b16 %v2629, %v2625
      %v2686 = vpack.c.b16 %v2634, %v2630
      %v2687 = vpack.c.b16 %v2635, %v2631
      %v2688 = vpack.c.b16 %v2636, %v2632
      %v2689 = vpack.c.b16 %v2637, %v2633
      %v2690 = vpack.c.b16 %v2642, %v2638
      %v2691 = vpack.c.b16 %v2643, %v2639
      %v2692 = vpack.c.b16 %v2644, %v2640
      %v2693 = vpack.c.b16 %v2645, %v2641
      %v2694 = vpack.c.b16 %v2650, %v2646
      %v2695 = vpack.c.b16 %v2651, %v2647
      %v2696 = vpack.c.b16 %v2652, %v2648
      %v2697 = vpack.c.b16 %v2653, %v2649
      %v2698 = vpack.c.b16 %v2658, %v2654
      %v2699 = vpack.c.b16 %v2659, %v2655
      %v2700 = vpack.c.b16 %v2660, %v2656
      %v2701 = vpack.c.b16 %v2661, %v2657
      %v2702 = vpack.c.b16 %v2666, %v2662
      %v2703 = vpack.c.b16 %v2667, %v2663
      %v2704 = vpack.c.b16 %v2668, %v2664
      %v2705 = vpack.c.b16 %v2669, %v2665
      %v2706 = vpack.c.b16 %v2674, %v2670
      %v2707 = vpack.c.b16 %v2675, %v2671
      %v2708 = vpack.c.b16 %v2676, %v2672
      %v2709 = vpack.c.b16 %v2677, %v2673
      %2742 = vmatprep.subr.bf16.mxu0 %v2679
      %2743 = vmatpush1.bf16.msra.mxu0 %v2678
      %2744 = vmatprep.subr.bf16.mxu0 %v2683
      %2745 = vmatpush1.bf16.msra.mxu0 %v2682
      %2746 = vmatprep.subr.bf16.mxu0 %v2687
      %2747 = vmatpush1.bf16.msra.mxu0 %v2686
      %2748 = vmatprep.subr.bf16.mxu0 %v2691
      %2749 = vmatpush1.bf16.msra.mxu0 %v2690
      %2750 = vmatprep.subr.bf16.mxu0 %v2695
      %2751 = vmatpush1.bf16.msra.mxu0 %v2694
      %2752 = vmatprep.subr.bf16.mxu0 %v2699
      %2753 = vmatpush1.bf16.msra.mxu0 %v2698
      %2754 = vmatprep.subr.bf16.mxu0 %v2703
      %2755 = vmatpush1.bf16.msra.mxu0 %v2702
      %2756 = vmatprep.subr.bf16.mxu0 %v2707
      %2757 = vmatpush1.bf16.msra.mxu0 %v2706
      %2758 = vmatprep.subr.bf16.mxu0 0
      %2759 = vmatpush1.bf16.msra.mxu0 0
      %2760 = vmatprep.subr.bf16.mxu0 0
      %2761 = vmatpush1.bf16.msra.mxu0 0
      %2762 = vmatprep.subr.bf16.mxu0 0
      %2763 = vmatpush1.bf16.msra.mxu0 0
      %2764 = vmatprep.subr.bf16.mxu0 0
      %2765 = vmatpush1.bf16.msra.mxu0 0
      %2766 = vmatprep.subr.bf16.mxu0 0
      %2767 = vmatpush1.bf16.msra.mxu0 0
      %2768 = vmatprep.subr.bf16.mxu0 0
      %2769 = vmatpush1.bf16.msra.mxu0 0
      %2770 = vmatprep.subr.bf16.mxu0 0
      %2771 = vmatpush1.bf16.msra.mxu0 0
      %2772 = vmatprep.subr.bf16.mxu0 0
      %2773 = vmatpush1.bf16.msra.mxu0 0
      %2774 = vmatprep.mubr.bf16.mxu0 0
      %2775 = vmatmul.mubr.bf16.gmra.mrb[0].mxu0 %v2547
      %v2776 = vpop.f32.mrb[0].mxu0
      %v2777 = vadd.f32 0.0, %v2776
      %v2778 = vpop.f32.mrb[0].mxu0
      %v2779 = vadd.f32 0.0, %v2778
      %v2780 = vpop.f32.mrb[0].mxu0
      %v2781 = vadd.f32 0.0, %v2780
      %v2782 = vpop.f32.mrb[0].mxu0
      %v2783 = vadd.f32 0.0, %v2782
      %2784 = vdwg.mxu0
      %2785 = vmatprep.subr.bf16.mxu0 %v2681
      %2786 = vmatpush1.bf16.msra.mxu0 %v2680
      %2787 = vmatprep.subr.bf16.mxu0 %v2685
      %2788 = vmatpush1.bf16.msra.mxu0 %v2684
      %2789 = vmatprep.subr.bf16.mxu0 %v2689
      %2790 = vmatpush1.bf16.msra.mxu0 %v2688
      %2791 = vmatprep.subr.bf16.mxu0 %v2693
      %2792 = vmatpush1.bf16.msra.mxu0 %v2692
      %2793 = vmatprep.subr.bf16.mxu0 %v2697
      %2794 = vmatpush1.bf16.msra.mxu0 %v2696
      %2795 = vmatprep.subr.bf16.mxu0 %v2701
      %2796 = vmatpush1.bf16.msra.mxu0 %v2700
      %2797 = vmatprep.subr.bf16.mxu0 %v2705
      %2798 = vmatpush1.bf16.msra.mxu0 %v2704
      %2799 = vmatprep.subr.bf16.mxu0 %v2709
      %2800 = vmatpush1.bf16.msra.mxu0 %v2708
      %2801 = vmatprep.subr.bf16.mxu0 0
      %2802 = vmatpush1.bf16.msra.mxu0 0
      %2803 = vmatprep.subr.bf16.mxu0 0
      %2804 = vmatpush1.bf16.msra.mxu0 0
      %2805 = vmatprep.subr.bf16.mxu0 0
      %2806 = vmatpush1.bf16.msra.mxu0 0
      %2807 = vmatprep.subr.bf16.mxu0 0
      %2808 = vmatpush1.bf16.msra.mxu0 0
      %2809 = vmatprep.subr.bf16.mxu0 0
      %2810 = vmatpush1.bf16.msra.mxu0 0
      %2811 = vmatprep.subr.bf16.mxu0 0
      %2812 = vmatpush1.bf16.msra.mxu0 0
      %2813 = vmatprep.subr.bf16.mxu0 0
      %2814 = vmatpush1.bf16.msra.mxu0 0
      %2815 = vmatprep.subr.bf16.mxu0 0
      %2816 = vmatpush1.bf16.msra.mxu0 0
      %2817 = vmatprep.mubr.bf16.mxu0 0
      %2818 = vmatmul.mubr.bf16.gmra.mrb[0].mxu0 %v2547
      %v2819 = vpop.f32.mrb[0].mxu0
      %v2820 = vadd.f32 0.0, %v2819
      %v2821 = vpop.f32.mrb[0].mxu0
      %v2822 = vadd.f32 0.0, %v2821
      %v2823 = vpop.f32.mrb[0].mxu0
      %v2824 = vadd.f32 0.0, %v2823
      %v2825 = vpop.f32.mrb[0].mxu0
      %v2826 = vadd.f32 0.0, %v2825
      %2827 = vdwg.mxu0
      %v2828 = vadd.f32 %v2539, %v2777
      %v2829 = vadd.f32 %v2540, %v2779
      %v2830 = vadd.f32 %v2541, %v2820
      %v2831 = vadd.f32 %v2542, %v2822
      %v2832 = vadd.f32 %v2543, %v2781
      %v2833 = vadd.f32 %v2544, %v2783
      %v2834 = vadd.f32 %v2545, %v2824
      %v2835 = vadd.f32 %v2546, %v2826
      %v2836 = vxor.u32 %v2828, 2147483648
      %v2837 = vxor.u32 %v2832, 2147483648
      %v2838 = vmul.f32 %v2836, 1.442695
      %v2839 = vpow.pop %v2838
      %v2840 = vmul.f32 %v2837, 1.442695
      %v2841 = vpow.pop %v2840
      %v2842 = vadd.f32 %v2839, 1.0
      %v2843 = vadd.f32 %v2841, 1.0
      %v2844 = vrcp.pop %v2842
      %v2845 = vmul.f32 1.0, %v2844
      %v2846 = vrcp.pop %v2843
      %v2847 = vmul.f32 1.0, %v2846
      %v2848 = vxor.u32 %v2829, 2147483648
      %v2849 = vxor.u32 %v2833, 2147483648
      %v2850 = vmul.f32 %v2848, 1.442695
      %v2851 = vpow.pop %v2850
      %v2852 = vmul.f32 %v2849, 1.442695
      %v2853 = vpow.pop %v2852
      %v2854 = vadd.f32 %v2851, 1.0
      %v2855 = vadd.f32 %v2853, 1.0
      %v2856 = vrcp.pop %v2854
      %v2857 = vmul.f32 1.0, %v2856
      %v2858 = vrcp.pop %v2855
      %v2859 = vmul.f32 1.0, %v2858
      %v2860 = vtanh.pop %v2830
      %v2861 = vtanh.pop %v2834
      %v2862 = vxor.u32 %v2831, 2147483648
      %v2863 = vxor.u32 %v2835, 2147483648
      %v2864 = vmul.f32 %v2862, 1.442695
      %v2865 = vpow.pop %v2864
      %v2866 = vmul.f32 %v2863, 1.442695
      %v2867 = vpow.pop %v2866
      %v2868 = vadd.f32 %v2865, 1.0
      %v2869 = vadd.f32 %v2867, 1.0
      %v2870 = vrcp.pop %v2868
      %v2871 = vmul.f32 1.0, %v2870
      %v2872 = vrcp.pop %v2869
      %v2873 = vmul.f32 1.0, %v2872
      %v2874 = vmul.f32 %v2857, %v2548
      %v2875 = vmul.f32 %v2859, %v2549
      %v2876 = vmul.f32 %v2845, %v2860
      %v2877 = vmul.f32 %v2847, %v2861
      %v2878 = vadd.f32 %v2874, %v2876
      %v2879 = vadd.f32 %v2875, %v2877
      %v2880 = vtanh.pop %v2878
      %v2881 = vtanh.pop %v2879
      %v2882 = vmul.f32 %v2871, %v2880
      %v2883 = vmul.f32 %v2873, %v2881
      %v2884 = vpack.c.bf16 %v2883, %v2882
      %2885 = vst [vmem:[#allocation2] sm:$0xff] %v2884
      %2886 = vst [vmem:[#allocation3] sm:$0xff] %v2878
      %2887 = vst [vmem:[#allocation3 + $0x8] sm:$0xff] %v2879
      %s2888 = scalar_lea.vmem %s335, 24
      %2889 = vst [vmem:[%s2888] sm:$0xff] %v2884
      %p2890 = scmp.lt.s32.totalorder %s360, 9
      %s2891 = scalar_select %p2890, 1, 0
      %s2892 = scvt.s32.f32 %s2891
      %v2893 = vld [vmem:[%s324] sm:$0xff]
      %v2894 = vld [vmem:[%s324 + $0x8] sm:$0xff]
      %v2895 = vld [vmem:[%s324 + $0x10] sm:$0xff]
      %v2896 = vld [vmem:[%s324 + $0x18] sm:$0xff]
      %v2897 = vunpack.c.l.bf16 %v2893
      %v2898 = vunpack.c.h.bf16 %v2893
      %v2899 = vunpack.c.l.bf16 %v2894
      %v2900 = vunpack.c.h.bf16 %v2894
      %v2901 = vunpack.c.l.bf16 %v2895
      %v2902 = vunpack.c.h.bf16 %v2895
      %v2903 = vunpack.c.l.bf16 %v2896
      %v2904 = vunpack.c.h.bf16 %v2896
      %v2905 = vstv %s2892
      %v2906 = vmul.f32 %v2897, %v2905
      %v2907 = vmul.f32 %v2898, %v2905
      %v2908 = vmul.f32 %v2899, %v2905
      %v2909 = vmul.f32 %v2900, %v2905
      %v2910 = vmul.f32 %v2901, %v2905
      %v2911 = vmul.f32 %v2902, %v2905
      %v2912 = vmul.f32 %v2903, %v2905
      %v2913 = vmul.f32 %v2904, %v2905
      %v2914 = vld [vmem:[#allocation4] sm:$0xff]
      %v2915 = vld [vmem:[#allocation5] sm:$0xff]
      %v2916 = vld [vmem:[#allocation5 + $0x8] sm:$0xff]
      %v2917 = vld [vmem:[%s3] sm:$0xff]
      %v2918 = vld [vmem:[%s3 + $0x8] sm:$0xff]
      %v2919 = vld [vmem:[%s3 + $0x10] sm:$0xff]
      %v2920 = vld [vmem:[%s3 + $0x18] sm:$0xff]
      %v2921 = vld [vmem:[%s3 + $0x20] sm:$0xff]
      %v2922 = vld [vmem:[%s3 + $0x28] sm:$0xff]
      %v2923 = vld [vmem:[%s3 + $0x30] sm:$0xff]
      %v2924 = vld [vmem:[%s3 + $0x38] sm:$0xff]
      %v2925 = vld [vmem:[%s3 + $0x40] sm:$0xff]
      %v2926 = vld [vmem:[%s3 + $0x48] sm:$0xff]
      %v2927 = vld [vmem:[%s3 + $0x50] sm:$0xff]
      %v2928 = vld [vmem:[%s3 + $0x58] sm:$0xff]
      %v2929 = vld [vmem:[%s3 + $0x60] sm:$0xff]
      %v2930 = vld [vmem:[%s3 + $0x68] sm:$0xff]
      %v2931 = vld [vmem:[%s3 + $0x70] sm:$0xff]
      %v2932 = vld [vmem:[%s3 + $0x78] sm:$0xff]
      %v2933 = vld [vmem:[%s3 + $0x80] sm:$0xff]
      %v2934 = vld [vmem:[%s3 + $0x88] sm:$0xff]
      %v2935 = vld [vmem:[%s3 + $0x90] sm:$0xff]
      %v2936 = vld [vmem:[%s3 + $0x98] sm:$0xff]
      %v2937 = vld [vmem:[%s3 + $0xa0] sm:$0xff]
      %v2938 = vld [vmem:[%s3 + $0xa8] sm:$0xff]
      %v2939 = vld [vmem:[%s3 + $0xb0] sm:$0xff]
      %v2940 = vld [vmem:[%s3 + $0xb8] sm:$0xff]
      %v2941 = vld [vmem:[%s3 + $0xc0] sm:$0xff]
      %v2942 = vld [vmem:[%s3 + $0xc8] sm:$0xff]
      %v2943 = vld [vmem:[%s3 + $0xd0] sm:$0xff]
      %v2944 = vld [vmem:[%s3 + $0xd8] sm:$0xff]
      %v2945 = vld [vmem:[%s3 + $0xe0] sm:$0xff]
      %v2946 = vld [vmem:[%s3 + $0xe8] sm:$0xff]
      %v2947 = vld [vmem:[%s3 + $0xf0] sm:$0xff]
      %v2948 = vld [vmem:[%s3 + $0xf8] sm:$0xff]
      %v2981 = vunpack.c.l.b16 %v2917
      %v2982 = vunpack.c.h.b16 %v2917
      %v2983 = vunpack.c.l.b16 %v2918
      %v2984 = vunpack.c.h.b16 %v2918
      %v2985 = vunpack.c.l.b16 %v2919
      %v2986 = vunpack.c.h.b16 %v2919
      %v2987 = vunpack.c.l.b16 %v2920
      %v2988 = vunpack.c.h.b16 %v2920
      %v2989 = vunpack.c.l.b16 %v2921
      %v2990 = vunpack.c.h.b16 %v2921
      %v2991 = vunpack.c.l.b16 %v2922
      %v2992 = vunpack.c.h.b16 %v2922
      %v2993 = vunpack.c.l.b16 %v2923
      %v2994 = vunpack.c.h.b16 %v2923
      %v2995 = vunpack.c.l.b16 %v2924
      %v2996 = vunpack.c.h.b16 %v2924
      %v2997 = vunpack.c.l.b16 %v2925
      %v2998 = vunpack.c.h.b16 %v2925
      %v2999 = vunpack.c.l.b16 %v2926
      %v3000 = vunpack.c.h.b16 %v2926
      %v3001 = vunpack.c.l.b16 %v2927
      %v3002 = vunpack.c.h.b16 %v2927
      %v3003 = vunpack.c.l.b16 %v2928
      %v3004 = vunpack.c.h.b16 %v2928
      %v3005 = vunpack.c.l.b16 %v2929
      %v3006 = vunpack.c.h.b16 %v2929
      %v3007 = vunpack.c.l.b16 %v2930
      %v3008 = vunpack.c.h.b16 %v2930
      %v3009 = vunpack.c.l.b16 %v2931
      %v3010 = vunpack.c.h.b16 %v2931
      %v3011 = vunpack.c.l.b16 %v2932
      %v3012 = vunpack.c.h.b16 %v2932
      %v3013 = vunpack.c.l.b16 %v2933
      %v3014 = vunpack.c.h.b16 %v2933
      %v3015 = vunpack.c.l.b16 %v2934
      %v3016 = vunpack.c.h.b16 %v2934
      %v3017 = vunpack.c.l.b16 %v2935
      %v3018 = vunpack.c.h.b16 %v2935
      %v3019 = vunpack.c.l.b16 %v2936
      %v3020 = vunpack.c.h.b16 %v2936
      %v3021 = vunpack.c.l.b16 %v2937
      %v3022 = vunpack.c.h.b16 %v2937
      %v3023 = vunpack.c.l.b16 %v2938
      %v3024 = vunpack.c.h.b16 %v2938
      %v3025 = vunpack.c.l.b16 %v2939
      %v3026 = vunpack.c.h.b16 %v2939
      %v3027 = vunpack.c.l.b16 %v2940
      %v3028 = vunpack.c.h.b16 %v2940
      %v3029 = vunpack.c.l.b16 %v2941
      %v3030 = vunpack.c.h.b16 %v2941
      %v3031 = vunpack.c.l.b16 %v2942
      %v3032 = vunpack.c.h.b16 %v2942
      %v3033 = vunpack.c.l.b16 %v2943
      %v3034 = vunpack.c.h.b16 %v2943
      %v3035 = vunpack.c.l.b16 %v2944
      %v3036 = vunpack.c.h.b16 %v2944
      %v3037 = vunpack.c.l.b16 %v2945
      %v3038 = vunpack.c.h.b16 %v2945
      %v3039 = vunpack.c.l.b16 %v2946
      %v3040 = vunpack.c.h.b16 %v2946
      %v3041 = vunpack.c.l.b16 %v2947
      %v3042 = vunpack.c.h.b16 %v2947
      %v3043 = vunpack.c.l.b16 %v2948
      %v3044 = vunpack.c.h.b16 %v2948
      %v3045 = vpack.c.b16 %v2985, %v2981
      %v3046 = vpack.c.b16 %v2986, %v2982
      %v3047 = vpack.c.b16 %v2987, %v2983
      %v3048 = vpack.c.b16 %v2988, %v2984
      %v3049 = vpack.c.b16 %v2993, %v2989
      %v3050 = vpack.c.b16 %v2994, %v2990
      %v3051 = vpack.c.b16 %v2995, %v2991
      %v3052 = vpack.c.b16 %v2996, %v2992
      %v3053 = vpack.c.b16 %v3001, %v2997
      %v3054 = vpack.c.b16 %v3002, %v2998
      %v3055 = vpack.c.b16 %v3003, %v2999
      %v3056 = vpack.c.b16 %v3004, %v3000
      %v3057 = vpack.c.b16 %v3009, %v3005
      %v3058 = vpack.c.b16 %v3010, %v3006
      %v3059 = vpack.c.b16 %v3011, %v3007
      %v3060 = vpack.c.b16 %v3012, %v3008
      %v3061 = vpack.c.b16 %v3017, %v3013
      %v3062 = vpack.c.b16 %v3018, %v3014
      %v3063 = vpack.c.b16 %v3019, %v3015
      %v3064 = vpack.c.b16 %v3020, %v3016
      %v3065 = vpack.c.b16 %v3025, %v3021
      %v3066 = vpack.c.b16 %v3026, %v3022
      %v3067 = vpack.c.b16 %v3027, %v3023
      %v3068 = vpack.c.b16 %v3028, %v3024
      %v3069 = vpack.c.b16 %v3033, %v3029
      %v3070 = vpack.c.b16 %v3034, %v3030
      %v3071 = vpack.c.b16 %v3035, %v3031
      %v3072 = vpack.c.b16 %v3036, %v3032
      %v3073 = vpack.c.b16 %v3041, %v3037
      %v3074 = vpack.c.b16 %v3042, %v3038
      %v3075 = vpack.c.b16 %v3043, %v3039
      %v3076 = vpack.c.b16 %v3044, %v3040
      %3109 = vmatprep.subr.bf16.mxu0 %v3046
      %3110 = vmatpush1.bf16.msra.mxu0 %v3045
      %3111 = vmatprep.subr.bf16.mxu0 %v3050
      %3112 = vmatpush1.bf16.msra.mxu0 %v3049
      %3113 = vmatprep.subr.bf16.mxu0 %v3054
      %3114 = vmatpush1.bf16.msra.mxu0 %v3053
      %3115 = vmatprep.subr.bf16.mxu0 %v3058
      %3116 = vmatpush1.bf16.msra.mxu0 %v3057
      %3117 = vmatprep.subr.bf16.mxu0 %v3062
      %3118 = vmatpush1.bf16.msra.mxu0 %v3061
      %3119 = vmatprep.subr.bf16.mxu0 %v3066
      %3120 = vmatpush1.bf16.msra.mxu0 %v3065
      %3121 = vmatprep.subr.bf16.mxu0 %v3070
      %3122 = vmatpush1.bf16.msra.mxu0 %v3069
      %3123 = vmatprep.subr.bf16.mxu0 %v3074
      %3124 = vmatpush1.bf16.msra.mxu0 %v3073
      %3125 = vmatprep.subr.bf16.mxu0 0
      %3126 = vmatpush1.bf16.msra.mxu0 0
      %3127 = vmatprep.subr.bf16.mxu0 0
      %3128 = vmatpush1.bf16.msra.mxu0 0
      %3129 = vmatprep.subr.bf16.mxu0 0
      %3130 = vmatpush1.bf16.msra.mxu0 0
      %3131 = vmatprep.subr.bf16.mxu0 0
      %3132 = vmatpush1.bf16.msra.mxu0 0
      %3133 = vmatprep.subr.bf16.mxu0 0
      %3134 = vmatpush1.bf16.msra.mxu0 0
      %3135 = vmatprep.subr.bf16.mxu0 0
      %3136 = vmatpush1.bf16.msra.mxu0 0
      %3137 = vmatprep.subr.bf16.mxu0 0
      %3138 = vmatpush1.bf16.msra.mxu0 0
      %3139 = vmatprep.subr.bf16.mxu0 0
      %3140 = vmatpush1.bf16.msra.mxu0 0
      %3141 = vmatprep.mubr.bf16.mxu0 0
      %3142 = vmatmul.mubr.bf16.gmra.mrb[0].mxu0 %v2914
      %v3143 = vpop.f32.mrb[0].mxu0
      %v3144 = vadd.f32 0.0, %v3143
      %v3145 = vpop.f32.mrb[0].mxu0
      %v3146 = vadd.f32 0.0, %v3145
      %v3147 = vpop.f32.mrb[0].mxu0
      %v3148 = vadd.f32 0.0, %v3147
      %v3149 = vpop.f32.mrb[0].mxu0
      %v3150 = vadd.f32 0.0, %v3149
      %3151 = vdwg.mxu0
      %3152 = vmatprep.subr.bf16.mxu0 %v3048
      %3153 = vmatpush1.bf16.msra.mxu0 %v3047
      %3154 = vmatprep.subr.bf16.mxu0 %v3052
      %3155 = vmatpush1.bf16.msra.mxu0 %v3051
      %3156 = vmatprep.subr.bf16.mxu0 %v3056
      %3157 = vmatpush1.bf16.msra.mxu0 %v3055
      %3158 = vmatprep.subr.bf16.mxu0 %v3060
      %3159 = vmatpush1.bf16.msra.mxu0 %v3059
      %3160 = vmatprep.subr.bf16.mxu0 %v3064
      %3161 = vmatpush1.bf16.msra.mxu0 %v3063
      %3162 = vmatprep.subr.bf16.mxu0 %v3068
      %3163 = vmatpush1.bf16.msra.mxu0 %v3067
      %3164 = vmatprep.subr.bf16.mxu0 %v3072
      %3165 = vmatpush1.bf16.msra.mxu0 %v3071
      %3166 = vmatprep.subr.bf16.mxu0 %v3076
      %3167 = vmatpush1.bf16.msra.mxu0 %v3075
      %3168 = vmatprep.subr.bf16.mxu0 0
      %3169 = vmatpush1.bf16.msra.mxu0 0
      %3170 = vmatprep.subr.bf16.mxu0 0
      %3171 = vmatpush1.bf16.msra.mxu0 0
      %3172 = vmatprep.subr.bf16.mxu0 0
      %3173 = vmatpush1.bf16.msra.mxu0 0
      %3174 = vmatprep.subr.bf16.mxu0 0
      %3175 = vmatpush1.bf16.msra.mxu0 0
      %3176 = vmatprep.subr.bf16.mxu0 0
      %3177 = vmatpush1.bf16.msra.mxu0 0
      %3178 = vmatprep.subr.bf16.mxu0 0
      %3179 = vmatpush1.bf16.msra.mxu0 0
      %3180 = vmatprep.subr.bf16.mxu0 0
      %3181 = vmatpush1.bf16.msra.mxu0 0
      %3182 = vmatprep.subr.bf16.mxu0 0
      %3183 = vmatpush1.bf16.msra.mxu0 0
      %3184 = vmatprep.mubr.bf16.mxu0 0
      %3185 = vmatmul.mubr.bf16.gmra.mrb[0].mxu0 %v2914
      %v3186 = vpop.f32.mrb[0].mxu0
      %v3187 = vadd.f32 0.0, %v3186
      %v3188 = vpop.f32.mrb[0].mxu0
      %v3189 = vadd.f32 0.0, %v3188
      %v3190 = vpop.f32.mrb[0].mxu0
      %v3191 = vadd.f32 0.0, %v3190
      %v3192 = vpop.f32.mrb[0].mxu0
      %v3193 = vadd.f32 0.0, %v3192
      %3194 = vdwg.mxu0
      %v3195 = vadd.f32 %v2906, %v3144
      %v3196 = vadd.f32 %v2907, %v3146
      %v3197 = vadd.f32 %v2908, %v3187
      %v3198 = vadd.f32 %v2909, %v3189
      %v3199 = vadd.f32 %v2910, %v3148
      %v3200 = vadd.f32 %v2911, %v3150
      %v3201 = vadd.f32 %v2912, %v3191
      %v3202 = vadd.f32 %v2913, %v3193
      %v3203 = vxor.u32 %v3195, 2147483648
      %v3204 = vxor.u32 %v3199, 2147483648
      %v3205 = vmul.f32 %v3203, 1.442695
      %v3206 = vpow.pop %v3205
      %v3207 = vmul.f32 %v3204, 1.442695
      %v3208 = vpow.pop %v3207
      %v3209 = vadd.f32 %v3206, 1.0
      %v3210 = vadd.f32 %v3208, 1.0
      %v3211 = vrcp.pop %v3209
      %v3212 = vmul.f32 1.0, %v3211
      %v3213 = vrcp.pop %v3210
      %v3214 = vmul.f32 1.0, %v3213
      %v3215 = vxor.u32 %v3196, 2147483648
      %v3216 = vxor.u32 %v3200, 2147483648
      %v3217 = vmul.f32 %v3215, 1.442695
      %v3218 = vpow.pop %v3217
      %v3219 = vmul.f32 %v3216, 1.442695
      %v3220 = vpow.pop %v3219
      %v3221 = vadd.f32 %v3218, 1.0
      %v3222 = vadd.f32 %v3220, 1.0
      %v3223 = vrcp.pop %v3221
      %v3224 = vmul.f32 1.0, %v3223
      %v3225 = vrcp.pop %v3222
      %v3226 = vmul.f32 1.0, %v3225
      %v3227 = vtanh.pop %v3197
      %v3228 = vtanh.pop %v3201
      %v3229 = vxor.u32 %v3198, 2147483648
      %v3230 = vxor.u32 %v3202, 2147483648
      %v3231 = vmul.f32 %v3229, 1.442695
      %v3232 = vpow.pop %v3231
      %v3233 = vmul.f32 %v3230, 1.442695
      %v3234 = vpow.pop %v3233
      %v3235 = vadd.f32 %v3232, 1.0
      %v3236 = vadd.f32 %v3234, 1.0
      %v3237 = vrcp.pop %v3235
      %v3238 = vmul.f32 1.0, %v3237
      %v3239 = vrcp.pop %v3236
      %v3240 = vmul.f32 1.0, %v3239
      %v3241 = vmul.f32 %v3224, %v2915
      %v3242 = vmul.f32 %v3226, %v2916
      %v3243 = vmul.f32 %v3212, %v3227
      %v3244 = vmul.f32 %v3214, %v3228
      %v3245 = vadd.f32 %v3241, %v3243
      %v3246 = vadd.f32 %v3242, %v3244
      %v3247 = vtanh.pop %v3245
      %v3248 = vtanh.pop %v3246
      %v3249 = vmul.f32 %v3238, %v3247
      %v3250 = vmul.f32 %v3240, %v3248
      %v3251 = vpack.c.bf16 %v3250, %v3249
      %3252 = vst [vmem:[#allocation4] sm:$0xff] %v3251
      %3253 = vst [vmem:[#allocation5] sm:$0xff] %v3245
      %3254 = vst [vmem:[#allocation5 + $0x8] sm:$0xff] %v3246
      %3255 = vst [vmem:[%s345] sm:$0xff] %v3251
      %s3256 = smul.u32 4, %s22
      %p3257 = scmp.lt.s32.totalorder %s3256, 11
      %s3258 = scalar_select %p3257, %s3256, 11
      %p3259 = scmp.lt.s32.totalorder %s21, 0
      %s3260 = scalar_select %p3259, %s21, 0
      %s3261 = sadd.s32 %s3260, %s3258
      %s3262 = smul.addr %s3261, 8
      %s3263 = scalar_lea.vmem %s4, %s3262
      %s3264 = ssub.s32 2, %s22
      %s3265 = smul.u32 4, %s3264
      %p3266 = scmp.lt.s32.totalorder %s3265, 11
      %s3267 = scalar_select %p3266, %s3265, 11
      %p3268 = scmp.lt.s32.totalorder %s21, 0
      %s3269 = scalar_select %p3268, %s21, 0
      %s3270 = sadd.s32 %s3269, %s3267
      %s3271 = smul.addr %s3270, 8
      %s3272 = scalar_lea.vmem %s5, %s3271
      // Predicated region
      $region41: #{word_lstm_encoder_forward.3} parent=35 // pred_check
        %p3273 = pneg %p149
      $region42: #{word_lstm_encoder_forward.3} parent=35 // pred_check_branch
        %3275 = sbr.rel (%p3273) target = $region44
      $region43: #{word_lstm_encoder_forward.3} parent=35 // pred_region
        %s3276 = smul.u32 4, %s22
      $region44: #{word_lstm_encoder_forward.3} parent=35 // pred_fallthru
        _
      // Predicated region
      $region45: #{word_lstm_encoder_forward.3} parent=35 // pred_check
        %p3277 = pneg %p179
      $region46: #{word_lstm_encoder_forward.3} parent=35 // pred_check_branch
        %3279 = sbr.rel (%p3277) target = $region48
      $region47: #{word_lstm_encoder_forward.3} parent=35 // pred_region
        %s3280 = ssub.s32 2, %s22
        %s3281 = smul.u32 4, %s3280
      $region48: #{word_lstm_encoder_forward.3} parent=35 // pred_fallthru
        _
    $region36: #{word_lstm_encoder_forward.3} parent=5 // pred_fallthru
      _
    %p3282 = scmp.le.s32.totalorder 2, %s12
    // Predicated region
    $region49: #{word_lstm_encoder_forward.3} parent=5 // pred_check
      %p3283 = pneg %p3282
    $region50: #{word_lstm_encoder_forward.3} parent=5 // pred_check_branch
      %3285 = sbr.rel (%p3283) target = $region52
    $region51: #{word_lstm_encoder_forward.3} parent=5 // pred_region
      %s3286 = ssub.s32 %s12, 2
      // Predicated region
      $region53: #{word_lstm_encoder_forward.3} parent=51 // pred_check
        %p3287 = pneg %p155
      $region54: #{word_lstm_encoder_forward.3} parent=51 // pred_check_branch
        %3289 = sbr.rel (%p3287) target = $region56
      $region55: #{word_lstm_encoder_forward.3} parent=51 // pred_region
        %s3290 = smul.u32 4, %s24
        %p3291 = scmp.lt.s32.totalorder %s3290, 11
        %s3292 = scalar_select %p3291, %s3290, 11
        %p3293 = scmp.lt.s32.totalorder %s23, 0
        %s3294 = scalar_select %p3293, %s23, 0
        %s3295 = sadd.s32 %s3294, %s3292
        %s3296 = smul.addr %s3295, 8
        %s3297 = scalar_lea.vmem %s4, %s3296
      $region56: #{word_lstm_encoder_forward.3} parent=51 // pred_fallthru
        _
      // Predicated region
      $region57: #{word_lstm_encoder_forward.3} parent=51 // pred_check
        %p3298 = pneg %p185
      $region58: #{word_lstm_encoder_forward.3} parent=51 // pred_check_branch
        %3300 = sbr.rel (%p3298) target = $region60
      $region59: #{word_lstm_encoder_forward.3} parent=51 // pred_region
        %s3301 = ssub.s32 2, %s24
        %s3302 = smul.u32 4, %s3301
        %p3303 = scmp.lt.s32.totalorder %s3302, 11
        %s3304 = scalar_select %p3303, %s3302, 11
        %p3305 = scmp.lt.s32.totalorder %s23, 0
        %s3306 = scalar_select %p3305, %s23, 0
        %s3307 = sadd.s32 %s3306, %s3304
        %s3308 = smul.addr %s3307, 8
        %s3309 = scalar_lea.vmem %s5, %s3308
      $region60: #{word_lstm_encoder_forward.3} parent=51 // pred_fallthru
        _
    $region52: #{word_lstm_encoder_forward.3} parent=5 // pred_fallthru
      _
  $region6: #{word_lstm_encoder_forward.3} parent=0 // loop_footer
    %s16 = sadd.s32 1, %s12
  $region7: #{word_lstm_encoder_forward.3} parent=0 // loop_footer_branch
    %11 = sbr.rel target = $region3
  $region8: #{word_lstm_encoder_forward.3} parent=0 // loop_exit
    _

// kernel: word_lstm_encoder_forward.5
$region0: #{word_lstm_encoder_forward.5}
  #allocation0 [shape = 'u32[]', space=smem, size = 0x4, offset = 0x4, fixed_abs, tag = 'smem constant byte address 0x4 - core index']
  #allocation1 [shape = 'u32[144,128]{1,0:T(1,128)}', space=vmem, size = 0x12000, scoped, tag = 'internal scratch']
  #allocation2 [shape = 'bf16[16,128]{1,0:T(16,128)(2,1)}', space=vmem, size = 0x1000, scoped, tag = 'scratch operand']
  #allocation3 [shape = 'f32[16,128]{1,0:T(8,128)}', space=vmem, size = 0x2000, scoped, tag = 'scratch operand']
  #allocation4 [shape = 'bf16[16,128]{1,0:T(16,128)(2,1)}', space=vmem, size = 0x1000, scoped, tag = 'scratch operand']
  #allocation5 [shape = 'f32[16,128]{1,0:T(8,128)}', space=vmem, size = 0x2000, scoped, tag = 'scratch operand']
  %s0 = inlined_call_operand.vmem [shape: bf16[12,16,512], index: 0, kind: input, shape index: {}]
  %s1 = inlined_call_operand.vmem [shape: bf16[12,16,512], index: 1, kind: input, shape index: {}]
  %s2 = inlined_call_operand.vmem [shape: bf16[128,512], index: 2, kind: input, shape index: {}]
  %s3 = inlined_call_operand.vmem [shape: bf16[128,512], index: 3, kind: input, shape index: {}]
  %s4 = inlined_call_operand.vmem [shape: bf16[12,16,128], index: 4, kind: output, shape index: {0}]
  %s5 = inlined_call_operand.vmem [shape: bf16[12,16,128], index: 5, kind: output, shape index: {1}]
  %6 = xla_tuple %s4, %s5
  %s7 = sld [smem:[#allocation0]]
  $region61: #{word_lstm_encoder_forward.5} parent=0
    _
  %s9 = ssub.s32 1, %s7
  %s10 = scalar_select 0, %s9, %s7
  loop: start=0, step=1, limit=5
  $region2: #{word_lstm_encoder_forward.5} parent=0 // loop_pre_header
    _
  $region3: #{word_lstm_encoder_forward.5} parent=0 // loop_header
    %s12 = sphi 0, %s16
    %p13 = scmp.ge.s32.totalorder %s12, 5
    %s19 = sphi 0, %s31
    %s20 = sphi 0, %s27
    %s21 = sphi 0, %s19
    %s22 = sphi 0, %s20
    %s23 = sphi 0, %s21
    %s24 = sphi 0, %s22
    %s36 = sphi 0, %s38
    %s39 = sphi 0, %s36
    %s40 = sphi 0, %s39
    %s56 = sphi 0, %s40
    %s66 = sphi 0, %s68
    %s69 = sphi 0, %s66
    %s70 = sphi 0, %s69
    %s86 = sphi 0, %s70
    %s90 = sphi 0, %s90
    %s92 = sphi 0, %s90
    %s93 = sphi 0, %s92
    %s107 = sphi 0, %s93
    %s111 = sphi 0, %s111
    %s113 = sphi 0, %s111
    %s114 = sphi 0, %s113
    %s128 = sphi 0, %s114
    %s136 = sphi 0, %s138
    %s139 = sphi 0, %s136
    %s140 = sphi 0, %s139
    %s156 = sphi 0, %s140
    %s166 = sphi 0, %s168
    %s169 = sphi 0, %s166
    %s170 = sphi 0, %s169
    %s186 = sphi 0, %s170
  $region4: #{word_lstm_encoder_forward.5} parent=0 // loop_header_branch
    %15 = sbr.rel (%p13) target = $region8
  $region5: #{word_lstm_encoder_forward.5} parent=0 // loop_body
    %s17 = ssub.s32 %s12, 1
    %s18 = ssub.s32 %s12, 2
    %s25 = sadd.s32 1, %s20
    %p26 = scmp.ge.s32.totalorder %s25, 3
    %s27 = scalar_select %p26, 0, %s25
    %s28 = sadd.s32 1, %s19
    %s29 = scalar_select %p26, %s28, %s19
    %p30 = scmp.ge.s32.totalorder %s29, 1
    %s31 = scalar_select %p30, 0, %s29
    %s32 = ssub.s32 %s20, %s27
    %s33 = ssub.s32 %s19, %s31
    %s34 = sor.u32 %s32, %s33
    %p35 = scmp.eq.s32.totalorder %s34, 0
    %s37 = sadd.s32 %s36, 1
    %s38 = scalar_select %p35, %s36, %s37
    %p41 = pneg %p35
    %p42 = scmp.eq.s32.totalorder %s12, 2
    %p43 = por %p41, %p42
    %p44 = scmp.ne.s32.totalorder %s36, %s39
    %p45 = scmp.eq.s32.totalorder %s12, 0
    %p46 = por %p44, %p45
    %p47 = scmp.ne.s32.totalorder %s36, %s39
    %p48 = scmp.eq.s32.totalorder %s17, 2
    %p49 = por %p47, %p48
    %p50 = scmp.ne.s32.totalorder %s39, %s40
    %p51 = scmp.eq.s32.totalorder %s17, 0
    %p52 = por %p50, %p51
    %p53 = scmp.ne.s32.totalorder %s39, %s40
    %p54 = scmp.eq.s32.totalorder %s18, 2
    %p55 = por %p53, %p54
    %p57 = scmp.ne.s32.totalorder %s40, %s56
    %p58 = scmp.eq.s32.totalorder %s18, 0
    %p59 = por %p57, %p58
    %s60 = ssub.s32 2, %s20
    %s61 = ssub.s32 2, %s27
    %s62 = ssub.s32 %s60, %s61
    %s63 = ssub.s32 %s19, %s31
    %s64 = sor.u32 %s62, %s63
    %p65 = scmp.eq.s32.totalorder %s64, 0
    %s67 = sadd.s32 %s66, 1
    %s68 = scalar_select %p65, %s66, %s67
    %p71 = pneg %p65
    %p72 = scmp.eq.s32.totalorder %s12, 2
    %p73 = por %p71, %p72
    %p74 = scmp.ne.s32.totalorder %s66, %s69
    %p75 = scmp.eq.s32.totalorder %s12, 0
    %p76 = por %p74, %p75
    %p77 = scmp.ne.s32.totalorder %s66, %s69
    %p78 = scmp.eq.s32.totalorder %s17, 2
    %p79 = por %p77, %p78
    %p80 = scmp.ne.s32.totalorder %s69, %s70
    %p81 = scmp.eq.s32.totalorder %s17, 0
    %p82 = por %p80, %p81
    %p83 = scmp.ne.s32.totalorder %s69, %s70
    %p84 = scmp.eq.s32.totalorder %s18, 2
    %p85 = por %p83, %p84
    %p87 = scmp.ne.s32.totalorder %s70, %s86
    %p88 = scmp.eq.s32.totalorder %s18, 0
    %p89 = por %p87, %p88
    %s91 = sadd.s32 %s90, 1
    %p94 = scmp.eq.s32.totalorder %s12, 2
    %p95 = scmp.ne.s32.totalorder %s90, %s92
    %p96 = scmp.eq.s32.totalorder %s12, 0
    %p97 = por %p95, %p96
    %p98 = scmp.ne.s32.totalorder %s90, %s92
    %p99 = scmp.eq.s32.totalorder %s17, 2
    %p100 = por %p98, %p99
    %p101 = scmp.ne.s32.totalorder %s92, %s93
    %p102 = scmp.eq.s32.totalorder %s17, 0
    %p103 = por %p101, %p102
    %p104 = scmp.ne.s32.totalorder %s92, %s93
    %p105 = scmp.eq.s32.totalorder %s18, 2
    %p106 = por %p104, %p105
    %p108 = scmp.ne.s32.totalorder %s93, %s107
    %p109 = scmp.eq.s32.totalorder %s18, 0
    %p110 = por %p108, %p109
    %s112 = sadd.s32 %s111, 1
    %p115 = scmp.eq.s32.totalorder %s12, 2
    %p116 = scmp.ne.s32.totalorder %s111, %s113
    %p117 = scmp.eq.s32.totalorder %s12, 0
    %p118 = por %p116, %p117
    %p119 = scmp.ne.s32.totalorder %s111, %s113
    %p120 = scmp.eq.s32.totalorder %s17, 2
    %p121 = por %p119, %p120
    %p122 = scmp.ne.s32.totalorder %s113, %s114
    %p123 = scmp.eq.s32.totalorder %s17, 0
    %p124 = por %p122, %p123
    %p125 = scmp.ne.s32.totalorder %s113, %s114
    %p126 = scmp.eq.s32.totalorder %s18, 2
    %p127 = por %p125, %p126
    %p129 = scmp.ne.s32.totalorder %s114, %s128
    %p130 = scmp.eq.s32.totalorder %s18, 0
    %p131 = por %p129, %p130
    %s132 = ssub.s32 %s20, %s27
    %s133 = ssub.s32 %s19, %s31
    %s134 = sor.u32 %s132, %s133
    %p135 = scmp.eq.s32.totalorder %s134, 0
    %s137 = sadd.s32 %s136, 1
    %s138 = scalar_select %p135, %s136, %s137
    %p141 = pneg %p135
    %p142 = scmp.eq.s32.totalorder %s12, 2
    %p143 = por %p141, %p142
    %p144 = scmp.ne.s32.totalorder %s136, %s139
    %p145 = scmp.eq.s32.totalorder %s12, 0
    %p146 = por %p144, %p145
    %p147 = scmp.ne.s32.totalorder %s136, %s139
    %p148 = scmp.eq.s32.totalorder %s17, 2
    %p149 = por %p147, %p148
    %p150 = scmp.ne.s32.totalorder %s139, %s140
    %p151 = scmp.eq.s32.totalorder %s17, 0
    %p152 = por %p150, %p151
    %p153 = scmp.ne.s32.totalorder %s139, %s140
    %p154 = scmp.eq.s32.totalorder %s18, 2
    %p155 = por %p153, %p154
    %p157 = scmp.ne.s32.totalorder %s140, %s156
    %p158 = scmp.eq.s32.totalorder %s18, 0
    %p159 = por %p157, %p158
    %s160 = ssub.s32 2, %s20
    %s161 = ssub.s32 2, %s27
    %s162 = ssub.s32 %s160, %s161
    %s163 = ssub.s32 %s19, %s31
    %s164 = sor.u32 %s162, %s163
    %p165 = scmp.eq.s32.totalorder %s164, 0
    %s167 = sadd.s32 %s166, 1
    %s168 = scalar_select %p165, %s166, %s167
    %p171 = pneg %p165
    %p172 = scmp.eq.s32.totalorder %s12, 2
    %p173 = por %p171, %p172
    %p174 = scmp.ne.s32.totalorder %s166, %s169
    %p175 = scmp.eq.s32.totalorder %s12, 0
    %p176 = por %p174, %p175
    %p177 = scmp.ne.s32.totalorder %s166, %s169
    %p178 = scmp.eq.s32.totalorder %s17, 2
    %p179 = por %p177, %p178
    %p180 = scmp.ne.s32.totalorder %s169, %s170
    %p181 = scmp.eq.s32.totalorder %s17, 0
    %p182 = por %p180, %p181
    %p183 = scmp.ne.s32.totalorder %s169, %s170
    %p184 = scmp.eq.s32.totalorder %s18, 2
    %p185 = por %p183, %p184
    %p187 = scmp.ne.s32.totalorder %s170, %s186
    %p188 = scmp.eq.s32.totalorder %s18, 0
    %p189 = por %p187, %p188
    %p190 = scmp.le.s32.totalorder 1, %s12
    %p191 = scmp.lt.s32.totalorder %s12, 4
    %p192 = pnand %p190, %p191
    %p193 = pneg %p192
    // Predicated region
    $region9: #{word_lstm_encoder_forward.5} parent=5 // pred_check
      _
    $region10: #{word_lstm_encoder_forward.5} parent=5 // pred_check_branch
      %195 = sbr.rel (%p192) target = $region12
    $region11: #{word_lstm_encoder_forward.5} parent=5 // pred_region
      %s196 = ssub.s32 %s12, 1
      // Predicated region
      $region13: #{word_lstm_encoder_forward.5} parent=11 // pred_check
        %p197 = pneg %p103
      $region14: #{word_lstm_encoder_forward.5} parent=11 // pred_check_branch
        %199 = sbr.rel (%p197) target = $region16
      $region15: #{word_lstm_encoder_forward.5} parent=11 // pred_region
        _
      $region16: #{word_lstm_encoder_forward.5} parent=11 // pred_fallthru
        _
      // Predicated region
      $region17: #{word_lstm_encoder_forward.5} parent=11 // pred_check
        %p200 = pneg %p124
      $region18: #{word_lstm_encoder_forward.5} parent=11 // pred_check_branch
        %202 = sbr.rel (%p200) target = $region20
      $region19: #{word_lstm_encoder_forward.5} parent=11 // pred_region
        _
      $region20: #{word_lstm_encoder_forward.5} parent=11 // pred_fallthru
        _
    $region12: #{word_lstm_encoder_forward.5} parent=5 // pred_fallthru
      _
    %p203 = scmp.lt.s32.totalorder %s12, 3
    // Predicated region
    $region21: #{word_lstm_encoder_forward.5} parent=5 // pred_check
      %p204 = pneg %p203
    $region22: #{word_lstm_encoder_forward.5} parent=5 // pred_check_branch
      %206 = sbr.rel (%p204) target = $region24
    $region23: #{word_lstm_encoder_forward.5} parent=5 // pred_region
      // Predicated region
      $region25: #{word_lstm_encoder_forward.5} parent=23 // pred_check
        %p207 = pneg %p46
      $region26: #{word_lstm_encoder_forward.5} parent=23 // pred_check_branch
        %209 = sbr.rel (%p207) target = $region28
      $region27: #{word_lstm_encoder_forward.5} parent=23 // pred_region
        %s210 = smul.u32 4, %s20
        %s211 = smul.u32 2, %s19
        %p212 = scmp.lt.s32.totalorder %s210, 11
        %s213 = scalar_select %p212, %s210, 11
        %p214 = scmp.lt.s32.totalorder %s211, 1
        %s215 = scalar_select %p214, %s211, 1
        %s216 = smul.addr %s215, 4
        %s217 = smul.addr %s213, 8
        %s218 = sadd.s32 %s216, %s217
        %s219 = smul.addr %s218, 4
        %s220 = scalar_lea.vmem %s0, %s219
        %s221 = smul.u32 4, %s20
        %s222 = smul.u32 2, %s19
      $region28: #{word_lstm_encoder_forward.5} parent=23 // pred_fallthru
        _
      // Predicated region
      $region29: #{word_lstm_encoder_forward.5} parent=23 // pred_check
        %p223 = pneg %p76
      $region30: #{word_lstm_encoder_forward.5} parent=23 // pred_check_branch
        %225 = sbr.rel (%p223) target = $region32
      $region31: #{word_lstm_encoder_forward.5} parent=23 // pred_region
        %s226 = ssub.s32 2, %s20
        %s227 = smul.u32 4, %s226
        %s228 = smul.u32 2, %s19
        %p229 = scmp.lt.s32.totalorder %s227, 11
        %s230 = scalar_select %p229, %s227, 11
        %p231 = scmp.lt.s32.totalorder %s228, 1
        %s232 = scalar_select %p231, %s228, 1
        %s233 = smul.addr %s232, 4
        %s234 = smul.addr %s230, 8
        %s235 = sadd.s32 %s233, %s234
        %s236 = smul.addr %s235, 4
        %s237 = scalar_lea.vmem %s1, %s236
        %s238 = ssub.s32 2, %s20
        %s239 = smul.u32 4, %s238
        %s240 = smul.u32 2, %s19
      $region32: #{word_lstm_encoder_forward.5} parent=23 // pred_fallthru
        _
    $region24: #{word_lstm_encoder_forward.5} parent=5 // pred_fallthru
      _
    %p241 = scmp.le.s32.totalorder 1, %s12
    %p242 = scmp.lt.s32.totalorder %s12, 4
    %p243 = pnand %p241, %p242
    %p244 = pneg %p243
    // Predicated region
    $region33: #{word_lstm_encoder_forward.5} parent=5 // pred_check
      _
    $region34: #{word_lstm_encoder_forward.5} parent=5 // pred_check_branch
      %246 = sbr.rel (%p243) target = $region36
    $region35: #{word_lstm_encoder_forward.5} parent=5 // pred_region
      %s247 = ssub.s32 %s12, 1
      %s248 = smul.u32 4, %s22
      %s249 = smul.u32 2, %s21
      %p250 = scmp.lt.s32.totalorder %s248, 11
      %s251 = scalar_select %p250, %s248, 11
      %p252 = scmp.lt.s32.totalorder %s249, 1
      %s253 = scalar_select %p252, %s249, 1
      %s254 = smul.addr %s253, 4
      %s255 = smul.addr %s251, 8
      %s256 = sadd.s32 %s254, %s255
      %s257 = smul.addr %s256, 4
      %s258 = scalar_lea.vmem %s0, %s257
      %p259 = pneg %p52
      %p260 = pneg %p49
      %s261 = ssub.s32 2, %s22
      %s262 = smul.u32 4, %s261
      %s263 = smul.u32 2, %s21
      %p264 = scmp.lt.s32.totalorder %s262, 11
      %s265 = scalar_select %p264, %s262, 11
      %p266 = scmp.lt.s32.totalorder %s263, 1
      %s267 = scalar_select %p266, %s263, 1
      %s268 = smul.addr %s267, 4
      %s269 = smul.addr %s265, 8
      %s270 = sadd.s32 %s268, %s269
      %s271 = smul.addr %s270, 4
      %s272 = scalar_lea.vmem %s1, %s271
      %p273 = pneg %p82
      %p274 = pneg %p79
      %p275 = pneg %p103
      %p276 = pneg %p100
      %p277 = pneg %p124
      %p278 = pneg %p121
      %p279 = pneg %p152
      %p280 = pneg %p149
      %s281 = smul.u32 4, %s22
      %s282 = smul.u32 2, %s21
      %p283 = scmp.lt.s32.totalorder %s281, 11
      %s284 = scalar_select %p283, %s281, 11
      %p285 = scmp.lt.s32.totalorder %s282, 1
      %s286 = scalar_select %p285, %s282, 1
      %s287 = smul.addr %s284, 2
      %s288 = sadd.s32 %s286, %s287
      %s289 = smul.addr %s288, 4
      %s290 = scalar_lea.vmem %s4, %s289
      %p291 = pneg %p182
      %p292 = pneg %p179
      %s293 = ssub.s32 2, %s22
      %s294 = smul.u32 4, %s293
      %s295 = smul.u32 2, %s21
      %p296 = scmp.lt.s32.totalorder %s294, 11
      %s297 = scalar_select %p296, %s294, 11
      %p298 = scmp.lt.s32.totalorder %s295, 1
      %s299 = scalar_select %p298, %s295, 1
      %s300 = smul.addr %s297, 2
      %s301 = sadd.s32 %s299, %s300
      %s302 = smul.addr %s301, 4
      %s303 = scalar_lea.vmem %s5, %s302
      %s304 = smul.u32 4, %s22
      %s305 = smul.u32 2, %s21
      %p306 = scmp.lt.s32.totalorder %s304, 11
      %s307 = scalar_select %p306, %s304, 11
      %p308 = scmp.lt.s32.totalorder %s305, 1
      %s309 = scalar_select %p308, %s305, 1
      %s310 = smul.addr %s309, 4
      %s311 = smul.addr %s307, 8
      %s312 = sadd.s32 %s310, %s311
      %s313 = smul.addr %s312, 4
      %s314 = scalar_lea.vmem %s0, %s313
      %s315 = smul.u32 4, %s22
      %s316 = smul.u32 2, %s21
      %s317 = ssub.s32 2, %s22
      %s318 = smul.u32 4, %s317
      %s319 = smul.u32 2, %s21
      %p320 = scmp.lt.s32.totalorder %s318, 11
      %s321 = scalar_select %p320, %s318, 11
      %p322 = scmp.lt.s32.totalorder %s319, 1
      %s323 = scalar_select %p322, %s319, 1
      %s324 = smul.addr %s323, 4
      %s325 = smul.addr %s321, 8
      %s326 = sadd.s32 %s324, %s325
      %s327 = smul.addr %s326, 4
      %s328 = scalar_lea.vmem %s1, %s327
      %s329 = ssub.s32 2, %s22
      %s330 = smul.u32 4, %s329
      %s331 = smul.u32 2, %s21
      %s332 = smul.u32 4, %s22
      %s333 = smul.u32 2, %s21
      %p334 = scmp.lt.s32.totalorder %s332, 11
      %s335 = scalar_select %p334, %s332, 11
      %p336 = scmp.lt.s32.totalorder %s333, 1
      %s337 = scalar_select %p336, %s333, 1
      %s338 = smul.addr %s335, 2
      %s339 = sadd.s32 %s337, %s338
      %s340 = smul.addr %s339, 4
      %s341 = scalar_lea.vmem %s4, %s340
      %s342 = smul.u32 4, %s22
      %s343 = smul.u32 2, %s21
      %s344 = ssub.s32 2, %s22
      %s345 = smul.u32 4, %s344
      %s346 = smul.u32 2, %s21
      %p347 = scmp.lt.s32.totalorder %s345, 11
      %s348 = scalar_select %p347, %s345, 11
      %p349 = scmp.lt.s32.totalorder %s346, 1
      %s350 = scalar_select %p349, %s346, 1
      %s351 = smul.addr %s348, 2
      %s352 = sadd.s32 %s350, %s351
      %s353 = smul.addr %s352, 4
      %s354 = scalar_lea.vmem %s5, %s353
      %s355 = ssub.s32 2, %s22
      %s356 = smul.u32 4, %s355
      %s357 = smul.u32 2, %s21
      %p359 = scmp.eq.s32.totalorder %s22, 0
      // Predicated region
      $region37: #{word_lstm_encoder_forward.5} parent=35 // pred_check
        %p360 = pneg %p359
      $region38: #{word_lstm_encoder_forward.5} parent=35 // pred_check_branch
        %362 = sbr.rel (%p360) target = $region40
      $region39: #{word_lstm_encoder_forward.5} parent=35 // pred_region
        %363 = vst [vmem:[#allocation2] sm:$0xff] 0
        %364 = vst [vmem:[#allocation3] sm:$0xff] 0.0
        %365 = vst [vmem:[#allocation3 + $0x8] sm:$0xff] 0.0
        %366 = vst [vmem:[#allocation4] sm:$0xff] 0
        %367 = vst [vmem:[#allocation5] sm:$0xff] 0.0
        %368 = vst [vmem:[#allocation5 + $0x8] sm:$0xff] 0.0
      $region40: #{word_lstm_encoder_forward.5} parent=35 // pred_fallthru
        _
      %s369 = ssub.s32 2, %s22
      %s370 = smul.u32 %s369, 4
      %v371 = vld [vmem:[%s314] sm:$0xff]
      %v372 = vld [vmem:[%s314 + $0x8] sm:$0xff]
      %v373 = vld [vmem:[%s314 + $0x10] sm:$0xff]
      %v374 = vld [vmem:[%s314 + $0x18] sm:$0xff]
      %v375 = vunpack.c.l.bf16 %v371
      %v376 = vunpack.c.h.bf16 %v371
      %v377 = vunpack.c.l.bf16 %v372
      %v378 = vunpack.c.h.bf16 %v372
      %v379 = vunpack.c.l.bf16 %v373
      %v380 = vunpack.c.h.bf16 %v373
      %v381 = vunpack.c.l.bf16 %v374
      %v382 = vunpack.c.h.bf16 %v374
      %v383 = vld [vmem:[#allocation2] sm:$0xff]
      %v384 = vld [vmem:[#allocation3] sm:$0xff]
      %v385 = vld [vmem:[#allocation3 + $0x8] sm:$0xff]
      %v386 = vld [vmem:[%s2] sm:$0xff]
      %v387 = vld [vmem:[%s2 + $0x8] sm:$0xff]
      %v388 = vld [vmem:[%s2 + $0x10] sm:$0xff]
      %v389 = vld [vmem:[%s2 + $0x18] sm:$0xff]
      %v390 = vld [vmem:[%s2 + $0x20] sm:$0xff]
      %v391 = vld [vmem:[%s2 + $0x28] sm:$0xff]
      %v392 = vld [vmem:[%s2 + $0x30] sm:$0xff]
      %v393 = vld [vmem:[%s2 + $0x38] sm:$0xff]
      %v394 = vld [vmem:[%s2 + $0x40] sm:$0xff]
      %v395 = vld [vmem:[%s2 + $0x48] sm:$0xff]
      %v396 = vld [vmem:[%s2 + $0x50] sm:$0xff]
      %v397 = vld [vmem:[%s2 + $0x58] sm:$0xff]
      %v398 = vld [vmem:[%s2 + $0x60] sm:$0xff]
      %v399 = vld [vmem:[%s2 + $0x68] sm:$0xff]
      %v400 = vld [vmem:[%s2 + $0x70] sm:$0xff]
      %v401 = vld [vmem:[%s2 + $0x78] sm:$0xff]
      %v402 = vld [vmem:[%s2 + $0x80] sm:$0xff]
      %v403 = vld [vmem:[%s2 + $0x88] sm:$0xff]
      %v404 = vld [vmem:[%s2 + $0x90] sm:$0xff]
      %v405 = vld [vmem:[%s2 + $0x98] sm:$0xff]
      %v406 = vld [vmem:[%s2 + $0xa0] sm:$0xff]
      %v407 = vld [vmem:[%s2 + $0xa8] sm:$0xff]
      %v408 = vld [vmem:[%s2 + $0xb0] sm:$0xff]
      %v409 = vld [vmem:[%s2 + $0xb8] sm:$0xff]
      %v410 = vld [vmem:[%s2 + $0xc0] sm:$0xff]
      %v411 = vld [vmem:[%s2 + $0xc8] sm:$0xff]
      %v412 = vld [vmem:[%s2 + $0xd0] sm:$0xff]
      %v413 = vld [vmem:[%s2 + $0xd8] sm:$0xff]
      %v414 = vld [vmem:[%s2 + $0xe0] sm:$0xff]
      %v415 = vld [vmem:[%s2 + $0xe8] sm:$0xff]
      %v416 = vld [vmem:[%s2 + $0xf0] sm:$0xff]
      %v417 = vld [vmem:[%s2 + $0xf8] sm:$0xff]
      %v450 = vunpack.c.l.b16 %v386
      %v451 = vunpack.c.h.b16 %v386
      %v452 = vunpack.c.l.b16 %v387
      %v453 = vunpack.c.h.b16 %v387
      %v454 = vunpack.c.l.b16 %v388
      %v455 = vunpack.c.h.b16 %v388
      %v456 = vunpack.c.l.b16 %v389
      %v457 = vunpack.c.h.b16 %v389
      %v458 = vunpack.c.l.b16 %v390
      %v459 = vunpack.c.h.b16 %v390
      %v460 = vunpack.c.l.b16 %v391
      %v461 = vunpack.c.h.b16 %v391
      %v462 = vunpack.c.l.b16 %v392
      %v463 = vunpack.c.h.b16 %v392
      %v464 = vunpack.c.l.b16 %v393
      %v465 = vunpack.c.h.b16 %v393
      %v466 = vunpack.c.l.b16 %v394
      %v467 = vunpack.c.h.b16 %v394
      %v468 = vunpack.c.l.b16 %v395
      %v469 = vunpack.c.h.b16 %v395
      %v470 = vunpack.c.l.b16 %v396
      %v471 = vunpack.c.h.b16 %v396
      %v472 = vunpack.c.l.b16 %v397
      %v473 = vunpack.c.h.b16 %v397
      %v474 = vunpack.c.l.b16 %v398
      %v475 = vunpack.c.h.b16 %v398
      %v476 = vunpack.c.l.b16 %v399
      %v477 = vunpack.c.h.b16 %v399
      %v478 = vunpack.c.l.b16 %v400
      %v479 = vunpack.c.h.b16 %v400
      %v480 = vunpack.c.l.b16 %v401
      %v481 = vunpack.c.h.b16 %v401
      %v482 = vunpack.c.l.b16 %v402
      %v483 = vunpack.c.h.b16 %v402
      %v484 = vunpack.c.l.b16 %v403
      %v485 = vunpack.c.h.b16 %v403
      %v486 = vunpack.c.l.b16 %v404
      %v487 = vunpack.c.h.b16 %v404
      %v488 = vunpack.c.l.b16 %v405
      %v489 = vunpack.c.h.b16 %v405
      %v490 = vunpack.c.l.b16 %v406
      %v491 = vunpack.c.h.b16 %v406
      %v492 = vunpack.c.l.b16 %v407
      %v493 = vunpack.c.h.b16 %v407
      %v494 = vunpack.c.l.b16 %v408
      %v495 = vunpack.c.h.b16 %v408
      %v496 = vunpack.c.l.b16 %v409
      %v497 = vunpack.c.h.b16 %v409
      %v498 = vunpack.c.l.b16 %v410
      %v499 = vunpack.c.h.b16 %v410
      %v500 = vunpack.c.l.b16 %v411
      %v501 = vunpack.c.h.b16 %v411
      %v502 = vunpack.c.l.b16 %v412
      %v503 = vunpack.c.h.b16 %v412
      %v504 = vunpack.c.l.b16 %v413
      %v505 = vunpack.c.h.b16 %v413
      %v506 = vunpack.c.l.b16 %v414
      %v507 = vunpack.c.h.b16 %v414
      %v508 = vunpack.c.l.b16 %v415
      %v509 = vunpack.c.h.b16 %v415
      %v510 = vunpack.c.l.b16 %v416
      %v511 = vunpack.c.h.b16 %v416
      %v512 = vunpack.c.l.b16 %v417
      %v513 = vunpack.c.h.b16 %v417
      %v514 = vpack.c.b16 %v454, %v450
      %v515 = vpack.c.b16 %v455, %v451
      %v516 = vpack.c.b16 %v456, %v452
      %v517 = vpack.c.b16 %v457, %v453
      %v518 = vpack.c.b16 %v462, %v458
      %v519 = vpack.c.b16 %v463, %v459
      %v520 = vpack.c.b16 %v464, %v460
      %v521 = vpack.c.b16 %v465, %v461
      %v522 = vpack.c.b16 %v470, %v466
      %v523 = vpack.c.b16 %v471, %v467
      %v524 = vpack.c.b16 %v472, %v468
      %v525 = vpack.c.b16 %v473, %v469
      %v526 = vpack.c.b16 %v478, %v474
      %v527 = vpack.c.b16 %v479, %v475
      %v528 = vpack.c.b16 %v480, %v476
      %v529 = vpack.c.b16 %v481, %v477
      %v530 = vpack.c.b16 %v486, %v482
      %v531 = vpack.c.b16 %v487, %v483
      %v532 = vpack.c.b16 %v488, %v484
      %v533 = vpack.c.b16 %v489, %v485
      %v534 = vpack.c.b16 %v494, %v490
      %v535 = vpack.c.b16 %v495, %v491
      %v536 = vpack.c.b16 %v496, %v492
      %v537 = vpack.c.b16 %v497, %v493
      %v538 = vpack.c.b16 %v502, %v498
      %v539 = vpack.c.b16 %v503, %v499
      %v540 = vpack.c.b16 %v504, %v500
      %v541 = vpack.c.b16 %v505, %v501
      %v542 = vpack.c.b16 %v510, %v506
      %v543 = vpack.c.b16 %v511, %v507
      %v544 = vpack.c.b16 %v512, %v508
      %v545 = vpack.c.b16 %v513, %v509
      %578 = vmatprep.subr.bf16.mxu0 %v515
      %579 = vmatpush1.bf16.msra.mxu0 %v514
      %580 = vmatprep.subr.bf16.mxu0 %v519
      %581 = vmatpush1.bf16.msra.mxu0 %v518
      %582 = vmatprep.subr.bf16.mxu0 %v523
      %583 = vmatpush1.bf16.msra.mxu0 %v522
      %584 = vmatprep.subr.bf16.mxu0 %v527
      %585 = vmatpush1.bf16.msra.mxu0 %v526
      %586 = vmatprep.subr.bf16.mxu0 %v531
      %587 = vmatpush1.bf16.msra.mxu0 %v530
      %588 = vmatprep.subr.bf16.mxu0 %v535
      %589 = vmatpush1.bf16.msra.mxu0 %v534
      %590 = vmatprep.subr.bf16.mxu0 %v539
      %591 = vmatpush1.bf16.msra.mxu0 %v538
      %592 = vmatprep.subr.bf16.mxu0 %v543
      %593 = vmatpush1.bf16.msra.mxu0 %v542
      %594 = vmatprep.subr.bf16.mxu0 0
      %595 = vmatpush1.bf16.msra.mxu0 0
      %596 = vmatprep.subr.bf16.mxu0 0
      %597 = vmatpush1.bf16.msra.mxu0 0
      %598 = vmatprep.subr.bf16.mxu0 0
      %599 = vmatpush1.bf16.msra.mxu0 0
      %600 = vmatprep.subr.bf16.mxu0 0
      %601 = vmatpush1.bf16.msra.mxu0 0
      %602 = vmatprep.subr.bf16.mxu0 0
      %603 = vmatpush1.bf16.msra.mxu0 0
      %604 = vmatprep.subr.bf16.mxu0 0
      %605 = vmatpush1.bf16.msra.mxu0 0
      %606 = vmatprep.subr.bf16.mxu0 0
      %607 = vmatpush1.bf16.msra.mxu0 0
      %608 = vmatprep.subr.bf16.mxu0 0
      %609 = vmatpush1.bf16.msra.mxu0 0
      %610 = vmatprep.mubr.bf16.mxu0 0
      %611 = vmatmul.mubr.bf16.gmra.mrb[0].mxu0 %v383
      %v612 = vpop.f32.mrb[0].mxu0
      %v613 = vadd.f32 0.0, %v612
      %v614 = vpop.f32.mrb[0].mxu0
      %v615 = vadd.f32 0.0, %v614
      %v616 = vpop.f32.mrb[0].mxu0
      %v617 = vadd.f32 0.0, %v616
      %v618 = vpop.f32.mrb[0].mxu0
      %v619 = vadd.f32 0.0, %v618
      %620 = vdwg.mxu0
      %621 = vmatprep.subr.bf16.mxu0 %v517
      %622 = vmatpush1.bf16.msra.mxu0 %v516
      %623 = vmatprep.subr.bf16.mxu0 %v521
      %624 = vmatpush1.bf16.msra.mxu0 %v520
      %625 = vmatprep.subr.bf16.mxu0 %v525
      %626 = vmatpush1.bf16.msra.mxu0 %v524
      %627 = vmatprep.subr.bf16.mxu0 %v529
      %628 = vmatpush1.bf16.msra.mxu0 %v528
      %629 = vmatprep.subr.bf16.mxu0 %v533
      %630 = vmatpush1.bf16.msra.mxu0 %v532
      %631 = vmatprep.subr.bf16.mxu0 %v537
      %632 = vmatpush1.bf16.msra.mxu0 %v536
      %633 = vmatprep.subr.bf16.mxu0 %v541
      %634 = vmatpush1.bf16.msra.mxu0 %v540
      %635 = vmatprep.subr.bf16.mxu0 %v545
      %636 = vmatpush1.bf16.msra.mxu0 %v544
      %637 = vmatprep.subr.bf16.mxu0 0
      %638 = vmatpush1.bf16.msra.mxu0 0
      %639 = vmatprep.subr.bf16.mxu0 0
      %640 = vmatpush1.bf16.msra.mxu0 0
      %641 = vmatprep.subr.bf16.mxu0 0
      %642 = vmatpush1.bf16.msra.mxu0 0
      %643 = vmatprep.subr.bf16.mxu0 0
      %644 = vmatpush1.bf16.msra.mxu0 0
      %645 = vmatprep.subr.bf16.mxu0 0
      %646 = vmatpush1.bf16.msra.mxu0 0
      %647 = vmatprep.subr.bf16.mxu0 0
      %648 = vmatpush1.bf16.msra.mxu0 0
      %649 = vmatprep.subr.bf16.mxu0 0
      %650 = vmatpush1.bf16.msra.mxu0 0
      %651 = vmatprep.subr.bf16.mxu0 0
      %652 = vmatpush1.bf16.msra.mxu0 0
      %653 = vmatprep.mubr.bf16.mxu0 0
      %654 = vmatmul.mubr.bf16.gmra.mrb[0].mxu0 %v383
      %v655 = vpop.f32.mrb[0].mxu0
      %v656 = vadd.f32 0.0, %v655
      %v657 = vpop.f32.mrb[0].mxu0
      %v658 = vadd.f32 0.0, %v657
      %v659 = vpop.f32.mrb[0].mxu0
      %v660 = vadd.f32 0.0, %v659
      %v661 = vpop.f32.mrb[0].mxu0
      %v662 = vadd.f32 0.0, %v661
      %663 = vdwg.mxu0
      %v664 = vadd.f32 %v375, %v613
      %v665 = vadd.f32 %v376, %v615
      %v666 = vadd.f32 %v377, %v656
      %v667 = vadd.f32 %v378, %v658
      %v668 = vadd.f32 %v379, %v617
      %v669 = vadd.f32 %v380, %v619
      %v670 = vadd.f32 %v381, %v660
      %v671 = vadd.f32 %v382, %v662
      %v672 = vxor.u32 %v664, 2147483648
      %v673 = vxor.u32 %v668, 2147483648
      %v674 = vmul.f32 %v672, 1.442695
      %v675 = vpow.pop %v674
      %v676 = vmul.f32 %v673, 1.442695
      %v677 = vpow.pop %v676
      %v678 = vadd.f32 %v675, 1.0
      %v679 = vadd.f32 %v677, 1.0
      %v680 = vrcp.pop %v678
      %v681 = vmul.f32 1.0, %v680
      %v682 = vrcp.pop %v679
      %v683 = vmul.f32 1.0, %v682
      %v684 = vxor.u32 %v665, 2147483648
      %v685 = vxor.u32 %v669, 2147483648
      %v686 = vmul.f32 %v684, 1.442695
      %v687 = vpow.pop %v686
      %v688 = vmul.f32 %v685, 1.442695
      %v689 = vpow.pop %v688
      %v690 = vadd.f32 %v687, 1.0
      %v691 = vadd.f32 %v689, 1.0
      %v692 = vrcp.pop %v690
      %v693 = vmul.f32 1.0, %v692
      %v694 = vrcp.pop %v691
      %v695 = vmul.f32 1.0, %v694
      %v696 = vtanh.pop %v666
      %v697 = vtanh.pop %v670
      %v698 = vxor.u32 %v667, 2147483648
      %v699 = vxor.u32 %v671, 2147483648
      %v700 = vmul.f32 %v698, 1.442695
      %v701 = vpow.pop %v700
      %v702 = vmul.f32 %v699, 1.442695
      %v703 = vpow.pop %v702
      %v704 = vadd.f32 %v701, 1.0
      %v705 = vadd.f32 %v703, 1.0
      %v706 = vrcp.pop %v704
      %v707 = vmul.f32 1.0, %v706
      %v708 = vrcp.pop %v705
      %v709 = vmul.f32 1.0, %v708
      %v710 = vmul.f32 %v693, %v384
      %v711 = vmul.f32 %v695, %v385
      %v712 = vmul.f32 %v681, %v696
      %v713 = vmul.f32 %v683, %v697
      %v714 = vadd.f32 %v710, %v712
      %v715 = vadd.f32 %v711, %v713
      %v716 = vtanh.pop %v714
      %v717 = vtanh.pop %v715
      %v718 = vmul.f32 %v707, %v716
      %v719 = vmul.f32 %v709, %v717
      %v720 = vpack.c.bf16 %v719, %v718
      %721 = vst [vmem:[#allocation2] sm:$0xff] %v720
      %722 = vst [vmem:[#allocation3] sm:$0xff] %v714
      %723 = vst [vmem:[#allocation3 + $0x8] sm:$0xff] %v715
      %v725 = vunpack.c.l.b16 %v720
      %v726 = vunpack.c.h.b16 %v720
      %v727 = vpack.c.b16 %v725, %v725
      %v728 = vpack.c.b16 %v726, %v726
      %731 = vst [vmem:[%s341] sm:$0xf] %v727
      %732 = vst [vmem:[%s341 + $0x4] sm:$0xf] %v728
      %s733 = sadd.s32 %s370, 3
      %p734 = scmp.lt.s32.totalorder %s733, 9
      %s735 = scalar_select %p734, 1, 0
      %s736 = scvt.s32.f32 %s735
      %s737 = scalar_lea.vmem %s328, 96
      %v738 = vld [vmem:[%s737] sm:$0xff]
      %v739 = vld [vmem:[%s737 + $0x8] sm:$0xff]
      %v740 = vld [vmem:[%s737 + $0x10] sm:$0xff]
      %v741 = vld [vmem:[%s737 + $0x18] sm:$0xff]
      %v742 = vunpack.c.l.bf16 %v738
      %v743 = vunpack.c.h.bf16 %v738
      %v744 = vunpack.c.l.bf16 %v739
      %v745 = vunpack.c.h.bf16 %v739
      %v746 = vunpack.c.l.bf16 %v740
      %v747 = vunpack.c.h.bf16 %v740
      %v748 = vunpack.c.l.bf16 %v741
      %v749 = vunpack.c.h.bf16 %v741
      %v750 = vstv %s736
      %v751 = vmul.f32 %v742, %v750
      %v752 = vmul.f32 %v743, %v750
      %v753 = vmul.f32 %v744, %v750
      %v754 = vmul.f32 %v745, %v750
      %v755 = vmul.f32 %v746, %v750
      %v756 = vmul.f32 %v747, %v750
      %v757 = vmul.f32 %v748, %v750
      %v758 = vmul.f32 %v749, %v750
      %v759 = vld [vmem:[#allocation4] sm:$0xff]
      %v760 = vld [vmem:[#allocation5] sm:$0xff]
      %v761 = vld [vmem:[#allocation5 + $0x8] sm:$0xff]
      %v762 = vld [vmem:[%s3] sm:$0xff]
      %v763 = vld [vmem:[%s3 + $0x8] sm:$0xff]
      %v764 = vld [vmem:[%s3 + $0x10] sm:$0xff]
      %v765 = vld [vmem:[%s3 + $0x18] sm:$0xff]
      %v766 = vld [vmem:[%s3 + $0x20] sm:$0xff]
      %v767 = vld [vmem:[%s3 + $0x28] sm:$0xff]
      %v768 = vld [vmem:[%s3 + $0x30] sm:$0xff]
      %v769 = vld [vmem:[%s3 + $0x38] sm:$0xff]
      %v770 = vld [vmem:[%s3 + $0x40] sm:$0xff]
      %v771 = vld [vmem:[%s3 + $0x48] sm:$0xff]
      %v772 = vld [vmem:[%s3 + $0x50] sm:$0xff]
      %v773 = vld [vmem:[%s3 + $0x58] sm:$0xff]
      %v774 = vld [vmem:[%s3 + $0x60] sm:$0xff]
      %v775 = vld [vmem:[%s3 + $0x68] sm:$0xff]
      %v776 = vld [vmem:[%s3 + $0x70] sm:$0xff]
      %v777 = vld [vmem:[%s3 + $0x78] sm:$0xff]
      %v778 = vld [vmem:[%s3 + $0x80] sm:$0xff]
      %v779 = vld [vmem:[%s3 + $0x88] sm:$0xff]
      %v780 = vld [vmem:[%s3 + $0x90] sm:$0xff]
      %v781 = vld [vmem:[%s3 + $0x98] sm:$0xff]
      %v782 = vld [vmem:[%s3 + $0xa0] sm:$0xff]
      %v783 = vld [vmem:[%s3 + $0xa8] sm:$0xff]
      %v784 = vld [vmem:[%s3 + $0xb0] sm:$0xff]
      %v785 = vld [vmem:[%s3 + $0xb8] sm:$0xff]
      %v786 = vld [vmem:[%s3 + $0xc0] sm:$0xff]
      %v787 = vld [vmem:[%s3 + $0xc8] sm:$0xff]
      %v788 = vld [vmem:[%s3 + $0xd0] sm:$0xff]
      %v789 = vld [vmem:[%s3 + $0xd8] sm:$0xff]
      %v790 = vld [vmem:[%s3 + $0xe0] sm:$0xff]
      %v791 = vld [vmem:[%s3 + $0xe8] sm:$0xff]
      %v792 = vld [vmem:[%s3 + $0xf0] sm:$0xff]
      %v793 = vld [vmem:[%s3 + $0xf8] sm:$0xff]
      %v826 = vunpack.c.l.b16 %v762
      %v827 = vunpack.c.h.b16 %v762
      %v828 = vunpack.c.l.b16 %v763
      %v829 = vunpack.c.h.b16 %v763
      %v830 = vunpack.c.l.b16 %v764
      %v831 = vunpack.c.h.b16 %v764
      %v832 = vunpack.c.l.b16 %v765
      %v833 = vunpack.c.h.b16 %v765
      %v834 = vunpack.c.l.b16 %v766
      %v835 = vunpack.c.h.b16 %v766
      %v836 = vunpack.c.l.b16 %v767
      %v837 = vunpack.c.h.b16 %v767
      %v838 = vunpack.c.l.b16 %v768
      %v839 = vunpack.c.h.b16 %v768
      %v840 = vunpack.c.l.b16 %v769
      %v841 = vunpack.c.h.b16 %v769
      %v842 = vunpack.c.l.b16 %v770
      %v843 = vunpack.c.h.b16 %v770
      %v844 = vunpack.c.l.b16 %v771
      %v845 = vunpack.c.h.b16 %v771
      %v846 = vunpack.c.l.b16 %v772
      %v847 = vunpack.c.h.b16 %v772
      %v848 = vunpack.c.l.b16 %v773
      %v849 = vunpack.c.h.b16 %v773
      %v850 = vunpack.c.l.b16 %v774
      %v851 = vunpack.c.h.b16 %v774
      %v852 = vunpack.c.l.b16 %v775
      %v853 = vunpack.c.h.b16 %v775
      %v854 = vunpack.c.l.b16 %v776
      %v855 = vunpack.c.h.b16 %v776
      %v856 = vunpack.c.l.b16 %v777
      %v857 = vunpack.c.h.b16 %v777
      %v858 = vunpack.c.l.b16 %v778
      %v859 = vunpack.c.h.b16 %v778
      %v860 = vunpack.c.l.b16 %v779
      %v861 = vunpack.c.h.b16 %v779
      %v862 = vunpack.c.l.b16 %v780
      %v863 = vunpack.c.h.b16 %v780
      %v864 = vunpack.c.l.b16 %v781
      %v865 = vunpack.c.h.b16 %v781
      %v866 = vunpack.c.l.b16 %v782
      %v867 = vunpack.c.h.b16 %v782
      %v868 = vunpack.c.l.b16 %v783
      %v869 = vunpack.c.h.b16 %v783
      %v870 = vunpack.c.l.b16 %v784
      %v871 = vunpack.c.h.b16 %v784
      %v872 = vunpack.c.l.b16 %v785
      %v873 = vunpack.c.h.b16 %v785
      %v874 = vunpack.c.l.b16 %v786
      %v875 = vunpack.c.h.b16 %v786
      %v876 = vunpack.c.l.b16 %v787
      %v877 = vunpack.c.h.b16 %v787
      %v878 = vunpack.c.l.b16 %v788
      %v879 = vunpack.c.h.b16 %v788
      %v880 = vunpack.c.l.b16 %v789
      %v881 = vunpack.c.h.b16 %v789
      %v882 = vunpack.c.l.b16 %v790
      %v883 = vunpack.c.h.b16 %v790
      %v884 = vunpack.c.l.b16 %v791
      %v885 = vunpack.c.h.b16 %v791
      %v886 = vunpack.c.l.b16 %v792
      %v887 = vunpack.c.h.b16 %v792
      %v888 = vunpack.c.l.b16 %v793
      %v889 = vunpack.c.h.b16 %v793
      %v890 = vpack.c.b16 %v830, %v826
      %v891 = vpack.c.b16 %v831, %v827
      %v892 = vpack.c.b16 %v832, %v828
      %v893 = vpack.c.b16 %v833, %v829
      %v894 = vpack.c.b16 %v838, %v834
      %v895 = vpack.c.b16 %v839, %v835
      %v896 = vpack.c.b16 %v840, %v836
      %v897 = vpack.c.b16 %v841, %v837
      %v898 = vpack.c.b16 %v846, %v842
      %v899 = vpack.c.b16 %v847, %v843
      %v900 = vpack.c.b16 %v848, %v844
      %v901 = vpack.c.b16 %v849, %v845
      %v902 = vpack.c.b16 %v854, %v850
      %v903 = vpack.c.b16 %v855, %v851
      %v904 = vpack.c.b16 %v856, %v852
      %v905 = vpack.c.b16 %v857, %v853
      %v906 = vpack.c.b16 %v862, %v858
      %v907 = vpack.c.b16 %v863, %v859
      %v908 = vpack.c.b16 %v864, %v860
      %v909 = vpack.c.b16 %v865, %v861
      %v910 = vpack.c.b16 %v870, %v866
      %v911 = vpack.c.b16 %v871, %v867
      %v912 = vpack.c.b16 %v872, %v868
      %v913 = vpack.c.b16 %v873, %v869
      %v914 = vpack.c.b16 %v878, %v874
      %v915 = vpack.c.b16 %v879, %v875
      %v916 = vpack.c.b16 %v880, %v876
      %v917 = vpack.c.b16 %v881, %v877
      %v918 = vpack.c.b16 %v886, %v882
      %v919 = vpack.c.b16 %v887, %v883
      %v920 = vpack.c.b16 %v888, %v884
      %v921 = vpack.c.b16 %v889, %v885
      %954 = vmatprep.subr.bf16.mxu0 %v891
      %955 = vmatpush1.bf16.msra.mxu0 %v890
      %956 = vmatprep.subr.bf16.mxu0 %v895
      %957 = vmatpush1.bf16.msra.mxu0 %v894
      %958 = vmatprep.subr.bf16.mxu0 %v899
      %959 = vmatpush1.bf16.msra.mxu0 %v898
      %960 = vmatprep.subr.bf16.mxu0 %v903
      %961 = vmatpush1.bf16.msra.mxu0 %v902
      %962 = vmatprep.subr.bf16.mxu0 %v907
      %963 = vmatpush1.bf16.msra.mxu0 %v906
      %964 = vmatprep.subr.bf16.mxu0 %v911
      %965 = vmatpush1.bf16.msra.mxu0 %v910
      %966 = vmatprep.subr.bf16.mxu0 %v915
      %967 = vmatpush1.bf16.msra.mxu0 %v914
      %968 = vmatprep.subr.bf16.mxu0 %v919
      %969 = vmatpush1.bf16.msra.mxu0 %v918
      %970 = vmatprep.subr.bf16.mxu0 0
      %971 = vmatpush1.bf16.msra.mxu0 0
      %972 = vmatprep.subr.bf16.mxu0 0
      %973 = vmatpush1.bf16.msra.mxu0 0
      %974 = vmatprep.subr.bf16.mxu0 0
      %975 = vmatpush1.bf16.msra.mxu0 0
      %976 = vmatprep.subr.bf16.mxu0 0
      %977 = vmatpush1.bf16.msra.mxu0 0
      %978 = vmatprep.subr.bf16.mxu0 0
      %979 = vmatpush1.bf16.msra.mxu0 0
      %980 = vmatprep.subr.bf16.mxu0 0
      %981 = vmatpush1.bf16.msra.mxu0 0
      %982 = vmatprep.subr.bf16.mxu0 0
      %983 = vmatpush1.bf16.msra.mxu0 0
      %984 = vmatprep.subr.bf16.mxu0 0
      %985 = vmatpush1.bf16.msra.mxu0 0
      %986 = vmatprep.mubr.bf16.mxu0 0
      %987 = vmatmul.mubr.bf16.gmra.mrb[0].mxu0 %v759
      %v988 = vpop.f32.mrb[0].mxu0
      %v989 = vadd.f32 0.0, %v988
      %v990 = vpop.f32.mrb[0].mxu0
      %v991 = vadd.f32 0.0, %v990
      %v992 = vpop.f32.mrb[0].mxu0
      %v993 = vadd.f32 0.0, %v992
      %v994 = vpop.f32.mrb[0].mxu0
      %v995 = vadd.f32 0.0, %v994
      %996 = vdwg.mxu0
      %997 = vmatprep.subr.bf16.mxu0 %v893
      %998 = vmatpush1.bf16.msra.mxu0 %v892
      %999 = vmatprep.subr.bf16.mxu0 %v897
      %1000 = vmatpush1.bf16.msra.mxu0 %v896
      %1001 = vmatprep.subr.bf16.mxu0 %v901
      %1002 = vmatpush1.bf16.msra.mxu0 %v900
      %1003 = vmatprep.subr.bf16.mxu0 %v905
      %1004 = vmatpush1.bf16.msra.mxu0 %v904
      %1005 = vmatprep.subr.bf16.mxu0 %v909
      %1006 = vmatpush1.bf16.msra.mxu0 %v908
      %1007 = vmatprep.subr.bf16.mxu0 %v913
      %1008 = vmatpush1.bf16.msra.mxu0 %v912
      %1009 = vmatprep.subr.bf16.mxu0 %v917
      %1010 = vmatpush1.bf16.msra.mxu0 %v916
      %1011 = vmatprep.subr.bf16.mxu0 %v921
      %1012 = vmatpush1.bf16.msra.mxu0 %v920
      %1013 = vmatprep.subr.bf16.mxu0 0
      %1014 = vmatpush1.bf16.msra.mxu0 0
      %1015 = vmatprep.subr.bf16.mxu0 0
      %1016 = vmatpush1.bf16.msra.mxu0 0
      %1017 = vmatprep.subr.bf16.mxu0 0
      %1018 = vmatpush1.bf16.msra.mxu0 0
      %1019 = vmatprep.subr.bf16.mxu0 0
      %1020 = vmatpush1.bf16.msra.mxu0 0
      %1021 = vmatprep.subr.bf16.mxu0 0
      %1022 = vmatpush1.bf16.msra.mxu0 0
      %1023 = vmatprep.subr.bf16.mxu0 0
      %1024 = vmatpush1.bf16.msra.mxu0 0
      %1025 = vmatprep.subr.bf16.mxu0 0
      %1026 = vmatpush1.bf16.msra.mxu0 0
      %1027 = vmatprep.subr.bf16.mxu0 0
      %1028 = vmatpush1.bf16.msra.mxu0 0
      %1029 = vmatprep.mubr.bf16.mxu0 0
      %1030 = vmatmul.mubr.bf16.gmra.mrb[0].mxu0 %v759
      %v1031 = vpop.f32.mrb[0].mxu0
      %v1032 = vadd.f32 0.0, %v1031
      %v1033 = vpop.f32.mrb[0].mxu0
      %v1034 = vadd.f32 0.0, %v1033
      %v1035 = vpop.f32.mrb[0].mxu0
      %v1036 = vadd.f32 0.0, %v1035
      %v1037 = vpop.f32.mrb[0].mxu0
      %v1038 = vadd.f32 0.0, %v1037
      %1039 = vdwg.mxu0
      %v1040 = vadd.f32 %v751, %v989
      %v1041 = vadd.f32 %v752, %v991
      %v1042 = vadd.f32 %v753, %v1032
      %v1043 = vadd.f32 %v754, %v1034
      %v1044 = vadd.f32 %v755, %v993
      %v1045 = vadd.f32 %v756, %v995
      %v1046 = vadd.f32 %v757, %v1036
      %v1047 = vadd.f32 %v758, %v1038
      %v1048 = vxor.u32 %v1040, 2147483648
      %v1049 = vxor.u32 %v1044, 2147483648
      %v1050 = vmul.f32 %v1048, 1.442695
      %v1051 = vpow.pop %v1050
      %v1052 = vmul.f32 %v1049, 1.442695
      %v1053 = vpow.pop %v1052
      %v1054 = vadd.f32 %v1051, 1.0
      %v1055 = vadd.f32 %v1053, 1.0
      %v1056 = vrcp.pop %v1054
      %v1057 = vmul.f32 1.0, %v1056
      %v1058 = vrcp.pop %v1055
      %v1059 = vmul.f32 1.0, %v1058
      %v1060 = vxor.u32 %v1041, 2147483648
      %v1061 = vxor.u32 %v1045, 2147483648
      %v1062 = vmul.f32 %v1060, 1.442695
      %v1063 = vpow.pop %v1062
      %v1064 = vmul.f32 %v1061, 1.442695
      %v1065 = vpow.pop %v1064
      %v1066 = vadd.f32 %v1063, 1.0
      %v1067 = vadd.f32 %v1065, 1.0
      %v1068 = vrcp.pop %v1066
      %v1069 = vmul.f32 1.0, %v1068
      %v1070 = vrcp.pop %v1067
      %v1071 = vmul.f32 1.0, %v1070
      %v1072 = vtanh.pop %v1042
      %v1073 = vtanh.pop %v1046
      %v1074 = vxor.u32 %v1043, 2147483648
      %v1075 = vxor.u32 %v1047, 2147483648
      %v1076 = vmul.f32 %v1074, 1.442695
      %v1077 = vpow.pop %v1076
      %v1078 = vmul.f32 %v1075, 1.442695
      %v1079 = vpow.pop %v1078
      %v1080 = vadd.f32 %v1077, 1.0
      %v1081 = vadd.f32 %v1079, 1.0
      %v1082 = vrcp.pop %v1080
      %v1083 = vmul.f32 1.0, %v1082
      %v1084 = vrcp.pop %v1081
      %v1085 = vmul.f32 1.0, %v1084
      %v1086 = vmul.f32 %v1069, %v760
      %v1087 = vmul.f32 %v1071, %v761
      %v1088 = vmul.f32 %v1057, %v1072
      %v1089 = vmul.f32 %v1059, %v1073
      %v1090 = vadd.f32 %v1086, %v1088
      %v1091 = vadd.f32 %v1087, %v1089
      %v1092 = vtanh.pop %v1090
      %v1093 = vtanh.pop %v1091
      %v1094 = vmul.f32 %v1083, %v1092
      %v1095 = vmul.f32 %v1085, %v1093
      %v1096 = vpack.c.bf16 %v1095, %v1094
      %1097 = vst [vmem:[#allocation4] sm:$0xff] %v1096
      %1098 = vst [vmem:[#allocation5] sm:$0xff] %v1090
      %1099 = vst [vmem:[#allocation5 + $0x8] sm:$0xff] %v1091
      %v1101 = vunpack.c.l.b16 %v1096
      %v1102 = vunpack.c.h.b16 %v1096
      %v1103 = vpack.c.b16 %v1101, %v1101
      %v1104 = vpack.c.b16 %v1102, %v1102
      %s1107 = scalar_lea.vmem %s354, 24
      %1108 = vst [vmem:[%s1107] sm:$0xf] %v1103
      %1109 = vst [vmem:[%s1107 + $0x4] sm:$0xf] %v1104
      %s1110 = scalar_lea.vmem %s314, 32
      %v1111 = vld [vmem:[%s1110] sm:$0xff]
      %v1112 = vld [vmem:[%s1110 + $0x8] sm:$0xff]
      %v1113 = vld [vmem:[%s1110 + $0x10] sm:$0xff]
      %v1114 = vld [vmem:[%s1110 + $0x18] sm:$0xff]
      %v1115 = vunpack.c.l.bf16 %v1111
      %v1116 = vunpack.c.h.bf16 %v1111
      %v1117 = vunpack.c.l.bf16 %v1112
      %v1118 = vunpack.c.h.bf16 %v1112
      %v1119 = vunpack.c.l.bf16 %v1113
      %v1120 = vunpack.c.h.bf16 %v1113
      %v1121 = vunpack.c.l.bf16 %v1114
      %v1122 = vunpack.c.h.bf16 %v1114
      %v1123 = vld [vmem:[#allocation2] sm:$0xff]
      %v1124 = vld [vmem:[#allocation3] sm:$0xff]
      %v1125 = vld [vmem:[#allocation3 + $0x8] sm:$0xff]
      %v1126 = vld [vmem:[%s2] sm:$0xff]
      %v1127 = vld [vmem:[%s2 + $0x8] sm:$0xff]
      %v1128 = vld [vmem:[%s2 + $0x10] sm:$0xff]
      %v1129 = vld [vmem:[%s2 + $0x18] sm:$0xff]
      %v1130 = vld [vmem:[%s2 + $0x20] sm:$0xff]
      %v1131 = vld [vmem:[%s2 + $0x28] sm:$0xff]
      %v1132 = vld [vmem:[%s2 + $0x30] sm:$0xff]
      %v1133 = vld [vmem:[%s2 + $0x38] sm:$0xff]
      %v1134 = vld [vmem:[%s2 + $0x40] sm:$0xff]
      %v1135 = vld [vmem:[%s2 + $0x48] sm:$0xff]
      %v1136 = vld [vmem:[%s2 + $0x50] sm:$0xff]
      %v1137 = vld [vmem:[%s2 + $0x58] sm:$0xff]
      %v1138 = vld [vmem:[%s2 + $0x60] sm:$0xff]
      %v1139 = vld [vmem:[%s2 + $0x68] sm:$0xff]
      %v1140 = vld [vmem:[%s2 + $0x70] sm:$0xff]
      %v1141 = vld [vmem:[%s2 + $0x78] sm:$0xff]
      %v1142 = vld [vmem:[%s2 + $0x80] sm:$0xff]
      %v1143 = vld [vmem:[%s2 + $0x88] sm:$0xff]
      %v1144 = vld [vmem:[%s2 + $0x90] sm:$0xff]
      %v1145 = vld [vmem:[%s2 + $0x98] sm:$0xff]
      %v1146 = vld [vmem:[%s2 + $0xa0] sm:$0xff]
      %v1147 = vld [vmem:[%s2 + $0xa8] sm:$0xff]
      %v1148 = vld [vmem:[%s2 + $0xb0] sm:$0xff]
      %v1149 = vld [vmem:[%s2 + $0xb8] sm:$0xff]
      %v1150 = vld [vmem:[%s2 + $0xc0] sm:$0xff]
      %v1151 = vld [vmem:[%s2 + $0xc8] sm:$0xff]
      %v1152 = vld [vmem:[%s2 + $0xd0] sm:$0xff]
      %v1153 = vld [vmem:[%s2 + $0xd8] sm:$0xff]
      %v1154 = vld [vmem:[%s2 + $0xe0] sm:$0xff]
      %v1155 = vld [vmem:[%s2 + $0xe8] sm:$0xff]
      %v1156 = vld [vmem:[%s2 + $0xf0] sm:$0xff]
      %v1157 = vld [vmem:[%s2 + $0xf8] sm:$0xff]
      %v1190 = vunpack.c.l.b16 %v1126
      %v1191 = vunpack.c.h.b16 %v1126
      %v1192 = vunpack.c.l.b16 %v1127
      %v1193 = vunpack.c.h.b16 %v1127
      %v1194 = vunpack.c.l.b16 %v1128
      %v1195 = vunpack.c.h.b16 %v1128
      %v1196 = vunpack.c.l.b16 %v1129
      %v1197 = vunpack.c.h.b16 %v1129
      %v1198 = vunpack.c.l.b16 %v1130
      %v1199 = vunpack.c.h.b16 %v1130
      %v1200 = vunpack.c.l.b16 %v1131
      %v1201 = vunpack.c.h.b16 %v1131
      %v1202 = vunpack.c.l.b16 %v1132
      %v1203 = vunpack.c.h.b16 %v1132
      %v1204 = vunpack.c.l.b16 %v1133
      %v1205 = vunpack.c.h.b16 %v1133
      %v1206 = vunpack.c.l.b16 %v1134
      %v1207 = vunpack.c.h.b16 %v1134
      %v1208 = vunpack.c.l.b16 %v1135
      %v1209 = vunpack.c.h.b16 %v1135
      %v1210 = vunpack.c.l.b16 %v1136
      %v1211 = vunpack.c.h.b16 %v1136
      %v1212 = vunpack.c.l.b16 %v1137
      %v1213 = vunpack.c.h.b16 %v1137
      %v1214 = vunpack.c.l.b16 %v1138
      %v1215 = vunpack.c.h.b16 %v1138
      %v1216 = vunpack.c.l.b16 %v1139
      %v1217 = vunpack.c.h.b16 %v1139
      %v1218 = vunpack.c.l.b16 %v1140
      %v1219 = vunpack.c.h.b16 %v1140
      %v1220 = vunpack.c.l.b16 %v1141
      %v1221 = vunpack.c.h.b16 %v1141
      %v1222 = vunpack.c.l.b16 %v1142
      %v1223 = vunpack.c.h.b16 %v1142
      %v1224 = vunpack.c.l.b16 %v1143
      %v1225 = vunpack.c.h.b16 %v1143
      %v1226 = vunpack.c.l.b16 %v1144
      %v1227 = vunpack.c.h.b16 %v1144
      %v1228 = vunpack.c.l.b16 %v1145
      %v1229 = vunpack.c.h.b16 %v1145
      %v1230 = vunpack.c.l.b16 %v1146
      %v1231 = vunpack.c.h.b16 %v1146
      %v1232 = vunpack.c.l.b16 %v1147
      %v1233 = vunpack.c.h.b16 %v1147
      %v1234 = vunpack.c.l.b16 %v1148
      %v1235 = vunpack.c.h.b16 %v1148
      %v1236 = vunpack.c.l.b16 %v1149
      %v1237 = vunpack.c.h.b16 %v1149
      %v1238 = vunpack.c.l.b16 %v1150
      %v1239 = vunpack.c.h.b16 %v1150
      %v1240 = vunpack.c.l.b16 %v1151
      %v1241 = vunpack.c.h.b16 %v1151
      %v1242 = vunpack.c.l.b16 %v1152
      %v1243 = vunpack.c.h.b16 %v1152
      %v1244 = vunpack.c.l.b16 %v1153
      %v1245 = vunpack.c.h.b16 %v1153
      %v1246 = vunpack.c.l.b16 %v1154
      %v1247 = vunpack.c.h.b16 %v1154
      %v1248 = vunpack.c.l.b16 %v1155
      %v1249 = vunpack.c.h.b16 %v1155
      %v1250 = vunpack.c.l.b16 %v1156
      %v1251 = vunpack.c.h.b16 %v1156
      %v1252 = vunpack.c.l.b16 %v1157
      %v1253 = vunpack.c.h.b16 %v1157
      %v1254 = vpack.c.b16 %v1194, %v1190
      %v1255 = vpack.c.b16 %v1195, %v1191
      %v1256 = vpack.c.b16 %v1196, %v1192
      %v1257 = vpack.c.b16 %v1197, %v1193
      %v1258 = vpack.c.b16 %v1202, %v1198
      %v1259 = vpack.c.b16 %v1203, %v1199
      %v1260 = vpack.c.b16 %v1204, %v1200
      %v1261 = vpack.c.b16 %v1205, %v1201
      %v1262 = vpack.c.b16 %v1210, %v1206
      %v1263 = vpack.c.b16 %v1211, %v1207
      %v1264 = vpack.c.b16 %v1212, %v1208
      %v1265 = vpack.c.b16 %v1213, %v1209
      %v1266 = vpack.c.b16 %v1218, %v1214
      %v1267 = vpack.c.b16 %v1219, %v1215
      %v1268 = vpack.c.b16 %v1220, %v1216
      %v1269 = vpack.c.b16 %v1221, %v1217
      %v1270 = vpack.c.b16 %v1226, %v1222
      %v1271 = vpack.c.b16 %v1227, %v1223
      %v1272 = vpack.c.b16 %v1228, %v1224
      %v1273 = vpack.c.b16 %v1229, %v1225
      %v1274 = vpack.c.b16 %v1234, %v1230
      %v1275 = vpack.c.b16 %v1235, %v1231
      %v1276 = vpack.c.b16 %v1236, %v1232
      %v1277 = vpack.c.b16 %v1237, %v1233
      %v1278 = vpack.c.b16 %v1242, %v1238
      %v1279 = vpack.c.b16 %v1243, %v1239
      %v1280 = vpack.c.b16 %v1244, %v1240
      %v1281 = vpack.c.b16 %v1245, %v1241
      %v1282 = vpack.c.b16 %v1250, %v1246
      %v1283 = vpack.c.b16 %v1251, %v1247
      %v1284 = vpack.c.b16 %v1252, %v1248
      %v1285 = vpack.c.b16 %v1253, %v1249
      %1318 = vmatprep.subr.bf16.mxu0 %v1255
      %1319 = vmatpush1.bf16.msra.mxu0 %v1254
      %1320 = vmatprep.subr.bf16.mxu0 %v1259
      %1321 = vmatpush1.bf16.msra.mxu0 %v1258
      %1322 = vmatprep.subr.bf16.mxu0 %v1263
      %1323 = vmatpush1.bf16.msra.mxu0 %v1262
      %1324 = vmatprep.subr.bf16.mxu0 %v1267
      %1325 = vmatpush1.bf16.msra.mxu0 %v1266
      %1326 = vmatprep.subr.bf16.mxu0 %v1271
      %1327 = vmatpush1.bf16.msra.mxu0 %v1270
      %1328 = vmatprep.subr.bf16.mxu0 %v1275
      %1329 = vmatpush1.bf16.msra.mxu0 %v1274
      %1330 = vmatprep.subr.bf16.mxu0 %v1279
      %1331 = vmatpush1.bf16.msra.mxu0 %v1278
      %1332 = vmatprep.subr.bf16.mxu0 %v1283
      %1333 = vmatpush1.bf16.msra.mxu0 %v1282
      %1334 = vmatprep.subr.bf16.mxu0 0
      %1335 = vmatpush1.bf16.msra.mxu0 0
      %1336 = vmatprep.subr.bf16.mxu0 0
      %1337 = vmatpush1.bf16.msra.mxu0 0
      %1338 = vmatprep.subr.bf16.mxu0 0
      %1339 = vmatpush1.bf16.msra.mxu0 0
      %1340 = vmatprep.subr.bf16.mxu0 0
      %1341 = vmatpush1.bf16.msra.mxu0 0
      %1342 = vmatprep.subr.bf16.mxu0 0
      %1343 = vmatpush1.bf16.msra.mxu0 0
      %1344 = vmatprep.subr.bf16.mxu0 0
      %1345 = vmatpush1.bf16.msra.mxu0 0
      %1346 = vmatprep.subr.bf16.mxu0 0
      %1347 = vmatpush1.bf16.msra.mxu0 0
      %1348 = vmatprep.subr.bf16.mxu0 0
      %1349 = vmatpush1.bf16.msra.mxu0 0
      %1350 = vmatprep.mubr.bf16.mxu0 0
      %1351 = vmatmul.mubr.bf16.gmra.mrb[0].mxu0 %v1123
      %v1352 = vpop.f32.mrb[0].mxu0
      %v1353 = vadd.f32 0.0, %v1352
      %v1354 = vpop.f32.mrb[0].mxu0
      %v1355 = vadd.f32 0.0, %v1354
      %v1356 = vpop.f32.mrb[0].mxu0
      %v1357 = vadd.f32 0.0, %v1356
      %v1358 = vpop.f32.mrb[0].mxu0
      %v1359 = vadd.f32 0.0, %v1358
      %1360 = vdwg.mxu0
      %1361 = vmatprep.subr.bf16.mxu0 %v1257
      %1362 = vmatpush1.bf16.msra.mxu0 %v1256
      %1363 = vmatprep.subr.bf16.mxu0 %v1261
      %1364 = vmatpush1.bf16.msra.mxu0 %v1260
      %1365 = vmatprep.subr.bf16.mxu0 %v1265
      %1366 = vmatpush1.bf16.msra.mxu0 %v1264
      %1367 = vmatprep.subr.bf16.mxu0 %v1269
      %1368 = vmatpush1.bf16.msra.mxu0 %v1268
      %1369 = vmatprep.subr.bf16.mxu0 %v1273
      %1370 = vmatpush1.bf16.msra.mxu0 %v1272
      %1371 = vmatprep.subr.bf16.mxu0 %v1277
      %1372 = vmatpush1.bf16.msra.mxu0 %v1276
      %1373 = vmatprep.subr.bf16.mxu0 %v1281
      %1374 = vmatpush1.bf16.msra.mxu0 %v1280
      %1375 = vmatprep.subr.bf16.mxu0 %v1285
      %1376 = vmatpush1.bf16.msra.mxu0 %v1284
      %1377 = vmatprep.subr.bf16.mxu0 0
      %1378 = vmatpush1.bf16.msra.mxu0 0
      %1379 = vmatprep.subr.bf16.mxu0 0
      %1380 = vmatpush1.bf16.msra.mxu0 0
      %1381 = vmatprep.subr.bf16.mxu0 0
      %1382 = vmatpush1.bf16.msra.mxu0 0
      %1383 = vmatprep.subr.bf16.mxu0 0
      %1384 = vmatpush1.bf16.msra.mxu0 0
      %1385 = vmatprep.subr.bf16.mxu0 0
      %1386 = vmatpush1.bf16.msra.mxu0 0
      %1387 = vmatprep.subr.bf16.mxu0 0
      %1388 = vmatpush1.bf16.msra.mxu0 0
      %1389 = vmatprep.subr.bf16.mxu0 0
      %1390 = vmatpush1.bf16.msra.mxu0 0
      %1391 = vmatprep.subr.bf16.mxu0 0
      %1392 = vmatpush1.bf16.msra.mxu0 0
      %1393 = vmatprep.mubr.bf16.mxu0 0
      %1394 = vmatmul.mubr.bf16.gmra.mrb[0].mxu0 %v1123
      %v1395 = vpop.f32.mrb[0].mxu0
      %v1396 = vadd.f32 0.0, %v1395
      %v1397 = vpop.f32.mrb[0].mxu0
      %v1398 = vadd.f32 0.0, %v1397
      %v1399 = vpop.f32.mrb[0].mxu0
      %v1400 = vadd.f32 0.0, %v1399
      %v1401 = vpop.f32.mrb[0].mxu0
      %v1402 = vadd.f32 0.0, %v1401
      %1403 = vdwg.mxu0
      %v1404 = vadd.f32 %v1115, %v1353
      %v1405 = vadd.f32 %v1116, %v1355
      %v1406 = vadd.f32 %v1117, %v1396
      %v1407 = vadd.f32 %v1118, %v1398
      %v1408 = vadd.f32 %v1119, %v1357
      %v1409 = vadd.f32 %v1120, %v1359
      %v1410 = vadd.f32 %v1121, %v1400
      %v1411 = vadd.f32 %v1122, %v1402
      %v1412 = vxor.u32 %v1404, 2147483648
      %v1413 = vxor.u32 %v1408, 2147483648
      %v1414 = vmul.f32 %v1412, 1.442695
      %v1415 = vpow.pop %v1414
      %v1416 = vmul.f32 %v1413, 1.442695
      %v1417 = vpow.pop %v1416
      %v1418 = vadd.f32 %v1415, 1.0
      %v1419 = vadd.f32 %v1417, 1.0
      %v1420 = vrcp.pop %v1418
      %v1421 = vmul.f32 1.0, %v1420
      %v1422 = vrcp.pop %v1419
      %v1423 = vmul.f32 1.0, %v1422
      %v1424 = vxor.u32 %v1405, 2147483648
      %v1425 = vxor.u32 %v1409, 2147483648
      %v1426 = vmul.f32 %v1424, 1.442695
      %v1427 = vpow.pop %v1426
      %v1428 = vmul.f32 %v1425, 1.442695
      %v1429 = vpow.pop %v1428
      %v1430 = vadd.f32 %v1427, 1.0
      %v1431 = vadd.f32 %v1429, 1.0
      %v1432 = vrcp.pop %v1430
      %v1433 = vmul.f32 1.0, %v1432
      %v1434 = vrcp.pop %v1431
      %v1435 = vmul.f32 1.0, %v1434
      %v1436 = vtanh.pop %v1406
      %v1437 = vtanh.pop %v1410
      %v1438 = vxor.u32 %v1407, 2147483648
      %v1439 = vxor.u32 %v1411, 2147483648
      %v1440 = vmul.f32 %v1438, 1.442695
      %v1441 = vpow.pop %v1440
      %v1442 = vmul.f32 %v1439, 1.442695
      %v1443 = vpow.pop %v1442
      %v1444 = vadd.f32 %v1441, 1.0
      %v1445 = vadd.f32 %v1443, 1.0
      %v1446 = vrcp.pop %v1444
      %v1447 = vmul.f32 1.0, %v1446
      %v1448 = vrcp.pop %v1445
      %v1449 = vmul.f32 1.0, %v1448
      %v1450 = vmul.f32 %v1433, %v1124
      %v1451 = vmul.f32 %v1435, %v1125
      %v1452 = vmul.f32 %v1421, %v1436
      %v1453 = vmul.f32 %v1423, %v1437
      %v1454 = vadd.f32 %v1450, %v1452
      %v1455 = vadd.f32 %v1451, %v1453
      %v1456 = vtanh.pop %v1454
      %v1457 = vtanh.pop %v1455
      %v1458 = vmul.f32 %v1447, %v1456
      %v1459 = vmul.f32 %v1449, %v1457
      %v1460 = vpack.c.bf16 %v1459, %v1458
      %1461 = vst [vmem:[#allocation2] sm:$0xff] %v1460
      %1462 = vst [vmem:[#allocation3] sm:$0xff] %v1454
      %1463 = vst [vmem:[#allocation3 + $0x8] sm:$0xff] %v1455
      %v1465 = vunpack.c.l.b16 %v1460
      %v1466 = vunpack.c.h.b16 %v1460
      %v1467 = vpack.c.b16 %v1465, %v1465
      %v1468 = vpack.c.b16 %v1466, %v1466
      %s1471 = scalar_lea.vmem %s341, 8
      %1472 = vst [vmem:[%s1471] sm:$0xf] %v1467
      %1473 = vst [vmem:[%s1471 + $0x4] sm:$0xf] %v1468
      %s1474 = sadd.s32 %s370, 2
      %p1475 = scmp.lt.s32.totalorder %s1474, 9
      %s1476 = scalar_select %p1475, 1, 0
      %s1477 = scvt.s32.f32 %s1476
      %s1478 = scalar_lea.vmem %s328, 64
      %v1479 = vld [vmem:[%s1478] sm:$0xff]
      %v1480 = vld [vmem:[%s1478 + $0x8] sm:$0xff]
      %v1481 = vld [vmem:[%s1478 + $0x10] sm:$0xff]
      %v1482 = vld [vmem:[%s1478 + $0x18] sm:$0xff]
      %v1483 = vunpack.c.l.bf16 %v1479
      %v1484 = vunpack.c.h.bf16 %v1479
      %v1485 = vunpack.c.l.bf16 %v1480
      %v1486 = vunpack.c.h.bf16 %v1480
      %v1487 = vunpack.c.l.bf16 %v1481
      %v1488 = vunpack.c.h.bf16 %v1481
      %v1489 = vunpack.c.l.bf16 %v1482
      %v1490 = vunpack.c.h.bf16 %v1482
      %v1491 = vstv %s1477
      %v1492 = vmul.f32 %v1483, %v1491
      %v1493 = vmul.f32 %v1484, %v1491
      %v1494 = vmul.f32 %v1485, %v1491
      %v1495 = vmul.f32 %v1486, %v1491
      %v1496 = vmul.f32 %v1487, %v1491
      %v1497 = vmul.f32 %v1488, %v1491
      %v1498 = vmul.f32 %v1489, %v1491
      %v1499 = vmul.f32 %v1490, %v1491
      %v1500 = vld [vmem:[#allocation4] sm:$0xff]
      %v1501 = vld [vmem:[#allocation5] sm:$0xff]
      %v1502 = vld [vmem:[#allocation5 + $0x8] sm:$0xff]
      %v1503 = vld [vmem:[%s3] sm:$0xff]
      %v1504 = vld [vmem:[%s3 + $0x8] sm:$0xff]
      %v1505 = vld [vmem:[%s3 + $0x10] sm:$0xff]
      %v1506 = vld [vmem:[%s3 + $0x18] sm:$0xff]
      %v1507 = vld [vmem:[%s3 + $0x20] sm:$0xff]
      %v1508 = vld [vmem:[%s3 + $0x28] sm:$0xff]
      %v1509 = vld [vmem:[%s3 + $0x30] sm:$0xff]
      %v1510 = vld [vmem:[%s3 + $0x38] sm:$0xff]
      %v1511 = vld [vmem:[%s3 + $0x40] sm:$0xff]
      %v1512 = vld [vmem:[%s3 + $0x48] sm:$0xff]
      %v1513 = vld [vmem:[%s3 + $0x50] sm:$0xff]
      %v1514 = vld [vmem:[%s3 + $0x58] sm:$0xff]
      %v1515 = vld [vmem:[%s3 + $0x60] sm:$0xff]
      %v1516 = vld [vmem:[%s3 + $0x68] sm:$0xff]
      %v1517 = vld [vmem:[%s3 + $0x70] sm:$0xff]
      %v1518 = vld [vmem:[%s3 + $0x78] sm:$0xff]
      %v1519 = vld [vmem:[%s3 + $0x80] sm:$0xff]
      %v1520 = vld [vmem:[%s3 + $0x88] sm:$0xff]
      %v1521 = vld [vmem:[%s3 + $0x90] sm:$0xff]
      %v1522 = vld [vmem:[%s3 + $0x98] sm:$0xff]
      %v1523 = vld [vmem:[%s3 + $0xa0] sm:$0xff]
      %v1524 = vld [vmem:[%s3 + $0xa8] sm:$0xff]
      %v1525 = vld [vmem:[%s3 + $0xb0] sm:$0xff]
      %v1526 = vld [vmem:[%s3 + $0xb8] sm:$0xff]
      %v1527 = vld [vmem:[%s3 + $0xc0] sm:$0xff]
      %v1528 = vld [vmem:[%s3 + $0xc8] sm:$0xff]
      %v1529 = vld [vmem:[%s3 + $0xd0] sm:$0xff]
      %v1530 = vld [vmem:[%s3 + $0xd8] sm:$0xff]
      %v1531 = vld [vmem:[%s3 + $0xe0] sm:$0xff]
      %v1532 = vld [vmem:[%s3 + $0xe8] sm:$0xff]
      %v1533 = vld [vmem:[%s3 + $0xf0] sm:$0xff]
      %v1534 = vld [vmem:[%s3 + $0xf8] sm:$0xff]
      %v1567 = vunpack.c.l.b16 %v1503
      %v1568 = vunpack.c.h.b16 %v1503
      %v1569 = vunpack.c.l.b16 %v1504
      %v1570 = vunpack.c.h.b16 %v1504
      %v1571 = vunpack.c.l.b16 %v1505
      %v1572 = vunpack.c.h.b16 %v1505
      %v1573 = vunpack.c.l.b16 %v1506
      %v1574 = vunpack.c.h.b16 %v1506
      %v1575 = vunpack.c.l.b16 %v1507
      %v1576 = vunpack.c.h.b16 %v1507
      %v1577 = vunpack.c.l.b16 %v1508
      %v1578 = vunpack.c.h.b16 %v1508
      %v1579 = vunpack.c.l.b16 %v1509
      %v1580 = vunpack.c.h.b16 %v1509
      %v1581 = vunpack.c.l.b16 %v1510
      %v1582 = vunpack.c.h.b16 %v1510
      %v1583 = vunpack.c.l.b16 %v1511
      %v1584 = vunpack.c.h.b16 %v1511
      %v1585 = vunpack.c.l.b16 %v1512
      %v1586 = vunpack.c.h.b16 %v1512
      %v1587 = vunpack.c.l.b16 %v1513
      %v1588 = vunpack.c.h.b16 %v1513
      %v1589 = vunpack.c.l.b16 %v1514
      %v1590 = vunpack.c.h.b16 %v1514
      %v1591 = vunpack.c.l.b16 %v1515
      %v1592 = vunpack.c.h.b16 %v1515
      %v1593 = vunpack.c.l.b16 %v1516
      %v1594 = vunpack.c.h.b16 %v1516
      %v1595 = vunpack.c.l.b16 %v1517
      %v1596 = vunpack.c.h.b16 %v1517
      %v1597 = vunpack.c.l.b16 %v1518
      %v1598 = vunpack.c.h.b16 %v1518
      %v1599 = vunpack.c.l.b16 %v1519
      %v1600 = vunpack.c.h.b16 %v1519
      %v1601 = vunpack.c.l.b16 %v1520
      %v1602 = vunpack.c.h.b16 %v1520
      %v1603 = vunpack.c.l.b16 %v1521
      %v1604 = vunpack.c.h.b16 %v1521
      %v1605 = vunpack.c.l.b16 %v1522
      %v1606 = vunpack.c.h.b16 %v1522
      %v1607 = vunpack.c.l.b16 %v1523
      %v1608 = vunpack.c.h.b16 %v1523
      %v1609 = vunpack.c.l.b16 %v1524
      %v1610 = vunpack.c.h.b16 %v1524
      %v1611 = vunpack.c.l.b16 %v1525
      %v1612 = vunpack.c.h.b16 %v1525
      %v1613 = vunpack.c.l.b16 %v1526
      %v1614 = vunpack.c.h.b16 %v1526
      %v1615 = vunpack.c.l.b16 %v1527
      %v1616 = vunpack.c.h.b16 %v1527
      %v1617 = vunpack.c.l.b16 %v1528
      %v1618 = vunpack.c.h.b16 %v1528
      %v1619 = vunpack.c.l.b16 %v1529
      %v1620 = vunpack.c.h.b16 %v1529
      %v1621 = vunpack.c.l.b16 %v1530
      %v1622 = vunpack.c.h.b16 %v1530
      %v1623 = vunpack.c.l.b16 %v1531
      %v1624 = vunpack.c.h.b16 %v1531
      %v1625 = vunpack.c.l.b16 %v1532
      %v1626 = vunpack.c.h.b16 %v1532
      %v1627 = vunpack.c.l.b16 %v1533
      %v1628 = vunpack.c.h.b16 %v1533
      %v1629 = vunpack.c.l.b16 %v1534
      %v1630 = vunpack.c.h.b16 %v1534
      %v1631 = vpack.c.b16 %v1571, %v1567
      %v1632 = vpack.c.b16 %v1572, %v1568
      %v1633 = vpack.c.b16 %v1573, %v1569
      %v1634 = vpack.c.b16 %v1574, %v1570
      %v1635 = vpack.c.b16 %v1579, %v1575
      %v1636 = vpack.c.b16 %v1580, %v1576
      %v1637 = vpack.c.b16 %v1581, %v1577
      %v1638 = vpack.c.b16 %v1582, %v1578
      %v1639 = vpack.c.b16 %v1587, %v1583
      %v1640 = vpack.c.b16 %v1588, %v1584
      %v1641 = vpack.c.b16 %v1589, %v1585
      %v1642 = vpack.c.b16 %v1590, %v1586
      %v1643 = vpack.c.b16 %v1595, %v1591
      %v1644 = vpack.c.b16 %v1596, %v1592
      %v1645 = vpack.c.b16 %v1597, %v1593
      %v1646 = vpack.c.b16 %v1598, %v1594
      %v1647 = vpack.c.b16 %v1603, %v1599
      %v1648 = vpack.c.b16 %v1604, %v1600
      %v1649 = vpack.c.b16 %v1605, %v1601
      %v1650 = vpack.c.b16 %v1606, %v1602
      %v1651 = vpack.c.b16 %v1611, %v1607
      %v1652 = vpack.c.b16 %v1612, %v1608
      %v1653 = vpack.c.b16 %v1613, %v1609
      %v1654 = vpack.c.b16 %v1614, %v1610
      %v1655 = vpack.c.b16 %v1619, %v1615
      %v1656 = vpack.c.b16 %v1620, %v1616
      %v1657 = vpack.c.b16 %v1621, %v1617
      %v1658 = vpack.c.b16 %v1622, %v1618
      %v1659 = vpack.c.b16 %v1627, %v1623
      %v1660 = vpack.c.b16 %v1628, %v1624
      %v1661 = vpack.c.b16 %v1629, %v1625
      %v1662 = vpack.c.b16 %v1630, %v1626
      %1695 = vmatprep.subr.bf16.mxu0 %v1632
      %1696 = vmatpush1.bf16.msra.mxu0 %v1631
      %1697 = vmatprep.subr.bf16.mxu0 %v1636
      %1698 = vmatpush1.bf16.msra.mxu0 %v1635
      %1699 = vmatprep.subr.bf16.mxu0 %v1640
      %1700 = vmatpush1.bf16.msra.mxu0 %v1639
      %1701 = vmatprep.subr.bf16.mxu0 %v1644
      %1702 = vmatpush1.bf16.msra.mxu0 %v1643
      %1703 = vmatprep.subr.bf16.mxu0 %v1648
      %1704 = vmatpush1.bf16.msra.mxu0 %v1647
      %1705 = vmatprep.subr.bf16.mxu0 %v1652
      %1706 = vmatpush1.bf16.msra.mxu0 %v1651
      %1707 = vmatprep.subr.bf16.mxu0 %v1656
      %1708 = vmatpush1.bf16.msra.mxu0 %v1655
      %1709 = vmatprep.subr.bf16.mxu0 %v1660
      %1710 = vmatpush1.bf16.msra.mxu0 %v1659
      %1711 = vmatprep.subr.bf16.mxu0 0
      %1712 = vmatpush1.bf16.msra.mxu0 0
      %1713 = vmatprep.subr.bf16.mxu0 0
      %1714 = vmatpush1.bf16.msra.mxu0 0
      %1715 = vmatprep.subr.bf16.mxu0 0
      %1716 = vmatpush1.bf16.msra.mxu0 0
      %1717 = vmatprep.subr.bf16.mxu0 0
      %1718 = vmatpush1.bf16.msra.mxu0 0
      %1719 = vmatprep.subr.bf16.mxu0 0
      %1720 = vmatpush1.bf16.msra.mxu0 0
      %1721 = vmatprep.subr.bf16.mxu0 0
      %1722 = vmatpush1.bf16.msra.mxu0 0
      %1723 = vmatprep.subr.bf16.mxu0 0
      %1724 = vmatpush1.bf16.msra.mxu0 0
      %1725 = vmatprep.subr.bf16.mxu0 0
      %1726 = vmatpush1.bf16.msra.mxu0 0
      %1727 = vmatprep.mubr.bf16.mxu0 0
      %1728 = vmatmul.mubr.bf16.gmra.mrb[0].mxu0 %v1500
      %v1729 = vpop.f32.mrb[0].mxu0
      %v1730 = vadd.f32 0.0, %v1729
      %v1731 = vpop.f32.mrb[0].mxu0
      %v1732 = vadd.f32 0.0, %v1731
      %v1733 = vpop.f32.mrb[0].mxu0
      %v1734 = vadd.f32 0.0, %v1733
      %v1735 = vpop.f32.mrb[0].mxu0
      %v1736 = vadd.f32 0.0, %v1735
      %1737 = vdwg.mxu0
      %1738 = vmatprep.subr.bf16.mxu0 %v1634
      %1739 = vmatpush1.bf16.msra.mxu0 %v1633
      %1740 = vmatprep.subr.bf16.mxu0 %v1638
      %1741 = vmatpush1.bf16.msra.mxu0 %v1637
      %1742 = vmatprep.subr.bf16.mxu0 %v1642
      %1743 = vmatpush1.bf16.msra.mxu0 %v1641
      %1744 = vmatprep.subr.bf16.mxu0 %v1646
      %1745 = vmatpush1.bf16.msra.mxu0 %v1645
      %1746 = vmatprep.subr.bf16.mxu0 %v1650
      %1747 = vmatpush1.bf16.msra.mxu0 %v1649
      %1748 = vmatprep.subr.bf16.mxu0 %v1654
      %1749 = vmatpush1.bf16.msra.mxu0 %v1653
      %1750 = vmatprep.subr.bf16.mxu0 %v1658
      %1751 = vmatpush1.bf16.msra.mxu0 %v1657
      %1752 = vmatprep.subr.bf16.mxu0 %v1662
      %1753 = vmatpush1.bf16.msra.mxu0 %v1661
      %1754 = vmatprep.subr.bf16.mxu0 0
      %1755 = vmatpush1.bf16.msra.mxu0 0
      %1756 = vmatprep.subr.bf16.mxu0 0
      %1757 = vmatpush1.bf16.msra.mxu0 0
      %1758 = vmatprep.subr.bf16.mxu0 0
      %1759 = vmatpush1.bf16.msra.mxu0 0
      %1760 = vmatprep.subr.bf16.mxu0 0
      %1761 = vmatpush1.bf16.msra.mxu0 0
      %1762 = vmatprep.subr.bf16.mxu0 0
      %1763 = vmatpush1.bf16.msra.mxu0 0
      %1764 = vmatprep.subr.bf16.mxu0 0
      %1765 = vmatpush1.bf16.msra.mxu0 0
      %1766 = vmatprep.subr.bf16.mxu0 0
      %1767 = vmatpush1.bf16.msra.mxu0 0
      %1768 = vmatprep.subr.bf16.mxu0 0
      %1769 = vmatpush1.bf16.msra.mxu0 0
      %1770 = vmatprep.mubr.bf16.mxu0 0
      %1771 = vmatmul.mubr.bf16.gmra.mrb[0].mxu0 %v1500
      %v1772 = vpop.f32.mrb[0].mxu0
      %v1773 = vadd.f32 0.0, %v1772
      %v1774 = vpop.f32.mrb[0].mxu0
      %v1775 = vadd.f32 0.0, %v1774
      %v1776 = vpop.f32.mrb[0].mxu0
      %v1777 = vadd.f32 0.0, %v1776
      %v1778 = vpop.f32.mrb[0].mxu0
      %v1779 = vadd.f32 0.0, %v1778
      %1780 = vdwg.mxu0
      %v1781 = vadd.f32 %v1492, %v1730
      %v1782 = vadd.f32 %v1493, %v1732
      %v1783 = vadd.f32 %v1494, %v1773
      %v1784 = vadd.f32 %v1495, %v1775
      %v1785 = vadd.f32 %v1496, %v1734
      %v1786 = vadd.f32 %v1497, %v1736
      %v1787 = vadd.f32 %v1498, %v1777
      %v1788 = vadd.f32 %v1499, %v1779
      %v1789 = vxor.u32 %v1781, 2147483648
      %v1790 = vxor.u32 %v1785, 2147483648
      %v1791 = vmul.f32 %v1789, 1.442695
      %v1792 = vpow.pop %v1791
      %v1793 = vmul.f32 %v1790, 1.442695
      %v1794 = vpow.pop %v1793
      %v1795 = vadd.f32 %v1792, 1.0
      %v1796 = vadd.f32 %v1794, 1.0
      %v1797 = vrcp.pop %v1795
      %v1798 = vmul.f32 1.0, %v1797
      %v1799 = vrcp.pop %v1796
      %v1800 = vmul.f32 1.0, %v1799
      %v1801 = vxor.u32 %v1782, 2147483648
      %v1802 = vxor.u32 %v1786, 2147483648
      %v1803 = vmul.f32 %v1801, 1.442695
      %v1804 = vpow.pop %v1803
      %v1805 = vmul.f32 %v1802, 1.442695
      %v1806 = vpow.pop %v1805
      %v1807 = vadd.f32 %v1804, 1.0
      %v1808 = vadd.f32 %v1806, 1.0
      %v1809 = vrcp.pop %v1807
      %v1810 = vmul.f32 1.0, %v1809
      %v1811 = vrcp.pop %v1808
      %v1812 = vmul.f32 1.0, %v1811
      %v1813 = vtanh.pop %v1783
      %v1814 = vtanh.pop %v1787
      %v1815 = vxor.u32 %v1784, 2147483648
      %v1816 = vxor.u32 %v1788, 2147483648
      %v1817 = vmul.f32 %v1815, 1.442695
      %v1818 = vpow.pop %v1817
      %v1819 = vmul.f32 %v1816, 1.442695
      %v1820 = vpow.pop %v1819
      %v1821 = vadd.f32 %v1818, 1.0
      %v1822 = vadd.f32 %v1820, 1.0
      %v1823 = vrcp.pop %v1821
      %v1824 = vmul.f32 1.0, %v1823
      %v1825 = vrcp.pop %v1822
      %v1826 = vmul.f32 1.0, %v1825
      %v1827 = vmul.f32 %v1810, %v1501
      %v1828 = vmul.f32 %v1812, %v1502
      %v1829 = vmul.f32 %v1798, %v1813
      %v1830 = vmul.f32 %v1800, %v1814
      %v1831 = vadd.f32 %v1827, %v1829
      %v1832 = vadd.f32 %v1828, %v1830
      %v1833 = vtanh.pop %v1831
      %v1834 = vtanh.pop %v1832
      %v1835 = vmul.f32 %v1824, %v1833
      %v1836 = vmul.f32 %v1826, %v1834
      %v1837 = vpack.c.bf16 %v1836, %v1835
      %1838 = vst [vmem:[#allocation4] sm:$0xff] %v1837
      %1839 = vst [vmem:[#allocation5] sm:$0xff] %v1831
      %1840 = vst [vmem:[#allocation5 + $0x8] sm:$0xff] %v1832
      %v1842 = vunpack.c.l.b16 %v1837
      %v1843 = vunpack.c.h.b16 %v1837
      %v1844 = vpack.c.b16 %v1842, %v1842
      %v1845 = vpack.c.b16 %v1843, %v1843
      %s1848 = scalar_lea.vmem %s354, 16
      %1849 = vst [vmem:[%s1848] sm:$0xf] %v1844
      %1850 = vst [vmem:[%s1848 + $0x4] sm:$0xf] %v1845
      %s1851 = scalar_lea.vmem %s314, 64
      %v1852 = vld [vmem:[%s1851] sm:$0xff]
      %v1853 = vld [vmem:[%s1851 + $0x8] sm:$0xff]
      %v1854 = vld [vmem:[%s1851 + $0x10] sm:$0xff]
      %v1855 = vld [vmem:[%s1851 + $0x18] sm:$0xff]
      %v1856 = vunpack.c.l.bf16 %v1852
      %v1857 = vunpack.c.h.bf16 %v1852
      %v1858 = vunpack.c.l.bf16 %v1853
      %v1859 = vunpack.c.h.bf16 %v1853
      %v1860 = vunpack.c.l.bf16 %v1854
      %v1861 = vunpack.c.h.bf16 %v1854
      %v1862 = vunpack.c.l.bf16 %v1855
      %v1863 = vunpack.c.h.bf16 %v1855
      %v1864 = vld [vmem:[#allocation2] sm:$0xff]
      %v1865 = vld [vmem:[#allocation3] sm:$0xff]
      %v1866 = vld [vmem:[#allocation3 + $0x8] sm:$0xff]
      %v1867 = vld [vmem:[%s2] sm:$0xff]
      %v1868 = vld [vmem:[%s2 + $0x8] sm:$0xff]
      %v1869 = vld [vmem:[%s2 + $0x10] sm:$0xff]
      %v1870 = vld [vmem:[%s2 + $0x18] sm:$0xff]
      %v1871 = vld [vmem:[%s2 + $0x20] sm:$0xff]
      %v1872 = vld [vmem:[%s2 + $0x28] sm:$0xff]
      %v1873 = vld [vmem:[%s2 + $0x30] sm:$0xff]
      %v1874 = vld [vmem:[%s2 + $0x38] sm:$0xff]
      %v1875 = vld [vmem:[%s2 + $0x40] sm:$0xff]
      %v1876 = vld [vmem:[%s2 + $0x48] sm:$0xff]
      %v1877 = vld [vmem:[%s2 + $0x50] sm:$0xff]
      %v1878 = vld [vmem:[%s2 + $0x58] sm:$0xff]
      %v1879 = vld [vmem:[%s2 + $0x60] sm:$0xff]
      %v1880 = vld [vmem:[%s2 + $0x68] sm:$0xff]
      %v1881 = vld [vmem:[%s2 + $0x70] sm:$0xff]
      %v1882 = vld [vmem:[%s2 + $0x78] sm:$0xff]
      %v1883 = vld [vmem:[%s2 + $0x80] sm:$0xff]
      %v1884 = vld [vmem:[%s2 + $0x88] sm:$0xff]
      %v1885 = vld [vmem:[%s2 + $0x90] sm:$0xff]
      %v1886 = vld [vmem:[%s2 + $0x98] sm:$0xff]
      %v1887 = vld [vmem:[%s2 + $0xa0] sm:$0xff]
      %v1888 = vld [vmem:[%s2 + $0xa8] sm:$0xff]
      %v1889 = vld [vmem:[%s2 + $0xb0] sm:$0xff]
      %v1890 = vld [vmem:[%s2 + $0xb8] sm:$0xff]
      %v1891 = vld [vmem:[%s2 + $0xc0] sm:$0xff]
      %v1892 = vld [vmem:[%s2 + $0xc8] sm:$0xff]
      %v1893 = vld [vmem:[%s2 + $0xd0] sm:$0xff]
      %v1894 = vld [vmem:[%s2 + $0xd8] sm:$0xff]
      %v1895 = vld [vmem:[%s2 + $0xe0] sm:$0xff]
      %v1896 = vld [vmem:[%s2 + $0xe8] sm:$0xff]
      %v1897 = vld [vmem:[%s2 + $0xf0] sm:$0xff]
      %v1898 = vld [vmem:[%s2 + $0xf8] sm:$0xff]
      %v1931 = vunpack.c.l.b16 %v1867
      %v1932 = vunpack.c.h.b16 %v1867
      %v1933 = vunpack.c.l.b16 %v1868
      %v1934 = vunpack.c.h.b16 %v1868
      %v1935 = vunpack.c.l.b16 %v1869
      %v1936 = vunpack.c.h.b16 %v1869
      %v1937 = vunpack.c.l.b16 %v1870
      %v1938 = vunpack.c.h.b16 %v1870
      %v1939 = vunpack.c.l.b16 %v1871
      %v1940 = vunpack.c.h.b16 %v1871
      %v1941 = vunpack.c.l.b16 %v1872
      %v1942 = vunpack.c.h.b16 %v1872
      %v1943 = vunpack.c.l.b16 %v1873
      %v1944 = vunpack.c.h.b16 %v1873
      %v1945 = vunpack.c.l.b16 %v1874
      %v1946 = vunpack.c.h.b16 %v1874
      %v1947 = vunpack.c.l.b16 %v1875
      %v1948 = vunpack.c.h.b16 %v1875
      %v1949 = vunpack.c.l.b16 %v1876
      %v1950 = vunpack.c.h.b16 %v1876
      %v1951 = vunpack.c.l.b16 %v1877
      %v1952 = vunpack.c.h.b16 %v1877
      %v1953 = vunpack.c.l.b16 %v1878
      %v1954 = vunpack.c.h.b16 %v1878
      %v1955 = vunpack.c.l.b16 %v1879
      %v1956 = vunpack.c.h.b16 %v1879
      %v1957 = vunpack.c.l.b16 %v1880
      %v1958 = vunpack.c.h.b16 %v1880
      %v1959 = vunpack.c.l.b16 %v1881
      %v1960 = vunpack.c.h.b16 %v1881
      %v1961 = vunpack.c.l.b16 %v1882
      %v1962 = vunpack.c.h.b16 %v1882
      %v1963 = vunpack.c.l.b16 %v1883
      %v1964 = vunpack.c.h.b16 %v1883
      %v1965 = vunpack.c.l.b16 %v1884
      %v1966 = vunpack.c.h.b16 %v1884
      %v1967 = vunpack.c.l.b16 %v1885
      %v1968 = vunpack.c.h.b16 %v1885
      %v1969 = vunpack.c.l.b16 %v1886
      %v1970 = vunpack.c.h.b16 %v1886
      %v1971 = vunpack.c.l.b16 %v1887
      %v1972 = vunpack.c.h.b16 %v1887
      %v1973 = vunpack.c.l.b16 %v1888
      %v1974 = vunpack.c.h.b16 %v1888
      %v1975 = vunpack.c.l.b16 %v1889
      %v1976 = vunpack.c.h.b16 %v1889
      %v1977 = vunpack.c.l.b16 %v1890
      %v1978 = vunpack.c.h.b16 %v1890
      %v1979 = vunpack.c.l.b16 %v1891
      %v1980 = vunpack.c.h.b16 %v1891
      %v1981 = vunpack.c.l.b16 %v1892
      %v1982 = vunpack.c.h.b16 %v1892
      %v1983 = vunpack.c.l.b16 %v1893
      %v1984 = vunpack.c.h.b16 %v1893
      %v1985 = vunpack.c.l.b16 %v1894
      %v1986 = vunpack.c.h.b16 %v1894
      %v1987 = vunpack.c.l.b16 %v1895
      %v1988 = vunpack.c.h.b16 %v1895
      %v1989 = vunpack.c.l.b16 %v1896
      %v1990 = vunpack.c.h.b16 %v1896
      %v1991 = vunpack.c.l.b16 %v1897
      %v1992 = vunpack.c.h.b16 %v1897
      %v1993 = vunpack.c.l.b16 %v1898
      %v1994 = vunpack.c.h.b16 %v1898
      %v1995 = vpack.c.b16 %v1935, %v1931
      %v1996 = vpack.c.b16 %v1936, %v1932
      %v1997 = vpack.c.b16 %v1937, %v1933
      %v1998 = vpack.c.b16 %v1938, %v1934
      %v1999 = vpack.c.b16 %v1943, %v1939
      %v2000 = vpack.c.b16 %v1944, %v1940
      %v2001 = vpack.c.b16 %v1945, %v1941
      %v2002 = vpack.c.b16 %v1946, %v1942
      %v2003 = vpack.c.b16 %v1951, %v1947
      %v2004 = vpack.c.b16 %v1952, %v1948
      %v2005 = vpack.c.b16 %v1953, %v1949
      %v2006 = vpack.c.b16 %v1954, %v1950
      %v2007 = vpack.c.b16 %v1959, %v1955
      %v2008 = vpack.c.b16 %v1960, %v1956
      %v2009 = vpack.c.b16 %v1961, %v1957
      %v2010 = vpack.c.b16 %v1962, %v1958
      %v2011 = vpack.c.b16 %v1967, %v1963
      %v2012 = vpack.c.b16 %v1968, %v1964
      %v2013 = vpack.c.b16 %v1969, %v1965
      %v2014 = vpack.c.b16 %v1970, %v1966
      %v2015 = vpack.c.b16 %v1975, %v1971
      %v2016 = vpack.c.b16 %v1976, %v1972
      %v2017 = vpack.c.b16 %v1977, %v1973
      %v2018 = vpack.c.b16 %v1978, %v1974
      %v2019 = vpack.c.b16 %v1983, %v1979
      %v2020 = vpack.c.b16 %v1984, %v1980
      %v2021 = vpack.c.b16 %v1985, %v1981
      %v2022 = vpack.c.b16 %v1986, %v1982
      %v2023 = vpack.c.b16 %v1991, %v1987
      %v2024 = vpack.c.b16 %v1992, %v1988
      %v2025 = vpack.c.b16 %v1993, %v1989
      %v2026 = vpack.c.b16 %v1994, %v1990
      %2059 = vmatprep.subr.bf16.mxu0 %v1996
      %2060 = vmatpush1.bf16.msra.mxu0 %v1995
      %2061 = vmatprep.subr.bf16.mxu0 %v2000
      %2062 = vmatpush1.bf16.msra.mxu0 %v1999
      %2063 = vmatprep.subr.bf16.mxu0 %v2004
      %2064 = vmatpush1.bf16.msra.mxu0 %v2003
      %2065 = vmatprep.subr.bf16.mxu0 %v2008
      %2066 = vmatpush1.bf16.msra.mxu0 %v2007
      %2067 = vmatprep.subr.bf16.mxu0 %v2012
      %2068 = vmatpush1.bf16.msra.mxu0 %v2011
      %2069 = vmatprep.subr.bf16.mxu0 %v2016
      %2070 = vmatpush1.bf16.msra.mxu0 %v2015
      %2071 = vmatprep.subr.bf16.mxu0 %v2020
      %2072 = vmatpush1.bf16.msra.mxu0 %v2019
      %2073 = vmatprep.subr.bf16.mxu0 %v2024
      %2074 = vmatpush1.bf16.msra.mxu0 %v2023
      %2075 = vmatprep.subr.bf16.mxu0 0
      %2076 = vmatpush1.bf16.msra.mxu0 0
      %2077 = vmatprep.subr.bf16.mxu0 0
      %2078 = vmatpush1.bf16.msra.mxu0 0
      %2079 = vmatprep.subr.bf16.mxu0 0
      %2080 = vmatpush1.bf16.msra.mxu0 0
      %2081 = vmatprep.subr.bf16.mxu0 0
      %2082 = vmatpush1.bf16.msra.mxu0 0
      %2083 = vmatprep.subr.bf16.mxu0 0
      %2084 = vmatpush1.bf16.msra.mxu0 0
      %2085 = vmatprep.subr.bf16.mxu0 0
      %2086 = vmatpush1.bf16.msra.mxu0 0
      %2087 = vmatprep.subr.bf16.mxu0 0
      %2088 = vmatpush1.bf16.msra.mxu0 0
      %2089 = vmatprep.subr.bf16.mxu0 0
      %2090 = vmatpush1.bf16.msra.mxu0 0
      %2091 = vmatprep.mubr.bf16.mxu0 0
      %2092 = vmatmul.mubr.bf16.gmra.mrb[0].mxu0 %v1864
      %v2093 = vpop.f32.mrb[0].mxu0
      %v2094 = vadd.f32 0.0, %v2093
      %v2095 = vpop.f32.mrb[0].mxu0
      %v2096 = vadd.f32 0.0, %v2095
      %v2097 = vpop.f32.mrb[0].mxu0
      %v2098 = vadd.f32 0.0, %v2097
      %v2099 = vpop.f32.mrb[0].mxu0
      %v2100 = vadd.f32 0.0, %v2099
      %2101 = vdwg.mxu0
      %2102 = vmatprep.subr.bf16.mxu0 %v1998
      %2103 = vmatpush1.bf16.msra.mxu0 %v1997
      %2104 = vmatprep.subr.bf16.mxu0 %v2002
      %2105 = vmatpush1.bf16.msra.mxu0 %v2001
      %2106 = vmatprep.subr.bf16.mxu0 %v2006
      %2107 = vmatpush1.bf16.msra.mxu0 %v2005
      %2108 = vmatprep.subr.bf16.mxu0 %v2010
      %2109 = vmatpush1.bf16.msra.mxu0 %v2009
      %2110 = vmatprep.subr.bf16.mxu0 %v2014
      %2111 = vmatpush1.bf16.msra.mxu0 %v2013
      %2112 = vmatprep.subr.bf16.mxu0 %v2018
      %2113 = vmatpush1.bf16.msra.mxu0 %v2017
      %2114 = vmatprep.subr.bf16.mxu0 %v2022
      %2115 = vmatpush1.bf16.msra.mxu0 %v2021
      %2116 = vmatprep.subr.bf16.mxu0 %v2026
      %2117 = vmatpush1.bf16.msra.mxu0 %v2025
      %2118 = vmatprep.subr.bf16.mxu0 0
      %2119 = vmatpush1.bf16.msra.mxu0 0
      %2120 = vmatprep.subr.bf16.mxu0 0
      %2121 = vmatpush1.bf16.msra.mxu0 0
      %2122 = vmatprep.subr.bf16.mxu0 0
      %2123 = vmatpush1.bf16.msra.mxu0 0
      %2124 = vmatprep.subr.bf16.mxu0 0
      %2125 = vmatpush1.bf16.msra.mxu0 0
      %2126 = vmatprep.subr.bf16.mxu0 0
      %2127 = vmatpush1.bf16.msra.mxu0 0
      %2128 = vmatprep.subr.bf16.mxu0 0
      %2129 = vmatpush1.bf16.msra.mxu0 0
      %2130 = vmatprep.subr.bf16.mxu0 0
      %2131 = vmatpush1.bf16.msra.mxu0 0
      %2132 = vmatprep.subr.bf16.mxu0 0
      %2133 = vmatpush1.bf16.msra.mxu0 0
      %2134 = vmatprep.mubr.bf16.mxu0 0
      %2135 = vmatmul.mubr.bf16.gmra.mrb[0].mxu0 %v1864
      %v2136 = vpop.f32.mrb[0].mxu0
      %v2137 = vadd.f32 0.0, %v2136
      %v2138 = vpop.f32.mrb[0].mxu0
      %v2139 = vadd.f32 0.0, %v2138
      %v2140 = vpop.f32.mrb[0].mxu0
      %v2141 = vadd.f32 0.0, %v2140
      %v2142 = vpop.f32.mrb[0].mxu0
      %v2143 = vadd.f32 0.0, %v2142
      %2144 = vdwg.mxu0
      %v2145 = vadd.f32 %v1856, %v2094
      %v2146 = vadd.f32 %v1857, %v2096
      %v2147 = vadd.f32 %v1858, %v2137
      %v2148 = vadd.f32 %v1859, %v2139
      %v2149 = vadd.f32 %v1860, %v2098
      %v2150 = vadd.f32 %v1861, %v2100
      %v2151 = vadd.f32 %v1862, %v2141
      %v2152 = vadd.f32 %v1863, %v2143
      %v2153 = vxor.u32 %v2145, 2147483648
      %v2154 = vxor.u32 %v2149, 2147483648
      %v2155 = vmul.f32 %v2153, 1.442695
      %v2156 = vpow.pop %v2155
      %v2157 = vmul.f32 %v2154, 1.442695
      %v2158 = vpow.pop %v2157
      %v2159 = vadd.f32 %v2156, 1.0
      %v2160 = vadd.f32 %v2158, 1.0
      %v2161 = vrcp.pop %v2159
      %v2162 = vmul.f32 1.0, %v2161
      %v2163 = vrcp.pop %v2160
      %v2164 = vmul.f32 1.0, %v2163
      %v2165 = vxor.u32 %v2146, 2147483648
      %v2166 = vxor.u32 %v2150, 2147483648
      %v2167 = vmul.f32 %v2165, 1.442695
      %v2168 = vpow.pop %v2167
      %v2169 = vmul.f32 %v2166, 1.442695
      %v2170 = vpow.pop %v2169
      %v2171 = vadd.f32 %v2168, 1.0
      %v2172 = vadd.f32 %v2170, 1.0
      %v2173 = vrcp.pop %v2171
      %v2174 = vmul.f32 1.0, %v2173
      %v2175 = vrcp.pop %v2172
      %v2176 = vmul.f32 1.0, %v2175
      %v2177 = vtanh.pop %v2147
      %v2178 = vtanh.pop %v2151
      %v2179 = vxor.u32 %v2148, 2147483648
      %v2180 = vxor.u32 %v2152, 2147483648
      %v2181 = vmul.f32 %v2179, 1.442695
      %v2182 = vpow.pop %v2181
      %v2183 = vmul.f32 %v2180, 1.442695
      %v2184 = vpow.pop %v2183
      %v2185 = vadd.f32 %v2182, 1.0
      %v2186 = vadd.f32 %v2184, 1.0
      %v2187 = vrcp.pop %v2185
      %v2188 = vmul.f32 1.0, %v2187
      %v2189 = vrcp.pop %v2186
      %v2190 = vmul.f32 1.0, %v2189
      %v2191 = vmul.f32 %v2174, %v1865
      %v2192 = vmul.f32 %v2176, %v1866
      %v2193 = vmul.f32 %v2162, %v2177
      %v2194 = vmul.f32 %v2164, %v2178
      %v2195 = vadd.f32 %v2191, %v2193
      %v2196 = vadd.f32 %v2192, %v2194
      %v2197 = vtanh.pop %v2195
      %v2198 = vtanh.pop %v2196
      %v2199 = vmul.f32 %v2188, %v2197
      %v2200 = vmul.f32 %v2190, %v2198
      %v2201 = vpack.c.bf16 %v2200, %v2199
      %2202 = vst [vmem:[#allocation2] sm:$0xff] %v2201
      %2203 = vst [vmem:[#allocation3] sm:$0xff] %v2195
      %2204 = vst [vmem:[#allocation3 + $0x8] sm:$0xff] %v2196
      %v2206 = vunpack.c.l.b16 %v2201
      %v2207 = vunpack.c.h.b16 %v2201
      %v2208 = vpack.c.b16 %v2206, %v2206
      %v2209 = vpack.c.b16 %v2207, %v2207
      %s2212 = scalar_lea.vmem %s341, 16
      %2213 = vst [vmem:[%s2212] sm:$0xf] %v2208
      %2214 = vst [vmem:[%s2212 + $0x4] sm:$0xf] %v2209
      %s2215 = sadd.s32 %s370, 1
      %p2216 = scmp.lt.s32.totalorder %s2215, 9
      %s2217 = scalar_select %p2216, 1, 0
      %s2218 = scvt.s32.f32 %s2217
      %s2219 = scalar_lea.vmem %s328, 32
      %v2220 = vld [vmem:[%s2219] sm:$0xff]
      %v2221 = vld [vmem:[%s2219 + $0x8] sm:$0xff]
      %v2222 = vld [vmem:[%s2219 + $0x10] sm:$0xff]
      %v2223 = vld [vmem:[%s2219 + $0x18] sm:$0xff]
      %v2224 = vunpack.c.l.bf16 %v2220
      %v2225 = vunpack.c.h.bf16 %v2220
      %v2226 = vunpack.c.l.bf16 %v2221
      %v2227 = vunpack.c.h.bf16 %v2221
      %v2228 = vunpack.c.l.bf16 %v2222
      %v2229 = vunpack.c.h.bf16 %v2222
      %v2230 = vunpack.c.l.bf16 %v2223
      %v2231 = vunpack.c.h.bf16 %v2223
      %v2232 = vstv %s2218
      %v2233 = vmul.f32 %v2224, %v2232
      %v2234 = vmul.f32 %v2225, %v2232
      %v2235 = vmul.f32 %v2226, %v2232
      %v2236 = vmul.f32 %v2227, %v2232
      %v2237 = vmul.f32 %v2228, %v2232
      %v2238 = vmul.f32 %v2229, %v2232
      %v2239 = vmul.f32 %v2230, %v2232
      %v2240 = vmul.f32 %v2231, %v2232
      %v2241 = vld [vmem:[#allocation4] sm:$0xff]
      %v2242 = vld [vmem:[#allocation5] sm:$0xff]
      %v2243 = vld [vmem:[#allocation5 + $0x8] sm:$0xff]
      %v2244 = vld [vmem:[%s3] sm:$0xff]
      %v2245 = vld [vmem:[%s3 + $0x8] sm:$0xff]
      %v2246 = vld [vmem:[%s3 + $0x10] sm:$0xff]
      %v2247 = vld [vmem:[%s3 + $0x18] sm:$0xff]
      %v2248 = vld [vmem:[%s3 + $0x20] sm:$0xff]
      %v2249 = vld [vmem:[%s3 + $0x28] sm:$0xff]
      %v2250 = vld [vmem:[%s3 + $0x30] sm:$0xff]
      %v2251 = vld [vmem:[%s3 + $0x38] sm:$0xff]
      %v2252 = vld [vmem:[%s3 + $0x40] sm:$0xff]
      %v2253 = vld [vmem:[%s3 + $0x48] sm:$0xff]
      %v2254 = vld [vmem:[%s3 + $0x50] sm:$0xff]
      %v2255 = vld [vmem:[%s3 + $0x58] sm:$0xff]
      %v2256 = vld [vmem:[%s3 + $0x60] sm:$0xff]
      %v2257 = vld [vmem:[%s3 + $0x68] sm:$0xff]
      %v2258 = vld [vmem:[%s3 + $0x70] sm:$0xff]
      %v2259 = vld [vmem:[%s3 + $0x78] sm:$0xff]
      %v2260 = vld [vmem:[%s3 + $0x80] sm:$0xff]
      %v2261 = vld [vmem:[%s3 + $0x88] sm:$0xff]
      %v2262 = vld [vmem:[%s3 + $0x90] sm:$0xff]
      %v2263 = vld [vmem:[%s3 + $0x98] sm:$0xff]
      %v2264 = vld [vmem:[%s3 + $0xa0] sm:$0xff]
      %v2265 = vld [vmem:[%s3 + $0xa8] sm:$0xff]
      %v2266 = vld [vmem:[%s3 + $0xb0] sm:$0xff]
      %v2267 = vld [vmem:[%s3 + $0xb8] sm:$0xff]
      %v2268 = vld [vmem:[%s3 + $0xc0] sm:$0xff]
      %v2269 = vld [vmem:[%s3 + $0xc8] sm:$0xff]
      %v2270 = vld [vmem:[%s3 + $0xd0] sm:$0xff]
      %v2271 = vld [vmem:[%s3 + $0xd8] sm:$0xff]
      %v2272 = vld [vmem:[%s3 + $0xe0] sm:$0xff]
      %v2273 = vld [vmem:[%s3 + $0xe8] sm:$0xff]
      %v2274 = vld [vmem:[%s3 + $0xf0] sm:$0xff]
      %v2275 = vld [vmem:[%s3 + $0xf8] sm:$0xff]
      %v2308 = vunpack.c.l.b16 %v2244
      %v2309 = vunpack.c.h.b16 %v2244
      %v2310 = vunpack.c.l.b16 %v2245
      %v2311 = vunpack.c.h.b16 %v2245
      %v2312 = vunpack.c.l.b16 %v2246
      %v2313 = vunpack.c.h.b16 %v2246
      %v2314 = vunpack.c.l.b16 %v2247
      %v2315 = vunpack.c.h.b16 %v2247
      %v2316 = vunpack.c.l.b16 %v2248
      %v2317 = vunpack.c.h.b16 %v2248
      %v2318 = vunpack.c.l.b16 %v2249
      %v2319 = vunpack.c.h.b16 %v2249
      %v2320 = vunpack.c.l.b16 %v2250
      %v2321 = vunpack.c.h.b16 %v2250
      %v2322 = vunpack.c.l.b16 %v2251
      %v2323 = vunpack.c.h.b16 %v2251
      %v2324 = vunpack.c.l.b16 %v2252
      %v2325 = vunpack.c.h.b16 %v2252
      %v2326 = vunpack.c.l.b16 %v2253
      %v2327 = vunpack.c.h.b16 %v2253
      %v2328 = vunpack.c.l.b16 %v2254
      %v2329 = vunpack.c.h.b16 %v2254
      %v2330 = vunpack.c.l.b16 %v2255
      %v2331 = vunpack.c.h.b16 %v2255
      %v2332 = vunpack.c.l.b16 %v2256
      %v2333 = vunpack.c.h.b16 %v2256
      %v2334 = vunpack.c.l.b16 %v2257
      %v2335 = vunpack.c.h.b16 %v2257
      %v2336 = vunpack.c.l.b16 %v2258
      %v2337 = vunpack.c.h.b16 %v2258
      %v2338 = vunpack.c.l.b16 %v2259
      %v2339 = vunpack.c.h.b16 %v2259
      %v2340 = vunpack.c.l.b16 %v2260
      %v2341 = vunpack.c.h.b16 %v2260
      %v2342 = vunpack.c.l.b16 %v2261
      %v2343 = vunpack.c.h.b16 %v2261
      %v2344 = vunpack.c.l.b16 %v2262
      %v2345 = vunpack.c.h.b16 %v2262
      %v2346 = vunpack.c.l.b16 %v2263
      %v2347 = vunpack.c.h.b16 %v2263
      %v2348 = vunpack.c.l.b16 %v2264
      %v2349 = vunpack.c.h.b16 %v2264
      %v2350 = vunpack.c.l.b16 %v2265
      %v2351 = vunpack.c.h.b16 %v2265
      %v2352 = vunpack.c.l.b16 %v2266
      %v2353 = vunpack.c.h.b16 %v2266
      %v2354 = vunpack.c.l.b16 %v2267
      %v2355 = vunpack.c.h.b16 %v2267
      %v2356 = vunpack.c.l.b16 %v2268
      %v2357 = vunpack.c.h.b16 %v2268
      %v2358 = vunpack.c.l.b16 %v2269
      %v2359 = vunpack.c.h.b16 %v2269
      %v2360 = vunpack.c.l.b16 %v2270
      %v2361 = vunpack.c.h.b16 %v2270
      %v2362 = vunpack.c.l.b16 %v2271
      %v2363 = vunpack.c.h.b16 %v2271
      %v2364 = vunpack.c.l.b16 %v2272
      %v2365 = vunpack.c.h.b16 %v2272
      %v2366 = vunpack.c.l.b16 %v2273
      %v2367 = vunpack.c.h.b16 %v2273
      %v2368 = vunpack.c.l.b16 %v2274
      %v2369 = vunpack.c.h.b16 %v2274
      %v2370 = vunpack.c.l.b16 %v2275
      %v2371 = vunpack.c.h.b16 %v2275
      %v2372 = vpack.c.b16 %v2312, %v2308
      %v2373 = vpack.c.b16 %v2313, %v2309
      %v2374 = vpack.c.b16 %v2314, %v2310
      %v2375 = vpack.c.b16 %v2315, %v2311
      %v2376 = vpack.c.b16 %v2320, %v2316
      %v2377 = vpack.c.b16 %v2321, %v2317
      %v2378 = vpack.c.b16 %v2322, %v2318
      %v2379 = vpack.c.b16 %v2323, %v2319
      %v2380 = vpack.c.b16 %v2328, %v2324
      %v2381 = vpack.c.b16 %v2329, %v2325
      %v2382 = vpack.c.b16 %v2330, %v2326
      %v2383 = vpack.c.b16 %v2331, %v2327
      %v2384 = vpack.c.b16 %v2336, %v2332
      %v2385 = vpack.c.b16 %v2337, %v2333
      %v2386 = vpack.c.b16 %v2338, %v2334
      %v2387 = vpack.c.b16 %v2339, %v2335
      %v2388 = vpack.c.b16 %v2344, %v2340
      %v2389 = vpack.c.b16 %v2345, %v2341
      %v2390 = vpack.c.b16 %v2346, %v2342
      %v2391 = vpack.c.b16 %v2347, %v2343
      %v2392 = vpack.c.b16 %v2352, %v2348
      %v2393 = vpack.c.b16 %v2353, %v2349
      %v2394 = vpack.c.b16 %v2354, %v2350
      %v2395 = vpack.c.b16 %v2355, %v2351
      %v2396 = vpack.c.b16 %v2360, %v2356
      %v2397 = vpack.c.b16 %v2361, %v2357
      %v2398 = vpack.c.b16 %v2362, %v2358
      %v2399 = vpack.c.b16 %v2363, %v2359
      %v2400 = vpack.c.b16 %v2368, %v2364
      %v2401 = vpack.c.b16 %v2369, %v2365
      %v2402 = vpack.c.b16 %v2370, %v2366
      %v2403 = vpack.c.b16 %v2371, %v2367
      %2436 = vmatprep.subr.bf16.mxu0 %v2373
      %2437 = vmatpush1.bf16.msra.mxu0 %v2372
      %2438 = vmatprep.subr.bf16.mxu0 %v2377
      %2439 = vmatpush1.bf16.msra.mxu0 %v2376
      %2440 = vmatprep.subr.bf16.mxu0 %v2381
      %2441 = vmatpush1.bf16.msra.mxu0 %v2380
      %2442 = vmatprep.subr.bf16.mxu0 %v2385
      %2443 = vmatpush1.bf16.msra.mxu0 %v2384
      %2444 = vmatprep.subr.bf16.mxu0 %v2389
      %2445 = vmatpush1.bf16.msra.mxu0 %v2388
      %2446 = vmatprep.subr.bf16.mxu0 %v2393
      %2447 = vmatpush1.bf16.msra.mxu0 %v2392
      %2448 = vmatprep.subr.bf16.mxu0 %v2397
      %2449 = vmatpush1.bf16.msra.mxu0 %v2396
      %2450 = vmatprep.subr.bf16.mxu0 %v2401
      %2451 = vmatpush1.bf16.msra.mxu0 %v2400
      %2452 = vmatprep.subr.bf16.mxu0 0
      %2453 = vmatpush1.bf16.msra.mxu0 0
      %2454 = vmatprep.subr.bf16.mxu0 0
      %2455 = vmatpush1.bf16.msra.mxu0 0
      %2456 = vmatprep.subr.bf16.mxu0 0
      %2457 = vmatpush1.bf16.msra.mxu0 0
      %2458 = vmatprep.subr.bf16.mxu0 0
      %2459 = vmatpush1.bf16.msra.mxu0 0
      %2460 = vmatprep.subr.bf16.mxu0 0
      %2461 = vmatpush1.bf16.msra.mxu0 0
      %2462 = vmatprep.subr.bf16.mxu0 0
      %2463 = vmatpush1.bf16.msra.mxu0 0
      %2464 = vmatprep.subr.bf16.mxu0 0
      %2465 = vmatpush1.bf16.msra.mxu0 0
      %2466 = vmatprep.subr.bf16.mxu0 0
      %2467 = vmatpush1.bf16.msra.mxu0 0
      %2468 = vmatprep.mubr.bf16.mxu0 0
      %2469 = vmatmul.mubr.bf16.gmra.mrb[0].mxu0 %v2241
      %v2470 = vpop.f32.mrb[0].mxu0
      %v2471 = vadd.f32 0.0, %v2470
      %v2472 = vpop.f32.mrb[0].mxu0
      %v2473 = vadd.f32 0.0, %v2472
      %v2474 = vpop.f32.mrb[0].mxu0
      %v2475 = vadd.f32 0.0, %v2474
      %v2476 = vpop.f32.mrb[0].mxu0
      %v2477 = vadd.f32 0.0, %v2476
      %2478 = vdwg.mxu0
      %2479 = vmatprep.subr.bf16.mxu0 %v2375
      %2480 = vmatpush1.bf16.msra.mxu0 %v2374
      %2481 = vmatprep.subr.bf16.mxu0 %v2379
      %2482 = vmatpush1.bf16.msra.mxu0 %v2378
      %2483 = vmatprep.subr.bf16.mxu0 %v2383
      %2484 = vmatpush1.bf16.msra.mxu0 %v2382
      %2485 = vmatprep.subr.bf16.mxu0 %v2387
      %2486 = vmatpush1.bf16.msra.mxu0 %v2386
      %2487 = vmatprep.subr.bf16.mxu0 %v2391
      %2488 = vmatpush1.bf16.msra.mxu0 %v2390
      %2489 = vmatprep.subr.bf16.mxu0 %v2395
      %2490 = vmatpush1.bf16.msra.mxu0 %v2394
      %2491 = vmatprep.subr.bf16.mxu0 %v2399
      %2492 = vmatpush1.bf16.msra.mxu0 %v2398
      %2493 = vmatprep.subr.bf16.mxu0 %v2403
      %2494 = vmatpush1.bf16.msra.mxu0 %v2402
      %2495 = vmatprep.subr.bf16.mxu0 0
      %2496 = vmatpush1.bf16.msra.mxu0 0
      %2497 = vmatprep.subr.bf16.mxu0 0
      %2498 = vmatpush1.bf16.msra.mxu0 0
      %2499 = vmatprep.subr.bf16.mxu0 0
      %2500 = vmatpush1.bf16.msra.mxu0 0
      %2501 = vmatprep.subr.bf16.mxu0 0
      %2502 = vmatpush1.bf16.msra.mxu0 0
      %2503 = vmatprep.subr.bf16.mxu0 0
      %2504 = vmatpush1.bf16.msra.mxu0 0
      %2505 = vmatprep.subr.bf16.mxu0 0
      %2506 = vmatpush1.bf16.msra.mxu0 0
      %2507 = vmatprep.subr.bf16.mxu0 0
      %2508 = vmatpush1.bf16.msra.mxu0 0
      %2509 = vmatprep.subr.bf16.mxu0 0
      %2510 = vmatpush1.bf16.msra.mxu0 0
      %2511 = vmatprep.mubr.bf16.mxu0 0
      %2512 = vmatmul.mubr.bf16.gmra.mrb[0].mxu0 %v2241
      %v2513 = vpop.f32.mrb[0].mxu0
      %v2514 = vadd.f32 0.0, %v2513
      %v2515 = vpop.f32.mrb[0].mxu0
      %v2516 = vadd.f32 0.0, %v2515
      %v2517 = vpop.f32.mrb[0].mxu0
      %v2518 = vadd.f32 0.0, %v2517
      %v2519 = vpop.f32.mrb[0].mxu0
      %v2520 = vadd.f32 0.0, %v2519
      %2521 = vdwg.mxu0
      %v2522 = vadd.f32 %v2233, %v2471
      %v2523 = vadd.f32 %v2234, %v2473
      %v2524 = vadd.f32 %v2235, %v2514
      %v2525 = vadd.f32 %v2236, %v2516
      %v2526 = vadd.f32 %v2237, %v2475
      %v2527 = vadd.f32 %v2238, %v2477
      %v2528 = vadd.f32 %v2239, %v2518
      %v2529 = vadd.f32 %v2240, %v2520
      %v2530 = vxor.u32 %v2522, 2147483648
      %v2531 = vxor.u32 %v2526, 2147483648
      %v2532 = vmul.f32 %v2530, 1.442695
      %v2533 = vpow.pop %v2532
      %v2534 = vmul.f32 %v2531, 1.442695
      %v2535 = vpow.pop %v2534
      %v2536 = vadd.f32 %v2533, 1.0
      %v2537 = vadd.f32 %v2535, 1.0
      %v2538 = vrcp.pop %v2536
      %v2539 = vmul.f32 1.0, %v2538
      %v2540 = vrcp.pop %v2537
      %v2541 = vmul.f32 1.0, %v2540
      %v2542 = vxor.u32 %v2523, 2147483648
      %v2543 = vxor.u32 %v2527, 2147483648
      %v2544 = vmul.f32 %v2542, 1.442695
      %v2545 = vpow.pop %v2544
      %v2546 = vmul.f32 %v2543, 1.442695
      %v2547 = vpow.pop %v2546
      %v2548 = vadd.f32 %v2545, 1.0
      %v2549 = vadd.f32 %v2547, 1.0
      %v2550 = vrcp.pop %v2548
      %v2551 = vmul.f32 1.0, %v2550
      %v2552 = vrcp.pop %v2549
      %v2553 = vmul.f32 1.0, %v2552
      %v2554 = vtanh.pop %v2524
      %v2555 = vtanh.pop %v2528
      %v2556 = vxor.u32 %v2525, 2147483648
      %v2557 = vxor.u32 %v2529, 2147483648
      %v2558 = vmul.f32 %v2556, 1.442695
      %v2559 = vpow.pop %v2558
      %v2560 = vmul.f32 %v2557, 1.442695
      %v2561 = vpow.pop %v2560
      %v2562 = vadd.f32 %v2559, 1.0
      %v2563 = vadd.f32 %v2561, 1.0
      %v2564 = vrcp.pop %v2562
      %v2565 = vmul.f32 1.0, %v2564
      %v2566 = vrcp.pop %v2563
      %v2567 = vmul.f32 1.0, %v2566
      %v2568 = vmul.f32 %v2551, %v2242
      %v2569 = vmul.f32 %v2553, %v2243
      %v2570 = vmul.f32 %v2539, %v2554
      %v2571 = vmul.f32 %v2541, %v2555
      %v2572 = vadd.f32 %v2568, %v2570
      %v2573 = vadd.f32 %v2569, %v2571
      %v2574 = vtanh.pop %v2572
      %v2575 = vtanh.pop %v2573
      %v2576 = vmul.f32 %v2565, %v2574
      %v2577 = vmul.f32 %v2567, %v2575
      %v2578 = vpack.c.bf16 %v2577, %v2576
      %2579 = vst [vmem:[#allocation4] sm:$0xff] %v2578
      %2580 = vst [vmem:[#allocation5] sm:$0xff] %v2572
      %2581 = vst [vmem:[#allocation5 + $0x8] sm:$0xff] %v2573
      %v2583 = vunpack.c.l.b16 %v2578
      %v2584 = vunpack.c.h.b16 %v2578
      %v2585 = vpack.c.b16 %v2583, %v2583
      %v2586 = vpack.c.b16 %v2584, %v2584
      %s2589 = scalar_lea.vmem %s354, 8
      %2590 = vst [vmem:[%s2589] sm:$0xf] %v2585
      %2591 = vst [vmem:[%s2589 + $0x4] sm:$0xf] %v2586
      %s2592 = scalar_lea.vmem %s314, 96
      %v2593 = vld [vmem:[%s2592] sm:$0xff]
      %v2594 = vld [vmem:[%s2592 + $0x8] sm:$0xff]
      %v2595 = vld [vmem:[%s2592 + $0x10] sm:$0xff]
      %v2596 = vld [vmem:[%s2592 + $0x18] sm:$0xff]
      %v2597 = vunpack.c.l.bf16 %v2593
      %v2598 = vunpack.c.h.bf16 %v2593
      %v2599 = vunpack.c.l.bf16 %v2594
      %v2600 = vunpack.c.h.bf16 %v2594
      %v2601 = vunpack.c.l.bf16 %v2595
      %v2602 = vunpack.c.h.bf16 %v2595
      %v2603 = vunpack.c.l.bf16 %v2596
      %v2604 = vunpack.c.h.bf16 %v2596
      %v2605 = vld [vmem:[#allocation2] sm:$0xff]
      %v2606 = vld [vmem:[#allocation3] sm:$0xff]
      %v2607 = vld [vmem:[#allocation3 + $0x8] sm:$0xff]
      %v2608 = vld [vmem:[%s2] sm:$0xff]
      %v2609 = vld [vmem:[%s2 + $0x8] sm:$0xff]
      %v2610 = vld [vmem:[%s2 + $0x10] sm:$0xff]
      %v2611 = vld [vmem:[%s2 + $0x18] sm:$0xff]
      %v2612 = vld [vmem:[%s2 + $0x20] sm:$0xff]
      %v2613 = vld [vmem:[%s2 + $0x28] sm:$0xff]
      %v2614 = vld [vmem:[%s2 + $0x30] sm:$0xff]
      %v2615 = vld [vmem:[%s2 + $0x38] sm:$0xff]
      %v2616 = vld [vmem:[%s2 + $0x40] sm:$0xff]
      %v2617 = vld [vmem:[%s2 + $0x48] sm:$0xff]
      %v2618 = vld [vmem:[%s2 + $0x50] sm:$0xff]
      %v2619 = vld [vmem:[%s2 + $0x58] sm:$0xff]
      %v2620 = vld [vmem:[%s2 + $0x60] sm:$0xff]
      %v2621 = vld [vmem:[%s2 + $0x68] sm:$0xff]
      %v2622 = vld [vmem:[%s2 + $0x70] sm:$0xff]
      %v2623 = vld [vmem:[%s2 + $0x78] sm:$0xff]
      %v2624 = vld [vmem:[%s2 + $0x80] sm:$0xff]
      %v2625 = vld [vmem:[%s2 + $0x88] sm:$0xff]
      %v2626 = vld [vmem:[%s2 + $0x90] sm:$0xff]
      %v2627 = vld [vmem:[%s2 + $0x98] sm:$0xff]
      %v2628 = vld [vmem:[%s2 + $0xa0] sm:$0xff]
      %v2629 = vld [vmem:[%s2 + $0xa8] sm:$0xff]
      %v2630 = vld [vmem:[%s2 + $0xb0] sm:$0xff]
      %v2631 = vld [vmem:[%s2 + $0xb8] sm:$0xff]
      %v2632 = vld [vmem:[%s2 + $0xc0] sm:$0xff]
      %v2633 = vld [vmem:[%s2 + $0xc8] sm:$0xff]
      %v2634 = vld [vmem:[%s2 + $0xd0] sm:$0xff]
      %v2635 = vld [vmem:[%s2 + $0xd8] sm:$0xff]
      %v2636 = vld [vmem:[%s2 + $0xe0] sm:$0xff]
      %v2637 = vld [vmem:[%s2 + $0xe8] sm:$0xff]
      %v2638 = vld [vmem:[%s2 + $0xf0] sm:$0xff]
      %v2639 = vld [vmem:[%s2 + $0xf8] sm:$0xff]
      %v2672 = vunpack.c.l.b16 %v2608
      %v2673 = vunpack.c.h.b16 %v2608
      %v2674 = vunpack.c.l.b16 %v2609
      %v2675 = vunpack.c.h.b16 %v2609
      %v2676 = vunpack.c.l.b16 %v2610
      %v2677 = vunpack.c.h.b16 %v2610
      %v2678 = vunpack.c.l.b16 %v2611
      %v2679 = vunpack.c.h.b16 %v2611
      %v2680 = vunpack.c.l.b16 %v2612
      %v2681 = vunpack.c.h.b16 %v2612
      %v2682 = vunpack.c.l.b16 %v2613
      %v2683 = vunpack.c.h.b16 %v2613
      %v2684 = vunpack.c.l.b16 %v2614
      %v2685 = vunpack.c.h.b16 %v2614
      %v2686 = vunpack.c.l.b16 %v2615
      %v2687 = vunpack.c.h.b16 %v2615
      %v2688 = vunpack.c.l.b16 %v2616
      %v2689 = vunpack.c.h.b16 %v2616
      %v2690 = vunpack.c.l.b16 %v2617
      %v2691 = vunpack.c.h.b16 %v2617
      %v2692 = vunpack.c.l.b16 %v2618
      %v2693 = vunpack.c.h.b16 %v2618
      %v2694 = vunpack.c.l.b16 %v2619
      %v2695 = vunpack.c.h.b16 %v2619
      %v2696 = vunpack.c.l.b16 %v2620
      %v2697 = vunpack.c.h.b16 %v2620
      %v2698 = vunpack.c.l.b16 %v2621
      %v2699 = vunpack.c.h.b16 %v2621
      %v2700 = vunpack.c.l.b16 %v2622
      %v2701 = vunpack.c.h.b16 %v2622
      %v2702 = vunpack.c.l.b16 %v2623
      %v2703 = vunpack.c.h.b16 %v2623
      %v2704 = vunpack.c.l.b16 %v2624
      %v2705 = vunpack.c.h.b16 %v2624
      %v2706 = vunpack.c.l.b16 %v2625
      %v2707 = vunpack.c.h.b16 %v2625
      %v2708 = vunpack.c.l.b16 %v2626
      %v2709 = vunpack.c.h.b16 %v2626
      %v2710 = vunpack.c.l.b16 %v2627
      %v2711 = vunpack.c.h.b16 %v2627
      %v2712 = vunpack.c.l.b16 %v2628
      %v2713 = vunpack.c.h.b16 %v2628
      %v2714 = vunpack.c.l.b16 %v2629
      %v2715 = vunpack.c.h.b16 %v2629
      %v2716 = vunpack.c.l.b16 %v2630
      %v2717 = vunpack.c.h.b16 %v2630
      %v2718 = vunpack.c.l.b16 %v2631
      %v2719 = vunpack.c.h.b16 %v2631
      %v2720 = vunpack.c.l.b16 %v2632
      %v2721 = vunpack.c.h.b16 %v2632
      %v2722 = vunpack.c.l.b16 %v2633
      %v2723 = vunpack.c.h.b16 %v2633
      %v2724 = vunpack.c.l.b16 %v2634
      %v2725 = vunpack.c.h.b16 %v2634
      %v2726 = vunpack.c.l.b16 %v2635
      %v2727 = vunpack.c.h.b16 %v2635
      %v2728 = vunpack.c.l.b16 %v2636
      %v2729 = vunpack.c.h.b16 %v2636
      %v2730 = vunpack.c.l.b16 %v2637
      %v2731 = vunpack.c.h.b16 %v2637
      %v2732 = vunpack.c.l.b16 %v2638
      %v2733 = vunpack.c.h.b16 %v2638
      %v2734 = vunpack.c.l.b16 %v2639
      %v2735 = vunpack.c.h.b16 %v2639
      %v2736 = vpack.c.b16 %v2676, %v2672
      %v2737 = vpack.c.b16 %v2677, %v2673
      %v2738 = vpack.c.b16 %v2678, %v2674
      %v2739 = vpack.c.b16 %v2679, %v2675
      %v2740 = vpack.c.b16 %v2684, %v2680
      %v2741 = vpack.c.b16 %v2685, %v2681
      %v2742 = vpack.c.b16 %v2686, %v2682
      %v2743 = vpack.c.b16 %v2687, %v2683
      %v2744 = vpack.c.b16 %v2692, %v2688
      %v2745 = vpack.c.b16 %v2693, %v2689
      %v2746 = vpack.c.b16 %v2694, %v2690
      %v2747 = vpack.c.b16 %v2695, %v2691
      %v2748 = vpack.c.b16 %v2700, %v2696
      %v2749 = vpack.c.b16 %v2701, %v2697
      %v2750 = vpack.c.b16 %v2702, %v2698
      %v2751 = vpack.c.b16 %v2703, %v2699
      %v2752 = vpack.c.b16 %v2708, %v2704
      %v2753 = vpack.c.b16 %v2709, %v2705
      %v2754 = vpack.c.b16 %v2710, %v2706
      %v2755 = vpack.c.b16 %v2711, %v2707
      %v2756 = vpack.c.b16 %v2716, %v2712
      %v2757 = vpack.c.b16 %v2717, %v2713
      %v2758 = vpack.c.b16 %v2718, %v2714
      %v2759 = vpack.c.b16 %v2719, %v2715
      %v2760 = vpack.c.b16 %v2724, %v2720
      %v2761 = vpack.c.b16 %v2725, %v2721
      %v2762 = vpack.c.b16 %v2726, %v2722
      %v2763 = vpack.c.b16 %v2727, %v2723
      %v2764 = vpack.c.b16 %v2732, %v2728
      %v2765 = vpack.c.b16 %v2733, %v2729
      %v2766 = vpack.c.b16 %v2734, %v2730
      %v2767 = vpack.c.b16 %v2735, %v2731
      %2800 = vmatprep.subr.bf16.mxu0 %v2737
      %2801 = vmatpush1.bf16.msra.mxu0 %v2736
      %2802 = vmatprep.subr.bf16.mxu0 %v2741
      %2803 = vmatpush1.bf16.msra.mxu0 %v2740
      %2804 = vmatprep.subr.bf16.mxu0 %v2745
      %2805 = vmatpush1.bf16.msra.mxu0 %v2744
      %2806 = vmatprep.subr.bf16.mxu0 %v2749
      %2807 = vmatpush1.bf16.msra.mxu0 %v2748
      %2808 = vmatprep.subr.bf16.mxu0 %v2753
      %2809 = vmatpush1.bf16.msra.mxu0 %v2752
      %2810 = vmatprep.subr.bf16.mxu0 %v2757
      %2811 = vmatpush1.bf16.msra.mxu0 %v2756
      %2812 = vmatprep.subr.bf16.mxu0 %v2761
      %2813 = vmatpush1.bf16.msra.mxu0 %v2760
      %2814 = vmatprep.subr.bf16.mxu0 %v2765
      %2815 = vmatpush1.bf16.msra.mxu0 %v2764
      %2816 = vmatprep.subr.bf16.mxu0 0
      %2817 = vmatpush1.bf16.msra.mxu0 0
      %2818 = vmatprep.subr.bf16.mxu0 0
      %2819 = vmatpush1.bf16.msra.mxu0 0
      %2820 = vmatprep.subr.bf16.mxu0 0
      %2821 = vmatpush1.bf16.msra.mxu0 0
      %2822 = vmatprep.subr.bf16.mxu0 0
      %2823 = vmatpush1.bf16.msra.mxu0 0
      %2824 = vmatprep.subr.bf16.mxu0 0
      %2825 = vmatpush1.bf16.msra.mxu0 0
      %2826 = vmatprep.subr.bf16.mxu0 0
      %2827 = vmatpush1.bf16.msra.mxu0 0
      %2828 = vmatprep.subr.bf16.mxu0 0
      %2829 = vmatpush1.bf16.msra.mxu0 0
      %2830 = vmatprep.subr.bf16.mxu0 0
      %2831 = vmatpush1.bf16.msra.mxu0 0
      %2832 = vmatprep.mubr.bf16.mxu0 0
      %2833 = vmatmul.mubr.bf16.gmra.mrb[0].mxu0 %v2605
      %v2834 = vpop.f32.mrb[0].mxu0
      %v2835 = vadd.f32 0.0, %v2834
      %v2836 = vpop.f32.mrb[0].mxu0
      %v2837 = vadd.f32 0.0, %v2836
      %v2838 = vpop.f32.mrb[0].mxu0
      %v2839 = vadd.f32 0.0, %v2838
      %v2840 = vpop.f32.mrb[0].mxu0
      %v2841 = vadd.f32 0.0, %v2840
      %2842 = vdwg.mxu0
      %2843 = vmatprep.subr.bf16.mxu0 %v2739
      %2844 = vmatpush1.bf16.msra.mxu0 %v2738
      %2845 = vmatprep.subr.bf16.mxu0 %v2743
      %2846 = vmatpush1.bf16.msra.mxu0 %v2742
      %2847 = vmatprep.subr.bf16.mxu0 %v2747
      %2848 = vmatpush1.bf16.msra.mxu0 %v2746
      %2849 = vmatprep.subr.bf16.mxu0 %v2751
      %2850 = vmatpush1.bf16.msra.mxu0 %v2750
      %2851 = vmatprep.subr.bf16.mxu0 %v2755
      %2852 = vmatpush1.bf16.msra.mxu0 %v2754
      %2853 = vmatprep.subr.bf16.mxu0 %v2759
      %2854 = vmatpush1.bf16.msra.mxu0 %v2758
      %2855 = vmatprep.subr.bf16.mxu0 %v2763
      %2856 = vmatpush1.bf16.msra.mxu0 %v2762
      %2857 = vmatprep.subr.bf16.mxu0 %v2767
      %2858 = vmatpush1.bf16.msra.mxu0 %v2766
      %2859 = vmatprep.subr.bf16.mxu0 0
      %2860 = vmatpush1.bf16.msra.mxu0 0
      %2861 = vmatprep.subr.bf16.mxu0 0
      %2862 = vmatpush1.bf16.msra.mxu0 0
      %2863 = vmatprep.subr.bf16.mxu0 0
      %2864 = vmatpush1.bf16.msra.mxu0 0
      %2865 = vmatprep.subr.bf16.mxu0 0
      %2866 = vmatpush1.bf16.msra.mxu0 0
      %2867 = vmatprep.subr.bf16.mxu0 0
      %2868 = vmatpush1.bf16.msra.mxu0 0
      %2869 = vmatprep.subr.bf16.mxu0 0
      %2870 = vmatpush1.bf16.msra.mxu0 0
      %2871 = vmatprep.subr.bf16.mxu0 0
      %2872 = vmatpush1.bf16.msra.mxu0 0
      %2873 = vmatprep.subr.bf16.mxu0 0
      %2874 = vmatpush1.bf16.msra.mxu0 0
      %2875 = vmatprep.mubr.bf16.mxu0 0
      %2876 = vmatmul.mubr.bf16.gmra.mrb[0].mxu0 %v2605
      %v2877 = vpop.f32.mrb[0].mxu0
      %v2878 = vadd.f32 0.0, %v2877
      %v2879 = vpop.f32.mrb[0].mxu0
      %v2880 = vadd.f32 0.0, %v2879
      %v2881 = vpop.f32.mrb[0].mxu0
      %v2882 = vadd.f32 0.0, %v2881
      %v2883 = vpop.f32.mrb[0].mxu0
      %v2884 = vadd.f32 0.0, %v2883
      %2885 = vdwg.mxu0
      %v2886 = vadd.f32 %v2597, %v2835
      %v2887 = vadd.f32 %v2598, %v2837
      %v2888 = vadd.f32 %v2599, %v2878
      %v2889 = vadd.f32 %v2600, %v2880
      %v2890 = vadd.f32 %v2601, %v2839
      %v2891 = vadd.f32 %v2602, %v2841
      %v2892 = vadd.f32 %v2603, %v2882
      %v2893 = vadd.f32 %v2604, %v2884
      %v2894 = vxor.u32 %v2886, 2147483648
      %v2895 = vxor.u32 %v2890, 2147483648
      %v2896 = vmul.f32 %v2894, 1.442695
      %v2897 = vpow.pop %v2896
      %v2898 = vmul.f32 %v2895, 1.442695
      %v2899 = vpow.pop %v2898
      %v2900 = vadd.f32 %v2897, 1.0
      %v2901 = vadd.f32 %v2899, 1.0
      %v2902 = vrcp.pop %v2900
      %v2903 = vmul.f32 1.0, %v2902
      %v2904 = vrcp.pop %v2901
      %v2905 = vmul.f32 1.0, %v2904
      %v2906 = vxor.u32 %v2887, 2147483648
      %v2907 = vxor.u32 %v2891, 2147483648
      %v2908 = vmul.f32 %v2906, 1.442695
      %v2909 = vpow.pop %v2908
      %v2910 = vmul.f32 %v2907, 1.442695
      %v2911 = vpow.pop %v2910
      %v2912 = vadd.f32 %v2909, 1.0
      %v2913 = vadd.f32 %v2911, 1.0
      %v2914 = vrcp.pop %v2912
      %v2915 = vmul.f32 1.0, %v2914
      %v2916 = vrcp.pop %v2913
      %v2917 = vmul.f32 1.0, %v2916
      %v2918 = vtanh.pop %v2888
      %v2919 = vtanh.pop %v2892
      %v2920 = vxor.u32 %v2889, 2147483648
      %v2921 = vxor.u32 %v2893, 2147483648
      %v2922 = vmul.f32 %v2920, 1.442695
      %v2923 = vpow.pop %v2922
      %v2924 = vmul.f32 %v2921, 1.442695
      %v2925 = vpow.pop %v2924
      %v2926 = vadd.f32 %v2923, 1.0
      %v2927 = vadd.f32 %v2925, 1.0
      %v2928 = vrcp.pop %v2926
      %v2929 = vmul.f32 1.0, %v2928
      %v2930 = vrcp.pop %v2927
      %v2931 = vmul.f32 1.0, %v2930
      %v2932 = vmul.f32 %v2915, %v2606
      %v2933 = vmul.f32 %v2917, %v2607
      %v2934 = vmul.f32 %v2903, %v2918
      %v2935 = vmul.f32 %v2905, %v2919
      %v2936 = vadd.f32 %v2932, %v2934
      %v2937 = vadd.f32 %v2933, %v2935
      %v2938 = vtanh.pop %v2936
      %v2939 = vtanh.pop %v2937
      %v2940 = vmul.f32 %v2929, %v2938
      %v2941 = vmul.f32 %v2931, %v2939
      %v2942 = vpack.c.bf16 %v2941, %v2940
      %2943 = vst [vmem:[#allocation2] sm:$0xff] %v2942
      %2944 = vst [vmem:[#allocation3] sm:$0xff] %v2936
      %2945 = vst [vmem:[#allocation3 + $0x8] sm:$0xff] %v2937
      %v2947 = vunpack.c.l.b16 %v2942
      %v2948 = vunpack.c.h.b16 %v2942
      %v2949 = vpack.c.b16 %v2947, %v2947
      %v2950 = vpack.c.b16 %v2948, %v2948
      %s2953 = scalar_lea.vmem %s341, 24
      %2954 = vst [vmem:[%s2953] sm:$0xf] %v2949
      %2955 = vst [vmem:[%s2953 + $0x4] sm:$0xf] %v2950
      %p2956 = scmp.lt.s32.totalorder %s370, 9
      %s2957 = scalar_select %p2956, 1, 0
      %s2958 = scvt.s32.f32 %s2957
      %v2959 = vld [vmem:[%s328] sm:$0xff]
      %v2960 = vld [vmem:[%s328 + $0x8] sm:$0xff]
      %v2961 = vld [vmem:[%s328 + $0x10] sm:$0xff]
      %v2962 = vld [vmem:[%s328 + $0x18] sm:$0xff]
      %v2963 = vunpack.c.l.bf16 %v2959
      %v2964 = vunpack.c.h.bf16 %v2959
      %v2965 = vunpack.c.l.bf16 %v2960
      %v2966 = vunpack.c.h.bf16 %v2960
      %v2967 = vunpack.c.l.bf16 %v2961
      %v2968 = vunpack.c.h.bf16 %v2961
      %v2969 = vunpack.c.l.bf16 %v2962
      %v2970 = vunpack.c.h.bf16 %v2962
      %v2971 = vstv %s2958
      %v2972 = vmul.f32 %v2963, %v2971
      %v2973 = vmul.f32 %v2964, %v2971
      %v2974 = vmul.f32 %v2965, %v2971
      %v2975 = vmul.f32 %v2966, %v2971
      %v2976 = vmul.f32 %v2967, %v2971
      %v2977 = vmul.f32 %v2968, %v2971
      %v2978 = vmul.f32 %v2969, %v2971
      %v2979 = vmul.f32 %v2970, %v2971
      %v2980 = vld [vmem:[#allocation4] sm:$0xff]
      %v2981 = vld [vmem:[#allocation5] sm:$0xff]
      %v2982 = vld [vmem:[#allocation5 + $0x8] sm:$0xff]
      %v2983 = vld [vmem:[%s3] sm:$0xff]
      %v2984 = vld [vmem:[%s3 + $0x8] sm:$0xff]
      %v2985 = vld [vmem:[%s3 + $0x10] sm:$0xff]
      %v2986 = vld [vmem:[%s3 + $0x18] sm:$0xff]
      %v2987 = vld [vmem:[%s3 + $0x20] sm:$0xff]
      %v2988 = vld [vmem:[%s3 + $0x28] sm:$0xff]
      %v2989 = vld [vmem:[%s3 + $0x30] sm:$0xff]
      %v2990 = vld [vmem:[%s3 + $0x38] sm:$0xff]
      %v2991 = vld [vmem:[%s3 + $0x40] sm:$0xff]
      %v2992 = vld [vmem:[%s3 + $0x48] sm:$0xff]
      %v2993 = vld [vmem:[%s3 + $0x50] sm:$0xff]
      %v2994 = vld [vmem:[%s3 + $0x58] sm:$0xff]
      %v2995 = vld [vmem:[%s3 + $0x60] sm:$0xff]
      %v2996 = vld [vmem:[%s3 + $0x68] sm:$0xff]
      %v2997 = vld [vmem:[%s3 + $0x70] sm:$0xff]
      %v2998 = vld [vmem:[%s3 + $0x78] sm:$0xff]
      %v2999 = vld [vmem:[%s3 + $0x80] sm:$0xff]
      %v3000 = vld [vmem:[%s3 + $0x88] sm:$0xff]
      %v3001 = vld [vmem:[%s3 + $0x90] sm:$0xff]
      %v3002 = vld [vmem:[%s3 + $0x98] sm:$0xff]
      %v3003 = vld [vmem:[%s3 + $0xa0] sm:$0xff]
      %v3004 = vld [vmem:[%s3 + $0xa8] sm:$0xff]
      %v3005 = vld [vmem:[%s3 + $0xb0] sm:$0xff]
      %v3006 = vld [vmem:[%s3 + $0xb8] sm:$0xff]
      %v3007 = vld [vmem:[%s3 + $0xc0] sm:$0xff]
      %v3008 = vld [vmem:[%s3 + $0xc8] sm:$0xff]
      %v3009 = vld [vmem:[%s3 + $0xd0] sm:$0xff]
      %v3010 = vld [vmem:[%s3 + $0xd8] sm:$0xff]
      %v3011 = vld [vmem:[%s3 + $0xe0] sm:$0xff]
      %v3012 = vld [vmem:[%s3 + $0xe8] sm:$0xff]
      %v3013 = vld [vmem:[%s3 + $0xf0] sm:$0xff]
      %v3014 = vld [vmem:[%s3 + $0xf8] sm:$0xff]
      %v3047 = vunpack.c.l.b16 %v2983
      %v3048 = vunpack.c.h.b16 %v2983
      %v3049 = vunpack.c.l.b16 %v2984
      %v3050 = vunpack.c.h.b16 %v2984
      %v3051 = vunpack.c.l.b16 %v2985
      %v3052 = vunpack.c.h.b16 %v2985
      %v3053 = vunpack.c.l.b16 %v2986
      %v3054 = vunpack.c.h.b16 %v2986
      %v3055 = vunpack.c.l.b16 %v2987
      %v3056 = vunpack.c.h.b16 %v2987
      %v3057 = vunpack.c.l.b16 %v2988
      %v3058 = vunpack.c.h.b16 %v2988
      %v3059 = vunpack.c.l.b16 %v2989
      %v3060 = vunpack.c.h.b16 %v2989
      %v3061 = vunpack.c.l.b16 %v2990
      %v3062 = vunpack.c.h.b16 %v2990
      %v3063 = vunpack.c.l.b16 %v2991
      %v3064 = vunpack.c.h.b16 %v2991
      %v3065 = vunpack.c.l.b16 %v2992
      %v3066 = vunpack.c.h.b16 %v2992
      %v3067 = vunpack.c.l.b16 %v2993
      %v3068 = vunpack.c.h.b16 %v2993
      %v3069 = vunpack.c.l.b16 %v2994
      %v3070 = vunpack.c.h.b16 %v2994
      %v3071 = vunpack.c.l.b16 %v2995
      %v3072 = vunpack.c.h.b16 %v2995
      %v3073 = vunpack.c.l.b16 %v2996
      %v3074 = vunpack.c.h.b16 %v2996
      %v3075 = vunpack.c.l.b16 %v2997
      %v3076 = vunpack.c.h.b16 %v2997
      %v3077 = vunpack.c.l.b16 %v2998
      %v3078 = vunpack.c.h.b16 %v2998
      %v3079 = vunpack.c.l.b16 %v2999
      %v3080 = vunpack.c.h.b16 %v2999
      %v3081 = vunpack.c.l.b16 %v3000
      %v3082 = vunpack.c.h.b16 %v3000
      %v3083 = vunpack.c.l.b16 %v3001
      %v3084 = vunpack.c.h.b16 %v3001
      %v3085 = vunpack.c.l.b16 %v3002
      %v3086 = vunpack.c.h.b16 %v3002
      %v3087 = vunpack.c.l.b16 %v3003
      %v3088 = vunpack.c.h.b16 %v3003
      %v3089 = vunpack.c.l.b16 %v3004
      %v3090 = vunpack.c.h.b16 %v3004
      %v3091 = vunpack.c.l.b16 %v3005
      %v3092 = vunpack.c.h.b16 %v3005
      %v3093 = vunpack.c.l.b16 %v3006
      %v3094 = vunpack.c.h.b16 %v3006
      %v3095 = vunpack.c.l.b16 %v3007
      %v3096 = vunpack.c.h.b16 %v3007
      %v3097 = vunpack.c.l.b16 %v3008
      %v3098 = vunpack.c.h.b16 %v3008
      %v3099 = vunpack.c.l.b16 %v3009
      %v3100 = vunpack.c.h.b16 %v3009
      %v3101 = vunpack.c.l.b16 %v3010
      %v3102 = vunpack.c.h.b16 %v3010
      %v3103 = vunpack.c.l.b16 %v3011
      %v3104 = vunpack.c.h.b16 %v3011
      %v3105 = vunpack.c.l.b16 %v3012
      %v3106 = vunpack.c.h.b16 %v3012
      %v3107 = vunpack.c.l.b16 %v3013
      %v3108 = vunpack.c.h.b16 %v3013
      %v3109 = vunpack.c.l.b16 %v3014
      %v3110 = vunpack.c.h.b16 %v3014
      %v3111 = vpack.c.b16 %v3051, %v3047
      %v3112 = vpack.c.b16 %v3052, %v3048
      %v3113 = vpack.c.b16 %v3053, %v3049
      %v3114 = vpack.c.b16 %v3054, %v3050
      %v3115 = vpack.c.b16 %v3059, %v3055
      %v3116 = vpack.c.b16 %v3060, %v3056
      %v3117 = vpack.c.b16 %v3061, %v3057
      %v3118 = vpack.c.b16 %v3062, %v3058
      %v3119 = vpack.c.b16 %v3067, %v3063
      %v3120 = vpack.c.b16 %v3068, %v3064
      %v3121 = vpack.c.b16 %v3069, %v3065
      %v3122 = vpack.c.b16 %v3070, %v3066
      %v3123 = vpack.c.b16 %v3075, %v3071
      %v3124 = vpack.c.b16 %v3076, %v3072
      %v3125 = vpack.c.b16 %v3077, %v3073
      %v3126 = vpack.c.b16 %v3078, %v3074
      %v3127 = vpack.c.b16 %v3083, %v3079
      %v3128 = vpack.c.b16 %v3084, %v3080
      %v3129 = vpack.c.b16 %v3085, %v3081
      %v3130 = vpack.c.b16 %v3086, %v3082
      %v3131 = vpack.c.b16 %v3091, %v3087
      %v3132 = vpack.c.b16 %v3092, %v3088
      %v3133 = vpack.c.b16 %v3093, %v3089
      %v3134 = vpack.c.b16 %v3094, %v3090
      %v3135 = vpack.c.b16 %v3099, %v3095
      %v3136 = vpack.c.b16 %v3100, %v3096
      %v3137 = vpack.c.b16 %v3101, %v3097
      %v3138 = vpack.c.b16 %v3102, %v3098
      %v3139 = vpack.c.b16 %v3107, %v3103
      %v3140 = vpack.c.b16 %v3108, %v3104
      %v3141 = vpack.c.b16 %v3109, %v3105
      %v3142 = vpack.c.b16 %v3110, %v3106
      %3175 = vmatprep.subr.bf16.mxu0 %v3112
      %3176 = vmatpush1.bf16.msra.mxu0 %v3111
      %3177 = vmatprep.subr.bf16.mxu0 %v3116
      %3178 = vmatpush1.bf16.msra.mxu0 %v3115
      %3179 = vmatprep.subr.bf16.mxu0 %v3120
      %3180 = vmatpush1.bf16.msra.mxu0 %v3119
      %3181 = vmatprep.subr.bf16.mxu0 %v3124
      %3182 = vmatpush1.bf16.msra.mxu0 %v3123
      %3183 = vmatprep.subr.bf16.mxu0 %v3128
      %3184 = vmatpush1.bf16.msra.mxu0 %v3127
      %3185 = vmatprep.subr.bf16.mxu0 %v3132
      %3186 = vmatpush1.bf16.msra.mxu0 %v3131
      %3187 = vmatprep.subr.bf16.mxu0 %v3136
      %3188 = vmatpush1.bf16.msra.mxu0 %v3135
      %3189 = vmatprep.subr.bf16.mxu0 %v3140
      %3190 = vmatpush1.bf16.msra.mxu0 %v3139
      %3191 = vmatprep.subr.bf16.mxu0 0
      %3192 = vmatpush1.bf16.msra.mxu0 0
      %3193 = vmatprep.subr.bf16.mxu0 0
      %3194 = vmatpush1.bf16.msra.mxu0 0
      %3195 = vmatprep.subr.bf16.mxu0 0
      %3196 = vmatpush1.bf16.msra.mxu0 0
      %3197 = vmatprep.subr.bf16.mxu0 0
      %3198 = vmatpush1.bf16.msra.mxu0 0
      %3199 = vmatprep.subr.bf16.mxu0 0
      %3200 = vmatpush1.bf16.msra.mxu0 0
      %3201 = vmatprep.subr.bf16.mxu0 0
      %3202 = vmatpush1.bf16.msra.mxu0 0
      %3203 = vmatprep.subr.bf16.mxu0 0
      %3204 = vmatpush1.bf16.msra.mxu0 0
      %3205 = vmatprep.subr.bf16.mxu0 0
      %3206 = vmatpush1.bf16.msra.mxu0 0
      %3207 = vmatprep.mubr.bf16.mxu0 0
      %3208 = vmatmul.mubr.bf16.gmra.mrb[0].mxu0 %v2980
      %v3209 = vpop.f32.mrb[0].mxu0
      %v3210 = vadd.f32 0.0, %v3209
      %v3211 = vpop.f32.mrb[0].mxu0
      %v3212 = vadd.f32 0.0, %v3211
      %v3213 = vpop.f32.mrb[0].mxu0
      %v3214 = vadd.f32 0.0, %v3213
      %v3215 = vpop.f32.mrb[0].mxu0
      %v3216 = vadd.f32 0.0, %v3215
      %3217 = vdwg.mxu0
      %3218 = vmatprep.subr.bf16.mxu0 %v3114
      %3219 = vmatpush1.bf16.msra.mxu0 %v3113
      %3220 = vmatprep.subr.bf16.mxu0 %v3118
      %3221 = vmatpush1.bf16.msra.mxu0 %v3117
      %3222 = vmatprep.subr.bf16.mxu0 %v3122
      %3223 = vmatpush1.bf16.msra.mxu0 %v3121
      %3224 = vmatprep.subr.bf16.mxu0 %v3126
      %3225 = vmatpush1.bf16.msra.mxu0 %v3125
      %3226 = vmatprep.subr.bf16.mxu0 %v3130
      %3227 = vmatpush1.bf16.msra.mxu0 %v3129
      %3228 = vmatprep.subr.bf16.mxu0 %v3134
      %3229 = vmatpush1.bf16.msra.mxu0 %v3133
      %3230 = vmatprep.subr.bf16.mxu0 %v3138
      %3231 = vmatpush1.bf16.msra.mxu0 %v3137
      %3232 = vmatprep.subr.bf16.mxu0 %v3142
      %3233 = vmatpush1.bf16.msra.mxu0 %v3141
      %3234 = vmatprep.subr.bf16.mxu0 0
      %3235 = vmatpush1.bf16.msra.mxu0 0
      %3236 = vmatprep.subr.bf16.mxu0 0
      %3237 = vmatpush1.bf16.msra.mxu0 0
      %3238 = vmatprep.subr.bf16.mxu0 0
      %3239 = vmatpush1.bf16.msra.mxu0 0
      %3240 = vmatprep.subr.bf16.mxu0 0
      %3241 = vmatpush1.bf16.msra.mxu0 0
      %3242 = vmatprep.subr.bf16.mxu0 0
      %3243 = vmatpush1.bf16.msra.mxu0 0
      %3244 = vmatprep.subr.bf16.mxu0 0
      %3245 = vmatpush1.bf16.msra.mxu0 0
      %3246 = vmatprep.subr.bf16.mxu0 0
      %3247 = vmatpush1.bf16.msra.mxu0 0
      %3248 = vmatprep.subr.bf16.mxu0 0
      %3249 = vmatpush1.bf16.msra.mxu0 0
      %3250 = vmatprep.mubr.bf16.mxu0 0
      %3251 = vmatmul.mubr.bf16.gmra.mrb[0].mxu0 %v2980
      %v3252 = vpop.f32.mrb[0].mxu0
      %v3253 = vadd.f32 0.0, %v3252
      %v3254 = vpop.f32.mrb[0].mxu0
      %v3255 = vadd.f32 0.0, %v3254
      %v3256 = vpop.f32.mrb[0].mxu0
      %v3257 = vadd.f32 0.0, %v3256
      %v3258 = vpop.f32.mrb[0].mxu0
      %v3259 = vadd.f32 0.0, %v3258
      %3260 = vdwg.mxu0
      %v3261 = vadd.f32 %v2972, %v3210
      %v3262 = vadd.f32 %v2973, %v3212
      %v3263 = vadd.f32 %v2974, %v3253
      %v3264 = vadd.f32 %v2975, %v3255
      %v3265 = vadd.f32 %v2976, %v3214
      %v3266 = vadd.f32 %v2977, %v3216
      %v3267 = vadd.f32 %v2978, %v3257
      %v3268 = vadd.f32 %v2979, %v3259
      %v3269 = vxor.u32 %v3261, 2147483648
      %v3270 = vxor.u32 %v3265, 2147483648
      %v3271 = vmul.f32 %v3269, 1.442695
      %v3272 = vpow.pop %v3271
      %v3273 = vmul.f32 %v3270, 1.442695
      %v3274 = vpow.pop %v3273
      %v3275 = vadd.f32 %v3272, 1.0
      %v3276 = vadd.f32 %v3274, 1.0
      %v3277 = vrcp.pop %v3275
      %v3278 = vmul.f32 1.0, %v3277
      %v3279 = vrcp.pop %v3276
      %v3280 = vmul.f32 1.0, %v3279
      %v3281 = vxor.u32 %v3262, 2147483648
      %v3282 = vxor.u32 %v3266, 2147483648
      %v3283 = vmul.f32 %v3281, 1.442695
      %v3284 = vpow.pop %v3283
      %v3285 = vmul.f32 %v3282, 1.442695
      %v3286 = vpow.pop %v3285
      %v3287 = vadd.f32 %v3284, 1.0
      %v3288 = vadd.f32 %v3286, 1.0
      %v3289 = vrcp.pop %v3287
      %v3290 = vmul.f32 1.0, %v3289
      %v3291 = vrcp.pop %v3288
      %v3292 = vmul.f32 1.0, %v3291
      %v3293 = vtanh.pop %v3263
      %v3294 = vtanh.pop %v3267
      %v3295 = vxor.u32 %v3264, 2147483648
      %v3296 = vxor.u32 %v3268, 2147483648
      %v3297 = vmul.f32 %v3295, 1.442695
      %v3298 = vpow.pop %v3297
      %v3299 = vmul.f32 %v3296, 1.442695
      %v3300 = vpow.pop %v3299
      %v3301 = vadd.f32 %v3298, 1.0
      %v3302 = vadd.f32 %v3300, 1.0
      %v3303 = vrcp.pop %v3301
      %v3304 = vmul.f32 1.0, %v3303
      %v3305 = vrcp.pop %v3302
      %v3306 = vmul.f32 1.0, %v3305
      %v3307 = vmul.f32 %v3290, %v2981
      %v3308 = vmul.f32 %v3292, %v2982
      %v3309 = vmul.f32 %v3278, %v3293
      %v3310 = vmul.f32 %v3280, %v3294
      %v3311 = vadd.f32 %v3307, %v3309
      %v3312 = vadd.f32 %v3308, %v3310
      %v3313 = vtanh.pop %v3311
      %v3314 = vtanh.pop %v3312
      %v3315 = vmul.f32 %v3304, %v3313
      %v3316 = vmul.f32 %v3306, %v3314
      %v3317 = vpack.c.bf16 %v3316, %v3315
      %3318 = vst [vmem:[#allocation4] sm:$0xff] %v3317
      %3319 = vst [vmem:[#allocation5] sm:$0xff] %v3311
      %3320 = vst [vmem:[#allocation5 + $0x8] sm:$0xff] %v3312
      %v3322 = vunpack.c.l.b16 %v3317
      %v3323 = vunpack.c.h.b16 %v3317
      %v3324 = vpack.c.b16 %v3322, %v3322
      %v3325 = vpack.c.b16 %v3323, %v3323
      %3328 = vst [vmem:[%s354] sm:$0xf] %v3324
      %3329 = vst [vmem:[%s354 + $0x4] sm:$0xf] %v3325
      %s3330 = smul.u32 4, %s22
      %s3331 = smul.u32 2, %s21
      %p3332 = scmp.lt.s32.totalorder %s3330, 11
      %s3333 = scalar_select %p3332, %s3330, 11
      %p3334 = scmp.lt.s32.totalorder %s3331, 1
      %s3335 = scalar_select %p3334, %s3331, 1
      %s3336 = smul.addr %s3333, 2
      %s3337 = sadd.s32 %s3335, %s3336
      %s3338 = smul.addr %s3337, 4
      %s3339 = scalar_lea.vmem %s4, %s3338
      %s3340 = ssub.s32 2, %s22
      %s3341 = smul.u32 4, %s3340
      %s3342 = smul.u32 2, %s21
      %p3343 = scmp.lt.s32.totalorder %s3341, 11
      %s3344 = scalar_select %p3343, %s3341, 11
      %p3345 = scmp.lt.s32.totalorder %s3342, 1
      %s3346 = scalar_select %p3345, %s3342, 1
      %s3347 = smul.addr %s3344, 2
      %s3348 = sadd.s32 %s3346, %s3347
      %s3349 = smul.addr %s3348, 4
      %s3350 = scalar_lea.vmem %s5, %s3349
      // Predicated region
      $region41: #{word_lstm_encoder_forward.5} parent=35 // pred_check
        %p3351 = pneg %p149
      $region42: #{word_lstm_encoder_forward.5} parent=35 // pred_check_branch
        %3353 = sbr.rel (%p3351) target = $region44
      $region43: #{word_lstm_encoder_forward.5} parent=35 // pred_region
        %s3354 = smul.u32 4, %s22
        %s3355 = smul.u32 2, %s21
      $region44: #{word_lstm_encoder_forward.5} parent=35 // pred_fallthru
        _
      // Predicated region
      $region45: #{word_lstm_encoder_forward.5} parent=35 // pred_check
        %p3356 = pneg %p179
      $region46: #{word_lstm_encoder_forward.5} parent=35 // pred_check_branch
        %3358 = sbr.rel (%p3356) target = $region48
      $region47: #{word_lstm_encoder_forward.5} parent=35 // pred_region
        %s3359 = ssub.s32 2, %s22
        %s3360 = smul.u32 4, %s3359
        %s3361 = smul.u32 2, %s21
      $region48: #{word_lstm_encoder_forward.5} parent=35 // pred_fallthru
        _
    $region36: #{word_lstm_encoder_forward.5} parent=5 // pred_fallthru
      _
    %p3362 = scmp.le.s32.totalorder 2, %s12
    // Predicated region
    $region49: #{word_lstm_encoder_forward.5} parent=5 // pred_check
      %p3363 = pneg %p3362
    $region50: #{word_lstm_encoder_forward.5} parent=5 // pred_check_branch
      %3365 = sbr.rel (%p3363) target = $region52
    $region51: #{word_lstm_encoder_forward.5} parent=5 // pred_region
      %s3366 = ssub.s32 %s12, 2
      // Predicated region
      $region53: #{word_lstm_encoder_forward.5} parent=51 // pred_check
        %p3367 = pneg %p155
      $region54: #{word_lstm_encoder_forward.5} parent=51 // pred_check_branch
        %3369 = sbr.rel (%p3367) target = $region56
      $region55: #{word_lstm_encoder_forward.5} parent=51 // pred_region
        %s3370 = smul.u32 4, %s24
        %s3371 = smul.u32 2, %s23
        %p3372 = scmp.lt.s32.totalorder %s3370, 11
        %s3373 = scalar_select %p3372, %s3370, 11
        %p3374 = scmp.lt.s32.totalorder %s3371, 1
        %s3375 = scalar_select %p3374, %s3371, 1
        %s3376 = smul.addr %s3373, 2
        %s3377 = sadd.s32 %s3375, %s3376
        %s3378 = smul.addr %s3377, 4
        %s3379 = scalar_lea.vmem %s4, %s3378
      $region56: #{word_lstm_encoder_forward.5} parent=51 // pred_fallthru
        _
      // Predicated region
      $region57: #{word_lstm_encoder_forward.5} parent=51 // pred_check
        %p3380 = pneg %p185
      $region58: #{word_lstm_encoder_forward.5} parent=51 // pred_check_branch
        %3382 = sbr.rel (%p3380) target = $region60
      $region59: #{word_lstm_encoder_forward.5} parent=51 // pred_region
        %s3383 = ssub.s32 2, %s24
        %s3384 = smul.u32 4, %s3383
        %s3385 = smul.u32 2, %s23
        %p3386 = scmp.lt.s32.totalorder %s3384, 11
        %s3387 = scalar_select %p3386, %s3384, 11
        %p3388 = scmp.lt.s32.totalorder %s3385, 1
        %s3389 = scalar_select %p3388, %s3385, 1
        %s3390 = smul.addr %s3387, 2
        %s3391 = sadd.s32 %s3389, %s3390
        %s3392 = smul.addr %s3391, 4
        %s3393 = scalar_lea.vmem %s5, %s3392
      $region60: #{word_lstm_encoder_forward.5} parent=51 // pred_fallthru
        _
    $region52: #{word_lstm_encoder_forward.5} parent=5 // pred_fallthru
      _
  $region6: #{word_lstm_encoder_forward.5} parent=0 // loop_footer
    %s16 = sadd.s32 1, %s12
  $region7: #{word_lstm_encoder_forward.5} parent=0 // loop_footer_branch
    %11 = sbr.rel target = $region3
  $region8: #{word_lstm_encoder_forward.5} parent=0 // loop_exit
    _

</llo_original>
